<compile_context>
chip_gen: v6e
topology: v6e:2x2x1
jax: 0.10.0
libtpu: 0.0.40
codegen_flags: <defaults>
</compile_context>

<pallas_src>
import functools
import numpy as np
import jax
import jax.numpy as jnp
from jax.experimental import pallas as pl
from jax.experimental.pallas import tpu as pltpu


def _rup(x, m):
    return ((x + m - 1) // m) * m


# ----------------------------------------------------------------------------
# Per-generation tuning knobs
# ----------------------------------------------------------------------------
def _tpu_generation():
    try:
        kind = jax.devices()[0].device_kind.lower()
    except Exception:
        return 0
    for g in (2, 3, 4, 5, 6, 7, 8):
        if f"v{g}" in kind:
            return g
    return 0


_GEN = _tpu_generation()
if _GEN in (5, 6):                      # 128 MiB physical VMEM, 1 TensorCore
    _VMEM_LIMIT = 96 * 1024 * 1024
    _A_BYTES = 12 * 1024 * 1024         # A-block (bf16) budget per tile
    LIN_TN = 32768                      # column tile of the wide hypernet linear
    _SPLIT_M = False
else:                                   # v7x (64 MiB VMEM, 2 TCs) / unknown -> safe
    _VMEM_LIMIT = 48 * 1024 * 1024
    _A_BYTES = 6 * 1024 * 1024
    LIN_TN = 16384
    _SPLIT_M = True                     # >=2 M tiles so both TensorCores get work


# ----------------------------------------------------------------------------
# Pallas kernel: out = A @ W + bias, optional fused PReLU(slope=0.25)
# ----------------------------------------------------------------------------
def _mm_kernel(a_ref, w_ref, b_ref, o_ref, *, act):
    acc = jnp.dot(a_ref[...], w_ref[...], preferred_element_type=jnp.float32)
    acc = acc + b_ref[...]
    if act:
        acc = jnp.where(acc >= 0.0, acc, 0.25 * acc)
    o_ref[...] = acc.astype(o_ref.dtype)


@functools.partial(jax.jit, static_argnames=("act", "tn", "out_dtype", "unpad"))
def grouped_matmul(A, W, bias, *, act, tn=None, out_dtype=jnp.bfloat16, unpad=True):
    """A:(G,M,K)  W:(G,K,N)  bias:(G,1,N)  ->  (G,M,N) in out_dtype.

    Grouped (per-G weights) matmul on the MXU with fused bias + PReLU(0.25).
    A/W stream as bf16, accumulation is f32, the store casts to out_dtype.
    With unpad=False the padded (G, Mp, Np) block output is returned so the
    consumer can slice lazily (no extra unpad copy)."""
    G, M, K = A.shape
    Gw, Kw, N = W.shape
    assert G == Gw and K == Kw and bias.shape == (G, 1, N)

    Kp = _rup(K, 128)
    Mp = _rup(M, 16)
    Np = _rup(N, 128)
    if tn is None:
        tn = min(Np, 512)
    Np = _rup(Np, tn)
    # keep the A block comfortably inside VMEM (bf16 bytes)
    tm_cap = max(16, min(2048, (_A_BYTES // (2 * Kp)) // 16 * 16))
    if Mp <= tm_cap:
        if _SPLIT_M and Mp >= 32 and Mp % 32 == 0:
            tm = Mp // 2          # two M tiles -> both v7x TensorCores busy
        else:
            tm = Mp
    else:
        tm = tm_cap
        Mp = _rup(Mp, tm)

    A = A.astype(jnp.bfloat16)
    W = W.astype(jnp.bfloat16)
    bias = bias.astype(jnp.float32)
    if (Mp, Kp) != (M, K):
        A = jnp.pad(A, ((0, 0), (0, Mp - M), (0, Kp - K)))
    if (Kp, Np) != (K, N):
        W = jnp.pad(W, ((0, 0), (0, Kp - K), (0, Np - N)))
    if Np != N:
        bias = jnp.pad(bias, ((0, 0), (0, 0), (0, Np - N)))

    grid = (G, Mp // tm, Np // tn)
    out = pl.pallas_call(
        functools.partial(_mm_kernel, act=act),
        out_shape=jax.ShapeDtypeStruct((G, Mp, Np), out_dtype),
        grid_spec=pltpu.PrefetchScalarGridSpec(
            num_scalar_prefetch=0,
            grid=grid,
            in_specs=[
                pl.BlockSpec((None, tm, Kp), lambda g, i, j: (g, i, 0)),
                pl.BlockSpec((None, Kp, tn), lambda g, i, j: (g, 0, j)),
                pl.BlockSpec((None, 1, tn), lambda g, i, j: (g, 0, j)),
            ],
            out_specs=pl.BlockSpec((None, tm, tn), lambda g, i, j: (g, i, j)),
        ),
        compiler_params=pltpu.CompilerParams(
            dimension_semantics=("parallel", "parallel", "parallel"),
            vmem_limit_bytes=_VMEM_LIMIT,
        ),
    )(A, W, bias)
    if unpad:
        return out[:, :M, :N]
    return out


# ----------------------------------------------------------------------------
# Conv layers built on the Pallas matmul (channels-last im2col is plain-JAX glue)
# ----------------------------------------------------------------------------
def _im2col3d(x, k, stride, padding):
    """x:(B,Z,Y,X,C) channels-last (bf16) -> (B, P, k^3*C), (Zo,Yo,Xo)."""
    # TODO(synk): full im2col-in-kernel fusion (halo BlockSpec + tap reduction
    # axis) would remove this HBM-materialized patch tensor entirely; here we
    # at least emit it in bf16 so the blowup is half of the previous f32 form.
    B, Z, Y, X, C = x.shape
    Zo = (Z + 2 * padding - k) // stride + 1
    Yo = (Y + 2 * padding - k) // stride + 1
    Xo = (X + 2 * padding - k) // stride + 1
    xp = jnp.pad(x, ((0, 0), (padding, padding), (padding, padding),
                     (padding, padding), (0, 0)))
    cols = []
    for dz in range(k):
        for dy in range(k):
            for dx in range(k):
                cols.append(xp[:, dz:dz + stride * Zo:stride,
                                  dy:dy + stride * Yo:stride,
                                  dx:dx + stride * Xo:stride, :])
    A = jnp.stack(cols, axis=4).reshape(B, Zo * Yo * Xo, k * k * k * C)
    return A, (Zo, Yo, Xo)


@functools.partial(jax.jit, static_argnames=("k", "stride", "padding", "act"))
def hyper_conv3d(x, Wmat, bvec, *, k, stride, padding, act=True):
    """Per-sample (hyper-generated) Conv3d + PReLU.
    x:(B,Z,Y,X,Cin), Wmat:(B,k^3*Cin,Cout), bvec:(B,1,Cout)."""
    B = x.shape[0]
    x = x.astype(jnp.bfloat16)
    A, (Zo, Yo, Xo) = _im2col3d(x, k, stride, padding)
    out = grouped_matmul(A, Wmat, bvec, act=act, out_dtype=jnp.bfloat16)
    return out.reshape(B, Zo, Yo, Xo, Wmat.shape[-1])


@functools.partial(jax.jit, static_argnames=("k", "stride", "padding", "act"))
def shared_conv3d(x, Wmat, bvec, *, k, stride, padding, act=True):
    """Shared-weight Conv3d (+PReLU), batched over B in the matmul M dimension."""
    B = x.shape[0]
    x = x.astype(jnp.bfloat16)
    A, (Zo, Yo, Xo) = _im2col3d(x, k, stride, padding)
    P, K = A.shape[1], A.shape[2]
    out = grouped_matmul(A.reshape(1, B * P, K), Wmat[None], bvec[None],
                         act=act, out_dtype=jnp.bfloat16)
    return out[0].reshape(B, Zo, Yo, Xo, Wmat.shape[-1])


_DECONV_TAPS = ((3, 1), (2, 0))   # taps[output parity][im2col offset] for k=4,s=2,p=1


def make_deconv_subkernels(w_t):
    """PyTorch ConvTranspose3d weight (Cin,Cout,4,4,4) -> 8 stride-1 sub-kernels,
    one per output parity, each as an (8*Cin, Cout) matmul matrix."""
    Cin, Cout = w_t.shape[0], w_t.shape[1]
    mats = []
    for pz in (0, 1):
        wz = jnp.take(w_t, jnp.array(_DECONV_TAPS[pz]), axis=2)
        for py in (0, 1):
            wy = jnp.take(wz, jnp.array(_DECONV_TAPS[py]), axis=3)
            for px in (0, 1):
                wx = jnp.take(wy, jnp.array(_DECONV_TAPS[px]), axis=4)   # (Cin,Cout,2,2,2)
                mats.append(wx.transpose(2, 3, 4, 0, 1).reshape(8 * Cin, Cout))
    return jnp.stack(mats, axis=0)                                       # (8, 8*Cin, Cout)


# combined-form mapping for k=4,s=2,p=1: (k3 im2col tap t, output parity p) -> kernel tap
_AXIS_MAP = {(0, 0): 3, (1, 0): 1, (1, 1): 2, (2, 1): 0}


def make_deconv_combined(w_t):
    """ConvTranspose3d weight (Cin,Cout,4,4,4) -> single (27*Cin, 8*Cout) matrix
    driven by a k=3,s=1,p=1 im2col, with all 8 output parities packed into N."""
    Cin, Cout = w_t.shape[0], w_t.shape[1]
    Wc = jnp.zeros((3, 3, 3, Cin, 2, 2, 2, Cout), w_t.dtype)
    for (tz, pz), kz in _AXIS_MAP.items():
        for (ty, py), ky in _AXIS_MAP.items():
            for (tx, px), kx in _AXIS_MAP.items():
                Wc = Wc.at[tz, ty, tx, :, pz, py, px, :].set(w_t[:, :, kz, ky, kx])
    return Wc.reshape(27 * Cin, 8 * Cout)


@jax.jit
def shared_deconv3d(x, Wsub, bvec):
    """ConvTranspose3d k=4,s=2,p=1 via 8-parity sub-kernel decomposition
    (no zero-dilated input => 8x fewer MXU FLOPs).  x:(B,Z,Y,X,Cin), bf16 out."""
    B, Z, Y, X, Cin = x.shape
    Cout = Wsub.shape[-1]
    x = x.astype(jnp.bfloat16)
    xp = jnp.pad(x, ((0, 0), (1, 1), (1, 1), (1, 1), (0, 0)))
    groups = []
    for pz in (0, 1):
        for py in (0, 1):
            for px in (0, 1):
                cols = []
                for dz in (0, 1):
                    for dy in (0, 1):
                        for dx in (0, 1):
                            cols.append(xp[:, dz + pz:dz + pz + Z,
                                              dy + py:dy + py + Y,
                                              dx + px:dx + px + X, :])
                groups.append(jnp.stack(cols, axis=4).reshape(B * Z * Y * X, 8 * Cin))
    A = jnp.stack(groups, axis=0)                                   # (8, B*P, 8*Cin)
    bias = jnp.broadcast_to(bvec.reshape(1, 1, Cout), (8, 1, Cout))
    out = grouped_matmul(A, Wsub, bias, act=False, out_dtype=jnp.bfloat16)
    out = out.reshape(2, 2, 2, B, Z, Y, X, Cout)
    out = out.transpose(3, 4, 0, 5, 1, 6, 2, 7).reshape(B, 2 * Z, 2 * Y, 2 * X, Cout)
    return out


@jax.jit
def shared_deconv3d_combined(x, Wc, bvec):
    """Final ConvTranspose3d (small Cout) as ONE k=3 im2col matmul with all 8
    output parities packed into the N dimension (56 valid of 128 lanes instead
    of 7 valid of 1024).  f32 output (network output)."""
    B, Z, Y, X, Cin = x.shape
    Cout = bvec.shape[0]
    x = x.astype(jnp.bfloat16)
    A, _ = _im2col3d(x, 3, 1, 1)                                    # (B, P, 27*Cin)
    P = Z * Y * X
    bias = jnp.tile(bvec, (8,)).reshape(1, 1, 8 * Cout)
    out = grouped_matmul(A.reshape(1, B * P, 27 * Cin), Wc[None], bias,
                         act=False, out_dtype=jnp.float32)          # (1, B*P, 8*Cout)
    out = out[0].reshape(B, Z, Y, X, 2, 2, 2, Cout)
    out = out.transpose(0, 1, 4, 2, 5, 3, 6, 7).reshape(B, 2 * Z, 2 * Y, 2 * X, Cout)
    return out


# ----------------------------------------------------------------------------
# Parameter construction (deterministic, fan-in scaled uniform)
# ----------------------------------------------------------------------------
class KeyGen:
    def __init__(self, key):
        self.key = key

    def __call__(self):
        self.key, k = jax.random.split(self.key)
        return k


def _uniform(key, shape, scale):
    return jax.random.uniform(key, shape, jnp.float32, -scale, scale)


def _linear_params(kg, fan_in, fan_out):
    a = 1.0 / np.sqrt(fan_in)
    return _uniform(kg(), (fan_in, fan_out), a), _uniform(kg(), (fan_out,), a)


def _hyper_col_perm(layer_specs):
    """Column permutation: reference (cout,cin,kz,ky,kx)+bias flat layout ->
    matmul-ready (kz,ky,kx,cin,cout)+bias blocks per layer (offline, one-time)."""
    perm = []
    off = 0
    for (cout, cin, k) in layer_specs:
        wsz = cout * cin * k ** 3
        idx = np.arange(wsz, dtype=np.int32).reshape(cout, cin, k, k, k)
        perm.append(off + idx.transpose(2, 3, 4, 1, 0).reshape(-1))
        off += wsz
        perm.append(off + np.arange(cout, dtype=np.int32))
        off += cout
    return np.concatenate(perm)


def make_hypernet(kg, input_dim, latent_dim, layer_specs):
    """HyperNetwork params.  The big generated-weight linear is stored pre-padded
    (K -> mult of 128, N -> mult of LIN_TN), column-permuted into per-layer
    matmul layout, and cast to bf16, so the Pallas matmul streams it with zero
    runtime re-layout and its output needs no transposes."""
    total = sum(co * ci * k ** 3 + co for (co, ci, k) in layer_specs)
    p = {"latent_dim": latent_dim, "total": total, "lin_tn": LIN_TN}
    p["mlp_w1"], p["mlp_b1"] = _linear_params(kg, input_dim, 16)
    p["mlp_w2"], p["mlp_b2"] = _linear_params(kg, 16, 32)
    p["mlp_w3"], p["mlp_b3"] = _linear_params(kg, 32, latent_dim)
    p["cnn_w1"] = _uniform(kg(), (16, 1, 3), 1.0 / np.sqrt(3))
    p["cnn_b1"] = _uniform(kg(), (16,), 1.0 / np.sqrt(3))
    p["cnn_w2"] = _uniform(kg(), (32, 16, 3), 1.0 / np.sqrt(48))
    p["cnn_b2"] = _uniform(kg(), (32,), 1.0 / np.sqrt(48))
    kin = 32 * latent_dim
    kp = _rup(kin, 128)
    npad = _rup(total, LIN_TN)
    a = 1e-2 / np.sqrt(kin)            # keeps hyper-generated conv weights tame
    lin_w = _uniform(kg(), (kin, total), a)
    lin_b = _uniform(kg(), (total,), a)
    # one-time offline column permutation -> per-layer (k^3*cin, cout)+bias blocks
    perm = jnp.asarray(_hyper_col_perm(layer_specs), dtype=jnp.int32)
    lin_w = jnp.take(lin_w, perm, axis=1)
    lin_b = lin_b[perm]
    p["lin_k"] = kp
    p["lin_w"] = (jnp.zeros((1, kp, npad), jnp.bfloat16)
                  .at[0, :kin, :total].set(lin_w.astype(jnp.bfloat16)))
    p["lin_b"] = jnp.zeros((1, 1, npad), jnp.float32).at[0, 0, :total].set(lin_b)
    return p


def make_convblock(kg, in_planes, c, input_dim=3):
    hyper_specs = ((c // 2, in_planes, 4), (c, c // 2, 4),
                   (c, c, 3), (c, c, 3), (c, c, 3))
    cb = {"c": c, "in_planes": in_planes, "hyper_specs": hyper_specs}
    cb["hyper"] = make_hypernet(kg, input_dim, input_dim, hyper_specs)

    def conv_mat(cout, cin, k):
        a = 1.0 / np.sqrt(cin * k ** 3)
        w = _uniform(kg(), (cout, cin, k, k, k), a)
        b = _uniform(kg(), (cout,), a)
        wm = w.transpose(2, 3, 4, 1, 0).reshape(k ** 3 * cin, cout)
        return wm.astype(jnp.bfloat16), b.reshape(1, cout)

    def deconv_mat(cin, cout, k):
        a = 1.0 / np.sqrt(cin * k ** 3)
        w = _uniform(kg(), (cin, cout, k, k, k), a)
        b = _uniform(kg(), (cout,), a)
        return make_deconv_subkernels(w).astype(jnp.bfloat16), b

    def deconv_combined_mat(cin, cout, k):
        a = 1.0 / np.sqrt(cin * k ** 3)
        w = _uniform(kg(), (cin, cout, k, k, k), a)
        b = _uniform(kg(), (cout,), a)
        return make_deconv_combined(w).astype(jnp.bfloat16), b

    for i in range(3, 10):
        cb[f"cb{i}_w"], cb[f"cb{i}_b"] = conv_mat(c, c, 3)
    cb["dc0_w"], cb["dc0_b"] = deconv_mat(c, c, 4)
    cb["dc1_w"], cb["dc1_b"] = deconv_mat(c, c // 2, 4)
    cb["dc2_w"], cb["dc2_b"] = deconv_combined_mat(c // 2, 7, 4)
    return cb


# ----------------------------------------------------------------------------
# Forward passes
# ----------------------------------------------------------------------------
def _prelu(x):
    return jnp.where(x >= 0.0, x, 0.25 * x)


def _conv1d(x, w, b):
    # x:(B,Cin,L), w:(Cout,Cin,3), stride 1, padding 1 (tiny -> plain jnp)
    L = x.shape[-1]
    xp = jnp.pad(x, ((0, 0), (0, 0), (1, 1)))
    pat = jnp.stack([xp[:, :, d:d + L] for d in range(3)], axis=2)   # (B,Cin,3,L)
    return jnp.einsum("bctl,oct->bol", pat, w) + b[None, :, None]


def hypernet_forward(hp, params):
    """Hyper-network for the WHOLE batch at once: tiny MLP/Conv1d in plain jnp,
    the generated-weight linear as one Pallas bf16 matmul.  Returns the PADDED
    (Mp, Np) bf16 output (rows 0..B-1 / cols 0..total-1 valid) so the consumer
    can slice lazily — no unpad copy and no runtime transpose (columns were
    pre-permuted into matmul layout at construction)."""
    h = _prelu(params @ hp["mlp_w1"] + hp["mlp_b1"])
    # TODO(synk): Dropout(0.1) in the hypernet MLP treated as identity (inference).
    h = _prelu(h @ hp["mlp_w2"] + hp["mlp_b2"])
    h = _prelu(h @ hp["mlp_w3"] + hp["mlp_b3"])                       # (B, latent)
    z = _prelu(_conv1d(h[:, None, :], hp["cnn_w1"], hp["cnn_b1"]))
    z = _prelu(_conv1d(z, hp["cnn_w2"], hp["cnn_b2"]))                # (B, 32, latent)
    flat = z.reshape(z.shape[0], -1)                                  # channel-major
    flat = jnp.pad(flat, ((0, 0), (0, hp["lin_k"] - flat.shape[1])))
    out = grouped_matmul(flat[None], hp["lin_w"], hp["lin_b"],
                         act=False, tn=hp["lin_tn"],
                         out_dtype=jnp.bfloat16, unpad=False)
    return out[0]                                                     # (Mp, Np) bf16


def convblock_forward(cb, x, flow, scale, params):
    # use_deconv=True => scale == 1, so the F.interpolate paths are identities.
    assert scale == 1
    if flow is not None:
        x = jnp.concatenate([x, flow], axis=1)
    B = x.shape[0]
    wfull = hypernet_forward(cb["hyper"], params)         # padded (Mp, Np) bf16

    # per-layer slices are pure reshapes (columns are pre-permuted offline)
    hyper_w = []
    off = 0
    for (cout, cin, k) in cb["hyper_specs"]:
        wsz = cout * cin * k ** 3
        wm = wfull[:B, off:off + wsz].reshape(B, k ** 3 * cin, cout)
        off += wsz
        bvec = wfull[:B, off:off + cout].reshape(B, 1, cout)
        off += cout
        hyper_w.append((wm, bvec))

    h = x.transpose(0, 2, 3, 4, 1)                                    # channels-last
    (w0, b0), (w1, b1), (w2, b2), (w3, b3), (w4, b4) = hyper_w
    h = hyper_conv3d(h, w0, b0, k=4, stride=2, padding=2)
    h = hyper_conv3d(h, w1, b1, k=4, stride=2, padding=2)
    h = hyper_conv3d(h, w2, b2, k=3, stride=1, padding=1)
    h = hyper_conv3d(h, w3, b3, k=3, stride=1, padding=1)
    h = hyper_conv3d(h, w4, b4, k=3, stride=1, padding=1)
    h = shared_conv3d(h, cb["cb3_w"], cb["cb3_b"], k=3, stride=2, padding=1)
    h = shared_conv3d(h, cb["cb4_w"], cb["cb4_b"], k=3, stride=1, padding=1)
    h = shared_conv3d(h, cb["cb5_w"], cb["cb5_b"], k=3, stride=1, padding=1)
    h = shared_conv3d(h, cb["cb6_w"], cb["cb6_b"], k=3, stride=1, padding=1)
    h = shared_deconv3d(h, cb["dc0_w"], cb["dc0_b"])
    h = shared_conv3d(h, cb["cb7_w"], cb["cb7_b"], k=3, stride=1, padding=1)
    h = shared_conv3d(h, cb["cb8_w"], cb["cb8_b"], k=3, stride=1, padding=1)
    h = shared_conv3d(h, cb["cb9_w"], cb["cb9_b"], k=3, stride=1, padding=1)
    # reference: convblock_out (a self-slice of x_i) + x_i  ==  2 * x_i
    h = h + h
    h = shared_deconv3d(h, cb["dc1_w"], cb["dc1_b"])
    h = shared_deconv3d_combined(h, cb["dc2_w"], cb["dc2_b"])         # f32 output
    out = h.transpose(0, 4, 1, 2, 3)                                  # back to NCDHW
    return out[:, :6], out[:, 6:7]


@jax.jit
def warp(img, flow):
    # TODO(synk): `warp` is not defined in the provided source; implemented as a
    # standard trilinear backward warp (voxel displacement, border clamp), flow
    # channels ordered (dD, dH, dW).  Gather has no clean Pallas equivalent.
    B, C, D, H, W = img.shape
    zz, yy, xx = jnp.meshgrid(jnp.arange(D, dtype=jnp.float32),
                              jnp.arange(H, dtype=jnp.float32),
                              jnp.arange(W, dtype=jnp.float32), indexing="ij")

    def warp_one(imb, flb):
        zf = jnp.clip(zz + flb[0], 0.0, D - 1.0)
        yf = jnp.clip(yy + flb[1], 0.0, H - 1.0)
        xf = jnp.clip(xx + flb[2], 0.0, W - 1.0)
        z0, y0, x0 = jnp.floor(zf), jnp.floor(yf), jnp.floor(xf)
        z1 = jnp.minimum(z0 + 1.0, D - 1.0)
        y1 = jnp.minimum(y0 + 1.0, H - 1.0)
        x1 = jnp.minimum(x0 + 1.0, W - 1.0)
        wz, wy, wx = zf - z0, yf - y0, xf - x0
        flat = imb.reshape(C, -1)

        def gather(z, y, x):
            idx = (z.astype(jnp.int32) * (H * W) + y.astype(jnp.int32) * W
                   + x.astype(jnp.int32)).reshape(-1)
            return jnp.take(flat, idx, axis=1).reshape(C, D, H, W)

        v000, v001 = gather(z0, y0, x0), gather(z0, y0, x1)
        v010, v011 = gather(z0, y1, x0), gather(z0, y1, x1)
        v100, v101 = gather(z1, y0, x0), gather(z1, y0, x1)
        v110, v111 = gather(z1, y1, x0), gather(z1, y1, x1)
        c00 = v000 * (1 - wx) + v001 * wx
        c01 = v010 * (1 - wx) + v011 * wx
        c10 = v100 * (1 - wx) + v101 * wx
        c11 = v110 * (1 - wx) + v111 * wx
        c0 = c00 * (1 - wy) + c01 * wy
        c1 = c10 * (1 - wy) + c11 * wy
        return c0 * (1 - wz) + c1 * wz

    return jax.vmap(warp_one)(img, flow)


def hyperflint_forward(net, x, params):
    img0, img1 = x[:, :1], x[:, 1:2]
    gt, t_mask = x[:, 2:3], x[:, 3:4]
    flow_list, mask_list, merged = [], [], []
    warped_img0, warped_img1 = img0, img1
    flow, mask = None, None
    stu = [net["block0"], net["block1"]]
    scale = [1, 1]                                    # use_deconv=True
    for i in range(2):
        if flow is not None:
            d2 = min(img0.shape[2], warped_img0.shape[2])
            d3 = min(img0.shape[3], warped_img0.shape[3])
            d4 = min(img0.shape[4], warped_img0.shape[4])
            img0 = img0[:, :, :d2, :d3, :d4]
            img1 = img1[:, :, :d2, :d3, :d4]
            warped_img0 = warped_img0[:, :, :d2, :d3, :d4]
            warped_img1 = warped_img1[:, :, :d2, :d3, :d4]
            mask = mask[:, :, :d2, :d3, :d4]
            flow = flow[:, :, :d2, :d3, :d4]
            inp = jnp.concatenate([img0, img1, t_mask, warped_img0, warped_img1, mask], 1)
            flow_d, mask_d = convblock_forward(stu[i], inp, flow, scale[i], params)
            flow_d = flow_d[:, :, :img0.shape[2], :img0.shape[3], :img0.shape[4]]
            mask_d = mask_d[:, :, :img0.shape[2], :img0.shape[3], :img0.shape[4]]
            flow = flow + flow_d
            mask = mask + mask_d
        else:
            inp = jnp.concatenate([img0, img1, t_mask], 1)
            flow, mask = convblock_forward(stu[i], inp, None, scale[i], params)
        d2 = min(img0.shape[2], warped_img0.shape[2])
        d3 = min(img0.shape[3], warped_img0.shape[3])
        d4 = min(img0.shape[4], warped_img0.shape[4])
        flow = flow[:, :, :d2, :d3, :d4]
        mask = mask[:, :, :d2, :d3, :d4]
        img0 = img0[:, :, :d2, :d3, :d4]
        img1 = img1[:, :, :d2, :d3, :d4]
        mask_list.append(jax.nn.sigmoid(mask))
        flow_list.append(flow)
        warped_img0 = warp(img0, flow[:, :3])
        warped_img1 = warp(img1, flow[:, 3:6])
        merged.append((warped_img0, warped_img1))
    for i in range(2):
        m = merged[i][0] * mask_list[i] + merged[i][1] * (1.0 - mask_list[i])
        merged[i] = m[:, :, :gt.shape[2], :gt.shape[3], :gt.shape[4]]
    return flow_list, mask_list, merged


# ----------------------------------------------------------------------------
if __name__ == "__main__":
    kg = KeyGen(jax.random.PRNGKey(0))
    net = {
        "block0": make_convblock(kg, 3, 128, input_dim=3),
        "block1": make_convblock(kg, 6 + 6, 64, input_dim=3),
    }
    B, D, H, W = 2, 8, 8, 8
    kx, kp = jax.random.split(kg())
    x = jax.random.normal(kx, (B, 4, D, H, W), jnp.float32)
    params = jax.random.normal(kp, (B, 3), jnp.float32)

    flow_list, mask_list, merged = hyperflint_forward(net, x, params)
    jax.block_until_ready((flow_list, mask_list, merged))

    assert flow_list[-1].shape == (B, 6, D, H, W)
    assert mask_list[-1].shape == (B, 1, D, H, W)
    assert merged[-1].shape == (B, 1, D, H, W)
    for t in (flow_list[-1], mask_list[-1], merged[-1]):
        assert bool(jnp.all(jnp.isfinite(t)))
    print("KERNEL_OK")
</pallas_src>

<mosaic_0001>
module attributes {stable_mosaic.version = 11 : i64} {
  func.func @_mm_kernel(%arg0: i32, %arg1: i32, %arg2: i32, %arg3: memref<1x16x128xbf16, #tpu.memory_space<vmem>>, %arg4: memref<1x128x16384xbf16, #tpu.memory_space<vmem>>, %arg5: memref<1x1x16384xf32, #tpu.memory_space<vmem>>, %arg6: memref<1x16x16384xbf16, #tpu.memory_space<vmem>>) attributes {dimension_semantics = [#tpu.dimension_semantics<parallel>, #tpu.dimension_semantics<parallel>, #tpu.dimension_semantics<parallel>], iteration_bounds = array<i64: 1, 1, 114>, scalar_prefetch = 0 : i64, scratch_operands = 0 : i64, tpu.core_type = #tpu.core_type<tc>, window_params = [{transform_indices = @transform_0, window_bounds = array<i64: 1, 16, 128>}, {transform_indices = @transform_1, window_bounds = array<i64: 1, 128, 16384>}, {transform_indices = @transform_2, window_bounds = array<i64: 1, 1, 16384>}, {transform_indices = @transform_3, window_bounds = array<i64: 1, 16, 16384>}]} {
    %c0 = arith.constant 0 : index
    %c0_0 = arith.constant 0 : index
    %c0_1 = arith.constant 0 : index
    %0 = vector.load %arg3[%c0, %c0_0, %c0_1] : memref<1x16x128xbf16, #tpu.memory_space<vmem>>, vector<1x16x128xbf16>
    %1 = vector.shape_cast %0 : vector<1x16x128xbf16> to vector<16x128xbf16>
    %c0_2 = arith.constant 0 : index
    %c0_3 = arith.constant 0 : index
    %c0_4 = arith.constant 0 : index
    %2 = vector.load %arg4[%c0_2, %c0_3, %c0_4] : memref<1x128x16384xbf16, #tpu.memory_space<vmem>>, vector<1x128x16384xbf16>
    %3 = vector.shape_cast %2 : vector<1x128x16384xbf16> to vector<128x16384xbf16>
    %cst = arith.constant dense<0.000000e+00> : vector<16x16384xf32>
    %4 = tpu.matmul %1, %3, %cst {dimension_numbers = #tpu.dot_dimension_numbers<[1], [0], [0], [1], [0, 0, 1, 1], [], []>} : vector<16x128xbf16>, vector<128x16384xbf16>, vector<16x16384xf32> -> vector<16x16384xf32>
    %c0_5 = arith.constant 0 : index
    %c0_6 = arith.constant 0 : index
    %c0_7 = arith.constant 0 : index
    %5 = vector.load %arg5[%c0_5, %c0_6, %c0_7] : memref<1x1x16384xf32, #tpu.memory_space<vmem>>, vector<1x1x16384xf32>
    %6 = vector.shape_cast %5 : vector<1x1x16384xf32> to vector<1x16384xf32>
    %7 = vector.broadcast %6 : vector<1x16384xf32> to vector<16x16384xf32>
    %8 = arith.addf %4, %7 : vector<16x16384xf32>
    %9 = arith.truncf %8 : vector<16x16384xf32> to vector<16x16384xbf16>
    %c0_8 = arith.constant 0 : index
    %c0_9 = arith.constant 0 : index
    %c0_10 = arith.constant 0 : index
    %10 = vector.load %arg6[%c0_8, %c0_9, %c0_10] : memref<1x16x16384xbf16, #tpu.memory_space<vmem>>, vector<1x16x16384xbf16>
    %11 = vector.shape_cast %10 : vector<1x16x16384xbf16> to vector<16x16384xbf16>
    %12 = vector.shape_cast %9 : vector<16x16384xbf16> to vector<1x16x16384xbf16>
    tpu.vector_store %arg6[%c0_8, %c0_9, %c0_10], %12 {strides = array<i32>} : memref<1x16x16384xbf16, #tpu.memory_space<vmem>>, vector<1x16x16384xbf16>,
    return
  }
  func.func @transform_0(%arg0: i32, %arg1: i32, %arg2: i32) -> (i32, i32, i32) {
    %c0_i32 = arith.constant 0 : i32
    %c0_i32_0 = arith.constant 0 : i32
    return %arg0, %arg1, %c0_i32 : i32, i32, i32
  }
  func.func @transform_1(%arg0: i32, %arg1: i32, %arg2: i32) -> (i32, i32, i32) {
    %c0_i32 = arith.constant 0 : i32
    %c0_i32_0 = arith.constant 0 : i32
    return %arg0, %c0_i32, %arg2 : i32, i32, i32
  }
  func.func @transform_2(%arg0: i32, %arg1: i32, %arg2: i32) -> (i32, i32, i32) {
    %c0_i32 = arith.constant 0 : i32
    %c0_i32_0 = arith.constant 0 : i32
    return %arg0, %c0_i32, %arg2 : i32, i32, i32
  }
  func.func @transform_3(%arg0: i32, %arg1: i32, %arg2: i32) -> (i32, i32, i32) {
    %c0_i32 = arith.constant 0 : i32
    return %arg0, %arg1, %arg2 : i32, i32, i32
  }
}

</mosaic_0001>

<llo_original>
// kernel: grouped_matmul.1
$region0: #{grouped_matmul.1}
  #allocation0 [shape = 'u32[]', space=smem, size = 0x4, offset = 0x4, fixed_abs, tag = 'smem constant byte address 0x4 - core index']
  #allocation1 [shape = 'u32[144,128]{1,0:T(1,128)}', space=vmem, size = 0x12000, scoped, tag = 'internal scratch']
  %s0 = inlined_call_operand.vmem [shape: bf16[1,16,128], index: 0, kind: input, shape index: {}]
  %s1 = inlined_call_operand.hbm [shape: bf16[1,128,1867776], index: 1, kind: input, shape index: {}]
  %s2 = inlined_call_operand.hbm [shape: f32[1,1,1867776], index: 2, kind: input, shape index: {}]
  %s3 = inlined_call_operand.hbm [shape: bf16[1,16,1867776], index: 3, kind: output, shape index: {}]
  %s4 = sld [smem:[#allocation0]]
  $region53: #{grouped_matmul.1} parent=0
    _
  %s6 = ssub.s32 1, %s4
  %s7 = scalar_select 0, %s6, %s4
  $region1: #{grouped_matmul.1} parent=0
    #allocation2 [shape = 'u8[8388608]{0}', space=vmem, size = 0x800000, scoped, tag = 'input window, operand 1']
    #allocation3 [shape = 's32[2]{0}', space=sflag, size = 0x8, scoped, tag = 'scoped memory for grouped_matmul.1']
    #allocation4 [shape = 's32[2]{0}', space=sflag, size = 0x8, scoped, tag = 'scoped memory for grouped_matmul.1']
    #allocation5 [shape = 'u8[131072]{0}', space=vmem, size = 0x20000, scoped, tag = 'input window, operand 2']
    #allocation6 [shape = 's32[2]{0}', space=sflag, size = 0x8, scoped, tag = 'scoped memory for grouped_matmul.1']
    #allocation7 [shape = 'u8[1048576]{0}', space=vmem, size = 0x100000, scoped, tag = 'output window, operand 0']
    %8 = vsyncpa [#allocation3], 0
    %s9 = scalar_lea.sflag [#allocation3], 1
    %10 = vsyncpa %s9, 0
    %11 = vsyncpa [#allocation6], 0
    %s12 = scalar_lea.sflag [#allocation6], 1
    %13 = vsyncpa %s12, 0
    %14 = vsyncpa [#allocation4], 0
    %s15 = scalar_lea.sflag [#allocation4], 1
    %16 = vsyncpa %s15, 0
    loop: start=0, step=1, limit=116
    $region2: #{grouped_matmul.1} parent=1 // loop_pre_header
      _
    $region3: #{grouped_matmul.1} parent=1 // loop_header
      %s18 = sphi 0, %s22
      %p19 = scmp.ge.s32.totalorder %s18, 116
      %s25 = sphi 0, %s44
      %s26 = sphi 0, %s40
      %s27 = sphi 0, %s36
      %s28 = sphi 0, %s25
      %s29 = sphi 0, %s26
      %s30 = sphi 0, %s27
      %s31 = sphi 0, %s28
      %s32 = sphi 0, %s29
      %s33 = sphi 0, %s30
      %s49 = sphi 0, %s51
      %s52 = sphi 0, %s49
      %s53 = sphi 0, %s52
      %s69 = sphi 0, %s53
      %s77 = sphi 0, %s79
      %s80 = sphi 0, %s77
      %s81 = sphi 0, %s80
      %s97 = sphi 0, %s81
      %s105 = sphi 0, %s107
      %s108 = sphi 0, %s105
      %s109 = sphi 0, %s108
      %s125 = sphi 0, %s109
      %s135 = sphi 0, %s137
      %s138 = sphi 0, %s135
      %s139 = sphi 0, %s138
      %s155 = sphi 0, %s139
    $region4: #{grouped_matmul.1} parent=1 // loop_header_branch
      %21 = sbr.rel (%p19) target = $region8
    $region5: #{grouped_matmul.1} parent=1 // loop_body
      %s23 = ssub.s32 %s18, 1
      %s24 = ssub.s32 %s18, 2
      %s34 = sadd.s32 1, %s27
      %p35 = scmp.ge.s32.totalorder %s34, 114
      %s36 = scalar_select %p35, 0, %s34
      %s37 = sadd.s32 1, %s26
      %s38 = scalar_select %p35, %s37, %s26
      %p39 = scmp.ge.s32.totalorder %s38, 1
      %s40 = scalar_select %p39, 0, %s38
      %s41 = sadd.s32 1, %s25
      %s42 = scalar_select %p39, %s41, %s25
      %p43 = scmp.ge.s32.totalorder %s42, 1
      %s44 = scalar_select %p43, 0, %s42
      %s45 = ssub.s32 %s25, %s44
      %s46 = ssub.s32 %s26, %s40
      %s47 = sor.u32 %s45, %s46
      %p48 = scmp.eq.s32.totalorder %s47, 0
      %s50 = sadd.s32 %s49, 1
      %s51 = scalar_select %p48, %s49, %s50
      %p54 = pneg %p48
      %p55 = scmp.eq.s32.totalorder %s18, 113
      %p56 = por %p54, %p55
      %p57 = scmp.ne.s32.totalorder %s49, %s52
      %p58 = scmp.eq.s32.totalorder %s18, 0
      %p59 = por %p57, %p58
      %p60 = scmp.ne.s32.totalorder %s49, %s52
      %p61 = scmp.eq.s32.totalorder %s23, 113
      %p62 = por %p60, %p61
      %p63 = scmp.ne.s32.totalorder %s52, %s53
      %p64 = scmp.eq.s32.totalorder %s23, 0
      %p65 = por %p63, %p64
      %p66 = scmp.ne.s32.totalorder %s52, %s53
      %p67 = scmp.eq.s32.totalorder %s24, 113
      %p68 = por %p66, %p67
      %p70 = scmp.ne.s32.totalorder %s53, %s69
      %p71 = scmp.eq.s32.totalorder %s24, 0
      %p72 = por %p70, %p71
      %s73 = ssub.s32 %s25, %s44
      %s74 = ssub.s32 %s27, %s36
      %s75 = sor.u32 %s73, %s74
      %p76 = scmp.eq.s32.totalorder %s75, 0
      %s78 = sadd.s32 %s77, 1
      %s79 = scalar_select %p76, %s77, %s78
      %p82 = pneg %p76
      %p83 = scmp.eq.s32.totalorder %s18, 113
      %p84 = por %p82, %p83
      %p85 = scmp.ne.s32.totalorder %s77, %s80
      %p86 = scmp.eq.s32.totalorder %s18, 0
      %p87 = por %p85, %p86
      %p88 = scmp.ne.s32.totalorder %s77, %s80
      %p89 = scmp.eq.s32.totalorder %s23, 113
      %p90 = por %p88, %p89
      %p91 = scmp.ne.s32.totalorder %s80, %s81
      %p92 = scmp.eq.s32.totalorder %s23, 0
      %p93 = por %p91, %p92
      %p94 = scmp.ne.s32.totalorder %s80, %s81
      %p95 = scmp.eq.s32.totalorder %s24, 113
      %p96 = por %p94, %p95
      %p98 = scmp.ne.s32.totalorder %s81, %s97
      %p99 = scmp.eq.s32.totalorder %s24, 0
      %p100 = por %p98, %p99
      %s101 = ssub.s32 %s25, %s44
      %s102 = ssub.s32 %s27, %s36
      %s103 = sor.u32 %s101, %s102
      %p104 = scmp.eq.s32.totalorder %s103, 0
      %s106 = sadd.s32 %s105, 1
      %s107 = scalar_select %p104, %s105, %s106
      %p110 = pneg %p104
      %p111 = scmp.eq.s32.totalorder %s18, 113
      %p112 = por %p110, %p111
      %p113 = scmp.ne.s32.totalorder %s105, %s108
      %p114 = scmp.eq.s32.totalorder %s18, 0
      %p115 = por %p113, %p114
      %p116 = scmp.ne.s32.totalorder %s105, %s108
      %p117 = scmp.eq.s32.totalorder %s23, 113
      %p118 = por %p116, %p117
      %p119 = scmp.ne.s32.totalorder %s108, %s109
      %p120 = scmp.eq.s32.totalorder %s23, 0
      %p121 = por %p119, %p120
      %p122 = scmp.ne.s32.totalorder %s108, %s109
      %p123 = scmp.eq.s32.totalorder %s24, 113
      %p124 = por %p122, %p123
      %p126 = scmp.ne.s32.totalorder %s109, %s125
      %p127 = scmp.eq.s32.totalorder %s24, 0
      %p128 = por %p126, %p127
      %s129 = ssub.s32 %s25, %s44
      %s130 = ssub.s32 %s26, %s40
      %s131 = sor.u32 %s129, %s130
      %s132 = ssub.s32 %s27, %s36
      %s133 = sor.u32 %s131, %s132
      %p134 = scmp.eq.s32.totalorder %s133, 0
      %s136 = sadd.s32 %s135, 1
      %s137 = scalar_select %p134, %s135, %s136
      %p140 = pneg %p134
      %p141 = scmp.eq.s32.totalorder %s18, 113
      %p142 = por %p140, %p141
      %p143 = scmp.ne.s32.totalorder %s135, %s138
      %p144 = scmp.eq.s32.totalorder %s18, 0
      %p145 = por %p143, %p144
      %p146 = scmp.ne.s32.totalorder %s135, %s138
      %p147 = scmp.eq.s32.totalorder %s23, 113
      %p148 = por %p146, %p147
      %p149 = scmp.ne.s32.totalorder %s138, %s139
      %p150 = scmp.eq.s32.totalorder %s23, 0
      %p151 = por %p149, %p150
      %p152 = scmp.ne.s32.totalorder %s138, %s139
      %p153 = scmp.eq.s32.totalorder %s24, 113
      %p154 = por %p152, %p153
      %p156 = scmp.ne.s32.totalorder %s139, %s155
      %p157 = scmp.eq.s32.totalorder %s24, 0
      %p158 = por %p156, %p157
      %p159 = scmp.le.s32.totalorder 1, %s18
      %p160 = scmp.lt.s32.totalorder %s18, 115
      %p161 = pnand %p159, %p160
      %p162 = pneg %p161
      // Predicated region
      $region9: #{grouped_matmul.1} parent=5 // pred_check
        _
      $region10: #{grouped_matmul.1} parent=5 // pred_check_branch
        %164 = sbr.rel (%p161) target = $region12
      $region11: #{grouped_matmul.1} parent=5 // pred_region
        %s165 = ssub.s32 %s18, 1
        // Predicated region
        $region13: #{grouped_matmul.1} parent=11 // pred_check
          %p166 = pneg %p65
        $region14: #{grouped_matmul.1} parent=11 // pred_check_branch
          %168 = sbr.rel (%p166) target = $region16
        $region15: #{grouped_matmul.1} parent=11 // pred_region
          %s169 = smul.u32 2, %s29
          %p170 = scmp.lt.s32.totalorder %s28, 0
          %s171 = scalar_select %p170, %s28, 0
          %p172 = scmp.lt.s32.totalorder %s169, 1
          %s173 = scalar_select %p172, %s169, 1
          %s174 = smul.addr %s171, 2
          %s175 = sadd.s32 %s173, %s174
          %s176 = smul.addr %s175, 4
          %s177 = scalar_lea.vmem %s0, %s176
          %s178 = smul.u32 2, %s29
        $region16: #{grouped_matmul.1} parent=11 // pred_fallthru
          _
      $region12: #{grouped_matmul.1} parent=5 // pred_fallthru
        _
      %p179 = scmp.lt.s32.totalorder %s18, 114
      // Predicated region
      $region17: #{grouped_matmul.1} parent=5 // pred_check
        %p180 = pneg %p179
      $region18: #{grouped_matmul.1} parent=5 // pred_check_branch
        %182 = sbr.rel (%p180) target = $region20
      $region19: #{grouped_matmul.1} parent=5 // pred_region
        // Predicated region
        $region21: #{grouped_matmul.1} parent=19 // pred_check
          %p183 = pneg %p87
        $region22: #{grouped_matmul.1} parent=19 // pred_check_branch
          %185 = sbr.rel (%p183) target = $region24
        $region23: #{grouped_matmul.1} parent=19 // pred_region
          %s186 = sand.u32 %s77, 1
          %s187 = scalar_lea.sflag [#allocation3], %s186
          %s188 = sand.u32 %s77, 1
          %s189 = smul.addr %s188, 8192
          %s190 = scalar_lea.vmem [#allocation2], %s189
          %s191 = smul.u32 128, %s27
          %s193 = ssub.s32 131072, 131072
          %194 = vsyncadd %s187, %s193
          %s195 = smul.addr %s25, 233472
          %s196 = sadd.s32 %s191, %s195
          %s197 = smul.addr %s196, 64
          %s198 = scalar_lea.hbm %s1, %s197
          %s199 = sshll.u32 %s190, 4
          %s200 = int_to_ptr.vmem [resolvable:$true] %s199
          %205 = dma.hbm_to_vmem [thread:$0]  %s198, 131072, %s200, %s187, 933888, 8192, 512
        $region24: #{grouped_matmul.1} parent=19 // pred_fallthru
          _
        // Predicated region
        $region25: #{grouped_matmul.1} parent=19 // pred_check
          %p206 = pneg %p115
        $region26: #{grouped_matmul.1} parent=19 // pred_check_branch
          %208 = sbr.rel (%p206) target = $region28
        $region27: #{grouped_matmul.1} parent=19 // pred_region
          %s209 = sand.u32 %s105, 1
          %s210 = scalar_lea.sflag [#allocation6], %s209
          %s211 = sand.u32 %s105, 1
          %s212 = smul.addr %s211, 128
          %s213 = scalar_lea.vmem [#allocation5], %s212
          %s214 = smul.u32 128, %s27
          %s216 = ssub.s32 2048, 2048
          %217 = vsyncadd %s210, %s216
          %s218 = smul.addr %s25, 14592
          %s219 = sadd.s32 %s214, %s218
          %s220 = smul.addr %s219, 16
          %s221 = scalar_lea.hbm %s2, %s220
          %s223 = sshll.u32 %s213, 4
          %s224 = int_to_ptr.vmem [resolvable:$true] %s223
          %226 = dma.hbm_to_vmem [thread:$0]  %s221, 2048, %s224, %s210
        $region28: #{grouped_matmul.1} parent=19 // pred_fallthru
          _
      $region20: #{grouped_matmul.1} parent=5 // pred_fallthru
        _
      %p227 = scmp.le.s32.totalorder 1, %s18
      %p228 = scmp.lt.s32.totalorder %s18, 115
      %p229 = pnand %p227, %p228
      %p230 = pneg %p229
      // Predicated region
      $region29: #{grouped_matmul.1} parent=5 // pred_check
        _
      $region30: #{grouped_matmul.1} parent=5 // pred_check_branch
        %232 = sbr.rel (%p229) target = $region32
      $region31: #{grouped_matmul.1} parent=5 // pred_region
        %s233 = ssub.s32 %s18, 1
        %s234 = sand.u32 %s80, 1
        %s235 = scalar_lea.sflag [#allocation3], %s234
        %s236 = sand.u32 %s80, 1
        %s237 = smul.addr %s236, 8192
        %s238 = scalar_lea.vmem [#allocation2], %s237
        // Predicated region
        $region33: #{grouped_matmul.1} parent=31 // pred_check
          %p239 = pneg %p93
        $region34: #{grouped_matmul.1} parent=31 // pred_check_branch
          %241 = sbr.rel (%p239) target = $region36
        $region35: #{grouped_matmul.1} parent=31 // pred_region
          %242 = dma.done %s235, 131072
        $region36: #{grouped_matmul.1} parent=31 // pred_fallthru
          _
        %s243 = sand.u32 %s108, 1
        %s244 = scalar_lea.sflag [#allocation6], %s243
        %s245 = sand.u32 %s108, 1
        %s246 = smul.addr %s245, 128
        %s247 = scalar_lea.vmem [#allocation5], %s246
        // Predicated region
        $region37: #{grouped_matmul.1} parent=31 // pred_check
          %p248 = pneg %p121
        $region38: #{grouped_matmul.1} parent=31 // pred_check_branch
          %250 = sbr.rel (%p248) target = $region40
        $region39: #{grouped_matmul.1} parent=31 // pred_region
          %251 = dma.done %s244, 2048
        $region40: #{grouped_matmul.1} parent=31 // pred_fallthru
          _
        %s252 = smul.u32 2, %s29
        %p253 = scmp.lt.s32.totalorder %s28, 0
        %s254 = scalar_select %p253, %s28, 0
        %p255 = scmp.lt.s32.totalorder %s252, 1
        %s256 = scalar_select %p255, %s252, 1
        %s257 = smul.addr %s254, 2
        %s258 = sadd.s32 %s256, %s257
        %s259 = smul.addr %s258, 4
        %s260 = scalar_lea.vmem %s0, %s259
        %p261 = pneg %p65
        %p262 = pneg %p62
        %s263 = sand.u32 %s80, 1
        %s264 = scalar_lea.sflag [#allocation3], %s263
        %s265 = sand.u32 %s80, 1
        %s266 = smul.addr %s265, 8192
        %s267 = scalar_lea.vmem [#allocation2], %s266
        %p268 = pneg %p93
        %p269 = pneg %p90
        %s270 = sand.u32 %s108, 1
        %s271 = scalar_lea.sflag [#allocation6], %s270
        %s272 = sand.u32 %s108, 1
        %s273 = smul.addr %s272, 128
        %s274 = scalar_lea.vmem [#allocation5], %s273
        %p275 = pneg %p121
        %p276 = pneg %p118
        %p277 = pneg %p151
        %p278 = pneg %p148
        %s279 = sand.u32 %s138, 1
        %s280 = scalar_lea.sflag [#allocation4], %s279
        %s281 = sand.u32 %s138, 1
        %s282 = smul.addr %s281, 1024
        %s283 = scalar_lea.vmem [#allocation7], %s282
        %s284 = smul.u32 2, %s29
        %p285 = scmp.lt.s32.totalorder %s28, 0
        %s286 = scalar_select %p285, %s28, 0
        %p287 = scmp.lt.s32.totalorder %s284, 1
        %s288 = scalar_select %p287, %s284, 1
        %s289 = smul.addr %s286, 2
        %s290 = sadd.s32 %s288, %s289
        %s291 = smul.addr %s290, 4
        %s292 = scalar_lea.vmem %s0, %s291
        %s293 = smul.u32 2, %s29
        %s294 = smul.u32 128, %s30
        %s295 = smul.u32 128, %s30
        %s296 = smul.u32 2, %s29
        %s297 = smul.u32 128, %s30
        %v299 = vld [vmem:[%s292] sm:$0xf]
        %v300 = vld [vmem:[%s292 + $0x4] sm:$0xf]
        %v301 = vld [vmem:[%s238] sm:$0xff]
        %v302 = vld [vmem:[%s238 + $0x8] sm:$0xff]
        %v303 = vld [vmem:[%s238 + $0x10] sm:$0xff]
        %v304 = vld [vmem:[%s238 + $0x18] sm:$0xff]
        %v305 = vld [vmem:[%s238 + $0x20] sm:$0xff]
        %v306 = vld [vmem:[%s238 + $0x28] sm:$0xff]
        %v307 = vld [vmem:[%s238 + $0x30] sm:$0xff]
        %v308 = vld [vmem:[%s238 + $0x38] sm:$0xff]
        %v309 = vld [vmem:[%s238 + $0x40] sm:$0xff]
        %v310 = vld [vmem:[%s238 + $0x48] sm:$0xff]
        %v311 = vld [vmem:[%s238 + $0x50] sm:$0xff]
        %v312 = vld [vmem:[%s238 + $0x58] sm:$0xff]
        %v313 = vld [vmem:[%s238 + $0x60] sm:$0xff]
        %v314 = vld [vmem:[%s238 + $0x68] sm:$0xff]
        %v315 = vld [vmem:[%s238 + $0x70] sm:$0xff]
        %v316 = vld [vmem:[%s238 + $0x78] sm:$0xff]
        %v317 = vld [vmem:[%s238 + $0x80] sm:$0xff]
        %v318 = vld [vmem:[%s238 + $0x88] sm:$0xff]
        %v319 = vld [vmem:[%s238 + $0x90] sm:$0xff]
        %v320 = vld [vmem:[%s238 + $0x98] sm:$0xff]
        %v321 = vld [vmem:[%s238 + $0xa0] sm:$0xff]
        %v322 = vld [vmem:[%s238 + $0xa8] sm:$0xff]
        %v323 = vld [vmem:[%s238 + $0xb0] sm:$0xff]
        %v324 = vld [vmem:[%s238 + $0xb8] sm:$0xff]
        %v325 = vld [vmem:[%s238 + $0xc0] sm:$0xff]
        %v326 = vld [vmem:[%s238 + $0xc8] sm:$0xff]
        %v327 = vld [vmem:[%s238 + $0xd0] sm:$0xff]
        %v328 = vld [vmem:[%s238 + $0xd8] sm:$0xff]
        %v329 = vld [vmem:[%s238 + $0xe0] sm:$0xff]
        %v330 = vld [vmem:[%s238 + $0xe8] sm:$0xff]
        %v331 = vld [vmem:[%s238 + $0xf0] sm:$0xff]
        %v332 = vld [vmem:[%s238 + $0xf8] sm:$0xff]
        %v333 = vld [vmem:[%s238 + $0x100] sm:$0xff]
        %v334 = vld [vmem:[%s238 + $0x108] sm:$0xff]
        %v335 = vld [vmem:[%s238 + $0x110] sm:$0xff]
        %v336 = vld [vmem:[%s238 + $0x118] sm:$0xff]
        %v337 = vld [vmem:[%s238 + $0x120] sm:$0xff]
        %v338 = vld [vmem:[%s238 + $0x128] sm:$0xff]
        %v339 = vld [vmem:[%s238 + $0x130] sm:$0xff]
        %v340 = vld [vmem:[%s238 + $0x138] sm:$0xff]
        %v341 = vld [vmem:[%s238 + $0x140] sm:$0xff]
        %v342 = vld [vmem:[%s238 + $0x148] sm:$0xff]
        %v343 = vld [vmem:[%s238 + $0x150] sm:$0xff]
        %v344 = vld [vmem:[%s238 + $0x158] sm:$0xff]
        %v345 = vld [vmem:[%s238 + $0x160] sm:$0xff]
        %v346 = vld [vmem:[%s238 + $0x168] sm:$0xff]
        %v347 = vld [vmem:[%s238 + $0x170] sm:$0xff]
        %v348 = vld [vmem:[%s238 + $0x178] sm:$0xff]
        %v349 = vld [vmem:[%s238 + $0x180] sm:$0xff]
        %v350 = vld [vmem:[%s238 + $0x188] sm:$0xff]
        %v351 = vld [vmem:[%s238 + $0x190] sm:$0xff]
        %v352 = vld [vmem:[%s238 + $0x198] sm:$0xff]
        %v353 = vld [vmem:[%s238 + $0x1a0] sm:$0xff]
        %v354 = vld [vmem:[%s238 + $0x1a8] sm:$0xff]
        %v355 = vld [vmem:[%s238 + $0x1b0] sm:$0xff]
        %v356 = vld [vmem:[%s238 + $0x1b8] sm:$0xff]
        %v357 = vld [vmem:[%s238 + $0x1c0] sm:$0xff]
        %v358 = vld [vmem:[%s238 + $0x1c8] sm:$0xff]
        %v359 = vld [vmem:[%s238 + $0x1d0] sm:$0xff]
        %v360 = vld [vmem:[%s238 + $0x1d8] sm:$0xff]
        %v361 = vld [vmem:[%s238 + $0x1e0] sm:$0xff]
        %v362 = vld [vmem:[%s238 + $0x1e8] sm:$0xff]
        %v363 = vld [vmem:[%s238 + $0x1f0] sm:$0xff]
        %v364 = vld [vmem:[%s238 + $0x1f8] sm:$0xff]
        %v365 = vld [vmem:[%s238 + $0x200] sm:$0xff]
        %v366 = vld [vmem:[%s238 + $0x208] sm:$0xff]
        %v367 = vld [vmem:[%s238 + $0x210] sm:$0xff]
        %v368 = vld [vmem:[%s238 + $0x218] sm:$0xff]
        %v369 = vld [vmem:[%s238 + $0x220] sm:$0xff]
        %v370 = vld [vmem:[%s238 + $0x228] sm:$0xff]
        %v371 = vld [vmem:[%s238 + $0x230] sm:$0xff]
        %v372 = vld [vmem:[%s238 + $0x238] sm:$0xff]
        %v373 = vld [vmem:[%s238 + $0x240] sm:$0xff]
        %v374 = vld [vmem:[%s238 + $0x248] sm:$0xff]
        %v375 = vld [vmem:[%s238 + $0x250] sm:$0xff]
        %v376 = vld [vmem:[%s238 + $0x258] sm:$0xff]
        %v377 = vld [vmem:[%s238 + $0x260] sm:$0xff]
        %v378 = vld [vmem:[%s238 + $0x268] sm:$0xff]
        %v379 = vld [vmem:[%s238 + $0x270] sm:$0xff]
        %v380 = vld [vmem:[%s238 + $0x278] sm:$0xff]
        %v381 = vld [vmem:[%s238 + $0x280] sm:$0xff]
        %v382 = vld [vmem:[%s238 + $0x288] sm:$0xff]
        %v383 = vld [vmem:[%s238 + $0x290] sm:$0xff]
        %v384 = vld [vmem:[%s238 + $0x298] sm:$0xff]
        %v385 = vld [vmem:[%s238 + $0x2a0] sm:$0xff]
        %v386 = vld [vmem:[%s238 + $0x2a8] sm:$0xff]
        %v387 = vld [vmem:[%s238 + $0x2b0] sm:$0xff]
        %v388 = vld [vmem:[%s238 + $0x2b8] sm:$0xff]
        %v389 = vld [vmem:[%s238 + $0x2c0] sm:$0xff]
        %v390 = vld [vmem:[%s238 + $0x2c8] sm:$0xff]
        %v391 = vld [vmem:[%s238 + $0x2d0] sm:$0xff]
        %v392 = vld [vmem:[%s238 + $0x2d8] sm:$0xff]
        %v393 = vld [vmem:[%s238 + $0x2e0] sm:$0xff]
        %v394 = vld [vmem:[%s238 + $0x2e8] sm:$0xff]
        %v395 = vld [vmem:[%s238 + $0x2f0] sm:$0xff]
        %v396 = vld [vmem:[%s238 + $0x2f8] sm:$0xff]
        %v397 = vld [vmem:[%s238 + $0x300] sm:$0xff]
        %v398 = vld [vmem:[%s238 + $0x308] sm:$0xff]
        %v399 = vld [vmem:[%s238 + $0x310] sm:$0xff]
        %v400 = vld [vmem:[%s238 + $0x318] sm:$0xff]
        %v401 = vld [vmem:[%s238 + $0x320] sm:$0xff]
        %v402 = vld [vmem:[%s238 + $0x328] sm:$0xff]
        %v403 = vld [vmem:[%s238 + $0x330] sm:$0xff]
        %v404 = vld [vmem:[%s238 + $0x338] sm:$0xff]
        %v405 = vld [vmem:[%s238 + $0x340] sm:$0xff]
        %v406 = vld [vmem:[%s238 + $0x348] sm:$0xff]
        %v407 = vld [vmem:[%s238 + $0x350] sm:$0xff]
        %v408 = vld [vmem:[%s238 + $0x358] sm:$0xff]
        %v409 = vld [vmem:[%s238 + $0x360] sm:$0xff]
        %v410 = vld [vmem:[%s238 + $0x368] sm:$0xff]
        %v411 = vld [vmem:[%s238 + $0x370] sm:$0xff]
        %v412 = vld [vmem:[%s238 + $0x378] sm:$0xff]
        %v413 = vld [vmem:[%s238 + $0x380] sm:$0xff]
        %v414 = vld [vmem:[%s238 + $0x388] sm:$0xff]
        %v415 = vld [vmem:[%s238 + $0x390] sm:$0xff]
        %v416 = vld [vmem:[%s238 + $0x398] sm:$0xff]
        %v417 = vld [vmem:[%s238 + $0x3a0] sm:$0xff]
        %v418 = vld [vmem:[%s238 + $0x3a8] sm:$0xff]
        %v419 = vld [vmem:[%s238 + $0x3b0] sm:$0xff]
        %v420 = vld [vmem:[%s238 + $0x3b8] sm:$0xff]
        %v421 = vld [vmem:[%s238 + $0x3c0] sm:$0xff]
        %v422 = vld [vmem:[%s238 + $0x3c8] sm:$0xff]
        %v423 = vld [vmem:[%s238 + $0x3d0] sm:$0xff]
        %v424 = vld [vmem:[%s238 + $0x3d8] sm:$0xff]
        %v425 = vld [vmem:[%s238 + $0x3e0] sm:$0xff]
        %v426 = vld [vmem:[%s238 + $0x3e8] sm:$0xff]
        %v427 = vld [vmem:[%s238 + $0x3f0] sm:$0xff]
        %v428 = vld [vmem:[%s238 + $0x3f8] sm:$0xff]
        %v429 = vld [vmem:[%s238 + $0x400] sm:$0xff]
        %v430 = vld [vmem:[%s238 + $0x408] sm:$0xff]
        %v431 = vld [vmem:[%s238 + $0x410] sm:$0xff]
        %v432 = vld [vmem:[%s238 + $0x418] sm:$0xff]
        %v433 = vld [vmem:[%s238 + $0x420] sm:$0xff]
        %v434 = vld [vmem:[%s238 + $0x428] sm:$0xff]
        %v435 = vld [vmem:[%s238 + $0x430] sm:$0xff]
        %v436 = vld [vmem:[%s238 + $0x438] sm:$0xff]
        %v437 = vld [vmem:[%s238 + $0x440] sm:$0xff]
        %v438 = vld [vmem:[%s238 + $0x448] sm:$0xff]
        %v439 = vld [vmem:[%s238 + $0x450] sm:$0xff]
        %v440 = vld [vmem:[%s238 + $0x458] sm:$0xff]
        %v441 = vld [vmem:[%s238 + $0x460] sm:$0xff]
        %v442 = vld [vmem:[%s238 + $0x468] sm:$0xff]
        %v443 = vld [vmem:[%s238 + $0x470] sm:$0xff]
        %v444 = vld [vmem:[%s238 + $0x478] sm:$0xff]
        %v445 = vld [vmem:[%s238 + $0x480] sm:$0xff]
        %v446 = vld [vmem:[%s238 + $0x488] sm:$0xff]
        %v447 = vld [vmem:[%s238 + $0x490] sm:$0xff]
        %v448 = vld [vmem:[%s238 + $0x498] sm:$0xff]
        %v449 = vld [vmem:[%s238 + $0x4a0] sm:$0xff]
        %v450 = vld [vmem:[%s238 + $0x4a8] sm:$0xff]
        %v451 = vld [vmem:[%s238 + $0x4b0] sm:$0xff]
        %v452 = vld [vmem:[%s238 + $0x4b8] sm:$0xff]
        %v453 = vld [vmem:[%s238 + $0x4c0] sm:$0xff]
        %v454 = vld [vmem:[%s238 + $0x4c8] sm:$0xff]
        %v455 = vld [vmem:[%s238 + $0x4d0] sm:$0xff]
        %v456 = vld [vmem:[%s238 + $0x4d8] sm:$0xff]
        %v457 = vld [vmem:[%s238 + $0x4e0] sm:$0xff]
        %v458 = vld [vmem:[%s238 + $0x4e8] sm:$0xff]
        %v459 = vld [vmem:[%s238 + $0x4f0] sm:$0xff]
        %v460 = vld [vmem:[%s238 + $0x4f8] sm:$0xff]
        %v461 = vld [vmem:[%s238 + $0x500] sm:$0xff]
        %v462 = vld [vmem:[%s238 + $0x508] sm:$0xff]
        %v463 = vld [vmem:[%s238 + $0x510] sm:$0xff]
        %v464 = vld [vmem:[%s238 + $0x518] sm:$0xff]
        %v465 = vld [vmem:[%s238 + $0x520] sm:$0xff]
        %v466 = vld [vmem:[%s238 + $0x528] sm:$0xff]
        %v467 = vld [vmem:[%s238 + $0x530] sm:$0xff]
        %v468 = vld [vmem:[%s238 + $0x538] sm:$0xff]
        %v469 = vld [vmem:[%s238 + $0x540] sm:$0xff]
        %v470 = vld [vmem:[%s238 + $0x548] sm:$0xff]
        %v471 = vld [vmem:[%s238 + $0x550] sm:$0xff]
        %v472 = vld [vmem:[%s238 + $0x558] sm:$0xff]
        %v473 = vld [vmem:[%s238 + $0x560] sm:$0xff]
        %v474 = vld [vmem:[%s238 + $0x568] sm:$0xff]
        %v475 = vld [vmem:[%s238 + $0x570] sm:$0xff]
        %v476 = vld [vmem:[%s238 + $0x578] sm:$0xff]
        %v477 = vld [vmem:[%s238 + $0x580] sm:$0xff]
        %v478 = vld [vmem:[%s238 + $0x588] sm:$0xff]
        %v479 = vld [vmem:[%s238 + $0x590] sm:$0xff]
        %v480 = vld [vmem:[%s238 + $0x598] sm:$0xff]
        %v481 = vld [vmem:[%s238 + $0x5a0] sm:$0xff]
        %v482 = vld [vmem:[%s238 + $0x5a8] sm:$0xff]
        %v483 = vld [vmem:[%s238 + $0x5b0] sm:$0xff]
        %v484 = vld [vmem:[%s238 + $0x5b8] sm:$0xff]
        %v485 = vld [vmem:[%s238 + $0x5c0] sm:$0xff]
        %v486 = vld [vmem:[%s238 + $0x5c8] sm:$0xff]
        %v487 = vld [vmem:[%s238 + $0x5d0] sm:$0xff]
        %v488 = vld [vmem:[%s238 + $0x5d8] sm:$0xff]
        %v489 = vld [vmem:[%s238 + $0x5e0] sm:$0xff]
        %v490 = vld [vmem:[%s238 + $0x5e8] sm:$0xff]
        %v491 = vld [vmem:[%s238 + $0x5f0] sm:$0xff]
        %v492 = vld [vmem:[%s238 + $0x5f8] sm:$0xff]
        %v493 = vld [vmem:[%s238 + $0x600] sm:$0xff]
        %v494 = vld [vmem:[%s238 + $0x608] sm:$0xff]
        %v495 = vld [vmem:[%s238 + $0x610] sm:$0xff]
        %v496 = vld [vmem:[%s238 + $0x618] sm:$0xff]
        %v497 = vld [vmem:[%s238 + $0x620] sm:$0xff]
        %v498 = vld [vmem:[%s238 + $0x628] sm:$0xff]
        %v499 = vld [vmem:[%s238 + $0x630] sm:$0xff]
        %v500 = vld [vmem:[%s238 + $0x638] sm:$0xff]
        %v501 = vld [vmem:[%s238 + $0x640] sm:$0xff]
        %v502 = vld [vmem:[%s238 + $0x648] sm:$0xff]
        %v503 = vld [vmem:[%s238 + $0x650] sm:$0xff]
        %v504 = vld [vmem:[%s238 + $0x658] sm:$0xff]
        %v505 = vld [vmem:[%s238 + $0x660] sm:$0xff]
        %v506 = vld [vmem:[%s238 + $0x668] sm:$0xff]
        %v507 = vld [vmem:[%s238 + $0x670] sm:$0xff]
        %v508 = vld [vmem:[%s238 + $0x678] sm:$0xff]
        %v509 = vld [vmem:[%s238 + $0x680] sm:$0xff]
        %v510 = vld [vmem:[%s238 + $0x688] sm:$0xff]
        %v511 = vld [vmem:[%s238 + $0x690] sm:$0xff]
        %v512 = vld [vmem:[%s238 + $0x698] sm:$0xff]
        %v513 = vld [vmem:[%s238 + $0x6a0] sm:$0xff]
        %v514 = vld [vmem:[%s238 + $0x6a8] sm:$0xff]
        %v515 = vld [vmem:[%s238 + $0x6b0] sm:$0xff]
        %v516 = vld [vmem:[%s238 + $0x6b8] sm:$0xff]
        %v517 = vld [vmem:[%s238 + $0x6c0] sm:$0xff]
        %v518 = vld [vmem:[%s238 + $0x6c8] sm:$0xff]
        %v519 = vld [vmem:[%s238 + $0x6d0] sm:$0xff]
        %v520 = vld [vmem:[%s238 + $0x6d8] sm:$0xff]
        %v521 = vld [vmem:[%s238 + $0x6e0] sm:$0xff]
        %v522 = vld [vmem:[%s238 + $0x6e8] sm:$0xff]
        %v523 = vld [vmem:[%s238 + $0x6f0] sm:$0xff]
        %v524 = vld [vmem:[%s238 + $0x6f8] sm:$0xff]
        %v525 = vld [vmem:[%s238 + $0x700] sm:$0xff]
        %v526 = vld [vmem:[%s238 + $0x708] sm:$0xff]
        %v527 = vld [vmem:[%s238 + $0x710] sm:$0xff]
        %v528 = vld [vmem:[%s238 + $0x718] sm:$0xff]
        %v529 = vld [vmem:[%s238 + $0x720] sm:$0xff]
        %v530 = vld [vmem:[%s238 + $0x728] sm:$0xff]
        %v531 = vld [vmem:[%s238 + $0x730] sm:$0xff]
        %v532 = vld [vmem:[%s238 + $0x738] sm:$0xff]
        %v533 = vld [vmem:[%s238 + $0x740] sm:$0xff]
        %v534 = vld [vmem:[%s238 + $0x748] sm:$0xff]
        %v535 = vld [vmem:[%s238 + $0x750] sm:$0xff]
        %v536 = vld [vmem:[%s238 + $0x758] sm:$0xff]
        %v537 = vld [vmem:[%s238 + $0x760] sm:$0xff]
        %v538 = vld [vmem:[%s238 + $0x768] sm:$0xff]
        %v539 = vld [vmem:[%s238 + $0x770] sm:$0xff]
        %v540 = vld [vmem:[%s238 + $0x778] sm:$0xff]
        %v541 = vld [vmem:[%s238 + $0x780] sm:$0xff]
        %v542 = vld [vmem:[%s238 + $0x788] sm:$0xff]
        %v543 = vld [vmem:[%s238 + $0x790] sm:$0xff]
        %v544 = vld [vmem:[%s238 + $0x798] sm:$0xff]
        %v545 = vld [vmem:[%s238 + $0x7a0] sm:$0xff]
        %v546 = vld [vmem:[%s238 + $0x7a8] sm:$0xff]
        %v547 = vld [vmem:[%s238 + $0x7b0] sm:$0xff]
        %v548 = vld [vmem:[%s238 + $0x7b8] sm:$0xff]
        %v549 = vld [vmem:[%s238 + $0x7c0] sm:$0xff]
        %v550 = vld [vmem:[%s238 + $0x7c8] sm:$0xff]
        %v551 = vld [vmem:[%s238 + $0x7d0] sm:$0xff]
        %v552 = vld [vmem:[%s238 + $0x7d8] sm:$0xff]
        %v553 = vld [vmem:[%s238 + $0x7e0] sm:$0xff]
        %v554 = vld [vmem:[%s238 + $0x7e8] sm:$0xff]
        %v555 = vld [vmem:[%s238 + $0x7f0] sm:$0xff]
        %v556 = vld [vmem:[%s238 + $0x7f8] sm:$0xff]
        %v557 = vld [vmem:[%s238 + $0x800] sm:$0xff]
        %v558 = vld [vmem:[%s238 + $0x808] sm:$0xff]
        %v559 = vld [vmem:[%s238 + $0x810] sm:$0xff]
        %v560 = vld [vmem:[%s238 + $0x818] sm:$0xff]
        %v561 = vld [vmem:[%s238 + $0x820] sm:$0xff]
        %v562 = vld [vmem:[%s238 + $0x828] sm:$0xff]
        %v563 = vld [vmem:[%s238 + $0x830] sm:$0xff]
        %v564 = vld [vmem:[%s238 + $0x838] sm:$0xff]
        %v565 = vld [vmem:[%s238 + $0x840] sm:$0xff]
        %v566 = vld [vmem:[%s238 + $0x848] sm:$0xff]
        %v567 = vld [vmem:[%s238 + $0x850] sm:$0xff]
        %v568 = vld [vmem:[%s238 + $0x858] sm:$0xff]
        %v569 = vld [vmem:[%s238 + $0x860] sm:$0xff]
        %v570 = vld [vmem:[%s238 + $0x868] sm:$0xff]
        %v571 = vld [vmem:[%s238 + $0x870] sm:$0xff]
        %v572 = vld [vmem:[%s238 + $0x878] sm:$0xff]
        %v573 = vld [vmem:[%s238 + $0x880] sm:$0xff]
        %v574 = vld [vmem:[%s238 + $0x888] sm:$0xff]
        %v575 = vld [vmem:[%s238 + $0x890] sm:$0xff]
        %v576 = vld [vmem:[%s238 + $0x898] sm:$0xff]
        %v577 = vld [vmem:[%s238 + $0x8a0] sm:$0xff]
        %v578 = vld [vmem:[%s238 + $0x8a8] sm:$0xff]
        %v579 = vld [vmem:[%s238 + $0x8b0] sm:$0xff]
        %v580 = vld [vmem:[%s238 + $0x8b8] sm:$0xff]
        %v581 = vld [vmem:[%s238 + $0x8c0] sm:$0xff]
        %v582 = vld [vmem:[%s238 + $0x8c8] sm:$0xff]
        %v583 = vld [vmem:[%s238 + $0x8d0] sm:$0xff]
        %v584 = vld [vmem:[%s238 + $0x8d8] sm:$0xff]
        %v585 = vld [vmem:[%s238 + $0x8e0] sm:$0xff]
        %v586 = vld [vmem:[%s238 + $0x8e8] sm:$0xff]
        %v587 = vld [vmem:[%s238 + $0x8f0] sm:$0xff]
        %v588 = vld [vmem:[%s238 + $0x8f8] sm:$0xff]
        %v589 = vld [vmem:[%s238 + $0x900] sm:$0xff]
        %v590 = vld [vmem:[%s238 + $0x908] sm:$0xff]
        %v591 = vld [vmem:[%s238 + $0x910] sm:$0xff]
        %v592 = vld [vmem:[%s238 + $0x918] sm:$0xff]
        %v593 = vld [vmem:[%s238 + $0x920] sm:$0xff]
        %v594 = vld [vmem:[%s238 + $0x928] sm:$0xff]
        %v595 = vld [vmem:[%s238 + $0x930] sm:$0xff]
        %v596 = vld [vmem:[%s238 + $0x938] sm:$0xff]
        %v597 = vld [vmem:[%s238 + $0x940] sm:$0xff]
        %v598 = vld [vmem:[%s238 + $0x948] sm:$0xff]
        %v599 = vld [vmem:[%s238 + $0x950] sm:$0xff]
        %v600 = vld [vmem:[%s238 + $0x958] sm:$0xff]
        %v601 = vld [vmem:[%s238 + $0x960] sm:$0xff]
        %v602 = vld [vmem:[%s238 + $0x968] sm:$0xff]
        %v603 = vld [vmem:[%s238 + $0x970] sm:$0xff]
        %v604 = vld [vmem:[%s238 + $0x978] sm:$0xff]
        %v605 = vld [vmem:[%s238 + $0x980] sm:$0xff]
        %v606 = vld [vmem:[%s238 + $0x988] sm:$0xff]
        %v607 = vld [vmem:[%s238 + $0x990] sm:$0xff]
        %v608 = vld [vmem:[%s238 + $0x998] sm:$0xff]
        %v609 = vld [vmem:[%s238 + $0x9a0] sm:$0xff]
        %v610 = vld [vmem:[%s238 + $0x9a8] sm:$0xff]
        %v611 = vld [vmem:[%s238 + $0x9b0] sm:$0xff]
        %v612 = vld [vmem:[%s238 + $0x9b8] sm:$0xff]
        %v613 = vld [vmem:[%s238 + $0x9c0] sm:$0xff]
        %v614 = vld [vmem:[%s238 + $0x9c8] sm:$0xff]
        %v615 = vld [vmem:[%s238 + $0x9d0] sm:$0xff]
        %v616 = vld [vmem:[%s238 + $0x9d8] sm:$0xff]
        %v617 = vld [vmem:[%s238 + $0x9e0] sm:$0xff]
        %v618 = vld [vmem:[%s238 + $0x9e8] sm:$0xff]
        %v619 = vld [vmem:[%s238 + $0x9f0] sm:$0xff]
        %v620 = vld [vmem:[%s238 + $0x9f8] sm:$0xff]
        %v621 = vld [vmem:[%s238 + $0xa00] sm:$0xff]
        %v622 = vld [vmem:[%s238 + $0xa08] sm:$0xff]
        %v623 = vld [vmem:[%s238 + $0xa10] sm:$0xff]
        %v624 = vld [vmem:[%s238 + $0xa18] sm:$0xff]
        %v625 = vld [vmem:[%s238 + $0xa20] sm:$0xff]
        %v626 = vld [vmem:[%s238 + $0xa28] sm:$0xff]
        %v627 = vld [vmem:[%s238 + $0xa30] sm:$0xff]
        %v628 = vld [vmem:[%s238 + $0xa38] sm:$0xff]
        %v629 = vld [vmem:[%s238 + $0xa40] sm:$0xff]
        %v630 = vld [vmem:[%s238 + $0xa48] sm:$0xff]
        %v631 = vld [vmem:[%s238 + $0xa50] sm:$0xff]
        %v632 = vld [vmem:[%s238 + $0xa58] sm:$0xff]
        %v633 = vld [vmem:[%s238 + $0xa60] sm:$0xff]
        %v634 = vld [vmem:[%s238 + $0xa68] sm:$0xff]
        %v635 = vld [vmem:[%s238 + $0xa70] sm:$0xff]
        %v636 = vld [vmem:[%s238 + $0xa78] sm:$0xff]
        %v637 = vld [vmem:[%s238 + $0xa80] sm:$0xff]
        %v638 = vld [vmem:[%s238 + $0xa88] sm:$0xff]
        %v639 = vld [vmem:[%s238 + $0xa90] sm:$0xff]
        %v640 = vld [vmem:[%s238 + $0xa98] sm:$0xff]
        %v641 = vld [vmem:[%s238 + $0xaa0] sm:$0xff]
        %v642 = vld [vmem:[%s238 + $0xaa8] sm:$0xff]
        %v643 = vld [vmem:[%s238 + $0xab0] sm:$0xff]
        %v644 = vld [vmem:[%s238 + $0xab8] sm:$0xff]
        %v645 = vld [vmem:[%s238 + $0xac0] sm:$0xff]
        %v646 = vld [vmem:[%s238 + $0xac8] sm:$0xff]
        %v647 = vld [vmem:[%s238 + $0xad0] sm:$0xff]
        %v648 = vld [vmem:[%s238 + $0xad8] sm:$0xff]
        %v649 = vld [vmem:[%s238 + $0xae0] sm:$0xff]
        %v650 = vld [vmem:[%s238 + $0xae8] sm:$0xff]
        %v651 = vld [vmem:[%s238 + $0xaf0] sm:$0xff]
        %v652 = vld [vmem:[%s238 + $0xaf8] sm:$0xff]
        %v653 = vld [vmem:[%s238 + $0xb00] sm:$0xff]
        %v654 = vld [vmem:[%s238 + $0xb08] sm:$0xff]
        %v655 = vld [vmem:[%s238 + $0xb10] sm:$0xff]
        %v656 = vld [vmem:[%s238 + $0xb18] sm:$0xff]
        %v657 = vld [vmem:[%s238 + $0xb20] sm:$0xff]
        %v658 = vld [vmem:[%s238 + $0xb28] sm:$0xff]
        %v659 = vld [vmem:[%s238 + $0xb30] sm:$0xff]
        %v660 = vld [vmem:[%s238 + $0xb38] sm:$0xff]
        %v661 = vld [vmem:[%s238 + $0xb40] sm:$0xff]
        %v662 = vld [vmem:[%s238 + $0xb48] sm:$0xff]
        %v663 = vld [vmem:[%s238 + $0xb50] sm:$0xff]
        %v664 = vld [vmem:[%s238 + $0xb58] sm:$0xff]
        %v665 = vld [vmem:[%s238 + $0xb60] sm:$0xff]
        %v666 = vld [vmem:[%s238 + $0xb68] sm:$0xff]
        %v667 = vld [vmem:[%s238 + $0xb70] sm:$0xff]
        %v668 = vld [vmem:[%s238 + $0xb78] sm:$0xff]
        %v669 = vld [vmem:[%s238 + $0xb80] sm:$0xff]
        %v670 = vld [vmem:[%s238 + $0xb88] sm:$0xff]
        %v671 = vld [vmem:[%s238 + $0xb90] sm:$0xff]
        %v672 = vld [vmem:[%s238 + $0xb98] sm:$0xff]
        %v673 = vld [vmem:[%s238 + $0xba0] sm:$0xff]
        %v674 = vld [vmem:[%s238 + $0xba8] sm:$0xff]
        %v675 = vld [vmem:[%s238 + $0xbb0] sm:$0xff]
        %v676 = vld [vmem:[%s238 + $0xbb8] sm:$0xff]
        %v677 = vld [vmem:[%s238 + $0xbc0] sm:$0xff]
        %v678 = vld [vmem:[%s238 + $0xbc8] sm:$0xff]
        %v679 = vld [vmem:[%s238 + $0xbd0] sm:$0xff]
        %v680 = vld [vmem:[%s238 + $0xbd8] sm:$0xff]
        %v681 = vld [vmem:[%s238 + $0xbe0] sm:$0xff]
        %v682 = vld [vmem:[%s238 + $0xbe8] sm:$0xff]
        %v683 = vld [vmem:[%s238 + $0xbf0] sm:$0xff]
        %v684 = vld [vmem:[%s238 + $0xbf8] sm:$0xff]
        %v685 = vld [vmem:[%s238 + $0xc00] sm:$0xff]
        %v686 = vld [vmem:[%s238 + $0xc08] sm:$0xff]
        %v687 = vld [vmem:[%s238 + $0xc10] sm:$0xff]
        %v688 = vld [vmem:[%s238 + $0xc18] sm:$0xff]
        %v689 = vld [vmem:[%s238 + $0xc20] sm:$0xff]
        %v690 = vld [vmem:[%s238 + $0xc28] sm:$0xff]
        %v691 = vld [vmem:[%s238 + $0xc30] sm:$0xff]
        %v692 = vld [vmem:[%s238 + $0xc38] sm:$0xff]
        %v693 = vld [vmem:[%s238 + $0xc40] sm:$0xff]
        %v694 = vld [vmem:[%s238 + $0xc48] sm:$0xff]
        %v695 = vld [vmem:[%s238 + $0xc50] sm:$0xff]
        %v696 = vld [vmem:[%s238 + $0xc58] sm:$0xff]
        %v697 = vld [vmem:[%s238 + $0xc60] sm:$0xff]
        %v698 = vld [vmem:[%s238 + $0xc68] sm:$0xff]
        %v699 = vld [vmem:[%s238 + $0xc70] sm:$0xff]
        %v700 = vld [vmem:[%s238 + $0xc78] sm:$0xff]
        %v701 = vld [vmem:[%s238 + $0xc80] sm:$0xff]
        %v702 = vld [vmem:[%s238 + $0xc88] sm:$0xff]
        %v703 = vld [vmem:[%s238 + $0xc90] sm:$0xff]
        %v704 = vld [vmem:[%s238 + $0xc98] sm:$0xff]
        %v705 = vld [vmem:[%s238 + $0xca0] sm:$0xff]
        %v706 = vld [vmem:[%s238 + $0xca8] sm:$0xff]
        %v707 = vld [vmem:[%s238 + $0xcb0] sm:$0xff]
        %v708 = vld [vmem:[%s238 + $0xcb8] sm:$0xff]
        %v709 = vld [vmem:[%s238 + $0xcc0] sm:$0xff]
        %v710 = vld [vmem:[%s238 + $0xcc8] sm:$0xff]
        %v711 = vld [vmem:[%s238 + $0xcd0] sm:$0xff]
        %v712 = vld [vmem:[%s238 + $0xcd8] sm:$0xff]
        %v713 = vld [vmem:[%s238 + $0xce0] sm:$0xff]
        %v714 = vld [vmem:[%s238 + $0xce8] sm:$0xff]
        %v715 = vld [vmem:[%s238 + $0xcf0] sm:$0xff]
        %v716 = vld [vmem:[%s238 + $0xcf8] sm:$0xff]
        %v717 = vld [vmem:[%s238 + $0xd00] sm:$0xff]
        %v718 = vld [vmem:[%s238 + $0xd08] sm:$0xff]
        %v719 = vld [vmem:[%s238 + $0xd10] sm:$0xff]
        %v720 = vld [vmem:[%s238 + $0xd18] sm:$0xff]
        %v721 = vld [vmem:[%s238 + $0xd20] sm:$0xff]
        %v722 = vld [vmem:[%s238 + $0xd28] sm:$0xff]
        %v723 = vld [vmem:[%s238 + $0xd30] sm:$0xff]
        %v724 = vld [vmem:[%s238 + $0xd38] sm:$0xff]
        %v725 = vld [vmem:[%s238 + $0xd40] sm:$0xff]
        %v726 = vld [vmem:[%s238 + $0xd48] sm:$0xff]
        %v727 = vld [vmem:[%s238 + $0xd50] sm:$0xff]
        %v728 = vld [vmem:[%s238 + $0xd58] sm:$0xff]
        %v729 = vld [vmem:[%s238 + $0xd60] sm:$0xff]
        %v730 = vld [vmem:[%s238 + $0xd68] sm:$0xff]
        %v731 = vld [vmem:[%s238 + $0xd70] sm:$0xff]
        %v732 = vld [vmem:[%s238 + $0xd78] sm:$0xff]
        %v733 = vld [vmem:[%s238 + $0xd80] sm:$0xff]
        %v734 = vld [vmem:[%s238 + $0xd88] sm:$0xff]
        %v735 = vld [vmem:[%s238 + $0xd90] sm:$0xff]
        %v736 = vld [vmem:[%s238 + $0xd98] sm:$0xff]
        %v737 = vld [vmem:[%s238 + $0xda0] sm:$0xff]
        %v738 = vld [vmem:[%s238 + $0xda8] sm:$0xff]
        %v739 = vld [vmem:[%s238 + $0xdb0] sm:$0xff]
        %v740 = vld [vmem:[%s238 + $0xdb8] sm:$0xff]
        %v741 = vld [vmem:[%s238 + $0xdc0] sm:$0xff]
        %v742 = vld [vmem:[%s238 + $0xdc8] sm:$0xff]
        %v743 = vld [vmem:[%s238 + $0xdd0] sm:$0xff]
        %v744 = vld [vmem:[%s238 + $0xdd8] sm:$0xff]
        %v745 = vld [vmem:[%s238 + $0xde0] sm:$0xff]
        %v746 = vld [vmem:[%s238 + $0xde8] sm:$0xff]
        %v747 = vld [vmem:[%s238 + $0xdf0] sm:$0xff]
        %v748 = vld [vmem:[%s238 + $0xdf8] sm:$0xff]
        %v749 = vld [vmem:[%s238 + $0xe00] sm:$0xff]
        %v750 = vld [vmem:[%s238 + $0xe08] sm:$0xff]
        %v751 = vld [vmem:[%s238 + $0xe10] sm:$0xff]
        %v752 = vld [vmem:[%s238 + $0xe18] sm:$0xff]
        %v753 = vld [vmem:[%s238 + $0xe20] sm:$0xff]
        %v754 = vld [vmem:[%s238 + $0xe28] sm:$0xff]
        %v755 = vld [vmem:[%s238 + $0xe30] sm:$0xff]
        %v756 = vld [vmem:[%s238 + $0xe38] sm:$0xff]
        %v757 = vld [vmem:[%s238 + $0xe40] sm:$0xff]
        %v758 = vld [vmem:[%s238 + $0xe48] sm:$0xff]
        %v759 = vld [vmem:[%s238 + $0xe50] sm:$0xff]
        %v760 = vld [vmem:[%s238 + $0xe58] sm:$0xff]
        %v761 = vld [vmem:[%s238 + $0xe60] sm:$0xff]
        %v762 = vld [vmem:[%s238 + $0xe68] sm:$0xff]
        %v763 = vld [vmem:[%s238 + $0xe70] sm:$0xff]
        %v764 = vld [vmem:[%s238 + $0xe78] sm:$0xff]
        %v765 = vld [vmem:[%s238 + $0xe80] sm:$0xff]
        %v766 = vld [vmem:[%s238 + $0xe88] sm:$0xff]
        %v767 = vld [vmem:[%s238 + $0xe90] sm:$0xff]
        %v768 = vld [vmem:[%s238 + $0xe98] sm:$0xff]
        %v769 = vld [vmem:[%s238 + $0xea0] sm:$0xff]
        %v770 = vld [vmem:[%s238 + $0xea8] sm:$0xff]
        %v771 = vld [vmem:[%s238 + $0xeb0] sm:$0xff]
        %v772 = vld [vmem:[%s238 + $0xeb8] sm:$0xff]
        %v773 = vld [vmem:[%s238 + $0xec0] sm:$0xff]
        %v774 = vld [vmem:[%s238 + $0xec8] sm:$0xff]
        %v775 = vld [vmem:[%s238 + $0xed0] sm:$0xff]
        %v776 = vld [vmem:[%s238 + $0xed8] sm:$0xff]
        %v777 = vld [vmem:[%s238 + $0xee0] sm:$0xff]
        %v778 = vld [vmem:[%s238 + $0xee8] sm:$0xff]
        %v779 = vld [vmem:[%s238 + $0xef0] sm:$0xff]
        %v780 = vld [vmem:[%s238 + $0xef8] sm:$0xff]
        %v781 = vld [vmem:[%s238 + $0xf00] sm:$0xff]
        %v782 = vld [vmem:[%s238 + $0xf08] sm:$0xff]
        %v783 = vld [vmem:[%s238 + $0xf10] sm:$0xff]
        %v784 = vld [vmem:[%s238 + $0xf18] sm:$0xff]
        %v785 = vld [vmem:[%s238 + $0xf20] sm:$0xff]
        %v786 = vld [vmem:[%s238 + $0xf28] sm:$0xff]
        %v787 = vld [vmem:[%s238 + $0xf30] sm:$0xff]
        %v788 = vld [vmem:[%s238 + $0xf38] sm:$0xff]
        %v789 = vld [vmem:[%s238 + $0xf40] sm:$0xff]
        %v790 = vld [vmem:[%s238 + $0xf48] sm:$0xff]
        %v791 = vld [vmem:[%s238 + $0xf50] sm:$0xff]
        %v792 = vld [vmem:[%s238 + $0xf58] sm:$0xff]
        %v793 = vld [vmem:[%s238 + $0xf60] sm:$0xff]
        %v794 = vld [vmem:[%s238 + $0xf68] sm:$0xff]
        %v795 = vld [vmem:[%s238 + $0xf70] sm:$0xff]
        %v796 = vld [vmem:[%s238 + $0xf78] sm:$0xff]
        %v797 = vld [vmem:[%s238 + $0xf80] sm:$0xff]
        %v798 = vld [vmem:[%s238 + $0xf88] sm:$0xff]
        %v799 = vld [vmem:[%s238 + $0xf90] sm:$0xff]
        %v800 = vld [vmem:[%s238 + $0xf98] sm:$0xff]
        %v801 = vld [vmem:[%s238 + $0xfa0] sm:$0xff]
        %v802 = vld [vmem:[%s238 + $0xfa8] sm:$0xff]
        %v803 = vld [vmem:[%s238 + $0xfb0] sm:$0xff]
        %v804 = vld [vmem:[%s238 + $0xfb8] sm:$0xff]
        %v805 = vld [vmem:[%s238 + $0xfc0] sm:$0xff]
        %v806 = vld [vmem:[%s238 + $0xfc8] sm:$0xff]
        %v807 = vld [vmem:[%s238 + $0xfd0] sm:$0xff]
        %v808 = vld [vmem:[%s238 + $0xfd8] sm:$0xff]
        %v809 = vld [vmem:[%s238 + $0xfe0] sm:$0xff]
        %v810 = vld [vmem:[%s238 + $0xfe8] sm:$0xff]
        %v811 = vld [vmem:[%s238 + $0xff0] sm:$0xff]
        %v812 = vld [vmem:[%s238 + $0xff8] sm:$0xff]
        %v813 = vld [vmem:[%s238 + $0x1000] sm:$0xff]
        %v814 = vld [vmem:[%s238 + $0x1008] sm:$0xff]
        %v815 = vld [vmem:[%s238 + $0x1010] sm:$0xff]
        %v816 = vld [vmem:[%s238 + $0x1018] sm:$0xff]
        %v817 = vld [vmem:[%s238 + $0x1020] sm:$0xff]
        %v818 = vld [vmem:[%s238 + $0x1028] sm:$0xff]
        %v819 = vld [vmem:[%s238 + $0x1030] sm:$0xff]
        %v820 = vld [vmem:[%s238 + $0x1038] sm:$0xff]
        %v821 = vld [vmem:[%s238 + $0x1040] sm:$0xff]
        %v822 = vld [vmem:[%s238 + $0x1048] sm:$0xff]
        %v823 = vld [vmem:[%s238 + $0x1050] sm:$0xff]
        %v824 = vld [vmem:[%s238 + $0x1058] sm:$0xff]
        %v825 = vld [vmem:[%s238 + $0x1060] sm:$0xff]
        %v826 = vld [vmem:[%s238 + $0x1068] sm:$0xff]
        %v827 = vld [vmem:[%s238 + $0x1070] sm:$0xff]
        %v828 = vld [vmem:[%s238 + $0x1078] sm:$0xff]
        %v829 = vld [vmem:[%s238 + $0x1080] sm:$0xff]
        %v830 = vld [vmem:[%s238 + $0x1088] sm:$0xff]
        %v831 = vld [vmem:[%s238 + $0x1090] sm:$0xff]
        %v832 = vld [vmem:[%s238 + $0x1098] sm:$0xff]
        %v833 = vld [vmem:[%s238 + $0x10a0] sm:$0xff]
        %v834 = vld [vmem:[%s238 + $0x10a8] sm:$0xff]
        %v835 = vld [vmem:[%s238 + $0x10b0] sm:$0xff]
        %v836 = vld [vmem:[%s238 + $0x10b8] sm:$0xff]
        %v837 = vld [vmem:[%s238 + $0x10c0] sm:$0xff]
        %v838 = vld [vmem:[%s238 + $0x10c8] sm:$0xff]
        %v839 = vld [vmem:[%s238 + $0x10d0] sm:$0xff]
        %v840 = vld [vmem:[%s238 + $0x10d8] sm:$0xff]
        %v841 = vld [vmem:[%s238 + $0x10e0] sm:$0xff]
        %v842 = vld [vmem:[%s238 + $0x10e8] sm:$0xff]
        %v843 = vld [vmem:[%s238 + $0x10f0] sm:$0xff]
        %v844 = vld [vmem:[%s238 + $0x10f8] sm:$0xff]
        %v845 = vld [vmem:[%s238 + $0x1100] sm:$0xff]
        %v846 = vld [vmem:[%s238 + $0x1108] sm:$0xff]
        %v847 = vld [vmem:[%s238 + $0x1110] sm:$0xff]
        %v848 = vld [vmem:[%s238 + $0x1118] sm:$0xff]
        %v849 = vld [vmem:[%s238 + $0x1120] sm:$0xff]
        %v850 = vld [vmem:[%s238 + $0x1128] sm:$0xff]
        %v851 = vld [vmem:[%s238 + $0x1130] sm:$0xff]
        %v852 = vld [vmem:[%s238 + $0x1138] sm:$0xff]
        %v853 = vld [vmem:[%s238 + $0x1140] sm:$0xff]
        %v854 = vld [vmem:[%s238 + $0x1148] sm:$0xff]
        %v855 = vld [vmem:[%s238 + $0x1150] sm:$0xff]
        %v856 = vld [vmem:[%s238 + $0x1158] sm:$0xff]
        %v857 = vld [vmem:[%s238 + $0x1160] sm:$0xff]
        %v858 = vld [vmem:[%s238 + $0x1168] sm:$0xff]
        %v859 = vld [vmem:[%s238 + $0x1170] sm:$0xff]
        %v860 = vld [vmem:[%s238 + $0x1178] sm:$0xff]
        %v861 = vld [vmem:[%s238 + $0x1180] sm:$0xff]
        %v862 = vld [vmem:[%s238 + $0x1188] sm:$0xff]
        %v863 = vld [vmem:[%s238 + $0x1190] sm:$0xff]
        %v864 = vld [vmem:[%s238 + $0x1198] sm:$0xff]
        %v865 = vld [vmem:[%s238 + $0x11a0] sm:$0xff]
        %v866 = vld [vmem:[%s238 + $0x11a8] sm:$0xff]
        %v867 = vld [vmem:[%s238 + $0x11b0] sm:$0xff]
        %v868 = vld [vmem:[%s238 + $0x11b8] sm:$0xff]
        %v869 = vld [vmem:[%s238 + $0x11c0] sm:$0xff]
        %v870 = vld [vmem:[%s238 + $0x11c8] sm:$0xff]
        %v871 = vld [vmem:[%s238 + $0x11d0] sm:$0xff]
        %v872 = vld [vmem:[%s238 + $0x11d8] sm:$0xff]
        %v873 = vld [vmem:[%s238 + $0x11e0] sm:$0xff]
        %v874 = vld [vmem:[%s238 + $0x11e8] sm:$0xff]
        %v875 = vld [vmem:[%s238 + $0x11f0] sm:$0xff]
        %v876 = vld [vmem:[%s238 + $0x11f8] sm:$0xff]
        %v877 = vld [vmem:[%s238 + $0x1200] sm:$0xff]
        %v878 = vld [vmem:[%s238 + $0x1208] sm:$0xff]
        %v879 = vld [vmem:[%s238 + $0x1210] sm:$0xff]
        %v880 = vld [vmem:[%s238 + $0x1218] sm:$0xff]
        %v881 = vld [vmem:[%s238 + $0x1220] sm:$0xff]
        %v882 = vld [vmem:[%s238 + $0x1228] sm:$0xff]
        %v883 = vld [vmem:[%s238 + $0x1230] sm:$0xff]
        %v884 = vld [vmem:[%s238 + $0x1238] sm:$0xff]
        %v885 = vld [vmem:[%s238 + $0x1240] sm:$0xff]
        %v886 = vld [vmem:[%s238 + $0x1248] sm:$0xff]
        %v887 = vld [vmem:[%s238 + $0x1250] sm:$0xff]
        %v888 = vld [vmem:[%s238 + $0x1258] sm:$0xff]
        %v889 = vld [vmem:[%s238 + $0x1260] sm:$0xff]
        %v890 = vld [vmem:[%s238 + $0x1268] sm:$0xff]
        %v891 = vld [vmem:[%s238 + $0x1270] sm:$0xff]
        %v892 = vld [vmem:[%s238 + $0x1278] sm:$0xff]
        %v893 = vld [vmem:[%s238 + $0x1280] sm:$0xff]
        %v894 = vld [vmem:[%s238 + $0x1288] sm:$0xff]
        %v895 = vld [vmem:[%s238 + $0x1290] sm:$0xff]
        %v896 = vld [vmem:[%s238 + $0x1298] sm:$0xff]
        %v897 = vld [vmem:[%s238 + $0x12a0] sm:$0xff]
        %v898 = vld [vmem:[%s238 + $0x12a8] sm:$0xff]
        %v899 = vld [vmem:[%s238 + $0x12b0] sm:$0xff]
        %v900 = vld [vmem:[%s238 + $0x12b8] sm:$0xff]
        %v901 = vld [vmem:[%s238 + $0x12c0] sm:$0xff]
        %v902 = vld [vmem:[%s238 + $0x12c8] sm:$0xff]
        %v903 = vld [vmem:[%s238 + $0x12d0] sm:$0xff]
        %v904 = vld [vmem:[%s238 + $0x12d8] sm:$0xff]
        %v905 = vld [vmem:[%s238 + $0x12e0] sm:$0xff]
        %v906 = vld [vmem:[%s238 + $0x12e8] sm:$0xff]
        %v907 = vld [vmem:[%s238 + $0x12f0] sm:$0xff]
        %v908 = vld [vmem:[%s238 + $0x12f8] sm:$0xff]
        %v909 = vld [vmem:[%s238 + $0x1300] sm:$0xff]
        %v910 = vld [vmem:[%s238 + $0x1308] sm:$0xff]
        %v911 = vld [vmem:[%s238 + $0x1310] sm:$0xff]
        %v912 = vld [vmem:[%s238 + $0x1318] sm:$0xff]
        %v913 = vld [vmem:[%s238 + $0x1320] sm:$0xff]
        %v914 = vld [vmem:[%s238 + $0x1328] sm:$0xff]
        %v915 = vld [vmem:[%s238 + $0x1330] sm:$0xff]
        %v916 = vld [vmem:[%s238 + $0x1338] sm:$0xff]
        %v917 = vld [vmem:[%s238 + $0x1340] sm:$0xff]
        %v918 = vld [vmem:[%s238 + $0x1348] sm:$0xff]
        %v919 = vld [vmem:[%s238 + $0x1350] sm:$0xff]
        %v920 = vld [vmem:[%s238 + $0x1358] sm:$0xff]
        %v921 = vld [vmem:[%s238 + $0x1360] sm:$0xff]
        %v922 = vld [vmem:[%s238 + $0x1368] sm:$0xff]
        %v923 = vld [vmem:[%s238 + $0x1370] sm:$0xff]
        %v924 = vld [vmem:[%s238 + $0x1378] sm:$0xff]
        %v925 = vld [vmem:[%s238 + $0x1380] sm:$0xff]
        %v926 = vld [vmem:[%s238 + $0x1388] sm:$0xff]
        %v927 = vld [vmem:[%s238 + $0x1390] sm:$0xff]
        %v928 = vld [vmem:[%s238 + $0x1398] sm:$0xff]
        %v929 = vld [vmem:[%s238 + $0x13a0] sm:$0xff]
        %v930 = vld [vmem:[%s238 + $0x13a8] sm:$0xff]
        %v931 = vld [vmem:[%s238 + $0x13b0] sm:$0xff]
        %v932 = vld [vmem:[%s238 + $0x13b8] sm:$0xff]
        %v933 = vld [vmem:[%s238 + $0x13c0] sm:$0xff]
        %v934 = vld [vmem:[%s238 + $0x13c8] sm:$0xff]
        %v935 = vld [vmem:[%s238 + $0x13d0] sm:$0xff]
        %v936 = vld [vmem:[%s238 + $0x13d8] sm:$0xff]
        %v937 = vld [vmem:[%s238 + $0x13e0] sm:$0xff]
        %v938 = vld [vmem:[%s238 + $0x13e8] sm:$0xff]
        %v939 = vld [vmem:[%s238 + $0x13f0] sm:$0xff]
        %v940 = vld [vmem:[%s238 + $0x13f8] sm:$0xff]
        %v941 = vld [vmem:[%s238 + $0x1400] sm:$0xff]
        %v942 = vld [vmem:[%s238 + $0x1408] sm:$0xff]
        %v943 = vld [vmem:[%s238 + $0x1410] sm:$0xff]
        %v944 = vld [vmem:[%s238 + $0x1418] sm:$0xff]
        %v945 = vld [vmem:[%s238 + $0x1420] sm:$0xff]
        %v946 = vld [vmem:[%s238 + $0x1428] sm:$0xff]
        %v947 = vld [vmem:[%s238 + $0x1430] sm:$0xff]
        %v948 = vld [vmem:[%s238 + $0x1438] sm:$0xff]
        %v949 = vld [vmem:[%s238 + $0x1440] sm:$0xff]
        %v950 = vld [vmem:[%s238 + $0x1448] sm:$0xff]
        %v951 = vld [vmem:[%s238 + $0x1450] sm:$0xff]
        %v952 = vld [vmem:[%s238 + $0x1458] sm:$0xff]
        %v953 = vld [vmem:[%s238 + $0x1460] sm:$0xff]
        %v954 = vld [vmem:[%s238 + $0x1468] sm:$0xff]
        %v955 = vld [vmem:[%s238 + $0x1470] sm:$0xff]
        %v956 = vld [vmem:[%s238 + $0x1478] sm:$0xff]
        %v957 = vld [vmem:[%s238 + $0x1480] sm:$0xff]
        %v958 = vld [vmem:[%s238 + $0x1488] sm:$0xff]
        %v959 = vld [vmem:[%s238 + $0x1490] sm:$0xff]
        %v960 = vld [vmem:[%s238 + $0x1498] sm:$0xff]
        %v961 = vld [vmem:[%s238 + $0x14a0] sm:$0xff]
        %v962 = vld [vmem:[%s238 + $0x14a8] sm:$0xff]
        %v963 = vld [vmem:[%s238 + $0x14b0] sm:$0xff]
        %v964 = vld [vmem:[%s238 + $0x14b8] sm:$0xff]
        %v965 = vld [vmem:[%s238 + $0x14c0] sm:$0xff]
        %v966 = vld [vmem:[%s238 + $0x14c8] sm:$0xff]
        %v967 = vld [vmem:[%s238 + $0x14d0] sm:$0xff]
        %v968 = vld [vmem:[%s238 + $0x14d8] sm:$0xff]
        %v969 = vld [vmem:[%s238 + $0x14e0] sm:$0xff]
        %v970 = vld [vmem:[%s238 + $0x14e8] sm:$0xff]
        %v971 = vld [vmem:[%s238 + $0x14f0] sm:$0xff]
        %v972 = vld [vmem:[%s238 + $0x14f8] sm:$0xff]
        %v973 = vld [vmem:[%s238 + $0x1500] sm:$0xff]
        %v974 = vld [vmem:[%s238 + $0x1508] sm:$0xff]
        %v975 = vld [vmem:[%s238 + $0x1510] sm:$0xff]
        %v976 = vld [vmem:[%s238 + $0x1518] sm:$0xff]
        %v977 = vld [vmem:[%s238 + $0x1520] sm:$0xff]
        %v978 = vld [vmem:[%s238 + $0x1528] sm:$0xff]
        %v979 = vld [vmem:[%s238 + $0x1530] sm:$0xff]
        %v980 = vld [vmem:[%s238 + $0x1538] sm:$0xff]
        %v981 = vld [vmem:[%s238 + $0x1540] sm:$0xff]
        %v982 = vld [vmem:[%s238 + $0x1548] sm:$0xff]
        %v983 = vld [vmem:[%s238 + $0x1550] sm:$0xff]
        %v984 = vld [vmem:[%s238 + $0x1558] sm:$0xff]
        %v985 = vld [vmem:[%s238 + $0x1560] sm:$0xff]
        %v986 = vld [vmem:[%s238 + $0x1568] sm:$0xff]
        %v987 = vld [vmem:[%s238 + $0x1570] sm:$0xff]
        %v988 = vld [vmem:[%s238 + $0x1578] sm:$0xff]
        %v989 = vld [vmem:[%s238 + $0x1580] sm:$0xff]
        %v990 = vld [vmem:[%s238 + $0x1588] sm:$0xff]
        %v991 = vld [vmem:[%s238 + $0x1590] sm:$0xff]
        %v992 = vld [vmem:[%s238 + $0x1598] sm:$0xff]
        %v993 = vld [vmem:[%s238 + $0x15a0] sm:$0xff]
        %v994 = vld [vmem:[%s238 + $0x15a8] sm:$0xff]
        %v995 = vld [vmem:[%s238 + $0x15b0] sm:$0xff]
        %v996 = vld [vmem:[%s238 + $0x15b8] sm:$0xff]
        %v997 = vld [vmem:[%s238 + $0x15c0] sm:$0xff]
        %v998 = vld [vmem:[%s238 + $0x15c8] sm:$0xff]
        %v999 = vld [vmem:[%s238 + $0x15d0] sm:$0xff]
        %v1000 = vld [vmem:[%s238 + $0x15d8] sm:$0xff]
        %v1001 = vld [vmem:[%s238 + $0x15e0] sm:$0xff]
        %v1002 = vld [vmem:[%s238 + $0x15e8] sm:$0xff]
        %v1003 = vld [vmem:[%s238 + $0x15f0] sm:$0xff]
        %v1004 = vld [vmem:[%s238 + $0x15f8] sm:$0xff]
        %v1005 = vld [vmem:[%s238 + $0x1600] sm:$0xff]
        %v1006 = vld [vmem:[%s238 + $0x1608] sm:$0xff]
        %v1007 = vld [vmem:[%s238 + $0x1610] sm:$0xff]
        %v1008 = vld [vmem:[%s238 + $0x1618] sm:$0xff]
        %v1009 = vld [vmem:[%s238 + $0x1620] sm:$0xff]
        %v1010 = vld [vmem:[%s238 + $0x1628] sm:$0xff]
        %v1011 = vld [vmem:[%s238 + $0x1630] sm:$0xff]
        %v1012 = vld [vmem:[%s238 + $0x1638] sm:$0xff]
        %v1013 = vld [vmem:[%s238 + $0x1640] sm:$0xff]
        %v1014 = vld [vmem:[%s238 + $0x1648] sm:$0xff]
        %v1015 = vld [vmem:[%s238 + $0x1650] sm:$0xff]
        %v1016 = vld [vmem:[%s238 + $0x1658] sm:$0xff]
        %v1017 = vld [vmem:[%s238 + $0x1660] sm:$0xff]
        %v1018 = vld [vmem:[%s238 + $0x1668] sm:$0xff]
        %v1019 = vld [vmem:[%s238 + $0x1670] sm:$0xff]
        %v1020 = vld [vmem:[%s238 + $0x1678] sm:$0xff]
        %v1021 = vld [vmem:[%s238 + $0x1680] sm:$0xff]
        %v1022 = vld [vmem:[%s238 + $0x1688] sm:$0xff]
        %v1023 = vld [vmem:[%s238 + $0x1690] sm:$0xff]
        %v1024 = vld [vmem:[%s238 + $0x1698] sm:$0xff]
        %v1025 = vld [vmem:[%s238 + $0x16a0] sm:$0xff]
        %v1026 = vld [vmem:[%s238 + $0x16a8] sm:$0xff]
        %v1027 = vld [vmem:[%s238 + $0x16b0] sm:$0xff]
        %v1028 = vld [vmem:[%s238 + $0x16b8] sm:$0xff]
        %v1029 = vld [vmem:[%s238 + $0x16c0] sm:$0xff]
        %v1030 = vld [vmem:[%s238 + $0x16c8] sm:$0xff]
        %v1031 = vld [vmem:[%s238 + $0x16d0] sm:$0xff]
        %v1032 = vld [vmem:[%s238 + $0x16d8] sm:$0xff]
        %v1033 = vld [vmem:[%s238 + $0x16e0] sm:$0xff]
        %v1034 = vld [vmem:[%s238 + $0x16e8] sm:$0xff]
        %v1035 = vld [vmem:[%s238 + $0x16f0] sm:$0xff]
        %v1036 = vld [vmem:[%s238 + $0x16f8] sm:$0xff]
        %v1037 = vld [vmem:[%s238 + $0x1700] sm:$0xff]
        %v1038 = vld [vmem:[%s238 + $0x1708] sm:$0xff]
        %v1039 = vld [vmem:[%s238 + $0x1710] sm:$0xff]
        %v1040 = vld [vmem:[%s238 + $0x1718] sm:$0xff]
        %v1041 = vld [vmem:[%s238 + $0x1720] sm:$0xff]
        %v1042 = vld [vmem:[%s238 + $0x1728] sm:$0xff]
        %v1043 = vld [vmem:[%s238 + $0x1730] sm:$0xff]
        %v1044 = vld [vmem:[%s238 + $0x1738] sm:$0xff]
        %v1045 = vld [vmem:[%s238 + $0x1740] sm:$0xff]
        %v1046 = vld [vmem:[%s238 + $0x1748] sm:$0xff]
        %v1047 = vld [vmem:[%s238 + $0x1750] sm:$0xff]
        %v1048 = vld [vmem:[%s238 + $0x1758] sm:$0xff]
        %v1049 = vld [vmem:[%s238 + $0x1760] sm:$0xff]
        %v1050 = vld [vmem:[%s238 + $0x1768] sm:$0xff]
        %v1051 = vld [vmem:[%s238 + $0x1770] sm:$0xff]
        %v1052 = vld [vmem:[%s238 + $0x1778] sm:$0xff]
        %v1053 = vld [vmem:[%s238 + $0x1780] sm:$0xff]
        %v1054 = vld [vmem:[%s238 + $0x1788] sm:$0xff]
        %v1055 = vld [vmem:[%s238 + $0x1790] sm:$0xff]
        %v1056 = vld [vmem:[%s238 + $0x1798] sm:$0xff]
        %v1057 = vld [vmem:[%s238 + $0x17a0] sm:$0xff]
        %v1058 = vld [vmem:[%s238 + $0x17a8] sm:$0xff]
        %v1059 = vld [vmem:[%s238 + $0x17b0] sm:$0xff]
        %v1060 = vld [vmem:[%s238 + $0x17b8] sm:$0xff]
        %v1061 = vld [vmem:[%s238 + $0x17c0] sm:$0xff]
        %v1062 = vld [vmem:[%s238 + $0x17c8] sm:$0xff]
        %v1063 = vld [vmem:[%s238 + $0x17d0] sm:$0xff]
        %v1064 = vld [vmem:[%s238 + $0x17d8] sm:$0xff]
        %v1065 = vld [vmem:[%s238 + $0x17e0] sm:$0xff]
        %v1066 = vld [vmem:[%s238 + $0x17e8] sm:$0xff]
        %v1067 = vld [vmem:[%s238 + $0x17f0] sm:$0xff]
        %v1068 = vld [vmem:[%s238 + $0x17f8] sm:$0xff]
        %v1069 = vld [vmem:[%s238 + $0x1800] sm:$0xff]
        %v1070 = vld [vmem:[%s238 + $0x1808] sm:$0xff]
        %v1071 = vld [vmem:[%s238 + $0x1810] sm:$0xff]
        %v1072 = vld [vmem:[%s238 + $0x1818] sm:$0xff]
        %v1073 = vld [vmem:[%s238 + $0x1820] sm:$0xff]
        %v1074 = vld [vmem:[%s238 + $0x1828] sm:$0xff]
        %v1075 = vld [vmem:[%s238 + $0x1830] sm:$0xff]
        %v1076 = vld [vmem:[%s238 + $0x1838] sm:$0xff]
        %v1077 = vld [vmem:[%s238 + $0x1840] sm:$0xff]
        %v1078 = vld [vmem:[%s238 + $0x1848] sm:$0xff]
        %v1079 = vld [vmem:[%s238 + $0x1850] sm:$0xff]
        %v1080 = vld [vmem:[%s238 + $0x1858] sm:$0xff]
        %v1081 = vld [vmem:[%s238 + $0x1860] sm:$0xff]
        %v1082 = vld [vmem:[%s238 + $0x1868] sm:$0xff]
        %v1083 = vld [vmem:[%s238 + $0x1870] sm:$0xff]
        %v1084 = vld [vmem:[%s238 + $0x1878] sm:$0xff]
        %v1085 = vld [vmem:[%s238 + $0x1880] sm:$0xff]
        %v1086 = vld [vmem:[%s238 + $0x1888] sm:$0xff]
        %v1087 = vld [vmem:[%s238 + $0x1890] sm:$0xff]
        %v1088 = vld [vmem:[%s238 + $0x1898] sm:$0xff]
        %v1089 = vld [vmem:[%s238 + $0x18a0] sm:$0xff]
        %v1090 = vld [vmem:[%s238 + $0x18a8] sm:$0xff]
        %v1091 = vld [vmem:[%s238 + $0x18b0] sm:$0xff]
        %v1092 = vld [vmem:[%s238 + $0x18b8] sm:$0xff]
        %v1093 = vld [vmem:[%s238 + $0x18c0] sm:$0xff]
        %v1094 = vld [vmem:[%s238 + $0x18c8] sm:$0xff]
        %v1095 = vld [vmem:[%s238 + $0x18d0] sm:$0xff]
        %v1096 = vld [vmem:[%s238 + $0x18d8] sm:$0xff]
        %v1097 = vld [vmem:[%s238 + $0x18e0] sm:$0xff]
        %v1098 = vld [vmem:[%s238 + $0x18e8] sm:$0xff]
        %v1099 = vld [vmem:[%s238 + $0x18f0] sm:$0xff]
        %v1100 = vld [vmem:[%s238 + $0x18f8] sm:$0xff]
        %v1101 = vld [vmem:[%s238 + $0x1900] sm:$0xff]
        %v1102 = vld [vmem:[%s238 + $0x1908] sm:$0xff]
        %v1103 = vld [vmem:[%s238 + $0x1910] sm:$0xff]
        %v1104 = vld [vmem:[%s238 + $0x1918] sm:$0xff]
        %v1105 = vld [vmem:[%s238 + $0x1920] sm:$0xff]
        %v1106 = vld [vmem:[%s238 + $0x1928] sm:$0xff]
        %v1107 = vld [vmem:[%s238 + $0x1930] sm:$0xff]
        %v1108 = vld [vmem:[%s238 + $0x1938] sm:$0xff]
        %v1109 = vld [vmem:[%s238 + $0x1940] sm:$0xff]
        %v1110 = vld [vmem:[%s238 + $0x1948] sm:$0xff]
        %v1111 = vld [vmem:[%s238 + $0x1950] sm:$0xff]
        %v1112 = vld [vmem:[%s238 + $0x1958] sm:$0xff]
        %v1113 = vld [vmem:[%s238 + $0x1960] sm:$0xff]
        %v1114 = vld [vmem:[%s238 + $0x1968] sm:$0xff]
        %v1115 = vld [vmem:[%s238 + $0x1970] sm:$0xff]
        %v1116 = vld [vmem:[%s238 + $0x1978] sm:$0xff]
        %v1117 = vld [vmem:[%s238 + $0x1980] sm:$0xff]
        %v1118 = vld [vmem:[%s238 + $0x1988] sm:$0xff]
        %v1119 = vld [vmem:[%s238 + $0x1990] sm:$0xff]
        %v1120 = vld [vmem:[%s238 + $0x1998] sm:$0xff]
        %v1121 = vld [vmem:[%s238 + $0x19a0] sm:$0xff]
        %v1122 = vld [vmem:[%s238 + $0x19a8] sm:$0xff]
        %v1123 = vld [vmem:[%s238 + $0x19b0] sm:$0xff]
        %v1124 = vld [vmem:[%s238 + $0x19b8] sm:$0xff]
        %v1125 = vld [vmem:[%s238 + $0x19c0] sm:$0xff]
        %v1126 = vld [vmem:[%s238 + $0x19c8] sm:$0xff]
        %v1127 = vld [vmem:[%s238 + $0x19d0] sm:$0xff]
        %v1128 = vld [vmem:[%s238 + $0x19d8] sm:$0xff]
        %v1129 = vld [vmem:[%s238 + $0x19e0] sm:$0xff]
        %v1130 = vld [vmem:[%s238 + $0x19e8] sm:$0xff]
        %v1131 = vld [vmem:[%s238 + $0x19f0] sm:$0xff]
        %v1132 = vld [vmem:[%s238 + $0x19f8] sm:$0xff]
        %v1133 = vld [vmem:[%s238 + $0x1a00] sm:$0xff]
        %v1134 = vld [vmem:[%s238 + $0x1a08] sm:$0xff]
        %v1135 = vld [vmem:[%s238 + $0x1a10] sm:$0xff]
        %v1136 = vld [vmem:[%s238 + $0x1a18] sm:$0xff]
        %v1137 = vld [vmem:[%s238 + $0x1a20] sm:$0xff]
        %v1138 = vld [vmem:[%s238 + $0x1a28] sm:$0xff]
        %v1139 = vld [vmem:[%s238 + $0x1a30] sm:$0xff]
        %v1140 = vld [vmem:[%s238 + $0x1a38] sm:$0xff]
        %v1141 = vld [vmem:[%s238 + $0x1a40] sm:$0xff]
        %v1142 = vld [vmem:[%s238 + $0x1a48] sm:$0xff]
        %v1143 = vld [vmem:[%s238 + $0x1a50] sm:$0xff]
        %v1144 = vld [vmem:[%s238 + $0x1a58] sm:$0xff]
        %v1145 = vld [vmem:[%s238 + $0x1a60] sm:$0xff]
        %v1146 = vld [vmem:[%s238 + $0x1a68] sm:$0xff]
        %v1147 = vld [vmem:[%s238 + $0x1a70] sm:$0xff]
        %v1148 = vld [vmem:[%s238 + $0x1a78] sm:$0xff]
        %v1149 = vld [vmem:[%s238 + $0x1a80] sm:$0xff]
        %v1150 = vld [vmem:[%s238 + $0x1a88] sm:$0xff]
        %v1151 = vld [vmem:[%s238 + $0x1a90] sm:$0xff]
        %v1152 = vld [vmem:[%s238 + $0x1a98] sm:$0xff]
        %v1153 = vld [vmem:[%s238 + $0x1aa0] sm:$0xff]
        %v1154 = vld [vmem:[%s238 + $0x1aa8] sm:$0xff]
        %v1155 = vld [vmem:[%s238 + $0x1ab0] sm:$0xff]
        %v1156 = vld [vmem:[%s238 + $0x1ab8] sm:$0xff]
        %v1157 = vld [vmem:[%s238 + $0x1ac0] sm:$0xff]
        %v1158 = vld [vmem:[%s238 + $0x1ac8] sm:$0xff]
        %v1159 = vld [vmem:[%s238 + $0x1ad0] sm:$0xff]
        %v1160 = vld [vmem:[%s238 + $0x1ad8] sm:$0xff]
        %v1161 = vld [vmem:[%s238 + $0x1ae0] sm:$0xff]
        %v1162 = vld [vmem:[%s238 + $0x1ae8] sm:$0xff]
        %v1163 = vld [vmem:[%s238 + $0x1af0] sm:$0xff]
        %v1164 = vld [vmem:[%s238 + $0x1af8] sm:$0xff]
        %v1165 = vld [vmem:[%s238 + $0x1b00] sm:$0xff]
        %v1166 = vld [vmem:[%s238 + $0x1b08] sm:$0xff]
        %v1167 = vld [vmem:[%s238 + $0x1b10] sm:$0xff]
        %v1168 = vld [vmem:[%s238 + $0x1b18] sm:$0xff]
        %v1169 = vld [vmem:[%s238 + $0x1b20] sm:$0xff]
        %v1170 = vld [vmem:[%s238 + $0x1b28] sm:$0xff]
        %v1171 = vld [vmem:[%s238 + $0x1b30] sm:$0xff]
        %v1172 = vld [vmem:[%s238 + $0x1b38] sm:$0xff]
        %v1173 = vld [vmem:[%s238 + $0x1b40] sm:$0xff]
        %v1174 = vld [vmem:[%s238 + $0x1b48] sm:$0xff]
        %v1175 = vld [vmem:[%s238 + $0x1b50] sm:$0xff]
        %v1176 = vld [vmem:[%s238 + $0x1b58] sm:$0xff]
        %v1177 = vld [vmem:[%s238 + $0x1b60] sm:$0xff]
        %v1178 = vld [vmem:[%s238 + $0x1b68] sm:$0xff]
        %v1179 = vld [vmem:[%s238 + $0x1b70] sm:$0xff]
        %v1180 = vld [vmem:[%s238 + $0x1b78] sm:$0xff]
        %v1181 = vld [vmem:[%s238 + $0x1b80] sm:$0xff]
        %v1182 = vld [vmem:[%s238 + $0x1b88] sm:$0xff]
        %v1183 = vld [vmem:[%s238 + $0x1b90] sm:$0xff]
        %v1184 = vld [vmem:[%s238 + $0x1b98] sm:$0xff]
        %v1185 = vld [vmem:[%s238 + $0x1ba0] sm:$0xff]
        %v1186 = vld [vmem:[%s238 + $0x1ba8] sm:$0xff]
        %v1187 = vld [vmem:[%s238 + $0x1bb0] sm:$0xff]
        %v1188 = vld [vmem:[%s238 + $0x1bb8] sm:$0xff]
        %v1189 = vld [vmem:[%s238 + $0x1bc0] sm:$0xff]
        %v1190 = vld [vmem:[%s238 + $0x1bc8] sm:$0xff]
        %v1191 = vld [vmem:[%s238 + $0x1bd0] sm:$0xff]
        %v1192 = vld [vmem:[%s238 + $0x1bd8] sm:$0xff]
        %v1193 = vld [vmem:[%s238 + $0x1be0] sm:$0xff]
        %v1194 = vld [vmem:[%s238 + $0x1be8] sm:$0xff]
        %v1195 = vld [vmem:[%s238 + $0x1bf0] sm:$0xff]
        %v1196 = vld [vmem:[%s238 + $0x1bf8] sm:$0xff]
        %v1197 = vld [vmem:[%s238 + $0x1c00] sm:$0xff]
        %v1198 = vld [vmem:[%s238 + $0x1c08] sm:$0xff]
        %v1199 = vld [vmem:[%s238 + $0x1c10] sm:$0xff]
        %v1200 = vld [vmem:[%s238 + $0x1c18] sm:$0xff]
        %v1201 = vld [vmem:[%s238 + $0x1c20] sm:$0xff]
        %v1202 = vld [vmem:[%s238 + $0x1c28] sm:$0xff]
        %v1203 = vld [vmem:[%s238 + $0x1c30] sm:$0xff]
        %v1204 = vld [vmem:[%s238 + $0x1c38] sm:$0xff]
        %v1205 = vld [vmem:[%s238 + $0x1c40] sm:$0xff]
        %v1206 = vld [vmem:[%s238 + $0x1c48] sm:$0xff]
        %v1207 = vld [vmem:[%s238 + $0x1c50] sm:$0xff]
        %v1208 = vld [vmem:[%s238 + $0x1c58] sm:$0xff]
        %v1209 = vld [vmem:[%s238 + $0x1c60] sm:$0xff]
        %v1210 = vld [vmem:[%s238 + $0x1c68] sm:$0xff]
        %v1211 = vld [vmem:[%s238 + $0x1c70] sm:$0xff]
        %v1212 = vld [vmem:[%s238 + $0x1c78] sm:$0xff]
        %v1213 = vld [vmem:[%s238 + $0x1c80] sm:$0xff]
        %v1214 = vld [vmem:[%s238 + $0x1c88] sm:$0xff]
        %v1215 = vld [vmem:[%s238 + $0x1c90] sm:$0xff]
        %v1216 = vld [vmem:[%s238 + $0x1c98] sm:$0xff]
        %v1217 = vld [vmem:[%s238 + $0x1ca0] sm:$0xff]
        %v1218 = vld [vmem:[%s238 + $0x1ca8] sm:$0xff]
        %v1219 = vld [vmem:[%s238 + $0x1cb0] sm:$0xff]
        %v1220 = vld [vmem:[%s238 + $0x1cb8] sm:$0xff]
        %v1221 = vld [vmem:[%s238 + $0x1cc0] sm:$0xff]
        %v1222 = vld [vmem:[%s238 + $0x1cc8] sm:$0xff]
        %v1223 = vld [vmem:[%s238 + $0x1cd0] sm:$0xff]
        %v1224 = vld [vmem:[%s238 + $0x1cd8] sm:$0xff]
        %v1225 = vld [vmem:[%s238 + $0x1ce0] sm:$0xff]
        %v1226 = vld [vmem:[%s238 + $0x1ce8] sm:$0xff]
        %v1227 = vld [vmem:[%s238 + $0x1cf0] sm:$0xff]
        %v1228 = vld [vmem:[%s238 + $0x1cf8] sm:$0xff]
        %v1229 = vld [vmem:[%s238 + $0x1d00] sm:$0xff]
        %v1230 = vld [vmem:[%s238 + $0x1d08] sm:$0xff]
        %v1231 = vld [vmem:[%s238 + $0x1d10] sm:$0xff]
        %v1232 = vld [vmem:[%s238 + $0x1d18] sm:$0xff]
        %v1233 = vld [vmem:[%s238 + $0x1d20] sm:$0xff]
        %v1234 = vld [vmem:[%s238 + $0x1d28] sm:$0xff]
        %v1235 = vld [vmem:[%s238 + $0x1d30] sm:$0xff]
        %v1236 = vld [vmem:[%s238 + $0x1d38] sm:$0xff]
        %v1237 = vld [vmem:[%s238 + $0x1d40] sm:$0xff]
        %v1238 = vld [vmem:[%s238 + $0x1d48] sm:$0xff]
        %v1239 = vld [vmem:[%s238 + $0x1d50] sm:$0xff]
        %v1240 = vld [vmem:[%s238 + $0x1d58] sm:$0xff]
        %v1241 = vld [vmem:[%s238 + $0x1d60] sm:$0xff]
        %v1242 = vld [vmem:[%s238 + $0x1d68] sm:$0xff]
        %v1243 = vld [vmem:[%s238 + $0x1d70] sm:$0xff]
        %v1244 = vld [vmem:[%s238 + $0x1d78] sm:$0xff]
        %v1245 = vld [vmem:[%s238 + $0x1d80] sm:$0xff]
        %v1246 = vld [vmem:[%s238 + $0x1d88] sm:$0xff]
        %v1247 = vld [vmem:[%s238 + $0x1d90] sm:$0xff]
        %v1248 = vld [vmem:[%s238 + $0x1d98] sm:$0xff]
        %v1249 = vld [vmem:[%s238 + $0x1da0] sm:$0xff]
        %v1250 = vld [vmem:[%s238 + $0x1da8] sm:$0xff]
        %v1251 = vld [vmem:[%s238 + $0x1db0] sm:$0xff]
        %v1252 = vld [vmem:[%s238 + $0x1db8] sm:$0xff]
        %v1253 = vld [vmem:[%s238 + $0x1dc0] sm:$0xff]
        %v1254 = vld [vmem:[%s238 + $0x1dc8] sm:$0xff]
        %v1255 = vld [vmem:[%s238 + $0x1dd0] sm:$0xff]
        %v1256 = vld [vmem:[%s238 + $0x1dd8] sm:$0xff]
        %v1257 = vld [vmem:[%s238 + $0x1de0] sm:$0xff]
        %v1258 = vld [vmem:[%s238 + $0x1de8] sm:$0xff]
        %v1259 = vld [vmem:[%s238 + $0x1df0] sm:$0xff]
        %v1260 = vld [vmem:[%s238 + $0x1df8] sm:$0xff]
        %v1261 = vld [vmem:[%s238 + $0x1e00] sm:$0xff]
        %v1262 = vld [vmem:[%s238 + $0x1e08] sm:$0xff]
        %v1263 = vld [vmem:[%s238 + $0x1e10] sm:$0xff]
        %v1264 = vld [vmem:[%s238 + $0x1e18] sm:$0xff]
        %v1265 = vld [vmem:[%s238 + $0x1e20] sm:$0xff]
        %v1266 = vld [vmem:[%s238 + $0x1e28] sm:$0xff]
        %v1267 = vld [vmem:[%s238 + $0x1e30] sm:$0xff]
        %v1268 = vld [vmem:[%s238 + $0x1e38] sm:$0xff]
        %v1269 = vld [vmem:[%s238 + $0x1e40] sm:$0xff]
        %v1270 = vld [vmem:[%s238 + $0x1e48] sm:$0xff]
        %v1271 = vld [vmem:[%s238 + $0x1e50] sm:$0xff]
        %v1272 = vld [vmem:[%s238 + $0x1e58] sm:$0xff]
        %v1273 = vld [vmem:[%s238 + $0x1e60] sm:$0xff]
        %v1274 = vld [vmem:[%s238 + $0x1e68] sm:$0xff]
        %v1275 = vld [vmem:[%s238 + $0x1e70] sm:$0xff]
        %v1276 = vld [vmem:[%s238 + $0x1e78] sm:$0xff]
        %v1277 = vld [vmem:[%s238 + $0x1e80] sm:$0xff]
        %v1278 = vld [vmem:[%s238 + $0x1e88] sm:$0xff]
        %v1279 = vld [vmem:[%s238 + $0x1e90] sm:$0xff]
        %v1280 = vld [vmem:[%s238 + $0x1e98] sm:$0xff]
        %v1281 = vld [vmem:[%s238 + $0x1ea0] sm:$0xff]
        %v1282 = vld [vmem:[%s238 + $0x1ea8] sm:$0xff]
        %v1283 = vld [vmem:[%s238 + $0x1eb0] sm:$0xff]
        %v1284 = vld [vmem:[%s238 + $0x1eb8] sm:$0xff]
        %v1285 = vld [vmem:[%s238 + $0x1ec0] sm:$0xff]
        %v1286 = vld [vmem:[%s238 + $0x1ec8] sm:$0xff]
        %v1287 = vld [vmem:[%s238 + $0x1ed0] sm:$0xff]
        %v1288 = vld [vmem:[%s238 + $0x1ed8] sm:$0xff]
        %v1289 = vld [vmem:[%s238 + $0x1ee0] sm:$0xff]
        %v1290 = vld [vmem:[%s238 + $0x1ee8] sm:$0xff]
        %v1291 = vld [vmem:[%s238 + $0x1ef0] sm:$0xff]
        %v1292 = vld [vmem:[%s238 + $0x1ef8] sm:$0xff]
        %v1293 = vld [vmem:[%s238 + $0x1f00] sm:$0xff]
        %v1294 = vld [vmem:[%s238 + $0x1f08] sm:$0xff]
        %v1295 = vld [vmem:[%s238 + $0x1f10] sm:$0xff]
        %v1296 = vld [vmem:[%s238 + $0x1f18] sm:$0xff]
        %v1297 = vld [vmem:[%s238 + $0x1f20] sm:$0xff]
        %v1298 = vld [vmem:[%s238 + $0x1f28] sm:$0xff]
        %v1299 = vld [vmem:[%s238 + $0x1f30] sm:$0xff]
        %v1300 = vld [vmem:[%s238 + $0x1f38] sm:$0xff]
        %v1301 = vld [vmem:[%s238 + $0x1f40] sm:$0xff]
        %v1302 = vld [vmem:[%s238 + $0x1f48] sm:$0xff]
        %v1303 = vld [vmem:[%s238 + $0x1f50] sm:$0xff]
        %v1304 = vld [vmem:[%s238 + $0x1f58] sm:$0xff]
        %v1305 = vld [vmem:[%s238 + $0x1f60] sm:$0xff]
        %v1306 = vld [vmem:[%s238 + $0x1f68] sm:$0xff]
        %v1307 = vld [vmem:[%s238 + $0x1f70] sm:$0xff]
        %v1308 = vld [vmem:[%s238 + $0x1f78] sm:$0xff]
        %v1309 = vld [vmem:[%s238 + $0x1f80] sm:$0xff]
        %v1310 = vld [vmem:[%s238 + $0x1f88] sm:$0xff]
        %v1311 = vld [vmem:[%s238 + $0x1f90] sm:$0xff]
        %v1312 = vld [vmem:[%s238 + $0x1f98] sm:$0xff]
        %v1313 = vld [vmem:[%s238 + $0x1fa0] sm:$0xff]
        %v1314 = vld [vmem:[%s238 + $0x1fa8] sm:$0xff]
        %v1315 = vld [vmem:[%s238 + $0x1fb0] sm:$0xff]
        %v1316 = vld [vmem:[%s238 + $0x1fb8] sm:$0xff]
        %v1317 = vld [vmem:[%s238 + $0x1fc0] sm:$0xff]
        %v1318 = vld [vmem:[%s238 + $0x1fc8] sm:$0xff]
        %v1319 = vld [vmem:[%s238 + $0x1fd0] sm:$0xff]
        %v1320 = vld [vmem:[%s238 + $0x1fd8] sm:$0xff]
        %v1321 = vld [vmem:[%s238 + $0x1fe0] sm:$0xff]
        %v1322 = vld [vmem:[%s238 + $0x1fe8] sm:$0xff]
        %v1323 = vld [vmem:[%s238 + $0x1ff0] sm:$0xff]
        %v1324 = vld [vmem:[%s238 + $0x1ff8] sm:$0xff]
        %v1325 = vld [vmem:[%s247] sm:$0xff]
        %v1326 = vld [vmem:[%s247 + $0x8] sm:$0xff]
        %v1327 = vld [vmem:[%s247 + $0x10] sm:$0xff]
        %v1328 = vld [vmem:[%s247 + $0x18] sm:$0xff]
        %v1329 = vld [vmem:[%s247 + $0x20] sm:$0xff]
        %v1330 = vld [vmem:[%s247 + $0x28] sm:$0xff]
        %v1331 = vld [vmem:[%s247 + $0x30] sm:$0xff]
        %v1332 = vld [vmem:[%s247 + $0x38] sm:$0xff]
        %v1333 = vld [vmem:[%s247 + $0x40] sm:$0xff]
        %v1334 = vld [vmem:[%s247 + $0x48] sm:$0xff]
        %v1335 = vld [vmem:[%s247 + $0x50] sm:$0xff]
        %v1336 = vld [vmem:[%s247 + $0x58] sm:$0xff]
        %v1337 = vld [vmem:[%s247 + $0x60] sm:$0xff]
        %v1338 = vld [vmem:[%s247 + $0x68] sm:$0xff]
        %v1339 = vld [vmem:[%s247 + $0x70] sm:$0xff]
        %v1340 = vld [vmem:[%s247 + $0x78] sm:$0xff]
        %v1357 = vlaneseq
        %v1358 = vshrl.u32 %v1357, 7
        %v1359 = vsub.s32 0, %v1358
        %v1360 = vrot.slane %v1325, %v1359
        %v1361 = vlaneseq
        %v1362 = vshrl.u32 %v1361, 7
        %v1363 = vsub.s32 1, %v1362
        %v1364 = vrot.slane %v1325, %v1363
        %v1365 = vlaneseq
        %v1366 = vshrl.u32 %v1365, 7
        %v1367 = vsub.s32 2, %v1366
        %v1368 = vrot.slane %v1325, %v1367
        %v1369 = vlaneseq
        %v1370 = vshrl.u32 %v1369, 7
        %v1371 = vsub.s32 3, %v1370
        %v1372 = vrot.slane %v1325, %v1371
        %v1373 = vlaneseq
        %v1374 = vshrl.u32 %v1373, 7
        %v1375 = vsub.s32 4, %v1374
        %v1376 = vrot.slane %v1325, %v1375
        %v1377 = vlaneseq
        %v1378 = vshrl.u32 %v1377, 7
        %v1379 = vsub.s32 5, %v1378
        %v1380 = vrot.slane %v1325, %v1379
        %v1381 = vlaneseq
        %v1382 = vshrl.u32 %v1381, 7
        %v1383 = vsub.s32 6, %v1382
        %v1384 = vrot.slane %v1325, %v1383
        %v1385 = vlaneseq
        %v1386 = vshrl.u32 %v1385, 7
        %v1387 = vsub.s32 7, %v1386
        %v1388 = vrot.slane %v1325, %v1387
        %v1389 = vlaneseq
        %v1390 = vshrl.u32 %v1389, 7
        %v1391 = vsub.s32 0, %v1390
        %v1392 = vrot.slane %v1326, %v1391
        %v1393 = vlaneseq
        %v1394 = vshrl.u32 %v1393, 7
        %v1395 = vsub.s32 1, %v1394
        %v1396 = vrot.slane %v1326, %v1395
        %v1397 = vlaneseq
        %v1398 = vshrl.u32 %v1397, 7
        %v1399 = vsub.s32 2, %v1398
        %v1400 = vrot.slane %v1326, %v1399
        %v1401 = vlaneseq
        %v1402 = vshrl.u32 %v1401, 7
        %v1403 = vsub.s32 3, %v1402
        %v1404 = vrot.slane %v1326, %v1403
        %v1405 = vlaneseq
        %v1406 = vshrl.u32 %v1405, 7
        %v1407 = vsub.s32 4, %v1406
        %v1408 = vrot.slane %v1326, %v1407
        %v1409 = vlaneseq
        %v1410 = vshrl.u32 %v1409, 7
        %v1411 = vsub.s32 5, %v1410
        %v1412 = vrot.slane %v1326, %v1411
        %v1413 = vlaneseq
        %v1414 = vshrl.u32 %v1413, 7
        %v1415 = vsub.s32 6, %v1414
        %v1416 = vrot.slane %v1326, %v1415
        %v1417 = vlaneseq
        %v1418 = vshrl.u32 %v1417, 7
        %v1419 = vsub.s32 7, %v1418
        %v1420 = vrot.slane %v1326, %v1419
        %v1421 = vlaneseq
        %v1422 = vshrl.u32 %v1421, 7
        %v1423 = vsub.s32 0, %v1422
        %v1424 = vrot.slane %v1327, %v1423
        %v1425 = vlaneseq
        %v1426 = vshrl.u32 %v1425, 7
        %v1427 = vsub.s32 1, %v1426
        %v1428 = vrot.slane %v1327, %v1427
        %v1429 = vlaneseq
        %v1430 = vshrl.u32 %v1429, 7
        %v1431 = vsub.s32 2, %v1430
        %v1432 = vrot.slane %v1327, %v1431
        %v1433 = vlaneseq
        %v1434 = vshrl.u32 %v1433, 7
        %v1435 = vsub.s32 3, %v1434
        %v1436 = vrot.slane %v1327, %v1435
        %v1437 = vlaneseq
        %v1438 = vshrl.u32 %v1437, 7
        %v1439 = vsub.s32 4, %v1438
        %v1440 = vrot.slane %v1327, %v1439
        %v1441 = vlaneseq
        %v1442 = vshrl.u32 %v1441, 7
        %v1443 = vsub.s32 5, %v1442
        %v1444 = vrot.slane %v1327, %v1443
        %v1445 = vlaneseq
        %v1446 = vshrl.u32 %v1445, 7
        %v1447 = vsub.s32 6, %v1446
        %v1448 = vrot.slane %v1327, %v1447
        %v1449 = vlaneseq
        %v1450 = vshrl.u32 %v1449, 7
        %v1451 = vsub.s32 7, %v1450
        %v1452 = vrot.slane %v1327, %v1451
        %v1453 = vlaneseq
        %v1454 = vshrl.u32 %v1453, 7
        %v1455 = vsub.s32 0, %v1454
        %v1456 = vrot.slane %v1328, %v1455
        %v1457 = vlaneseq
        %v1458 = vshrl.u32 %v1457, 7
        %v1459 = vsub.s32 1, %v1458
        %v1460 = vrot.slane %v1328, %v1459
        %v1461 = vlaneseq
        %v1462 = vshrl.u32 %v1461, 7
        %v1463 = vsub.s32 2, %v1462
        %v1464 = vrot.slane %v1328, %v1463
        %v1465 = vlaneseq
        %v1466 = vshrl.u32 %v1465, 7
        %v1467 = vsub.s32 3, %v1466
        %v1468 = vrot.slane %v1328, %v1467
        %v1469 = vlaneseq
        %v1470 = vshrl.u32 %v1469, 7
        %v1471 = vsub.s32 4, %v1470
        %v1472 = vrot.slane %v1328, %v1471
        %v1473 = vlaneseq
        %v1474 = vshrl.u32 %v1473, 7
        %v1475 = vsub.s32 5, %v1474
        %v1476 = vrot.slane %v1328, %v1475
        %v1477 = vlaneseq
        %v1478 = vshrl.u32 %v1477, 7
        %v1479 = vsub.s32 6, %v1478
        %v1480 = vrot.slane %v1328, %v1479
        %v1481 = vlaneseq
        %v1482 = vshrl.u32 %v1481, 7
        %v1483 = vsub.s32 7, %v1482
        %v1484 = vrot.slane %v1328, %v1483
        %v1485 = vlaneseq
        %v1486 = vshrl.u32 %v1485, 7
        %v1487 = vsub.s32 0, %v1486
        %v1488 = vrot.slane %v1329, %v1487
        %v1489 = vlaneseq
        %v1490 = vshrl.u32 %v1489, 7
        %v1491 = vsub.s32 1, %v1490
        %v1492 = vrot.slane %v1329, %v1491
        %v1493 = vlaneseq
        %v1494 = vshrl.u32 %v1493, 7
        %v1495 = vsub.s32 2, %v1494
        %v1496 = vrot.slane %v1329, %v1495
        %v1497 = vlaneseq
        %v1498 = vshrl.u32 %v1497, 7
        %v1499 = vsub.s32 3, %v1498
        %v1500 = vrot.slane %v1329, %v1499
        %v1501 = vlaneseq
        %v1502 = vshrl.u32 %v1501, 7
        %v1503 = vsub.s32 4, %v1502
        %v1504 = vrot.slane %v1329, %v1503
        %v1505 = vlaneseq
        %v1506 = vshrl.u32 %v1505, 7
        %v1507 = vsub.s32 5, %v1506
        %v1508 = vrot.slane %v1329, %v1507
        %v1509 = vlaneseq
        %v1510 = vshrl.u32 %v1509, 7
        %v1511 = vsub.s32 6, %v1510
        %v1512 = vrot.slane %v1329, %v1511
        %v1513 = vlaneseq
        %v1514 = vshrl.u32 %v1513, 7
        %v1515 = vsub.s32 7, %v1514
        %v1516 = vrot.slane %v1329, %v1515
        %v1517 = vlaneseq
        %v1518 = vshrl.u32 %v1517, 7
        %v1519 = vsub.s32 0, %v1518
        %v1520 = vrot.slane %v1330, %v1519
        %v1521 = vlaneseq
        %v1522 = vshrl.u32 %v1521, 7
        %v1523 = vsub.s32 1, %v1522
        %v1524 = vrot.slane %v1330, %v1523
        %v1525 = vlaneseq
        %v1526 = vshrl.u32 %v1525, 7
        %v1527 = vsub.s32 2, %v1526
        %v1528 = vrot.slane %v1330, %v1527
        %v1529 = vlaneseq
        %v1530 = vshrl.u32 %v1529, 7
        %v1531 = vsub.s32 3, %v1530
        %v1532 = vrot.slane %v1330, %v1531
        %v1533 = vlaneseq
        %v1534 = vshrl.u32 %v1533, 7
        %v1535 = vsub.s32 4, %v1534
        %v1536 = vrot.slane %v1330, %v1535
        %v1537 = vlaneseq
        %v1538 = vshrl.u32 %v1537, 7
        %v1539 = vsub.s32 5, %v1538
        %v1540 = vrot.slane %v1330, %v1539
        %v1541 = vlaneseq
        %v1542 = vshrl.u32 %v1541, 7
        %v1543 = vsub.s32 6, %v1542
        %v1544 = vrot.slane %v1330, %v1543
        %v1545 = vlaneseq
        %v1546 = vshrl.u32 %v1545, 7
        %v1547 = vsub.s32 7, %v1546
        %v1548 = vrot.slane %v1330, %v1547
        %v1549 = vlaneseq
        %v1550 = vshrl.u32 %v1549, 7
        %v1551 = vsub.s32 0, %v1550
        %v1552 = vrot.slane %v1331, %v1551
        %v1553 = vlaneseq
        %v1554 = vshrl.u32 %v1553, 7
        %v1555 = vsub.s32 1, %v1554
        %v1556 = vrot.slane %v1331, %v1555
        %v1557 = vlaneseq
        %v1558 = vshrl.u32 %v1557, 7
        %v1559 = vsub.s32 2, %v1558
        %v1560 = vrot.slane %v1331, %v1559
        %v1561 = vlaneseq
        %v1562 = vshrl.u32 %v1561, 7
        %v1563 = vsub.s32 3, %v1562
        %v1564 = vrot.slane %v1331, %v1563
        %v1565 = vlaneseq
        %v1566 = vshrl.u32 %v1565, 7
        %v1567 = vsub.s32 4, %v1566
        %v1568 = vrot.slane %v1331, %v1567
        %v1569 = vlaneseq
        %v1570 = vshrl.u32 %v1569, 7
        %v1571 = vsub.s32 5, %v1570
        %v1572 = vrot.slane %v1331, %v1571
        %v1573 = vlaneseq
        %v1574 = vshrl.u32 %v1573, 7
        %v1575 = vsub.s32 6, %v1574
        %v1576 = vrot.slane %v1331, %v1575
        %v1577 = vlaneseq
        %v1578 = vshrl.u32 %v1577, 7
        %v1579 = vsub.s32 7, %v1578
        %v1580 = vrot.slane %v1331, %v1579
        %v1581 = vlaneseq
        %v1582 = vshrl.u32 %v1581, 7
        %v1583 = vsub.s32 0, %v1582
        %v1584 = vrot.slane %v1332, %v1583
        %v1585 = vlaneseq
        %v1586 = vshrl.u32 %v1585, 7
        %v1587 = vsub.s32 1, %v1586
        %v1588 = vrot.slane %v1332, %v1587
        %v1589 = vlaneseq
        %v1590 = vshrl.u32 %v1589, 7
        %v1591 = vsub.s32 2, %v1590
        %v1592 = vrot.slane %v1332, %v1591
        %v1593 = vlaneseq
        %v1594 = vshrl.u32 %v1593, 7
        %v1595 = vsub.s32 3, %v1594
        %v1596 = vrot.slane %v1332, %v1595
        %v1597 = vlaneseq
        %v1598 = vshrl.u32 %v1597, 7
        %v1599 = vsub.s32 4, %v1598
        %v1600 = vrot.slane %v1332, %v1599
        %v1601 = vlaneseq
        %v1602 = vshrl.u32 %v1601, 7
        %v1603 = vsub.s32 5, %v1602
        %v1604 = vrot.slane %v1332, %v1603
        %v1605 = vlaneseq
        %v1606 = vshrl.u32 %v1605, 7
        %v1607 = vsub.s32 6, %v1606
        %v1608 = vrot.slane %v1332, %v1607
        %v1609 = vlaneseq
        %v1610 = vshrl.u32 %v1609, 7
        %v1611 = vsub.s32 7, %v1610
        %v1612 = vrot.slane %v1332, %v1611
        %v1613 = vlaneseq
        %v1614 = vshrl.u32 %v1613, 7
        %v1615 = vsub.s32 0, %v1614
        %v1616 = vrot.slane %v1333, %v1615
        %v1617 = vlaneseq
        %v1618 = vshrl.u32 %v1617, 7
        %v1619 = vsub.s32 1, %v1618
        %v1620 = vrot.slane %v1333, %v1619
        %v1621 = vlaneseq
        %v1622 = vshrl.u32 %v1621, 7
        %v1623 = vsub.s32 2, %v1622
        %v1624 = vrot.slane %v1333, %v1623
        %v1625 = vlaneseq
        %v1626 = vshrl.u32 %v1625, 7
        %v1627 = vsub.s32 3, %v1626
        %v1628 = vrot.slane %v1333, %v1627
        %v1629 = vlaneseq
        %v1630 = vshrl.u32 %v1629, 7
        %v1631 = vsub.s32 4, %v1630
        %v1632 = vrot.slane %v1333, %v1631
        %v1633 = vlaneseq
        %v1634 = vshrl.u32 %v1633, 7
        %v1635 = vsub.s32 5, %v1634
        %v1636 = vrot.slane %v1333, %v1635
        %v1637 = vlaneseq
        %v1638 = vshrl.u32 %v1637, 7
        %v1639 = vsub.s32 6, %v1638
        %v1640 = vrot.slane %v1333, %v1639
        %v1641 = vlaneseq
        %v1642 = vshrl.u32 %v1641, 7
        %v1643 = vsub.s32 7, %v1642
        %v1644 = vrot.slane %v1333, %v1643
        %v1645 = vlaneseq
        %v1646 = vshrl.u32 %v1645, 7
        %v1647 = vsub.s32 0, %v1646
        %v1648 = vrot.slane %v1334, %v1647
        %v1649 = vlaneseq
        %v1650 = vshrl.u32 %v1649, 7
        %v1651 = vsub.s32 1, %v1650
        %v1652 = vrot.slane %v1334, %v1651
        %v1653 = vlaneseq
        %v1654 = vshrl.u32 %v1653, 7
        %v1655 = vsub.s32 2, %v1654
        %v1656 = vrot.slane %v1334, %v1655
        %v1657 = vlaneseq
        %v1658 = vshrl.u32 %v1657, 7
        %v1659 = vsub.s32 3, %v1658
        %v1660 = vrot.slane %v1334, %v1659
        %v1661 = vlaneseq
        %v1662 = vshrl.u32 %v1661, 7
        %v1663 = vsub.s32 4, %v1662
        %v1664 = vrot.slane %v1334, %v1663
        %v1665 = vlaneseq
        %v1666 = vshrl.u32 %v1665, 7
        %v1667 = vsub.s32 5, %v1666
        %v1668 = vrot.slane %v1334, %v1667
        %v1669 = vlaneseq
        %v1670 = vshrl.u32 %v1669, 7
        %v1671 = vsub.s32 6, %v1670
        %v1672 = vrot.slane %v1334, %v1671
        %v1673 = vlaneseq
        %v1674 = vshrl.u32 %v1673, 7
        %v1675 = vsub.s32 7, %v1674
        %v1676 = vrot.slane %v1334, %v1675
        %v1677 = vlaneseq
        %v1678 = vshrl.u32 %v1677, 7
        %v1679 = vsub.s32 0, %v1678
        %v1680 = vrot.slane %v1335, %v1679
        %v1681 = vlaneseq
        %v1682 = vshrl.u32 %v1681, 7
        %v1683 = vsub.s32 1, %v1682
        %v1684 = vrot.slane %v1335, %v1683
        %v1685 = vlaneseq
        %v1686 = vshrl.u32 %v1685, 7
        %v1687 = vsub.s32 2, %v1686
        %v1688 = vrot.slane %v1335, %v1687
        %v1689 = vlaneseq
        %v1690 = vshrl.u32 %v1689, 7
        %v1691 = vsub.s32 3, %v1690
        %v1692 = vrot.slane %v1335, %v1691
        %v1693 = vlaneseq
        %v1694 = vshrl.u32 %v1693, 7
        %v1695 = vsub.s32 4, %v1694
        %v1696 = vrot.slane %v1335, %v1695
        %v1697 = vlaneseq
        %v1698 = vshrl.u32 %v1697, 7
        %v1699 = vsub.s32 5, %v1698
        %v1700 = vrot.slane %v1335, %v1699
        %v1701 = vlaneseq
        %v1702 = vshrl.u32 %v1701, 7
        %v1703 = vsub.s32 6, %v1702
        %v1704 = vrot.slane %v1335, %v1703
        %v1705 = vlaneseq
        %v1706 = vshrl.u32 %v1705, 7
        %v1707 = vsub.s32 7, %v1706
        %v1708 = vrot.slane %v1335, %v1707
        %v1709 = vlaneseq
        %v1710 = vshrl.u32 %v1709, 7
        %v1711 = vsub.s32 0, %v1710
        %v1712 = vrot.slane %v1336, %v1711
        %v1713 = vlaneseq
        %v1714 = vshrl.u32 %v1713, 7
        %v1715 = vsub.s32 1, %v1714
        %v1716 = vrot.slane %v1336, %v1715
        %v1717 = vlaneseq
        %v1718 = vshrl.u32 %v1717, 7
        %v1719 = vsub.s32 2, %v1718
        %v1720 = vrot.slane %v1336, %v1719
        %v1721 = vlaneseq
        %v1722 = vshrl.u32 %v1721, 7
        %v1723 = vsub.s32 3, %v1722
        %v1724 = vrot.slane %v1336, %v1723
        %v1725 = vlaneseq
        %v1726 = vshrl.u32 %v1725, 7
        %v1727 = vsub.s32 4, %v1726
        %v1728 = vrot.slane %v1336, %v1727
        %v1729 = vlaneseq
        %v1730 = vshrl.u32 %v1729, 7
        %v1731 = vsub.s32 5, %v1730
        %v1732 = vrot.slane %v1336, %v1731
        %v1733 = vlaneseq
        %v1734 = vshrl.u32 %v1733, 7
        %v1735 = vsub.s32 6, %v1734
        %v1736 = vrot.slane %v1336, %v1735
        %v1737 = vlaneseq
        %v1738 = vshrl.u32 %v1737, 7
        %v1739 = vsub.s32 7, %v1738
        %v1740 = vrot.slane %v1336, %v1739
        %v1741 = vlaneseq
        %v1742 = vshrl.u32 %v1741, 7
        %v1743 = vsub.s32 0, %v1742
        %v1744 = vrot.slane %v1337, %v1743
        %v1745 = vlaneseq
        %v1746 = vshrl.u32 %v1745, 7
        %v1747 = vsub.s32 1, %v1746
        %v1748 = vrot.slane %v1337, %v1747
        %v1749 = vlaneseq
        %v1750 = vshrl.u32 %v1749, 7
        %v1751 = vsub.s32 2, %v1750
        %v1752 = vrot.slane %v1337, %v1751
        %v1753 = vlaneseq
        %v1754 = vshrl.u32 %v1753, 7
        %v1755 = vsub.s32 3, %v1754
        %v1756 = vrot.slane %v1337, %v1755
        %v1757 = vlaneseq
        %v1758 = vshrl.u32 %v1757, 7
        %v1759 = vsub.s32 4, %v1758
        %v1760 = vrot.slane %v1337, %v1759
        %v1761 = vlaneseq
        %v1762 = vshrl.u32 %v1761, 7
        %v1763 = vsub.s32 5, %v1762
        %v1764 = vrot.slane %v1337, %v1763
        %v1765 = vlaneseq
        %v1766 = vshrl.u32 %v1765, 7
        %v1767 = vsub.s32 6, %v1766
        %v1768 = vrot.slane %v1337, %v1767
        %v1769 = vlaneseq
        %v1770 = vshrl.u32 %v1769, 7
        %v1771 = vsub.s32 7, %v1770
        %v1772 = vrot.slane %v1337, %v1771
        %v1773 = vlaneseq
        %v1774 = vshrl.u32 %v1773, 7
        %v1775 = vsub.s32 0, %v1774
        %v1776 = vrot.slane %v1338, %v1775
        %v1777 = vlaneseq
        %v1778 = vshrl.u32 %v1777, 7
        %v1779 = vsub.s32 1, %v1778
        %v1780 = vrot.slane %v1338, %v1779
        %v1781 = vlaneseq
        %v1782 = vshrl.u32 %v1781, 7
        %v1783 = vsub.s32 2, %v1782
        %v1784 = vrot.slane %v1338, %v1783
        %v1785 = vlaneseq
        %v1786 = vshrl.u32 %v1785, 7
        %v1787 = vsub.s32 3, %v1786
        %v1788 = vrot.slane %v1338, %v1787
        %v1789 = vlaneseq
        %v1790 = vshrl.u32 %v1789, 7
        %v1791 = vsub.s32 4, %v1790
        %v1792 = vrot.slane %v1338, %v1791
        %v1793 = vlaneseq
        %v1794 = vshrl.u32 %v1793, 7
        %v1795 = vsub.s32 5, %v1794
        %v1796 = vrot.slane %v1338, %v1795
        %v1797 = vlaneseq
        %v1798 = vshrl.u32 %v1797, 7
        %v1799 = vsub.s32 6, %v1798
        %v1800 = vrot.slane %v1338, %v1799
        %v1801 = vlaneseq
        %v1802 = vshrl.u32 %v1801, 7
        %v1803 = vsub.s32 7, %v1802
        %v1804 = vrot.slane %v1338, %v1803
        %v1805 = vlaneseq
        %v1806 = vshrl.u32 %v1805, 7
        %v1807 = vsub.s32 0, %v1806
        %v1808 = vrot.slane %v1339, %v1807
        %v1809 = vlaneseq
        %v1810 = vshrl.u32 %v1809, 7
        %v1811 = vsub.s32 1, %v1810
        %v1812 = vrot.slane %v1339, %v1811
        %v1813 = vlaneseq
        %v1814 = vshrl.u32 %v1813, 7
        %v1815 = vsub.s32 2, %v1814
        %v1816 = vrot.slane %v1339, %v1815
        %v1817 = vlaneseq
        %v1818 = vshrl.u32 %v1817, 7
        %v1819 = vsub.s32 3, %v1818
        %v1820 = vrot.slane %v1339, %v1819
        %v1821 = vlaneseq
        %v1822 = vshrl.u32 %v1821, 7
        %v1823 = vsub.s32 4, %v1822
        %v1824 = vrot.slane %v1339, %v1823
        %v1825 = vlaneseq
        %v1826 = vshrl.u32 %v1825, 7
        %v1827 = vsub.s32 5, %v1826
        %v1828 = vrot.slane %v1339, %v1827
        %v1829 = vlaneseq
        %v1830 = vshrl.u32 %v1829, 7
        %v1831 = vsub.s32 6, %v1830
        %v1832 = vrot.slane %v1339, %v1831
        %v1833 = vlaneseq
        %v1834 = vshrl.u32 %v1833, 7
        %v1835 = vsub.s32 7, %v1834
        %v1836 = vrot.slane %v1339, %v1835
        %v1837 = vlaneseq
        %v1838 = vshrl.u32 %v1837, 7
        %v1839 = vsub.s32 0, %v1838
        %v1840 = vrot.slane %v1340, %v1839
        %v1841 = vlaneseq
        %v1842 = vshrl.u32 %v1841, 7
        %v1843 = vsub.s32 1, %v1842
        %v1844 = vrot.slane %v1340, %v1843
        %v1845 = vlaneseq
        %v1846 = vshrl.u32 %v1845, 7
        %v1847 = vsub.s32 2, %v1846
        %v1848 = vrot.slane %v1340, %v1847
        %v1849 = vlaneseq
        %v1850 = vshrl.u32 %v1849, 7
        %v1851 = vsub.s32 3, %v1850
        %v1852 = vrot.slane %v1340, %v1851
        %v1853 = vlaneseq
        %v1854 = vshrl.u32 %v1853, 7
        %v1855 = vsub.s32 4, %v1854
        %v1856 = vrot.slane %v1340, %v1855
        %v1857 = vlaneseq
        %v1858 = vshrl.u32 %v1857, 7
        %v1859 = vsub.s32 5, %v1858
        %v1860 = vrot.slane %v1340, %v1859
        %v1861 = vlaneseq
        %v1862 = vshrl.u32 %v1861, 7
        %v1863 = vsub.s32 6, %v1862
        %v1864 = vrot.slane %v1340, %v1863
        %v1865 = vlaneseq
        %v1866 = vshrl.u32 %v1865, 7
        %v1867 = vsub.s32 7, %v1866
        %v1868 = vrot.slane %v1340, %v1867
        %v1999 = vunpack.c.l.b16 %v299
        %v2000 = vunpack.c.l.b16 %v300
        %v2001 = vpack.c.b16 %v2000, %v1999
        %v3027 = vunpack.c.l.b16 %v301
        %v3028 = vunpack.c.h.b16 %v301
        %v3029 = vunpack.c.l.b16 %v302
        %v3030 = vunpack.c.h.b16 %v302
        %v3031 = vunpack.c.l.b16 %v303
        %v3032 = vunpack.c.h.b16 %v303
        %v3033 = vunpack.c.l.b16 %v304
        %v3034 = vunpack.c.h.b16 %v304
        %v3035 = vunpack.c.l.b16 %v305
        %v3036 = vunpack.c.h.b16 %v305
        %v3037 = vunpack.c.l.b16 %v306
        %v3038 = vunpack.c.h.b16 %v306
        %v3039 = vunpack.c.l.b16 %v307
        %v3040 = vunpack.c.h.b16 %v307
        %v3041 = vunpack.c.l.b16 %v308
        %v3042 = vunpack.c.h.b16 %v308
        %v3043 = vunpack.c.l.b16 %v309
        %v3044 = vunpack.c.h.b16 %v309
        %v3045 = vunpack.c.l.b16 %v310
        %v3046 = vunpack.c.h.b16 %v310
        %v3047 = vunpack.c.l.b16 %v311
        %v3048 = vunpack.c.h.b16 %v311
        %v3049 = vunpack.c.l.b16 %v312
        %v3050 = vunpack.c.h.b16 %v312
        %v3051 = vunpack.c.l.b16 %v313
        %v3052 = vunpack.c.h.b16 %v313
        %v3053 = vunpack.c.l.b16 %v314
        %v3054 = vunpack.c.h.b16 %v314
        %v3055 = vunpack.c.l.b16 %v315
        %v3056 = vunpack.c.h.b16 %v315
        %v3057 = vunpack.c.l.b16 %v316
        %v3058 = vunpack.c.h.b16 %v316
        %v3059 = vunpack.c.l.b16 %v317
        %v3060 = vunpack.c.h.b16 %v317
        %v3061 = vunpack.c.l.b16 %v318
        %v3062 = vunpack.c.h.b16 %v318
        %v3063 = vunpack.c.l.b16 %v319
        %v3064 = vunpack.c.h.b16 %v319
        %v3065 = vunpack.c.l.b16 %v320
        %v3066 = vunpack.c.h.b16 %v320
        %v3067 = vunpack.c.l.b16 %v321
        %v3068 = vunpack.c.h.b16 %v321
        %v3069 = vunpack.c.l.b16 %v322
        %v3070 = vunpack.c.h.b16 %v322
        %v3071 = vunpack.c.l.b16 %v323
        %v3072 = vunpack.c.h.b16 %v323
        %v3073 = vunpack.c.l.b16 %v324
        %v3074 = vunpack.c.h.b16 %v324
        %v3075 = vunpack.c.l.b16 %v325
        %v3076 = vunpack.c.h.b16 %v325
        %v3077 = vunpack.c.l.b16 %v326
        %v3078 = vunpack.c.h.b16 %v326
        %v3079 = vunpack.c.l.b16 %v327
        %v3080 = vunpack.c.h.b16 %v327
        %v3081 = vunpack.c.l.b16 %v328
        %v3082 = vunpack.c.h.b16 %v328
        %v3083 = vunpack.c.l.b16 %v329
        %v3084 = vunpack.c.h.b16 %v329
        %v3085 = vunpack.c.l.b16 %v330
        %v3086 = vunpack.c.h.b16 %v330
        %v3087 = vunpack.c.l.b16 %v331
        %v3088 = vunpack.c.h.b16 %v331
        %v3089 = vunpack.c.l.b16 %v332
        %v3090 = vunpack.c.h.b16 %v332
        %v3091 = vunpack.c.l.b16 %v333
        %v3092 = vunpack.c.h.b16 %v333
        %v3093 = vunpack.c.l.b16 %v334
        %v3094 = vunpack.c.h.b16 %v334
        %v3095 = vunpack.c.l.b16 %v335
        %v3096 = vunpack.c.h.b16 %v335
        %v3097 = vunpack.c.l.b16 %v336
        %v3098 = vunpack.c.h.b16 %v336
        %v3099 = vunpack.c.l.b16 %v337
        %v3100 = vunpack.c.h.b16 %v337
        %v3101 = vunpack.c.l.b16 %v338
        %v3102 = vunpack.c.h.b16 %v338
        %v3103 = vunpack.c.l.b16 %v339
        %v3104 = vunpack.c.h.b16 %v339
        %v3105 = vunpack.c.l.b16 %v340
        %v3106 = vunpack.c.h.b16 %v340
        %v3107 = vunpack.c.l.b16 %v341
        %v3108 = vunpack.c.h.b16 %v341
        %v3109 = vunpack.c.l.b16 %v342
        %v3110 = vunpack.c.h.b16 %v342
        %v3111 = vunpack.c.l.b16 %v343
        %v3112 = vunpack.c.h.b16 %v343
        %v3113 = vunpack.c.l.b16 %v344
        %v3114 = vunpack.c.h.b16 %v344
        %v3115 = vunpack.c.l.b16 %v345
        %v3116 = vunpack.c.h.b16 %v345
        %v3117 = vunpack.c.l.b16 %v346
        %v3118 = vunpack.c.h.b16 %v346
        %v3119 = vunpack.c.l.b16 %v347
        %v3120 = vunpack.c.h.b16 %v347
        %v3121 = vunpack.c.l.b16 %v348
        %v3122 = vunpack.c.h.b16 %v348
        %v3123 = vunpack.c.l.b16 %v349
        %v3124 = vunpack.c.h.b16 %v349
        %v3125 = vunpack.c.l.b16 %v350
        %v3126 = vunpack.c.h.b16 %v350
        %v3127 = vunpack.c.l.b16 %v351
        %v3128 = vunpack.c.h.b16 %v351
        %v3129 = vunpack.c.l.b16 %v352
        %v3130 = vunpack.c.h.b16 %v352
        %v3131 = vunpack.c.l.b16 %v353
        %v3132 = vunpack.c.h.b16 %v353
        %v3133 = vunpack.c.l.b16 %v354
        %v3134 = vunpack.c.h.b16 %v354
        %v3135 = vunpack.c.l.b16 %v355
        %v3136 = vunpack.c.h.b16 %v355
        %v3137 = vunpack.c.l.b16 %v356
        %v3138 = vunpack.c.h.b16 %v356
        %v3139 = vunpack.c.l.b16 %v357
        %v3140 = vunpack.c.h.b16 %v357
        %v3141 = vunpack.c.l.b16 %v358
        %v3142 = vunpack.c.h.b16 %v358
        %v3143 = vunpack.c.l.b16 %v359
        %v3144 = vunpack.c.h.b16 %v359
        %v3145 = vunpack.c.l.b16 %v360
        %v3146 = vunpack.c.h.b16 %v360
        %v3147 = vunpack.c.l.b16 %v361
        %v3148 = vunpack.c.h.b16 %v361
        %v3149 = vunpack.c.l.b16 %v362
        %v3150 = vunpack.c.h.b16 %v362
        %v3151 = vunpack.c.l.b16 %v363
        %v3152 = vunpack.c.h.b16 %v363
        %v3153 = vunpack.c.l.b16 %v364
        %v3154 = vunpack.c.h.b16 %v364
        %v3155 = vunpack.c.l.b16 %v365
        %v3156 = vunpack.c.h.b16 %v365
        %v3157 = vunpack.c.l.b16 %v366
        %v3158 = vunpack.c.h.b16 %v366
        %v3159 = vunpack.c.l.b16 %v367
        %v3160 = vunpack.c.h.b16 %v367
        %v3161 = vunpack.c.l.b16 %v368
        %v3162 = vunpack.c.h.b16 %v368
        %v3163 = vunpack.c.l.b16 %v369
        %v3164 = vunpack.c.h.b16 %v369
        %v3165 = vunpack.c.l.b16 %v370
        %v3166 = vunpack.c.h.b16 %v370
        %v3167 = vunpack.c.l.b16 %v371
        %v3168 = vunpack.c.h.b16 %v371
        %v3169 = vunpack.c.l.b16 %v372
        %v3170 = vunpack.c.h.b16 %v372
        %v3171 = vunpack.c.l.b16 %v373
        %v3172 = vunpack.c.h.b16 %v373
        %v3173 = vunpack.c.l.b16 %v374
        %v3174 = vunpack.c.h.b16 %v374
        %v3175 = vunpack.c.l.b16 %v375
        %v3176 = vunpack.c.h.b16 %v375
        %v3177 = vunpack.c.l.b16 %v376
        %v3178 = vunpack.c.h.b16 %v376
        %v3179 = vunpack.c.l.b16 %v377
        %v3180 = vunpack.c.h.b16 %v377
        %v3181 = vunpack.c.l.b16 %v378
        %v3182 = vunpack.c.h.b16 %v378
        %v3183 = vunpack.c.l.b16 %v379
        %v3184 = vunpack.c.h.b16 %v379
        %v3185 = vunpack.c.l.b16 %v380
        %v3186 = vunpack.c.h.b16 %v380
        %v3187 = vunpack.c.l.b16 %v381
        %v3188 = vunpack.c.h.b16 %v381
        %v3189 = vunpack.c.l.b16 %v382
        %v3190 = vunpack.c.h.b16 %v382
        %v3191 = vunpack.c.l.b16 %v383
        %v3192 = vunpack.c.h.b16 %v383
        %v3193 = vunpack.c.l.b16 %v384
        %v3194 = vunpack.c.h.b16 %v384
        %v3195 = vunpack.c.l.b16 %v385
        %v3196 = vunpack.c.h.b16 %v385
        %v3197 = vunpack.c.l.b16 %v386
        %v3198 = vunpack.c.h.b16 %v386
        %v3199 = vunpack.c.l.b16 %v387
        %v3200 = vunpack.c.h.b16 %v387
        %v3201 = vunpack.c.l.b16 %v388
        %v3202 = vunpack.c.h.b16 %v388
        %v3203 = vunpack.c.l.b16 %v389
        %v3204 = vunpack.c.h.b16 %v389
        %v3205 = vunpack.c.l.b16 %v390
        %v3206 = vunpack.c.h.b16 %v390
        %v3207 = vunpack.c.l.b16 %v391
        %v3208 = vunpack.c.h.b16 %v391
        %v3209 = vunpack.c.l.b16 %v392
        %v3210 = vunpack.c.h.b16 %v392
        %v3211 = vunpack.c.l.b16 %v393
        %v3212 = vunpack.c.h.b16 %v393
        %v3213 = vunpack.c.l.b16 %v394
        %v3214 = vunpack.c.h.b16 %v394
        %v3215 = vunpack.c.l.b16 %v395
        %v3216 = vunpack.c.h.b16 %v395
        %v3217 = vunpack.c.l.b16 %v396
        %v3218 = vunpack.c.h.b16 %v396
        %v3219 = vunpack.c.l.b16 %v397
        %v3220 = vunpack.c.h.b16 %v397
        %v3221 = vunpack.c.l.b16 %v398
        %v3222 = vunpack.c.h.b16 %v398
        %v3223 = vunpack.c.l.b16 %v399
        %v3224 = vunpack.c.h.b16 %v399
        %v3225 = vunpack.c.l.b16 %v400
        %v3226 = vunpack.c.h.b16 %v400
        %v3227 = vunpack.c.l.b16 %v401
        %v3228 = vunpack.c.h.b16 %v401
        %v3229 = vunpack.c.l.b16 %v402
        %v3230 = vunpack.c.h.b16 %v402
        %v3231 = vunpack.c.l.b16 %v403
        %v3232 = vunpack.c.h.b16 %v403
        %v3233 = vunpack.c.l.b16 %v404
        %v3234 = vunpack.c.h.b16 %v404
        %v3235 = vunpack.c.l.b16 %v405
        %v3236 = vunpack.c.h.b16 %v405
        %v3237 = vunpack.c.l.b16 %v406
        %v3238 = vunpack.c.h.b16 %v406
        %v3239 = vunpack.c.l.b16 %v407
        %v3240 = vunpack.c.h.b16 %v407
        %v3241 = vunpack.c.l.b16 %v408
        %v3242 = vunpack.c.h.b16 %v408
        %v3243 = vunpack.c.l.b16 %v409
        %v3244 = vunpack.c.h.b16 %v409
        %v3245 = vunpack.c.l.b16 %v410
        %v3246 = vunpack.c.h.b16 %v410
        %v3247 = vunpack.c.l.b16 %v411
        %v3248 = vunpack.c.h.b16 %v411
        %v3249 = vunpack.c.l.b16 %v412
        %v3250 = vunpack.c.h.b16 %v412
        %v3251 = vunpack.c.l.b16 %v413
        %v3252 = vunpack.c.h.b16 %v413
        %v3253 = vunpack.c.l.b16 %v414
        %v3254 = vunpack.c.h.b16 %v414
        %v3255 = vunpack.c.l.b16 %v415
        %v3256 = vunpack.c.h.b16 %v415
        %v3257 = vunpack.c.l.b16 %v416
        %v3258 = vunpack.c.h.b16 %v416
        %v3259 = vunpack.c.l.b16 %v417
        %v3260 = vunpack.c.h.b16 %v417
        %v3261 = vunpack.c.l.b16 %v418
        %v3262 = vunpack.c.h.b16 %v418
        %v3263 = vunpack.c.l.b16 %v419
        %v3264 = vunpack.c.h.b16 %v419
        %v3265 = vunpack.c.l.b16 %v420
        %v3266 = vunpack.c.h.b16 %v420
        %v3267 = vunpack.c.l.b16 %v421
        %v3268 = vunpack.c.h.b16 %v421
        %v3269 = vunpack.c.l.b16 %v422
        %v3270 = vunpack.c.h.b16 %v422
        %v3271 = vunpack.c.l.b16 %v423
        %v3272 = vunpack.c.h.b16 %v423
        %v3273 = vunpack.c.l.b16 %v424
        %v3274 = vunpack.c.h.b16 %v424
        %v3275 = vunpack.c.l.b16 %v425
        %v3276 = vunpack.c.h.b16 %v425
        %v3277 = vunpack.c.l.b16 %v426
        %v3278 = vunpack.c.h.b16 %v426
        %v3279 = vunpack.c.l.b16 %v427
        %v3280 = vunpack.c.h.b16 %v427
        %v3281 = vunpack.c.l.b16 %v428
        %v3282 = vunpack.c.h.b16 %v428
        %v3283 = vunpack.c.l.b16 %v429
        %v3284 = vunpack.c.h.b16 %v429
        %v3285 = vunpack.c.l.b16 %v430
        %v3286 = vunpack.c.h.b16 %v430
        %v3287 = vunpack.c.l.b16 %v431
        %v3288 = vunpack.c.h.b16 %v431
        %v3289 = vunpack.c.l.b16 %v432
        %v3290 = vunpack.c.h.b16 %v432
        %v3291 = vunpack.c.l.b16 %v433
        %v3292 = vunpack.c.h.b16 %v433
        %v3293 = vunpack.c.l.b16 %v434
        %v3294 = vunpack.c.h.b16 %v434
        %v3295 = vunpack.c.l.b16 %v435
        %v3296 = vunpack.c.h.b16 %v435
        %v3297 = vunpack.c.l.b16 %v436
        %v3298 = vunpack.c.h.b16 %v436
        %v3299 = vunpack.c.l.b16 %v437
        %v3300 = vunpack.c.h.b16 %v437
        %v3301 = vunpack.c.l.b16 %v438
        %v3302 = vunpack.c.h.b16 %v438
        %v3303 = vunpack.c.l.b16 %v439
        %v3304 = vunpack.c.h.b16 %v439
        %v3305 = vunpack.c.l.b16 %v440
        %v3306 = vunpack.c.h.b16 %v440
        %v3307 = vunpack.c.l.b16 %v441
        %v3308 = vunpack.c.h.b16 %v441
        %v3309 = vunpack.c.l.b16 %v442
        %v3310 = vunpack.c.h.b16 %v442
        %v3311 = vunpack.c.l.b16 %v443
        %v3312 = vunpack.c.h.b16 %v443
        %v3313 = vunpack.c.l.b16 %v444
        %v3314 = vunpack.c.h.b16 %v444
        %v3315 = vunpack.c.l.b16 %v445
        %v3316 = vunpack.c.h.b16 %v445
        %v3317 = vunpack.c.l.b16 %v446
        %v3318 = vunpack.c.h.b16 %v446
        %v3319 = vunpack.c.l.b16 %v447
        %v3320 = vunpack.c.h.b16 %v447
        %v3321 = vunpack.c.l.b16 %v448
        %v3322 = vunpack.c.h.b16 %v448
        %v3323 = vunpack.c.l.b16 %v449
        %v3324 = vunpack.c.h.b16 %v449
        %v3325 = vunpack.c.l.b16 %v450
        %v3326 = vunpack.c.h.b16 %v450
        %v3327 = vunpack.c.l.b16 %v451
        %v3328 = vunpack.c.h.b16 %v451
        %v3329 = vunpack.c.l.b16 %v452
        %v3330 = vunpack.c.h.b16 %v452
        %v3331 = vunpack.c.l.b16 %v453
        %v3332 = vunpack.c.h.b16 %v453
        %v3333 = vunpack.c.l.b16 %v454
        %v3334 = vunpack.c.h.b16 %v454
        %v3335 = vunpack.c.l.b16 %v455
        %v3336 = vunpack.c.h.b16 %v455
        %v3337 = vunpack.c.l.b16 %v456
        %v3338 = vunpack.c.h.b16 %v456
        %v3339 = vunpack.c.l.b16 %v457
        %v3340 = vunpack.c.h.b16 %v457
        %v3341 = vunpack.c.l.b16 %v458
        %v3342 = vunpack.c.h.b16 %v458
        %v3343 = vunpack.c.l.b16 %v459
        %v3344 = vunpack.c.h.b16 %v459
        %v3345 = vunpack.c.l.b16 %v460
        %v3346 = vunpack.c.h.b16 %v460
        %v3347 = vunpack.c.l.b16 %v461
        %v3348 = vunpack.c.h.b16 %v461
        %v3349 = vunpack.c.l.b16 %v462
        %v3350 = vunpack.c.h.b16 %v462
        %v3351 = vunpack.c.l.b16 %v463
        %v3352 = vunpack.c.h.b16 %v463
        %v3353 = vunpack.c.l.b16 %v464
        %v3354 = vunpack.c.h.b16 %v464
        %v3355 = vunpack.c.l.b16 %v465
        %v3356 = vunpack.c.h.b16 %v465
        %v3357 = vunpack.c.l.b16 %v466
        %v3358 = vunpack.c.h.b16 %v466
        %v3359 = vunpack.c.l.b16 %v467
        %v3360 = vunpack.c.h.b16 %v467
        %v3361 = vunpack.c.l.b16 %v468
        %v3362 = vunpack.c.h.b16 %v468
        %v3363 = vunpack.c.l.b16 %v469
        %v3364 = vunpack.c.h.b16 %v469
        %v3365 = vunpack.c.l.b16 %v470
        %v3366 = vunpack.c.h.b16 %v470
        %v3367 = vunpack.c.l.b16 %v471
        %v3368 = vunpack.c.h.b16 %v471
        %v3369 = vunpack.c.l.b16 %v472
        %v3370 = vunpack.c.h.b16 %v472
        %v3371 = vunpack.c.l.b16 %v473
        %v3372 = vunpack.c.h.b16 %v473
        %v3373 = vunpack.c.l.b16 %v474
        %v3374 = vunpack.c.h.b16 %v474
        %v3375 = vunpack.c.l.b16 %v475
        %v3376 = vunpack.c.h.b16 %v475
        %v3377 = vunpack.c.l.b16 %v476
        %v3378 = vunpack.c.h.b16 %v476
        %v3379 = vunpack.c.l.b16 %v477
        %v3380 = vunpack.c.h.b16 %v477
        %v3381 = vunpack.c.l.b16 %v478
        %v3382 = vunpack.c.h.b16 %v478
        %v3383 = vunpack.c.l.b16 %v479
        %v3384 = vunpack.c.h.b16 %v479
        %v3385 = vunpack.c.l.b16 %v480
        %v3386 = vunpack.c.h.b16 %v480
        %v3387 = vunpack.c.l.b16 %v481
        %v3388 = vunpack.c.h.b16 %v481
        %v3389 = vunpack.c.l.b16 %v482
        %v3390 = vunpack.c.h.b16 %v482
        %v3391 = vunpack.c.l.b16 %v483
        %v3392 = vunpack.c.h.b16 %v483
        %v3393 = vunpack.c.l.b16 %v484
        %v3394 = vunpack.c.h.b16 %v484
        %v3395 = vunpack.c.l.b16 %v485
        %v3396 = vunpack.c.h.b16 %v485
        %v3397 = vunpack.c.l.b16 %v486
        %v3398 = vunpack.c.h.b16 %v486
        %v3399 = vunpack.c.l.b16 %v487
        %v3400 = vunpack.c.h.b16 %v487
        %v3401 = vunpack.c.l.b16 %v488
        %v3402 = vunpack.c.h.b16 %v488
        %v3403 = vunpack.c.l.b16 %v489
        %v3404 = vunpack.c.h.b16 %v489
        %v3405 = vunpack.c.l.b16 %v490
        %v3406 = vunpack.c.h.b16 %v490
        %v3407 = vunpack.c.l.b16 %v491
        %v3408 = vunpack.c.h.b16 %v491
        %v3409 = vunpack.c.l.b16 %v492
        %v3410 = vunpack.c.h.b16 %v492
        %v3411 = vunpack.c.l.b16 %v493
        %v3412 = vunpack.c.h.b16 %v493
        %v3413 = vunpack.c.l.b16 %v494
        %v3414 = vunpack.c.h.b16 %v494
        %v3415 = vunpack.c.l.b16 %v495
        %v3416 = vunpack.c.h.b16 %v495
        %v3417 = vunpack.c.l.b16 %v496
        %v3418 = vunpack.c.h.b16 %v496
        %v3419 = vunpack.c.l.b16 %v497
        %v3420 = vunpack.c.h.b16 %v497
        %v3421 = vunpack.c.l.b16 %v498
        %v3422 = vunpack.c.h.b16 %v498
        %v3423 = vunpack.c.l.b16 %v499
        %v3424 = vunpack.c.h.b16 %v499
        %v3425 = vunpack.c.l.b16 %v500
        %v3426 = vunpack.c.h.b16 %v500
        %v3427 = vunpack.c.l.b16 %v501
        %v3428 = vunpack.c.h.b16 %v501
        %v3429 = vunpack.c.l.b16 %v502
        %v3430 = vunpack.c.h.b16 %v502
        %v3431 = vunpack.c.l.b16 %v503
        %v3432 = vunpack.c.h.b16 %v503
        %v3433 = vunpack.c.l.b16 %v504
        %v3434 = vunpack.c.h.b16 %v504
        %v3435 = vunpack.c.l.b16 %v505
        %v3436 = vunpack.c.h.b16 %v505
        %v3437 = vunpack.c.l.b16 %v506
        %v3438 = vunpack.c.h.b16 %v506
        %v3439 = vunpack.c.l.b16 %v507
        %v3440 = vunpack.c.h.b16 %v507
        %v3441 = vunpack.c.l.b16 %v508
        %v3442 = vunpack.c.h.b16 %v508
        %v3443 = vunpack.c.l.b16 %v509
        %v3444 = vunpack.c.h.b16 %v509
        %v3445 = vunpack.c.l.b16 %v510
        %v3446 = vunpack.c.h.b16 %v510
        %v3447 = vunpack.c.l.b16 %v511
        %v3448 = vunpack.c.h.b16 %v511
        %v3449 = vunpack.c.l.b16 %v512
        %v3450 = vunpack.c.h.b16 %v512
        %v3451 = vunpack.c.l.b16 %v513
        %v3452 = vunpack.c.h.b16 %v513
        %v3453 = vunpack.c.l.b16 %v514
        %v3454 = vunpack.c.h.b16 %v514
        %v3455 = vunpack.c.l.b16 %v515
        %v3456 = vunpack.c.h.b16 %v515
        %v3457 = vunpack.c.l.b16 %v516
        %v3458 = vunpack.c.h.b16 %v516
        %v3459 = vunpack.c.l.b16 %v517
        %v3460 = vunpack.c.h.b16 %v517
        %v3461 = vunpack.c.l.b16 %v518
        %v3462 = vunpack.c.h.b16 %v518
        %v3463 = vunpack.c.l.b16 %v519
        %v3464 = vunpack.c.h.b16 %v519
        %v3465 = vunpack.c.l.b16 %v520
        %v3466 = vunpack.c.h.b16 %v520
        %v3467 = vunpack.c.l.b16 %v521
        %v3468 = vunpack.c.h.b16 %v521
        %v3469 = vunpack.c.l.b16 %v522
        %v3470 = vunpack.c.h.b16 %v522
        %v3471 = vunpack.c.l.b16 %v523
        %v3472 = vunpack.c.h.b16 %v523
        %v3473 = vunpack.c.l.b16 %v524
        %v3474 = vunpack.c.h.b16 %v524
        %v3475 = vunpack.c.l.b16 %v525
        %v3476 = vunpack.c.h.b16 %v525
        %v3477 = vunpack.c.l.b16 %v526
        %v3478 = vunpack.c.h.b16 %v526
        %v3479 = vunpack.c.l.b16 %v527
        %v3480 = vunpack.c.h.b16 %v527
        %v3481 = vunpack.c.l.b16 %v528
        %v3482 = vunpack.c.h.b16 %v528
        %v3483 = vunpack.c.l.b16 %v529
        %v3484 = vunpack.c.h.b16 %v529
        %v3485 = vunpack.c.l.b16 %v530
        %v3486 = vunpack.c.h.b16 %v530
        %v3487 = vunpack.c.l.b16 %v531
        %v3488 = vunpack.c.h.b16 %v531
        %v3489 = vunpack.c.l.b16 %v532
        %v3490 = vunpack.c.h.b16 %v532
        %v3491 = vunpack.c.l.b16 %v533
        %v3492 = vunpack.c.h.b16 %v533
        %v3493 = vunpack.c.l.b16 %v534
        %v3494 = vunpack.c.h.b16 %v534
        %v3495 = vunpack.c.l.b16 %v535
        %v3496 = vunpack.c.h.b16 %v535
        %v3497 = vunpack.c.l.b16 %v536
        %v3498 = vunpack.c.h.b16 %v536
        %v3499 = vunpack.c.l.b16 %v537
        %v3500 = vunpack.c.h.b16 %v537
        %v3501 = vunpack.c.l.b16 %v538
        %v3502 = vunpack.c.h.b16 %v538
        %v3503 = vunpack.c.l.b16 %v539
        %v3504 = vunpack.c.h.b16 %v539
        %v3505 = vunpack.c.l.b16 %v540
        %v3506 = vunpack.c.h.b16 %v540
        %v3507 = vunpack.c.l.b16 %v541
        %v3508 = vunpack.c.h.b16 %v541
        %v3509 = vunpack.c.l.b16 %v542
        %v3510 = vunpack.c.h.b16 %v542
        %v3511 = vunpack.c.l.b16 %v543
        %v3512 = vunpack.c.h.b16 %v543
        %v3513 = vunpack.c.l.b16 %v544
        %v3514 = vunpack.c.h.b16 %v544
        %v3515 = vunpack.c.l.b16 %v545
        %v3516 = vunpack.c.h.b16 %v545
        %v3517 = vunpack.c.l.b16 %v546
        %v3518 = vunpack.c.h.b16 %v546
        %v3519 = vunpack.c.l.b16 %v547
        %v3520 = vunpack.c.h.b16 %v547
        %v3521 = vunpack.c.l.b16 %v548
        %v3522 = vunpack.c.h.b16 %v548
        %v3523 = vunpack.c.l.b16 %v549
        %v3524 = vunpack.c.h.b16 %v549
        %v3525 = vunpack.c.l.b16 %v550
        %v3526 = vunpack.c.h.b16 %v550
        %v3527 = vunpack.c.l.b16 %v551
        %v3528 = vunpack.c.h.b16 %v551
        %v3529 = vunpack.c.l.b16 %v552
        %v3530 = vunpack.c.h.b16 %v552
        %v3531 = vunpack.c.l.b16 %v553
        %v3532 = vunpack.c.h.b16 %v553
        %v3533 = vunpack.c.l.b16 %v554
        %v3534 = vunpack.c.h.b16 %v554
        %v3535 = vunpack.c.l.b16 %v555
        %v3536 = vunpack.c.h.b16 %v555
        %v3537 = vunpack.c.l.b16 %v556
        %v3538 = vunpack.c.h.b16 %v556
        %v3539 = vunpack.c.l.b16 %v557
        %v3540 = vunpack.c.h.b16 %v557
        %v3541 = vunpack.c.l.b16 %v558
        %v3542 = vunpack.c.h.b16 %v558
        %v3543 = vunpack.c.l.b16 %v559
        %v3544 = vunpack.c.h.b16 %v559
        %v3545 = vunpack.c.l.b16 %v560
        %v3546 = vunpack.c.h.b16 %v560
        %v3547 = vunpack.c.l.b16 %v561
        %v3548 = vunpack.c.h.b16 %v561
        %v3549 = vunpack.c.l.b16 %v562
        %v3550 = vunpack.c.h.b16 %v562
        %v3551 = vunpack.c.l.b16 %v563
        %v3552 = vunpack.c.h.b16 %v563
        %v3553 = vunpack.c.l.b16 %v564
        %v3554 = vunpack.c.h.b16 %v564
        %v3555 = vunpack.c.l.b16 %v565
        %v3556 = vunpack.c.h.b16 %v565
        %v3557 = vunpack.c.l.b16 %v566
        %v3558 = vunpack.c.h.b16 %v566
        %v3559 = vunpack.c.l.b16 %v567
        %v3560 = vunpack.c.h.b16 %v567
        %v3561 = vunpack.c.l.b16 %v568
        %v3562 = vunpack.c.h.b16 %v568
        %v3563 = vunpack.c.l.b16 %v569
        %v3564 = vunpack.c.h.b16 %v569
        %v3565 = vunpack.c.l.b16 %v570
        %v3566 = vunpack.c.h.b16 %v570
        %v3567 = vunpack.c.l.b16 %v571
        %v3568 = vunpack.c.h.b16 %v571
        %v3569 = vunpack.c.l.b16 %v572
        %v3570 = vunpack.c.h.b16 %v572
        %v3571 = vunpack.c.l.b16 %v573
        %v3572 = vunpack.c.h.b16 %v573
        %v3573 = vunpack.c.l.b16 %v574
        %v3574 = vunpack.c.h.b16 %v574
        %v3575 = vunpack.c.l.b16 %v575
        %v3576 = vunpack.c.h.b16 %v575
        %v3577 = vunpack.c.l.b16 %v576
        %v3578 = vunpack.c.h.b16 %v576
        %v3579 = vunpack.c.l.b16 %v577
        %v3580 = vunpack.c.h.b16 %v577
        %v3581 = vunpack.c.l.b16 %v578
        %v3582 = vunpack.c.h.b16 %v578
        %v3583 = vunpack.c.l.b16 %v579
        %v3584 = vunpack.c.h.b16 %v579
        %v3585 = vunpack.c.l.b16 %v580
        %v3586 = vunpack.c.h.b16 %v580
        %v3587 = vunpack.c.l.b16 %v581
        %v3588 = vunpack.c.h.b16 %v581
        %v3589 = vunpack.c.l.b16 %v582
        %v3590 = vunpack.c.h.b16 %v582
        %v3591 = vunpack.c.l.b16 %v583
        %v3592 = vunpack.c.h.b16 %v583
        %v3593 = vunpack.c.l.b16 %v584
        %v3594 = vunpack.c.h.b16 %v584
        %v3595 = vunpack.c.l.b16 %v585
        %v3596 = vunpack.c.h.b16 %v585
        %v3597 = vunpack.c.l.b16 %v586
        %v3598 = vunpack.c.h.b16 %v586
        %v3599 = vunpack.c.l.b16 %v587
        %v3600 = vunpack.c.h.b16 %v587
        %v3601 = vunpack.c.l.b16 %v588
        %v3602 = vunpack.c.h.b16 %v588
        %v3603 = vunpack.c.l.b16 %v589
        %v3604 = vunpack.c.h.b16 %v589
        %v3605 = vunpack.c.l.b16 %v590
        %v3606 = vunpack.c.h.b16 %v590
        %v3607 = vunpack.c.l.b16 %v591
        %v3608 = vunpack.c.h.b16 %v591
        %v3609 = vunpack.c.l.b16 %v592
        %v3610 = vunpack.c.h.b16 %v592
        %v3611 = vunpack.c.l.b16 %v593
        %v3612 = vunpack.c.h.b16 %v593
        %v3613 = vunpack.c.l.b16 %v594
        %v3614 = vunpack.c.h.b16 %v594
        %v3615 = vunpack.c.l.b16 %v595
        %v3616 = vunpack.c.h.b16 %v595
        %v3617 = vunpack.c.l.b16 %v596
        %v3618 = vunpack.c.h.b16 %v596
        %v3619 = vunpack.c.l.b16 %v597
        %v3620 = vunpack.c.h.b16 %v597
        %v3621 = vunpack.c.l.b16 %v598
        %v3622 = vunpack.c.h.b16 %v598
        %v3623 = vunpack.c.l.b16 %v599
        %v3624 = vunpack.c.h.b16 %v599
        %v3625 = vunpack.c.l.b16 %v600
        %v3626 = vunpack.c.h.b16 %v600
        %v3627 = vunpack.c.l.b16 %v601
        %v3628 = vunpack.c.h.b16 %v601
        %v3629 = vunpack.c.l.b16 %v602
        %v3630 = vunpack.c.h.b16 %v602
        %v3631 = vunpack.c.l.b16 %v603
        %v3632 = vunpack.c.h.b16 %v603
        %v3633 = vunpack.c.l.b16 %v604
        %v3634 = vunpack.c.h.b16 %v604
        %v3635 = vunpack.c.l.b16 %v605
        %v3636 = vunpack.c.h.b16 %v605
        %v3637 = vunpack.c.l.b16 %v606
        %v3638 = vunpack.c.h.b16 %v606
        %v3639 = vunpack.c.l.b16 %v607
        %v3640 = vunpack.c.h.b16 %v607
        %v3641 = vunpack.c.l.b16 %v608
        %v3642 = vunpack.c.h.b16 %v608
        %v3643 = vunpack.c.l.b16 %v609
        %v3644 = vunpack.c.h.b16 %v609
        %v3645 = vunpack.c.l.b16 %v610
        %v3646 = vunpack.c.h.b16 %v610
        %v3647 = vunpack.c.l.b16 %v611
        %v3648 = vunpack.c.h.b16 %v611
        %v3649 = vunpack.c.l.b16 %v612
        %v3650 = vunpack.c.h.b16 %v612
        %v3651 = vunpack.c.l.b16 %v613
        %v3652 = vunpack.c.h.b16 %v613
        %v3653 = vunpack.c.l.b16 %v614
        %v3654 = vunpack.c.h.b16 %v614
        %v3655 = vunpack.c.l.b16 %v615
        %v3656 = vunpack.c.h.b16 %v615
        %v3657 = vunpack.c.l.b16 %v616
        %v3658 = vunpack.c.h.b16 %v616
        %v3659 = vunpack.c.l.b16 %v617
        %v3660 = vunpack.c.h.b16 %v617
        %v3661 = vunpack.c.l.b16 %v618
        %v3662 = vunpack.c.h.b16 %v618
        %v3663 = vunpack.c.l.b16 %v619
        %v3664 = vunpack.c.h.b16 %v619
        %v3665 = vunpack.c.l.b16 %v620
        %v3666 = vunpack.c.h.b16 %v620
        %v3667 = vunpack.c.l.b16 %v621
        %v3668 = vunpack.c.h.b16 %v621
        %v3669 = vunpack.c.l.b16 %v622
        %v3670 = vunpack.c.h.b16 %v622
        %v3671 = vunpack.c.l.b16 %v623
        %v3672 = vunpack.c.h.b16 %v623
        %v3673 = vunpack.c.l.b16 %v624
        %v3674 = vunpack.c.h.b16 %v624
        %v3675 = vunpack.c.l.b16 %v625
        %v3676 = vunpack.c.h.b16 %v625
        %v3677 = vunpack.c.l.b16 %v626
        %v3678 = vunpack.c.h.b16 %v626
        %v3679 = vunpack.c.l.b16 %v627
        %v3680 = vunpack.c.h.b16 %v627
        %v3681 = vunpack.c.l.b16 %v628
        %v3682 = vunpack.c.h.b16 %v628
        %v3683 = vunpack.c.l.b16 %v629
        %v3684 = vunpack.c.h.b16 %v629
        %v3685 = vunpack.c.l.b16 %v630
        %v3686 = vunpack.c.h.b16 %v630
        %v3687 = vunpack.c.l.b16 %v631
        %v3688 = vunpack.c.h.b16 %v631
        %v3689 = vunpack.c.l.b16 %v632
        %v3690 = vunpack.c.h.b16 %v632
        %v3691 = vunpack.c.l.b16 %v633
        %v3692 = vunpack.c.h.b16 %v633
        %v3693 = vunpack.c.l.b16 %v634
        %v3694 = vunpack.c.h.b16 %v634
        %v3695 = vunpack.c.l.b16 %v635
        %v3696 = vunpack.c.h.b16 %v635
        %v3697 = vunpack.c.l.b16 %v636
        %v3698 = vunpack.c.h.b16 %v636
        %v3699 = vunpack.c.l.b16 %v637
        %v3700 = vunpack.c.h.b16 %v637
        %v3701 = vunpack.c.l.b16 %v638
        %v3702 = vunpack.c.h.b16 %v638
        %v3703 = vunpack.c.l.b16 %v639
        %v3704 = vunpack.c.h.b16 %v639
        %v3705 = vunpack.c.l.b16 %v640
        %v3706 = vunpack.c.h.b16 %v640
        %v3707 = vunpack.c.l.b16 %v641
        %v3708 = vunpack.c.h.b16 %v641
        %v3709 = vunpack.c.l.b16 %v642
        %v3710 = vunpack.c.h.b16 %v642
        %v3711 = vunpack.c.l.b16 %v643
        %v3712 = vunpack.c.h.b16 %v643
        %v3713 = vunpack.c.l.b16 %v644
        %v3714 = vunpack.c.h.b16 %v644
        %v3715 = vunpack.c.l.b16 %v645
        %v3716 = vunpack.c.h.b16 %v645
        %v3717 = vunpack.c.l.b16 %v646
        %v3718 = vunpack.c.h.b16 %v646
        %v3719 = vunpack.c.l.b16 %v647
        %v3720 = vunpack.c.h.b16 %v647
        %v3721 = vunpack.c.l.b16 %v648
        %v3722 = vunpack.c.h.b16 %v648
        %v3723 = vunpack.c.l.b16 %v649
        %v3724 = vunpack.c.h.b16 %v649
        %v3725 = vunpack.c.l.b16 %v650
        %v3726 = vunpack.c.h.b16 %v650
        %v3727 = vunpack.c.l.b16 %v651
        %v3728 = vunpack.c.h.b16 %v651
        %v3729 = vunpack.c.l.b16 %v652
        %v3730 = vunpack.c.h.b16 %v652
        %v3731 = vunpack.c.l.b16 %v653
        %v3732 = vunpack.c.h.b16 %v653
        %v3733 = vunpack.c.l.b16 %v654
        %v3734 = vunpack.c.h.b16 %v654
        %v3735 = vunpack.c.l.b16 %v655
        %v3736 = vunpack.c.h.b16 %v655
        %v3737 = vunpack.c.l.b16 %v656
        %v3738 = vunpack.c.h.b16 %v656
        %v3739 = vunpack.c.l.b16 %v657
        %v3740 = vunpack.c.h.b16 %v657
        %v3741 = vunpack.c.l.b16 %v658
        %v3742 = vunpack.c.h.b16 %v658
        %v3743 = vunpack.c.l.b16 %v659
        %v3744 = vunpack.c.h.b16 %v659
        %v3745 = vunpack.c.l.b16 %v660
        %v3746 = vunpack.c.h.b16 %v660
        %v3747 = vunpack.c.l.b16 %v661
        %v3748 = vunpack.c.h.b16 %v661
        %v3749 = vunpack.c.l.b16 %v662
        %v3750 = vunpack.c.h.b16 %v662
        %v3751 = vunpack.c.l.b16 %v663
        %v3752 = vunpack.c.h.b16 %v663
        %v3753 = vunpack.c.l.b16 %v664
        %v3754 = vunpack.c.h.b16 %v664
        %v3755 = vunpack.c.l.b16 %v665
        %v3756 = vunpack.c.h.b16 %v665
        %v3757 = vunpack.c.l.b16 %v666
        %v3758 = vunpack.c.h.b16 %v666
        %v3759 = vunpack.c.l.b16 %v667
        %v3760 = vunpack.c.h.b16 %v667
        %v3761 = vunpack.c.l.b16 %v668
        %v3762 = vunpack.c.h.b16 %v668
        %v3763 = vunpack.c.l.b16 %v669
        %v3764 = vunpack.c.h.b16 %v669
        %v3765 = vunpack.c.l.b16 %v670
        %v3766 = vunpack.c.h.b16 %v670
        %v3767 = vunpack.c.l.b16 %v671
        %v3768 = vunpack.c.h.b16 %v671
        %v3769 = vunpack.c.l.b16 %v672
        %v3770 = vunpack.c.h.b16 %v672
        %v3771 = vunpack.c.l.b16 %v673
        %v3772 = vunpack.c.h.b16 %v673
        %v3773 = vunpack.c.l.b16 %v674
        %v3774 = vunpack.c.h.b16 %v674
        %v3775 = vunpack.c.l.b16 %v675
        %v3776 = vunpack.c.h.b16 %v675
        %v3777 = vunpack.c.l.b16 %v676
        %v3778 = vunpack.c.h.b16 %v676
        %v3779 = vunpack.c.l.b16 %v677
        %v3780 = vunpack.c.h.b16 %v677
        %v3781 = vunpack.c.l.b16 %v678
        %v3782 = vunpack.c.h.b16 %v678
        %v3783 = vunpack.c.l.b16 %v679
        %v3784 = vunpack.c.h.b16 %v679
        %v3785 = vunpack.c.l.b16 %v680
        %v3786 = vunpack.c.h.b16 %v680
        %v3787 = vunpack.c.l.b16 %v681
        %v3788 = vunpack.c.h.b16 %v681
        %v3789 = vunpack.c.l.b16 %v682
        %v3790 = vunpack.c.h.b16 %v682
        %v3791 = vunpack.c.l.b16 %v683
        %v3792 = vunpack.c.h.b16 %v683
        %v3793 = vunpack.c.l.b16 %v684
        %v3794 = vunpack.c.h.b16 %v684
        %v3795 = vunpack.c.l.b16 %v685
        %v3796 = vunpack.c.h.b16 %v685
        %v3797 = vunpack.c.l.b16 %v686
        %v3798 = vunpack.c.h.b16 %v686
        %v3799 = vunpack.c.l.b16 %v687
        %v3800 = vunpack.c.h.b16 %v687
        %v3801 = vunpack.c.l.b16 %v688
        %v3802 = vunpack.c.h.b16 %v688
        %v3803 = vunpack.c.l.b16 %v689
        %v3804 = vunpack.c.h.b16 %v689
        %v3805 = vunpack.c.l.b16 %v690
        %v3806 = vunpack.c.h.b16 %v690
        %v3807 = vunpack.c.l.b16 %v691
        %v3808 = vunpack.c.h.b16 %v691
        %v3809 = vunpack.c.l.b16 %v692
        %v3810 = vunpack.c.h.b16 %v692
        %v3811 = vunpack.c.l.b16 %v693
        %v3812 = vunpack.c.h.b16 %v693
        %v3813 = vunpack.c.l.b16 %v694
        %v3814 = vunpack.c.h.b16 %v694
        %v3815 = vunpack.c.l.b16 %v695
        %v3816 = vunpack.c.h.b16 %v695
        %v3817 = vunpack.c.l.b16 %v696
        %v3818 = vunpack.c.h.b16 %v696
        %v3819 = vunpack.c.l.b16 %v697
        %v3820 = vunpack.c.h.b16 %v697
        %v3821 = vunpack.c.l.b16 %v698
        %v3822 = vunpack.c.h.b16 %v698
        %v3823 = vunpack.c.l.b16 %v699
        %v3824 = vunpack.c.h.b16 %v699
        %v3825 = vunpack.c.l.b16 %v700
        %v3826 = vunpack.c.h.b16 %v700
        %v3827 = vunpack.c.l.b16 %v701
        %v3828 = vunpack.c.h.b16 %v701
        %v3829 = vunpack.c.l.b16 %v702
        %v3830 = vunpack.c.h.b16 %v702
        %v3831 = vunpack.c.l.b16 %v703
        %v3832 = vunpack.c.h.b16 %v703
        %v3833 = vunpack.c.l.b16 %v704
        %v3834 = vunpack.c.h.b16 %v704
        %v3835 = vunpack.c.l.b16 %v705
        %v3836 = vunpack.c.h.b16 %v705
        %v3837 = vunpack.c.l.b16 %v706
        %v3838 = vunpack.c.h.b16 %v706
        %v3839 = vunpack.c.l.b16 %v707
        %v3840 = vunpack.c.h.b16 %v707
        %v3841 = vunpack.c.l.b16 %v708
        %v3842 = vunpack.c.h.b16 %v708
        %v3843 = vunpack.c.l.b16 %v709
        %v3844 = vunpack.c.h.b16 %v709
        %v3845 = vunpack.c.l.b16 %v710
        %v3846 = vunpack.c.h.b16 %v710
        %v3847 = vunpack.c.l.b16 %v711
        %v3848 = vunpack.c.h.b16 %v711
        %v3849 = vunpack.c.l.b16 %v712
        %v3850 = vunpack.c.h.b16 %v712
        %v3851 = vunpack.c.l.b16 %v713
        %v3852 = vunpack.c.h.b16 %v713
        %v3853 = vunpack.c.l.b16 %v714
        %v3854 = vunpack.c.h.b16 %v714
        %v3855 = vunpack.c.l.b16 %v715
        %v3856 = vunpack.c.h.b16 %v715
        %v3857 = vunpack.c.l.b16 %v716
        %v3858 = vunpack.c.h.b16 %v716
        %v3859 = vunpack.c.l.b16 %v717
        %v3860 = vunpack.c.h.b16 %v717
        %v3861 = vunpack.c.l.b16 %v718
        %v3862 = vunpack.c.h.b16 %v718
        %v3863 = vunpack.c.l.b16 %v719
        %v3864 = vunpack.c.h.b16 %v719
        %v3865 = vunpack.c.l.b16 %v720
        %v3866 = vunpack.c.h.b16 %v720
        %v3867 = vunpack.c.l.b16 %v721
        %v3868 = vunpack.c.h.b16 %v721
        %v3869 = vunpack.c.l.b16 %v722
        %v3870 = vunpack.c.h.b16 %v722
        %v3871 = vunpack.c.l.b16 %v723
        %v3872 = vunpack.c.h.b16 %v723
        %v3873 = vunpack.c.l.b16 %v724
        %v3874 = vunpack.c.h.b16 %v724
        %v3875 = vunpack.c.l.b16 %v725
        %v3876 = vunpack.c.h.b16 %v725
        %v3877 = vunpack.c.l.b16 %v726
        %v3878 = vunpack.c.h.b16 %v726
        %v3879 = vunpack.c.l.b16 %v727
        %v3880 = vunpack.c.h.b16 %v727
        %v3881 = vunpack.c.l.b16 %v728
        %v3882 = vunpack.c.h.b16 %v728
        %v3883 = vunpack.c.l.b16 %v729
        %v3884 = vunpack.c.h.b16 %v729
        %v3885 = vunpack.c.l.b16 %v730
        %v3886 = vunpack.c.h.b16 %v730
        %v3887 = vunpack.c.l.b16 %v731
        %v3888 = vunpack.c.h.b16 %v731
        %v3889 = vunpack.c.l.b16 %v732
        %v3890 = vunpack.c.h.b16 %v732
        %v3891 = vunpack.c.l.b16 %v733
        %v3892 = vunpack.c.h.b16 %v733
        %v3893 = vunpack.c.l.b16 %v734
        %v3894 = vunpack.c.h.b16 %v734
        %v3895 = vunpack.c.l.b16 %v735
        %v3896 = vunpack.c.h.b16 %v735
        %v3897 = vunpack.c.l.b16 %v736
        %v3898 = vunpack.c.h.b16 %v736
        %v3899 = vunpack.c.l.b16 %v737
        %v3900 = vunpack.c.h.b16 %v737
        %v3901 = vunpack.c.l.b16 %v738
        %v3902 = vunpack.c.h.b16 %v738
        %v3903 = vunpack.c.l.b16 %v739
        %v3904 = vunpack.c.h.b16 %v739
        %v3905 = vunpack.c.l.b16 %v740
        %v3906 = vunpack.c.h.b16 %v740
        %v3907 = vunpack.c.l.b16 %v741
        %v3908 = vunpack.c.h.b16 %v741
        %v3909 = vunpack.c.l.b16 %v742
        %v3910 = vunpack.c.h.b16 %v742
        %v3911 = vunpack.c.l.b16 %v743
        %v3912 = vunpack.c.h.b16 %v743
        %v3913 = vunpack.c.l.b16 %v744
        %v3914 = vunpack.c.h.b16 %v744
        %v3915 = vunpack.c.l.b16 %v745
        %v3916 = vunpack.c.h.b16 %v745
        %v3917 = vunpack.c.l.b16 %v746
        %v3918 = vunpack.c.h.b16 %v746
        %v3919 = vunpack.c.l.b16 %v747
        %v3920 = vunpack.c.h.b16 %v747
        %v3921 = vunpack.c.l.b16 %v748
        %v3922 = vunpack.c.h.b16 %v748
        %v3923 = vunpack.c.l.b16 %v749
        %v3924 = vunpack.c.h.b16 %v749
        %v3925 = vunpack.c.l.b16 %v750
        %v3926 = vunpack.c.h.b16 %v750
        %v3927 = vunpack.c.l.b16 %v751
        %v3928 = vunpack.c.h.b16 %v751
        %v3929 = vunpack.c.l.b16 %v752
        %v3930 = vunpack.c.h.b16 %v752
        %v3931 = vunpack.c.l.b16 %v753
        %v3932 = vunpack.c.h.b16 %v753
        %v3933 = vunpack.c.l.b16 %v754
        %v3934 = vunpack.c.h.b16 %v754
        %v3935 = vunpack.c.l.b16 %v755
        %v3936 = vunpack.c.h.b16 %v755
        %v3937 = vunpack.c.l.b16 %v756
        %v3938 = vunpack.c.h.b16 %v756
        %v3939 = vunpack.c.l.b16 %v757
        %v3940 = vunpack.c.h.b16 %v757
        %v3941 = vunpack.c.l.b16 %v758
        %v3942 = vunpack.c.h.b16 %v758
        %v3943 = vunpack.c.l.b16 %v759
        %v3944 = vunpack.c.h.b16 %v759
        %v3945 = vunpack.c.l.b16 %v760
        %v3946 = vunpack.c.h.b16 %v760
        %v3947 = vunpack.c.l.b16 %v761
        %v3948 = vunpack.c.h.b16 %v761
        %v3949 = vunpack.c.l.b16 %v762
        %v3950 = vunpack.c.h.b16 %v762
        %v3951 = vunpack.c.l.b16 %v763
        %v3952 = vunpack.c.h.b16 %v763
        %v3953 = vunpack.c.l.b16 %v764
        %v3954 = vunpack.c.h.b16 %v764
        %v3955 = vunpack.c.l.b16 %v765
        %v3956 = vunpack.c.h.b16 %v765
        %v3957 = vunpack.c.l.b16 %v766
        %v3958 = vunpack.c.h.b16 %v766
        %v3959 = vunpack.c.l.b16 %v767
        %v3960 = vunpack.c.h.b16 %v767
        %v3961 = vunpack.c.l.b16 %v768
        %v3962 = vunpack.c.h.b16 %v768
        %v3963 = vunpack.c.l.b16 %v769
        %v3964 = vunpack.c.h.b16 %v769
        %v3965 = vunpack.c.l.b16 %v770
        %v3966 = vunpack.c.h.b16 %v770
        %v3967 = vunpack.c.l.b16 %v771
        %v3968 = vunpack.c.h.b16 %v771
        %v3969 = vunpack.c.l.b16 %v772
        %v3970 = vunpack.c.h.b16 %v772
        %v3971 = vunpack.c.l.b16 %v773
        %v3972 = vunpack.c.h.b16 %v773
        %v3973 = vunpack.c.l.b16 %v774
        %v3974 = vunpack.c.h.b16 %v774
        %v3975 = vunpack.c.l.b16 %v775
        %v3976 = vunpack.c.h.b16 %v775
        %v3977 = vunpack.c.l.b16 %v776
        %v3978 = vunpack.c.h.b16 %v776
        %v3979 = vunpack.c.l.b16 %v777
        %v3980 = vunpack.c.h.b16 %v777
        %v3981 = vunpack.c.l.b16 %v778
        %v3982 = vunpack.c.h.b16 %v778
        %v3983 = vunpack.c.l.b16 %v779
        %v3984 = vunpack.c.h.b16 %v779
        %v3985 = vunpack.c.l.b16 %v780
        %v3986 = vunpack.c.h.b16 %v780
        %v3987 = vunpack.c.l.b16 %v781
        %v3988 = vunpack.c.h.b16 %v781
        %v3989 = vunpack.c.l.b16 %v782
        %v3990 = vunpack.c.h.b16 %v782
        %v3991 = vunpack.c.l.b16 %v783
        %v3992 = vunpack.c.h.b16 %v783
        %v3993 = vunpack.c.l.b16 %v784
        %v3994 = vunpack.c.h.b16 %v784
        %v3995 = vunpack.c.l.b16 %v785
        %v3996 = vunpack.c.h.b16 %v785
        %v3997 = vunpack.c.l.b16 %v786
        %v3998 = vunpack.c.h.b16 %v786
        %v3999 = vunpack.c.l.b16 %v787
        %v4000 = vunpack.c.h.b16 %v787
        %v4001 = vunpack.c.l.b16 %v788
        %v4002 = vunpack.c.h.b16 %v788
        %v4003 = vunpack.c.l.b16 %v789
        %v4004 = vunpack.c.h.b16 %v789
        %v4005 = vunpack.c.l.b16 %v790
        %v4006 = vunpack.c.h.b16 %v790
        %v4007 = vunpack.c.l.b16 %v791
        %v4008 = vunpack.c.h.b16 %v791
        %v4009 = vunpack.c.l.b16 %v792
        %v4010 = vunpack.c.h.b16 %v792
        %v4011 = vunpack.c.l.b16 %v793
        %v4012 = vunpack.c.h.b16 %v793
        %v4013 = vunpack.c.l.b16 %v794
        %v4014 = vunpack.c.h.b16 %v794
        %v4015 = vunpack.c.l.b16 %v795
        %v4016 = vunpack.c.h.b16 %v795
        %v4017 = vunpack.c.l.b16 %v796
        %v4018 = vunpack.c.h.b16 %v796
        %v4019 = vunpack.c.l.b16 %v797
        %v4020 = vunpack.c.h.b16 %v797
        %v4021 = vunpack.c.l.b16 %v798
        %v4022 = vunpack.c.h.b16 %v798
        %v4023 = vunpack.c.l.b16 %v799
        %v4024 = vunpack.c.h.b16 %v799
        %v4025 = vunpack.c.l.b16 %v800
        %v4026 = vunpack.c.h.b16 %v800
        %v4027 = vunpack.c.l.b16 %v801
        %v4028 = vunpack.c.h.b16 %v801
        %v4029 = vunpack.c.l.b16 %v802
        %v4030 = vunpack.c.h.b16 %v802
        %v4031 = vunpack.c.l.b16 %v803
        %v4032 = vunpack.c.h.b16 %v803
        %v4033 = vunpack.c.l.b16 %v804
        %v4034 = vunpack.c.h.b16 %v804
        %v4035 = vunpack.c.l.b16 %v805
        %v4036 = vunpack.c.h.b16 %v805
        %v4037 = vunpack.c.l.b16 %v806
        %v4038 = vunpack.c.h.b16 %v806
        %v4039 = vunpack.c.l.b16 %v807
        %v4040 = vunpack.c.h.b16 %v807
        %v4041 = vunpack.c.l.b16 %v808
        %v4042 = vunpack.c.h.b16 %v808
        %v4043 = vunpack.c.l.b16 %v809
        %v4044 = vunpack.c.h.b16 %v809
        %v4045 = vunpack.c.l.b16 %v810
        %v4046 = vunpack.c.h.b16 %v810
        %v4047 = vunpack.c.l.b16 %v811
        %v4048 = vunpack.c.h.b16 %v811
        %v4049 = vunpack.c.l.b16 %v812
        %v4050 = vunpack.c.h.b16 %v812
        %v4051 = vunpack.c.l.b16 %v813
        %v4052 = vunpack.c.h.b16 %v813
        %v4053 = vunpack.c.l.b16 %v814
        %v4054 = vunpack.c.h.b16 %v814
        %v4055 = vunpack.c.l.b16 %v815
        %v4056 = vunpack.c.h.b16 %v815
        %v4057 = vunpack.c.l.b16 %v816
        %v4058 = vunpack.c.h.b16 %v816
        %v4059 = vunpack.c.l.b16 %v817
        %v4060 = vunpack.c.h.b16 %v817
        %v4061 = vunpack.c.l.b16 %v818
        %v4062 = vunpack.c.h.b16 %v818
        %v4063 = vunpack.c.l.b16 %v819
        %v4064 = vunpack.c.h.b16 %v819
        %v4065 = vunpack.c.l.b16 %v820
        %v4066 = vunpack.c.h.b16 %v820
        %v4067 = vunpack.c.l.b16 %v821
        %v4068 = vunpack.c.h.b16 %v821
        %v4069 = vunpack.c.l.b16 %v822
        %v4070 = vunpack.c.h.b16 %v822
        %v4071 = vunpack.c.l.b16 %v823
        %v4072 = vunpack.c.h.b16 %v823
        %v4073 = vunpack.c.l.b16 %v824
        %v4074 = vunpack.c.h.b16 %v824
        %v4075 = vunpack.c.l.b16 %v825
        %v4076 = vunpack.c.h.b16 %v825
        %v4077 = vunpack.c.l.b16 %v826
        %v4078 = vunpack.c.h.b16 %v826
        %v4079 = vunpack.c.l.b16 %v827
        %v4080 = vunpack.c.h.b16 %v827
        %v4081 = vunpack.c.l.b16 %v828
        %v4082 = vunpack.c.h.b16 %v828
        %v4083 = vunpack.c.l.b16 %v829
        %v4084 = vunpack.c.h.b16 %v829
        %v4085 = vunpack.c.l.b16 %v830
        %v4086 = vunpack.c.h.b16 %v830
        %v4087 = vunpack.c.l.b16 %v831
        %v4088 = vunpack.c.h.b16 %v831
        %v4089 = vunpack.c.l.b16 %v832
        %v4090 = vunpack.c.h.b16 %v832
        %v4091 = vunpack.c.l.b16 %v833
        %v4092 = vunpack.c.h.b16 %v833
        %v4093 = vunpack.c.l.b16 %v834
        %v4094 = vunpack.c.h.b16 %v834
        %v4095 = vunpack.c.l.b16 %v835
        %v4096 = vunpack.c.h.b16 %v835
        %v4097 = vunpack.c.l.b16 %v836
        %v4098 = vunpack.c.h.b16 %v836
        %v4099 = vunpack.c.l.b16 %v837
        %v4100 = vunpack.c.h.b16 %v837
        %v4101 = vunpack.c.l.b16 %v838
        %v4102 = vunpack.c.h.b16 %v838
        %v4103 = vunpack.c.l.b16 %v839
        %v4104 = vunpack.c.h.b16 %v839
        %v4105 = vunpack.c.l.b16 %v840
        %v4106 = vunpack.c.h.b16 %v840
        %v4107 = vunpack.c.l.b16 %v841
        %v4108 = vunpack.c.h.b16 %v841
        %v4109 = vunpack.c.l.b16 %v842
        %v4110 = vunpack.c.h.b16 %v842
        %v4111 = vunpack.c.l.b16 %v843
        %v4112 = vunpack.c.h.b16 %v843
        %v4113 = vunpack.c.l.b16 %v844
        %v4114 = vunpack.c.h.b16 %v844
        %v4115 = vunpack.c.l.b16 %v845
        %v4116 = vunpack.c.h.b16 %v845
        %v4117 = vunpack.c.l.b16 %v846
        %v4118 = vunpack.c.h.b16 %v846
        %v4119 = vunpack.c.l.b16 %v847
        %v4120 = vunpack.c.h.b16 %v847
        %v4121 = vunpack.c.l.b16 %v848
        %v4122 = vunpack.c.h.b16 %v848
        %v4123 = vunpack.c.l.b16 %v849
        %v4124 = vunpack.c.h.b16 %v849
        %v4125 = vunpack.c.l.b16 %v850
        %v4126 = vunpack.c.h.b16 %v850
        %v4127 = vunpack.c.l.b16 %v851
        %v4128 = vunpack.c.h.b16 %v851
        %v4129 = vunpack.c.l.b16 %v852
        %v4130 = vunpack.c.h.b16 %v852
        %v4131 = vunpack.c.l.b16 %v853
        %v4132 = vunpack.c.h.b16 %v853
        %v4133 = vunpack.c.l.b16 %v854
        %v4134 = vunpack.c.h.b16 %v854
        %v4135 = vunpack.c.l.b16 %v855
        %v4136 = vunpack.c.h.b16 %v855
        %v4137 = vunpack.c.l.b16 %v856
        %v4138 = vunpack.c.h.b16 %v856
        %v4139 = vunpack.c.l.b16 %v857
        %v4140 = vunpack.c.h.b16 %v857
        %v4141 = vunpack.c.l.b16 %v858
        %v4142 = vunpack.c.h.b16 %v858
        %v4143 = vunpack.c.l.b16 %v859
        %v4144 = vunpack.c.h.b16 %v859
        %v4145 = vunpack.c.l.b16 %v860
        %v4146 = vunpack.c.h.b16 %v860
        %v4147 = vunpack.c.l.b16 %v861
        %v4148 = vunpack.c.h.b16 %v861
        %v4149 = vunpack.c.l.b16 %v862
        %v4150 = vunpack.c.h.b16 %v862
        %v4151 = vunpack.c.l.b16 %v863
        %v4152 = vunpack.c.h.b16 %v863
        %v4153 = vunpack.c.l.b16 %v864
        %v4154 = vunpack.c.h.b16 %v864
        %v4155 = vunpack.c.l.b16 %v865
        %v4156 = vunpack.c.h.b16 %v865
        %v4157 = vunpack.c.l.b16 %v866
        %v4158 = vunpack.c.h.b16 %v866
        %v4159 = vunpack.c.l.b16 %v867
        %v4160 = vunpack.c.h.b16 %v867
        %v4161 = vunpack.c.l.b16 %v868
        %v4162 = vunpack.c.h.b16 %v868
        %v4163 = vunpack.c.l.b16 %v869
        %v4164 = vunpack.c.h.b16 %v869
        %v4165 = vunpack.c.l.b16 %v870
        %v4166 = vunpack.c.h.b16 %v870
        %v4167 = vunpack.c.l.b16 %v871
        %v4168 = vunpack.c.h.b16 %v871
        %v4169 = vunpack.c.l.b16 %v872
        %v4170 = vunpack.c.h.b16 %v872
        %v4171 = vunpack.c.l.b16 %v873
        %v4172 = vunpack.c.h.b16 %v873
        %v4173 = vunpack.c.l.b16 %v874
        %v4174 = vunpack.c.h.b16 %v874
        %v4175 = vunpack.c.l.b16 %v875
        %v4176 = vunpack.c.h.b16 %v875
        %v4177 = vunpack.c.l.b16 %v876
        %v4178 = vunpack.c.h.b16 %v876
        %v4179 = vunpack.c.l.b16 %v877
        %v4180 = vunpack.c.h.b16 %v877
        %v4181 = vunpack.c.l.b16 %v878
        %v4182 = vunpack.c.h.b16 %v878
        %v4183 = vunpack.c.l.b16 %v879
        %v4184 = vunpack.c.h.b16 %v879
        %v4185 = vunpack.c.l.b16 %v880
        %v4186 = vunpack.c.h.b16 %v880
        %v4187 = vunpack.c.l.b16 %v881
        %v4188 = vunpack.c.h.b16 %v881
        %v4189 = vunpack.c.l.b16 %v882
        %v4190 = vunpack.c.h.b16 %v882
        %v4191 = vunpack.c.l.b16 %v883
        %v4192 = vunpack.c.h.b16 %v883
        %v4193 = vunpack.c.l.b16 %v884
        %v4194 = vunpack.c.h.b16 %v884
        %v4195 = vunpack.c.l.b16 %v885
        %v4196 = vunpack.c.h.b16 %v885
        %v4197 = vunpack.c.l.b16 %v886
        %v4198 = vunpack.c.h.b16 %v886
        %v4199 = vunpack.c.l.b16 %v887
        %v4200 = vunpack.c.h.b16 %v887
        %v4201 = vunpack.c.l.b16 %v888
        %v4202 = vunpack.c.h.b16 %v888
        %v4203 = vunpack.c.l.b16 %v889
        %v4204 = vunpack.c.h.b16 %v889
        %v4205 = vunpack.c.l.b16 %v890
        %v4206 = vunpack.c.h.b16 %v890
        %v4207 = vunpack.c.l.b16 %v891
        %v4208 = vunpack.c.h.b16 %v891
        %v4209 = vunpack.c.l.b16 %v892
        %v4210 = vunpack.c.h.b16 %v892
        %v4211 = vunpack.c.l.b16 %v893
        %v4212 = vunpack.c.h.b16 %v893
        %v4213 = vunpack.c.l.b16 %v894
        %v4214 = vunpack.c.h.b16 %v894
        %v4215 = vunpack.c.l.b16 %v895
        %v4216 = vunpack.c.h.b16 %v895
        %v4217 = vunpack.c.l.b16 %v896
        %v4218 = vunpack.c.h.b16 %v896
        %v4219 = vunpack.c.l.b16 %v897
        %v4220 = vunpack.c.h.b16 %v897
        %v4221 = vunpack.c.l.b16 %v898
        %v4222 = vunpack.c.h.b16 %v898
        %v4223 = vunpack.c.l.b16 %v899
        %v4224 = vunpack.c.h.b16 %v899
        %v4225 = vunpack.c.l.b16 %v900
        %v4226 = vunpack.c.h.b16 %v900
        %v4227 = vunpack.c.l.b16 %v901
        %v4228 = vunpack.c.h.b16 %v901
        %v4229 = vunpack.c.l.b16 %v902
        %v4230 = vunpack.c.h.b16 %v902
        %v4231 = vunpack.c.l.b16 %v903
        %v4232 = vunpack.c.h.b16 %v903
        %v4233 = vunpack.c.l.b16 %v904
        %v4234 = vunpack.c.h.b16 %v904
        %v4235 = vunpack.c.l.b16 %v905
        %v4236 = vunpack.c.h.b16 %v905
        %v4237 = vunpack.c.l.b16 %v906
        %v4238 = vunpack.c.h.b16 %v906
        %v4239 = vunpack.c.l.b16 %v907
        %v4240 = vunpack.c.h.b16 %v907
        %v4241 = vunpack.c.l.b16 %v908
        %v4242 = vunpack.c.h.b16 %v908
        %v4243 = vunpack.c.l.b16 %v909
        %v4244 = vunpack.c.h.b16 %v909
        %v4245 = vunpack.c.l.b16 %v910
        %v4246 = vunpack.c.h.b16 %v910
        %v4247 = vunpack.c.l.b16 %v911
        %v4248 = vunpack.c.h.b16 %v911
        %v4249 = vunpack.c.l.b16 %v912
        %v4250 = vunpack.c.h.b16 %v912
        %v4251 = vunpack.c.l.b16 %v913
        %v4252 = vunpack.c.h.b16 %v913
        %v4253 = vunpack.c.l.b16 %v914
        %v4254 = vunpack.c.h.b16 %v914
        %v4255 = vunpack.c.l.b16 %v915
        %v4256 = vunpack.c.h.b16 %v915
        %v4257 = vunpack.c.l.b16 %v916
        %v4258 = vunpack.c.h.b16 %v916
        %v4259 = vunpack.c.l.b16 %v917
        %v4260 = vunpack.c.h.b16 %v917
        %v4261 = vunpack.c.l.b16 %v918
        %v4262 = vunpack.c.h.b16 %v918
        %v4263 = vunpack.c.l.b16 %v919
        %v4264 = vunpack.c.h.b16 %v919
        %v4265 = vunpack.c.l.b16 %v920
        %v4266 = vunpack.c.h.b16 %v920
        %v4267 = vunpack.c.l.b16 %v921
        %v4268 = vunpack.c.h.b16 %v921
        %v4269 = vunpack.c.l.b16 %v922
        %v4270 = vunpack.c.h.b16 %v922
        %v4271 = vunpack.c.l.b16 %v923
        %v4272 = vunpack.c.h.b16 %v923
        %v4273 = vunpack.c.l.b16 %v924
        %v4274 = vunpack.c.h.b16 %v924
        %v4275 = vunpack.c.l.b16 %v925
        %v4276 = vunpack.c.h.b16 %v925
        %v4277 = vunpack.c.l.b16 %v926
        %v4278 = vunpack.c.h.b16 %v926
        %v4279 = vunpack.c.l.b16 %v927
        %v4280 = vunpack.c.h.b16 %v927
        %v4281 = vunpack.c.l.b16 %v928
        %v4282 = vunpack.c.h.b16 %v928
        %v4283 = vunpack.c.l.b16 %v929
        %v4284 = vunpack.c.h.b16 %v929
        %v4285 = vunpack.c.l.b16 %v930
        %v4286 = vunpack.c.h.b16 %v930
        %v4287 = vunpack.c.l.b16 %v931
        %v4288 = vunpack.c.h.b16 %v931
        %v4289 = vunpack.c.l.b16 %v932
        %v4290 = vunpack.c.h.b16 %v932
        %v4291 = vunpack.c.l.b16 %v933
        %v4292 = vunpack.c.h.b16 %v933
        %v4293 = vunpack.c.l.b16 %v934
        %v4294 = vunpack.c.h.b16 %v934
        %v4295 = vunpack.c.l.b16 %v935
        %v4296 = vunpack.c.h.b16 %v935
        %v4297 = vunpack.c.l.b16 %v936
        %v4298 = vunpack.c.h.b16 %v936
        %v4299 = vunpack.c.l.b16 %v937
        %v4300 = vunpack.c.h.b16 %v937
        %v4301 = vunpack.c.l.b16 %v938
        %v4302 = vunpack.c.h.b16 %v938
        %v4303 = vunpack.c.l.b16 %v939
        %v4304 = vunpack.c.h.b16 %v939
        %v4305 = vunpack.c.l.b16 %v940
        %v4306 = vunpack.c.h.b16 %v940
        %v4307 = vunpack.c.l.b16 %v941
        %v4308 = vunpack.c.h.b16 %v941
        %v4309 = vunpack.c.l.b16 %v942
        %v4310 = vunpack.c.h.b16 %v942
        %v4311 = vunpack.c.l.b16 %v943
        %v4312 = vunpack.c.h.b16 %v943
        %v4313 = vunpack.c.l.b16 %v944
        %v4314 = vunpack.c.h.b16 %v944
        %v4315 = vunpack.c.l.b16 %v945
        %v4316 = vunpack.c.h.b16 %v945
        %v4317 = vunpack.c.l.b16 %v946
        %v4318 = vunpack.c.h.b16 %v946
        %v4319 = vunpack.c.l.b16 %v947
        %v4320 = vunpack.c.h.b16 %v947
        %v4321 = vunpack.c.l.b16 %v948
        %v4322 = vunpack.c.h.b16 %v948
        %v4323 = vunpack.c.l.b16 %v949
        %v4324 = vunpack.c.h.b16 %v949
        %v4325 = vunpack.c.l.b16 %v950
        %v4326 = vunpack.c.h.b16 %v950
        %v4327 = vunpack.c.l.b16 %v951
        %v4328 = vunpack.c.h.b16 %v951
        %v4329 = vunpack.c.l.b16 %v952
        %v4330 = vunpack.c.h.b16 %v952
        %v4331 = vunpack.c.l.b16 %v953
        %v4332 = vunpack.c.h.b16 %v953
        %v4333 = vunpack.c.l.b16 %v954
        %v4334 = vunpack.c.h.b16 %v954
        %v4335 = vunpack.c.l.b16 %v955
        %v4336 = vunpack.c.h.b16 %v955
        %v4337 = vunpack.c.l.b16 %v956
        %v4338 = vunpack.c.h.b16 %v956
        %v4339 = vunpack.c.l.b16 %v957
        %v4340 = vunpack.c.h.b16 %v957
        %v4341 = vunpack.c.l.b16 %v958
        %v4342 = vunpack.c.h.b16 %v958
        %v4343 = vunpack.c.l.b16 %v959
        %v4344 = vunpack.c.h.b16 %v959
        %v4345 = vunpack.c.l.b16 %v960
        %v4346 = vunpack.c.h.b16 %v960
        %v4347 = vunpack.c.l.b16 %v961
        %v4348 = vunpack.c.h.b16 %v961
        %v4349 = vunpack.c.l.b16 %v962
        %v4350 = vunpack.c.h.b16 %v962
        %v4351 = vunpack.c.l.b16 %v963
        %v4352 = vunpack.c.h.b16 %v963
        %v4353 = vunpack.c.l.b16 %v964
        %v4354 = vunpack.c.h.b16 %v964
        %v4355 = vunpack.c.l.b16 %v965
        %v4356 = vunpack.c.h.b16 %v965
        %v4357 = vunpack.c.l.b16 %v966
        %v4358 = vunpack.c.h.b16 %v966
        %v4359 = vunpack.c.l.b16 %v967
        %v4360 = vunpack.c.h.b16 %v967
        %v4361 = vunpack.c.l.b16 %v968
        %v4362 = vunpack.c.h.b16 %v968
        %v4363 = vunpack.c.l.b16 %v969
        %v4364 = vunpack.c.h.b16 %v969
        %v4365 = vunpack.c.l.b16 %v970
        %v4366 = vunpack.c.h.b16 %v970
        %v4367 = vunpack.c.l.b16 %v971
        %v4368 = vunpack.c.h.b16 %v971
        %v4369 = vunpack.c.l.b16 %v972
        %v4370 = vunpack.c.h.b16 %v972
        %v4371 = vunpack.c.l.b16 %v973
        %v4372 = vunpack.c.h.b16 %v973
        %v4373 = vunpack.c.l.b16 %v974
        %v4374 = vunpack.c.h.b16 %v974
        %v4375 = vunpack.c.l.b16 %v975
        %v4376 = vunpack.c.h.b16 %v975
        %v4377 = vunpack.c.l.b16 %v976
        %v4378 = vunpack.c.h.b16 %v976
        %v4379 = vunpack.c.l.b16 %v977
        %v4380 = vunpack.c.h.b16 %v977
        %v4381 = vunpack.c.l.b16 %v978
        %v4382 = vunpack.c.h.b16 %v978
        %v4383 = vunpack.c.l.b16 %v979
        %v4384 = vunpack.c.h.b16 %v979
        %v4385 = vunpack.c.l.b16 %v980
        %v4386 = vunpack.c.h.b16 %v980
        %v4387 = vunpack.c.l.b16 %v981
        %v4388 = vunpack.c.h.b16 %v981
        %v4389 = vunpack.c.l.b16 %v982
        %v4390 = vunpack.c.h.b16 %v982
        %v4391 = vunpack.c.l.b16 %v983
        %v4392 = vunpack.c.h.b16 %v983
        %v4393 = vunpack.c.l.b16 %v984
        %v4394 = vunpack.c.h.b16 %v984
        %v4395 = vunpack.c.l.b16 %v985
        %v4396 = vunpack.c.h.b16 %v985
        %v4397 = vunpack.c.l.b16 %v986
        %v4398 = vunpack.c.h.b16 %v986
        %v4399 = vunpack.c.l.b16 %v987
        %v4400 = vunpack.c.h.b16 %v987
        %v4401 = vunpack.c.l.b16 %v988
        %v4402 = vunpack.c.h.b16 %v988
        %v4403 = vunpack.c.l.b16 %v989
        %v4404 = vunpack.c.h.b16 %v989
        %v4405 = vunpack.c.l.b16 %v990
        %v4406 = vunpack.c.h.b16 %v990
        %v4407 = vunpack.c.l.b16 %v991
        %v4408 = vunpack.c.h.b16 %v991
        %v4409 = vunpack.c.l.b16 %v992
        %v4410 = vunpack.c.h.b16 %v992
        %v4411 = vunpack.c.l.b16 %v993
        %v4412 = vunpack.c.h.b16 %v993
        %v4413 = vunpack.c.l.b16 %v994
        %v4414 = vunpack.c.h.b16 %v994
        %v4415 = vunpack.c.l.b16 %v995
        %v4416 = vunpack.c.h.b16 %v995
        %v4417 = vunpack.c.l.b16 %v996
        %v4418 = vunpack.c.h.b16 %v996
        %v4419 = vunpack.c.l.b16 %v997
        %v4420 = vunpack.c.h.b16 %v997
        %v4421 = vunpack.c.l.b16 %v998
        %v4422 = vunpack.c.h.b16 %v998
        %v4423 = vunpack.c.l.b16 %v999
        %v4424 = vunpack.c.h.b16 %v999
        %v4425 = vunpack.c.l.b16 %v1000
        %v4426 = vunpack.c.h.b16 %v1000
        %v4427 = vunpack.c.l.b16 %v1001
        %v4428 = vunpack.c.h.b16 %v1001
        %v4429 = vunpack.c.l.b16 %v1002
        %v4430 = vunpack.c.h.b16 %v1002
        %v4431 = vunpack.c.l.b16 %v1003
        %v4432 = vunpack.c.h.b16 %v1003
        %v4433 = vunpack.c.l.b16 %v1004
        %v4434 = vunpack.c.h.b16 %v1004
        %v4435 = vunpack.c.l.b16 %v1005
        %v4436 = vunpack.c.h.b16 %v1005
        %v4437 = vunpack.c.l.b16 %v1006
        %v4438 = vunpack.c.h.b16 %v1006
        %v4439 = vunpack.c.l.b16 %v1007
        %v4440 = vunpack.c.h.b16 %v1007
        %v4441 = vunpack.c.l.b16 %v1008
        %v4442 = vunpack.c.h.b16 %v1008
        %v4443 = vunpack.c.l.b16 %v1009
        %v4444 = vunpack.c.h.b16 %v1009
        %v4445 = vunpack.c.l.b16 %v1010
        %v4446 = vunpack.c.h.b16 %v1010
        %v4447 = vunpack.c.l.b16 %v1011
        %v4448 = vunpack.c.h.b16 %v1011
        %v4449 = vunpack.c.l.b16 %v1012
        %v4450 = vunpack.c.h.b16 %v1012
        %v4451 = vunpack.c.l.b16 %v1013
        %v4452 = vunpack.c.h.b16 %v1013
        %v4453 = vunpack.c.l.b16 %v1014
        %v4454 = vunpack.c.h.b16 %v1014
        %v4455 = vunpack.c.l.b16 %v1015
        %v4456 = vunpack.c.h.b16 %v1015
        %v4457 = vunpack.c.l.b16 %v1016
        %v4458 = vunpack.c.h.b16 %v1016
        %v4459 = vunpack.c.l.b16 %v1017
        %v4460 = vunpack.c.h.b16 %v1017
        %v4461 = vunpack.c.l.b16 %v1018
        %v4462 = vunpack.c.h.b16 %v1018
        %v4463 = vunpack.c.l.b16 %v1019
        %v4464 = vunpack.c.h.b16 %v1019
        %v4465 = vunpack.c.l.b16 %v1020
        %v4466 = vunpack.c.h.b16 %v1020
        %v4467 = vunpack.c.l.b16 %v1021
        %v4468 = vunpack.c.h.b16 %v1021
        %v4469 = vunpack.c.l.b16 %v1022
        %v4470 = vunpack.c.h.b16 %v1022
        %v4471 = vunpack.c.l.b16 %v1023
        %v4472 = vunpack.c.h.b16 %v1023
        %v4473 = vunpack.c.l.b16 %v1024
        %v4474 = vunpack.c.h.b16 %v1024
        %v4475 = vunpack.c.l.b16 %v1025
        %v4476 = vunpack.c.h.b16 %v1025
        %v4477 = vunpack.c.l.b16 %v1026
        %v4478 = vunpack.c.h.b16 %v1026
        %v4479 = vunpack.c.l.b16 %v1027
        %v4480 = vunpack.c.h.b16 %v1027
        %v4481 = vunpack.c.l.b16 %v1028
        %v4482 = vunpack.c.h.b16 %v1028
        %v4483 = vunpack.c.l.b16 %v1029
        %v4484 = vunpack.c.h.b16 %v1029
        %v4485 = vunpack.c.l.b16 %v1030
        %v4486 = vunpack.c.h.b16 %v1030
        %v4487 = vunpack.c.l.b16 %v1031
        %v4488 = vunpack.c.h.b16 %v1031
        %v4489 = vunpack.c.l.b16 %v1032
        %v4490 = vunpack.c.h.b16 %v1032
        %v4491 = vunpack.c.l.b16 %v1033
        %v4492 = vunpack.c.h.b16 %v1033
        %v4493 = vunpack.c.l.b16 %v1034
        %v4494 = vunpack.c.h.b16 %v1034
        %v4495 = vunpack.c.l.b16 %v1035
        %v4496 = vunpack.c.h.b16 %v1035
        %v4497 = vunpack.c.l.b16 %v1036
        %v4498 = vunpack.c.h.b16 %v1036
        %v4499 = vunpack.c.l.b16 %v1037
        %v4500 = vunpack.c.h.b16 %v1037
        %v4501 = vunpack.c.l.b16 %v1038
        %v4502 = vunpack.c.h.b16 %v1038
        %v4503 = vunpack.c.l.b16 %v1039
        %v4504 = vunpack.c.h.b16 %v1039
        %v4505 = vunpack.c.l.b16 %v1040
        %v4506 = vunpack.c.h.b16 %v1040
        %v4507 = vunpack.c.l.b16 %v1041
        %v4508 = vunpack.c.h.b16 %v1041
        %v4509 = vunpack.c.l.b16 %v1042
        %v4510 = vunpack.c.h.b16 %v1042
        %v4511 = vunpack.c.l.b16 %v1043
        %v4512 = vunpack.c.h.b16 %v1043
        %v4513 = vunpack.c.l.b16 %v1044
        %v4514 = vunpack.c.h.b16 %v1044
        %v4515 = vunpack.c.l.b16 %v1045
        %v4516 = vunpack.c.h.b16 %v1045
        %v4517 = vunpack.c.l.b16 %v1046
        %v4518 = vunpack.c.h.b16 %v1046
        %v4519 = vunpack.c.l.b16 %v1047
        %v4520 = vunpack.c.h.b16 %v1047
        %v4521 = vunpack.c.l.b16 %v1048
        %v4522 = vunpack.c.h.b16 %v1048
        %v4523 = vunpack.c.l.b16 %v1049
        %v4524 = vunpack.c.h.b16 %v1049
        %v4525 = vunpack.c.l.b16 %v1050
        %v4526 = vunpack.c.h.b16 %v1050
        %v4527 = vunpack.c.l.b16 %v1051
        %v4528 = vunpack.c.h.b16 %v1051
        %v4529 = vunpack.c.l.b16 %v1052
        %v4530 = vunpack.c.h.b16 %v1052
        %v4531 = vunpack.c.l.b16 %v1053
        %v4532 = vunpack.c.h.b16 %v1053
        %v4533 = vunpack.c.l.b16 %v1054
        %v4534 = vunpack.c.h.b16 %v1054
        %v4535 = vunpack.c.l.b16 %v1055
        %v4536 = vunpack.c.h.b16 %v1055
        %v4537 = vunpack.c.l.b16 %v1056
        %v4538 = vunpack.c.h.b16 %v1056
        %v4539 = vunpack.c.l.b16 %v1057
        %v4540 = vunpack.c.h.b16 %v1057
        %v4541 = vunpack.c.l.b16 %v1058
        %v4542 = vunpack.c.h.b16 %v1058
        %v4543 = vunpack.c.l.b16 %v1059
        %v4544 = vunpack.c.h.b16 %v1059
        %v4545 = vunpack.c.l.b16 %v1060
        %v4546 = vunpack.c.h.b16 %v1060
        %v4547 = vunpack.c.l.b16 %v1061
        %v4548 = vunpack.c.h.b16 %v1061
        %v4549 = vunpack.c.l.b16 %v1062
        %v4550 = vunpack.c.h.b16 %v1062
        %v4551 = vunpack.c.l.b16 %v1063
        %v4552 = vunpack.c.h.b16 %v1063
        %v4553 = vunpack.c.l.b16 %v1064
        %v4554 = vunpack.c.h.b16 %v1064
        %v4555 = vunpack.c.l.b16 %v1065
        %v4556 = vunpack.c.h.b16 %v1065
        %v4557 = vunpack.c.l.b16 %v1066
        %v4558 = vunpack.c.h.b16 %v1066
        %v4559 = vunpack.c.l.b16 %v1067
        %v4560 = vunpack.c.h.b16 %v1067
        %v4561 = vunpack.c.l.b16 %v1068
        %v4562 = vunpack.c.h.b16 %v1068
        %v4563 = vunpack.c.l.b16 %v1069
        %v4564 = vunpack.c.h.b16 %v1069
        %v4565 = vunpack.c.l.b16 %v1070
        %v4566 = vunpack.c.h.b16 %v1070
        %v4567 = vunpack.c.l.b16 %v1071
        %v4568 = vunpack.c.h.b16 %v1071
        %v4569 = vunpack.c.l.b16 %v1072
        %v4570 = vunpack.c.h.b16 %v1072
        %v4571 = vunpack.c.l.b16 %v1073
        %v4572 = vunpack.c.h.b16 %v1073
        %v4573 = vunpack.c.l.b16 %v1074
        %v4574 = vunpack.c.h.b16 %v1074
        %v4575 = vunpack.c.l.b16 %v1075
        %v4576 = vunpack.c.h.b16 %v1075
        %v4577 = vunpack.c.l.b16 %v1076
        %v4578 = vunpack.c.h.b16 %v1076
        %v4579 = vunpack.c.l.b16 %v1077
        %v4580 = vunpack.c.h.b16 %v1077
        %v4581 = vunpack.c.l.b16 %v1078
        %v4582 = vunpack.c.h.b16 %v1078
        %v4583 = vunpack.c.l.b16 %v1079
        %v4584 = vunpack.c.h.b16 %v1079
        %v4585 = vunpack.c.l.b16 %v1080
        %v4586 = vunpack.c.h.b16 %v1080
        %v4587 = vunpack.c.l.b16 %v1081
        %v4588 = vunpack.c.h.b16 %v1081
        %v4589 = vunpack.c.l.b16 %v1082
        %v4590 = vunpack.c.h.b16 %v1082
        %v4591 = vunpack.c.l.b16 %v1083
        %v4592 = vunpack.c.h.b16 %v1083
        %v4593 = vunpack.c.l.b16 %v1084
        %v4594 = vunpack.c.h.b16 %v1084
        %v4595 = vunpack.c.l.b16 %v1085
        %v4596 = vunpack.c.h.b16 %v1085
        %v4597 = vunpack.c.l.b16 %v1086
        %v4598 = vunpack.c.h.b16 %v1086
        %v4599 = vunpack.c.l.b16 %v1087
        %v4600 = vunpack.c.h.b16 %v1087
        %v4601 = vunpack.c.l.b16 %v1088
        %v4602 = vunpack.c.h.b16 %v1088
        %v4603 = vunpack.c.l.b16 %v1089
        %v4604 = vunpack.c.h.b16 %v1089
        %v4605 = vunpack.c.l.b16 %v1090
        %v4606 = vunpack.c.h.b16 %v1090
        %v4607 = vunpack.c.l.b16 %v1091
        %v4608 = vunpack.c.h.b16 %v1091
        %v4609 = vunpack.c.l.b16 %v1092
        %v4610 = vunpack.c.h.b16 %v1092
        %v4611 = vunpack.c.l.b16 %v1093
        %v4612 = vunpack.c.h.b16 %v1093
        %v4613 = vunpack.c.l.b16 %v1094
        %v4614 = vunpack.c.h.b16 %v1094
        %v4615 = vunpack.c.l.b16 %v1095
        %v4616 = vunpack.c.h.b16 %v1095
        %v4617 = vunpack.c.l.b16 %v1096
        %v4618 = vunpack.c.h.b16 %v1096
        %v4619 = vunpack.c.l.b16 %v1097
        %v4620 = vunpack.c.h.b16 %v1097
        %v4621 = vunpack.c.l.b16 %v1098
        %v4622 = vunpack.c.h.b16 %v1098
        %v4623 = vunpack.c.l.b16 %v1099
        %v4624 = vunpack.c.h.b16 %v1099
        %v4625 = vunpack.c.l.b16 %v1100
        %v4626 = vunpack.c.h.b16 %v1100
        %v4627 = vunpack.c.l.b16 %v1101
        %v4628 = vunpack.c.h.b16 %v1101
        %v4629 = vunpack.c.l.b16 %v1102
        %v4630 = vunpack.c.h.b16 %v1102
        %v4631 = vunpack.c.l.b16 %v1103
        %v4632 = vunpack.c.h.b16 %v1103
        %v4633 = vunpack.c.l.b16 %v1104
        %v4634 = vunpack.c.h.b16 %v1104
        %v4635 = vunpack.c.l.b16 %v1105
        %v4636 = vunpack.c.h.b16 %v1105
        %v4637 = vunpack.c.l.b16 %v1106
        %v4638 = vunpack.c.h.b16 %v1106
        %v4639 = vunpack.c.l.b16 %v1107
        %v4640 = vunpack.c.h.b16 %v1107
        %v4641 = vunpack.c.l.b16 %v1108
        %v4642 = vunpack.c.h.b16 %v1108
        %v4643 = vunpack.c.l.b16 %v1109
        %v4644 = vunpack.c.h.b16 %v1109
        %v4645 = vunpack.c.l.b16 %v1110
        %v4646 = vunpack.c.h.b16 %v1110
        %v4647 = vunpack.c.l.b16 %v1111
        %v4648 = vunpack.c.h.b16 %v1111
        %v4649 = vunpack.c.l.b16 %v1112
        %v4650 = vunpack.c.h.b16 %v1112
        %v4651 = vunpack.c.l.b16 %v1113
        %v4652 = vunpack.c.h.b16 %v1113
        %v4653 = vunpack.c.l.b16 %v1114
        %v4654 = vunpack.c.h.b16 %v1114
        %v4655 = vunpack.c.l.b16 %v1115
        %v4656 = vunpack.c.h.b16 %v1115
        %v4657 = vunpack.c.l.b16 %v1116
        %v4658 = vunpack.c.h.b16 %v1116
        %v4659 = vunpack.c.l.b16 %v1117
        %v4660 = vunpack.c.h.b16 %v1117
        %v4661 = vunpack.c.l.b16 %v1118
        %v4662 = vunpack.c.h.b16 %v1118
        %v4663 = vunpack.c.l.b16 %v1119
        %v4664 = vunpack.c.h.b16 %v1119
        %v4665 = vunpack.c.l.b16 %v1120
        %v4666 = vunpack.c.h.b16 %v1120
        %v4667 = vunpack.c.l.b16 %v1121
        %v4668 = vunpack.c.h.b16 %v1121
        %v4669 = vunpack.c.l.b16 %v1122
        %v4670 = vunpack.c.h.b16 %v1122
        %v4671 = vunpack.c.l.b16 %v1123
        %v4672 = vunpack.c.h.b16 %v1123
        %v4673 = vunpack.c.l.b16 %v1124
        %v4674 = vunpack.c.h.b16 %v1124
        %v4675 = vunpack.c.l.b16 %v1125
        %v4676 = vunpack.c.h.b16 %v1125
        %v4677 = vunpack.c.l.b16 %v1126
        %v4678 = vunpack.c.h.b16 %v1126
        %v4679 = vunpack.c.l.b16 %v1127
        %v4680 = vunpack.c.h.b16 %v1127
        %v4681 = vunpack.c.l.b16 %v1128
        %v4682 = vunpack.c.h.b16 %v1128
        %v4683 = vunpack.c.l.b16 %v1129
        %v4684 = vunpack.c.h.b16 %v1129
        %v4685 = vunpack.c.l.b16 %v1130
        %v4686 = vunpack.c.h.b16 %v1130
        %v4687 = vunpack.c.l.b16 %v1131
        %v4688 = vunpack.c.h.b16 %v1131
        %v4689 = vunpack.c.l.b16 %v1132
        %v4690 = vunpack.c.h.b16 %v1132
        %v4691 = vunpack.c.l.b16 %v1133
        %v4692 = vunpack.c.h.b16 %v1133
        %v4693 = vunpack.c.l.b16 %v1134
        %v4694 = vunpack.c.h.b16 %v1134
        %v4695 = vunpack.c.l.b16 %v1135
        %v4696 = vunpack.c.h.b16 %v1135
        %v4697 = vunpack.c.l.b16 %v1136
        %v4698 = vunpack.c.h.b16 %v1136
        %v4699 = vunpack.c.l.b16 %v1137
        %v4700 = vunpack.c.h.b16 %v1137
        %v4701 = vunpack.c.l.b16 %v1138
        %v4702 = vunpack.c.h.b16 %v1138
        %v4703 = vunpack.c.l.b16 %v1139
        %v4704 = vunpack.c.h.b16 %v1139
        %v4705 = vunpack.c.l.b16 %v1140
        %v4706 = vunpack.c.h.b16 %v1140
        %v4707 = vunpack.c.l.b16 %v1141
        %v4708 = vunpack.c.h.b16 %v1141
        %v4709 = vunpack.c.l.b16 %v1142
        %v4710 = vunpack.c.h.b16 %v1142
        %v4711 = vunpack.c.l.b16 %v1143
        %v4712 = vunpack.c.h.b16 %v1143
        %v4713 = vunpack.c.l.b16 %v1144
        %v4714 = vunpack.c.h.b16 %v1144
        %v4715 = vunpack.c.l.b16 %v1145
        %v4716 = vunpack.c.h.b16 %v1145
        %v4717 = vunpack.c.l.b16 %v1146
        %v4718 = vunpack.c.h.b16 %v1146
        %v4719 = vunpack.c.l.b16 %v1147
        %v4720 = vunpack.c.h.b16 %v1147
        %v4721 = vunpack.c.l.b16 %v1148
        %v4722 = vunpack.c.h.b16 %v1148
        %v4723 = vunpack.c.l.b16 %v1149
        %v4724 = vunpack.c.h.b16 %v1149
        %v4725 = vunpack.c.l.b16 %v1150
        %v4726 = vunpack.c.h.b16 %v1150
        %v4727 = vunpack.c.l.b16 %v1151
        %v4728 = vunpack.c.h.b16 %v1151
        %v4729 = vunpack.c.l.b16 %v1152
        %v4730 = vunpack.c.h.b16 %v1152
        %v4731 = vunpack.c.l.b16 %v1153
        %v4732 = vunpack.c.h.b16 %v1153
        %v4733 = vunpack.c.l.b16 %v1154
        %v4734 = vunpack.c.h.b16 %v1154
        %v4735 = vunpack.c.l.b16 %v1155
        %v4736 = vunpack.c.h.b16 %v1155
        %v4737 = vunpack.c.l.b16 %v1156
        %v4738 = vunpack.c.h.b16 %v1156
        %v4739 = vunpack.c.l.b16 %v1157
        %v4740 = vunpack.c.h.b16 %v1157
        %v4741 = vunpack.c.l.b16 %v1158
        %v4742 = vunpack.c.h.b16 %v1158
        %v4743 = vunpack.c.l.b16 %v1159
        %v4744 = vunpack.c.h.b16 %v1159
        %v4745 = vunpack.c.l.b16 %v1160
        %v4746 = vunpack.c.h.b16 %v1160
        %v4747 = vunpack.c.l.b16 %v1161
        %v4748 = vunpack.c.h.b16 %v1161
        %v4749 = vunpack.c.l.b16 %v1162
        %v4750 = vunpack.c.h.b16 %v1162
        %v4751 = vunpack.c.l.b16 %v1163
        %v4752 = vunpack.c.h.b16 %v1163
        %v4753 = vunpack.c.l.b16 %v1164
        %v4754 = vunpack.c.h.b16 %v1164
        %v4755 = vunpack.c.l.b16 %v1165
        %v4756 = vunpack.c.h.b16 %v1165
        %v4757 = vunpack.c.l.b16 %v1166
        %v4758 = vunpack.c.h.b16 %v1166
        %v4759 = vunpack.c.l.b16 %v1167
        %v4760 = vunpack.c.h.b16 %v1167
        %v4761 = vunpack.c.l.b16 %v1168
        %v4762 = vunpack.c.h.b16 %v1168
        %v4763 = vunpack.c.l.b16 %v1169
        %v4764 = vunpack.c.h.b16 %v1169
        %v4765 = vunpack.c.l.b16 %v1170
        %v4766 = vunpack.c.h.b16 %v1170
        %v4767 = vunpack.c.l.b16 %v1171
        %v4768 = vunpack.c.h.b16 %v1171
        %v4769 = vunpack.c.l.b16 %v1172
        %v4770 = vunpack.c.h.b16 %v1172
        %v4771 = vunpack.c.l.b16 %v1173
        %v4772 = vunpack.c.h.b16 %v1173
        %v4773 = vunpack.c.l.b16 %v1174
        %v4774 = vunpack.c.h.b16 %v1174
        %v4775 = vunpack.c.l.b16 %v1175
        %v4776 = vunpack.c.h.b16 %v1175
        %v4777 = vunpack.c.l.b16 %v1176
        %v4778 = vunpack.c.h.b16 %v1176
        %v4779 = vunpack.c.l.b16 %v1177
        %v4780 = vunpack.c.h.b16 %v1177
        %v4781 = vunpack.c.l.b16 %v1178
        %v4782 = vunpack.c.h.b16 %v1178
        %v4783 = vunpack.c.l.b16 %v1179
        %v4784 = vunpack.c.h.b16 %v1179
        %v4785 = vunpack.c.l.b16 %v1180
        %v4786 = vunpack.c.h.b16 %v1180
        %v4787 = vunpack.c.l.b16 %v1181
        %v4788 = vunpack.c.h.b16 %v1181
        %v4789 = vunpack.c.l.b16 %v1182
        %v4790 = vunpack.c.h.b16 %v1182
        %v4791 = vunpack.c.l.b16 %v1183
        %v4792 = vunpack.c.h.b16 %v1183
        %v4793 = vunpack.c.l.b16 %v1184
        %v4794 = vunpack.c.h.b16 %v1184
        %v4795 = vunpack.c.l.b16 %v1185
        %v4796 = vunpack.c.h.b16 %v1185
        %v4797 = vunpack.c.l.b16 %v1186
        %v4798 = vunpack.c.h.b16 %v1186
        %v4799 = vunpack.c.l.b16 %v1187
        %v4800 = vunpack.c.h.b16 %v1187
        %v4801 = vunpack.c.l.b16 %v1188
        %v4802 = vunpack.c.h.b16 %v1188
        %v4803 = vunpack.c.l.b16 %v1189
        %v4804 = vunpack.c.h.b16 %v1189
        %v4805 = vunpack.c.l.b16 %v1190
        %v4806 = vunpack.c.h.b16 %v1190
        %v4807 = vunpack.c.l.b16 %v1191
        %v4808 = vunpack.c.h.b16 %v1191
        %v4809 = vunpack.c.l.b16 %v1192
        %v4810 = vunpack.c.h.b16 %v1192
        %v4811 = vunpack.c.l.b16 %v1193
        %v4812 = vunpack.c.h.b16 %v1193
        %v4813 = vunpack.c.l.b16 %v1194
        %v4814 = vunpack.c.h.b16 %v1194
        %v4815 = vunpack.c.l.b16 %v1195
        %v4816 = vunpack.c.h.b16 %v1195
        %v4817 = vunpack.c.l.b16 %v1196
        %v4818 = vunpack.c.h.b16 %v1196
        %v4819 = vunpack.c.l.b16 %v1197
        %v4820 = vunpack.c.h.b16 %v1197
        %v4821 = vunpack.c.l.b16 %v1198
        %v4822 = vunpack.c.h.b16 %v1198
        %v4823 = vunpack.c.l.b16 %v1199
        %v4824 = vunpack.c.h.b16 %v1199
        %v4825 = vunpack.c.l.b16 %v1200
        %v4826 = vunpack.c.h.b16 %v1200
        %v4827 = vunpack.c.l.b16 %v1201
        %v4828 = vunpack.c.h.b16 %v1201
        %v4829 = vunpack.c.l.b16 %v1202
        %v4830 = vunpack.c.h.b16 %v1202
        %v4831 = vunpack.c.l.b16 %v1203
        %v4832 = vunpack.c.h.b16 %v1203
        %v4833 = vunpack.c.l.b16 %v1204
        %v4834 = vunpack.c.h.b16 %v1204
        %v4835 = vunpack.c.l.b16 %v1205
        %v4836 = vunpack.c.h.b16 %v1205
        %v4837 = vunpack.c.l.b16 %v1206
        %v4838 = vunpack.c.h.b16 %v1206
        %v4839 = vunpack.c.l.b16 %v1207
        %v4840 = vunpack.c.h.b16 %v1207
        %v4841 = vunpack.c.l.b16 %v1208
        %v4842 = vunpack.c.h.b16 %v1208
        %v4843 = vunpack.c.l.b16 %v1209
        %v4844 = vunpack.c.h.b16 %v1209
        %v4845 = vunpack.c.l.b16 %v1210
        %v4846 = vunpack.c.h.b16 %v1210
        %v4847 = vunpack.c.l.b16 %v1211
        %v4848 = vunpack.c.h.b16 %v1211
        %v4849 = vunpack.c.l.b16 %v1212
        %v4850 = vunpack.c.h.b16 %v1212
        %v4851 = vunpack.c.l.b16 %v1213
        %v4852 = vunpack.c.h.b16 %v1213
        %v4853 = vunpack.c.l.b16 %v1214
        %v4854 = vunpack.c.h.b16 %v1214
        %v4855 = vunpack.c.l.b16 %v1215
        %v4856 = vunpack.c.h.b16 %v1215
        %v4857 = vunpack.c.l.b16 %v1216
        %v4858 = vunpack.c.h.b16 %v1216
        %v4859 = vunpack.c.l.b16 %v1217
        %v4860 = vunpack.c.h.b16 %v1217
        %v4861 = vunpack.c.l.b16 %v1218
        %v4862 = vunpack.c.h.b16 %v1218
        %v4863 = vunpack.c.l.b16 %v1219
        %v4864 = vunpack.c.h.b16 %v1219
        %v4865 = vunpack.c.l.b16 %v1220
        %v4866 = vunpack.c.h.b16 %v1220
        %v4867 = vunpack.c.l.b16 %v1221
        %v4868 = vunpack.c.h.b16 %v1221
        %v4869 = vunpack.c.l.b16 %v1222
        %v4870 = vunpack.c.h.b16 %v1222
        %v4871 = vunpack.c.l.b16 %v1223
        %v4872 = vunpack.c.h.b16 %v1223
        %v4873 = vunpack.c.l.b16 %v1224
        %v4874 = vunpack.c.h.b16 %v1224
        %v4875 = vunpack.c.l.b16 %v1225
        %v4876 = vunpack.c.h.b16 %v1225
        %v4877 = vunpack.c.l.b16 %v1226
        %v4878 = vunpack.c.h.b16 %v1226
        %v4879 = vunpack.c.l.b16 %v1227
        %v4880 = vunpack.c.h.b16 %v1227
        %v4881 = vunpack.c.l.b16 %v1228
        %v4882 = vunpack.c.h.b16 %v1228
        %v4883 = vunpack.c.l.b16 %v1229
        %v4884 = vunpack.c.h.b16 %v1229
        %v4885 = vunpack.c.l.b16 %v1230
        %v4886 = vunpack.c.h.b16 %v1230
        %v4887 = vunpack.c.l.b16 %v1231
        %v4888 = vunpack.c.h.b16 %v1231
        %v4889 = vunpack.c.l.b16 %v1232
        %v4890 = vunpack.c.h.b16 %v1232
        %v4891 = vunpack.c.l.b16 %v1233
        %v4892 = vunpack.c.h.b16 %v1233
        %v4893 = vunpack.c.l.b16 %v1234
        %v4894 = vunpack.c.h.b16 %v1234
        %v4895 = vunpack.c.l.b16 %v1235
        %v4896 = vunpack.c.h.b16 %v1235
        %v4897 = vunpack.c.l.b16 %v1236
        %v4898 = vunpack.c.h.b16 %v1236
        %v4899 = vunpack.c.l.b16 %v1237
        %v4900 = vunpack.c.h.b16 %v1237
        %v4901 = vunpack.c.l.b16 %v1238
        %v4902 = vunpack.c.h.b16 %v1238
        %v4903 = vunpack.c.l.b16 %v1239
        %v4904 = vunpack.c.h.b16 %v1239
        %v4905 = vunpack.c.l.b16 %v1240
        %v4906 = vunpack.c.h.b16 %v1240
        %v4907 = vunpack.c.l.b16 %v1241
        %v4908 = vunpack.c.h.b16 %v1241
        %v4909 = vunpack.c.l.b16 %v1242
        %v4910 = vunpack.c.h.b16 %v1242
        %v4911 = vunpack.c.l.b16 %v1243
        %v4912 = vunpack.c.h.b16 %v1243
        %v4913 = vunpack.c.l.b16 %v1244
        %v4914 = vunpack.c.h.b16 %v1244
        %v4915 = vunpack.c.l.b16 %v1245
        %v4916 = vunpack.c.h.b16 %v1245
        %v4917 = vunpack.c.l.b16 %v1246
        %v4918 = vunpack.c.h.b16 %v1246
        %v4919 = vunpack.c.l.b16 %v1247
        %v4920 = vunpack.c.h.b16 %v1247
        %v4921 = vunpack.c.l.b16 %v1248
        %v4922 = vunpack.c.h.b16 %v1248
        %v4923 = vunpack.c.l.b16 %v1249
        %v4924 = vunpack.c.h.b16 %v1249
        %v4925 = vunpack.c.l.b16 %v1250
        %v4926 = vunpack.c.h.b16 %v1250
        %v4927 = vunpack.c.l.b16 %v1251
        %v4928 = vunpack.c.h.b16 %v1251
        %v4929 = vunpack.c.l.b16 %v1252
        %v4930 = vunpack.c.h.b16 %v1252
        %v4931 = vunpack.c.l.b16 %v1253
        %v4932 = vunpack.c.h.b16 %v1253
        %v4933 = vunpack.c.l.b16 %v1254
        %v4934 = vunpack.c.h.b16 %v1254
        %v4935 = vunpack.c.l.b16 %v1255
        %v4936 = vunpack.c.h.b16 %v1255
        %v4937 = vunpack.c.l.b16 %v1256
        %v4938 = vunpack.c.h.b16 %v1256
        %v4939 = vunpack.c.l.b16 %v1257
        %v4940 = vunpack.c.h.b16 %v1257
        %v4941 = vunpack.c.l.b16 %v1258
        %v4942 = vunpack.c.h.b16 %v1258
        %v4943 = vunpack.c.l.b16 %v1259
        %v4944 = vunpack.c.h.b16 %v1259
        %v4945 = vunpack.c.l.b16 %v1260
        %v4946 = vunpack.c.h.b16 %v1260
        %v4947 = vunpack.c.l.b16 %v1261
        %v4948 = vunpack.c.h.b16 %v1261
        %v4949 = vunpack.c.l.b16 %v1262
        %v4950 = vunpack.c.h.b16 %v1262
        %v4951 = vunpack.c.l.b16 %v1263
        %v4952 = vunpack.c.h.b16 %v1263
        %v4953 = vunpack.c.l.b16 %v1264
        %v4954 = vunpack.c.h.b16 %v1264
        %v4955 = vunpack.c.l.b16 %v1265
        %v4956 = vunpack.c.h.b16 %v1265
        %v4957 = vunpack.c.l.b16 %v1266
        %v4958 = vunpack.c.h.b16 %v1266
        %v4959 = vunpack.c.l.b16 %v1267
        %v4960 = vunpack.c.h.b16 %v1267
        %v4961 = vunpack.c.l.b16 %v1268
        %v4962 = vunpack.c.h.b16 %v1268
        %v4963 = vunpack.c.l.b16 %v1269
        %v4964 = vunpack.c.h.b16 %v1269
        %v4965 = vunpack.c.l.b16 %v1270
        %v4966 = vunpack.c.h.b16 %v1270
        %v4967 = vunpack.c.l.b16 %v1271
        %v4968 = vunpack.c.h.b16 %v1271
        %v4969 = vunpack.c.l.b16 %v1272
        %v4970 = vunpack.c.h.b16 %v1272
        %v4971 = vunpack.c.l.b16 %v1273
        %v4972 = vunpack.c.h.b16 %v1273
        %v4973 = vunpack.c.l.b16 %v1274
        %v4974 = vunpack.c.h.b16 %v1274
        %v4975 = vunpack.c.l.b16 %v1275
        %v4976 = vunpack.c.h.b16 %v1275
        %v4977 = vunpack.c.l.b16 %v1276
        %v4978 = vunpack.c.h.b16 %v1276
        %v4979 = vunpack.c.l.b16 %v1277
        %v4980 = vunpack.c.h.b16 %v1277
        %v4981 = vunpack.c.l.b16 %v1278
        %v4982 = vunpack.c.h.b16 %v1278
        %v4983 = vunpack.c.l.b16 %v1279
        %v4984 = vunpack.c.h.b16 %v1279
        %v4985 = vunpack.c.l.b16 %v1280
        %v4986 = vunpack.c.h.b16 %v1280
        %v4987 = vunpack.c.l.b16 %v1281
        %v4988 = vunpack.c.h.b16 %v1281
        %v4989 = vunpack.c.l.b16 %v1282
        %v4990 = vunpack.c.h.b16 %v1282
        %v4991 = vunpack.c.l.b16 %v1283
        %v4992 = vunpack.c.h.b16 %v1283
        %v4993 = vunpack.c.l.b16 %v1284
        %v4994 = vunpack.c.h.b16 %v1284
        %v4995 = vunpack.c.l.b16 %v1285
        %v4996 = vunpack.c.h.b16 %v1285
        %v4997 = vunpack.c.l.b16 %v1286
        %v4998 = vunpack.c.h.b16 %v1286
        %v4999 = vunpack.c.l.b16 %v1287
        %v5000 = vunpack.c.h.b16 %v1287
        %v5001 = vunpack.c.l.b16 %v1288
        %v5002 = vunpack.c.h.b16 %v1288
        %v5003 = vunpack.c.l.b16 %v1289
        %v5004 = vunpack.c.h.b16 %v1289
        %v5005 = vunpack.c.l.b16 %v1290
        %v5006 = vunpack.c.h.b16 %v1290
        %v5007 = vunpack.c.l.b16 %v1291
        %v5008 = vunpack.c.h.b16 %v1291
        %v5009 = vunpack.c.l.b16 %v1292
        %v5010 = vunpack.c.h.b16 %v1292
        %v5011 = vunpack.c.l.b16 %v1293
        %v5012 = vunpack.c.h.b16 %v1293
        %v5013 = vunpack.c.l.b16 %v1294
        %v5014 = vunpack.c.h.b16 %v1294
        %v5015 = vunpack.c.l.b16 %v1295
        %v5016 = vunpack.c.h.b16 %v1295
        %v5017 = vunpack.c.l.b16 %v1296
        %v5018 = vunpack.c.h.b16 %v1296
        %v5019 = vunpack.c.l.b16 %v1297
        %v5020 = vunpack.c.h.b16 %v1297
        %v5021 = vunpack.c.l.b16 %v1298
        %v5022 = vunpack.c.h.b16 %v1298
        %v5023 = vunpack.c.l.b16 %v1299
        %v5024 = vunpack.c.h.b16 %v1299
        %v5025 = vunpack.c.l.b16 %v1300
        %v5026 = vunpack.c.h.b16 %v1300
        %v5027 = vunpack.c.l.b16 %v1301
        %v5028 = vunpack.c.h.b16 %v1301
        %v5029 = vunpack.c.l.b16 %v1302
        %v5030 = vunpack.c.h.b16 %v1302
        %v5031 = vunpack.c.l.b16 %v1303
        %v5032 = vunpack.c.h.b16 %v1303
        %v5033 = vunpack.c.l.b16 %v1304
        %v5034 = vunpack.c.h.b16 %v1304
        %v5035 = vunpack.c.l.b16 %v1305
        %v5036 = vunpack.c.h.b16 %v1305
        %v5037 = vunpack.c.l.b16 %v1306
        %v5038 = vunpack.c.h.b16 %v1306
        %v5039 = vunpack.c.l.b16 %v1307
        %v5040 = vunpack.c.h.b16 %v1307
        %v5041 = vunpack.c.l.b16 %v1308
        %v5042 = vunpack.c.h.b16 %v1308
        %v5043 = vunpack.c.l.b16 %v1309
        %v5044 = vunpack.c.h.b16 %v1309
        %v5045 = vunpack.c.l.b16 %v1310
        %v5046 = vunpack.c.h.b16 %v1310
        %v5047 = vunpack.c.l.b16 %v1311
        %v5048 = vunpack.c.h.b16 %v1311
        %v5049 = vunpack.c.l.b16 %v1312
        %v5050 = vunpack.c.h.b16 %v1312
        %v5051 = vunpack.c.l.b16 %v1313
        %v5052 = vunpack.c.h.b16 %v1313
        %v5053 = vunpack.c.l.b16 %v1314
        %v5054 = vunpack.c.h.b16 %v1314
        %v5055 = vunpack.c.l.b16 %v1315
        %v5056 = vunpack.c.h.b16 %v1315
        %v5057 = vunpack.c.l.b16 %v1316
        %v5058 = vunpack.c.h.b16 %v1316
        %v5059 = vunpack.c.l.b16 %v1317
        %v5060 = vunpack.c.h.b16 %v1317
        %v5061 = vunpack.c.l.b16 %v1318
        %v5062 = vunpack.c.h.b16 %v1318
        %v5063 = vunpack.c.l.b16 %v1319
        %v5064 = vunpack.c.h.b16 %v1319
        %v5065 = vunpack.c.l.b16 %v1320
        %v5066 = vunpack.c.h.b16 %v1320
        %v5067 = vunpack.c.l.b16 %v1321
        %v5068 = vunpack.c.h.b16 %v1321
        %v5069 = vunpack.c.l.b16 %v1322
        %v5070 = vunpack.c.h.b16 %v1322
        %v5071 = vunpack.c.l.b16 %v1323
        %v5072 = vunpack.c.h.b16 %v1323
        %v5073 = vunpack.c.l.b16 %v1324
        %v5074 = vunpack.c.h.b16 %v1324
        %v5075 = vpack.c.b16 %v3155, %v3027
        %v5076 = vpack.c.b16 %v3156, %v3028
        %v5077 = vpack.c.b16 %v3157, %v3029
        %v5078 = vpack.c.b16 %v3158, %v3030
        %v5079 = vpack.c.b16 %v3159, %v3031
        %v5080 = vpack.c.b16 %v3160, %v3032
        %v5081 = vpack.c.b16 %v3161, %v3033
        %v5082 = vpack.c.b16 %v3162, %v3034
        %v5083 = vpack.c.b16 %v3163, %v3035
        %v5084 = vpack.c.b16 %v3164, %v3036
        %v5085 = vpack.c.b16 %v3165, %v3037
        %v5086 = vpack.c.b16 %v3166, %v3038
        %v5087 = vpack.c.b16 %v3167, %v3039
        %v5088 = vpack.c.b16 %v3168, %v3040
        %v5089 = vpack.c.b16 %v3169, %v3041
        %v5090 = vpack.c.b16 %v3170, %v3042
        %v5091 = vpack.c.b16 %v3171, %v3043
        %v5092 = vpack.c.b16 %v3172, %v3044
        %v5093 = vpack.c.b16 %v3173, %v3045
        %v5094 = vpack.c.b16 %v3174, %v3046
        %v5095 = vpack.c.b16 %v3175, %v3047
        %v5096 = vpack.c.b16 %v3176, %v3048
        %v5097 = vpack.c.b16 %v3177, %v3049
        %v5098 = vpack.c.b16 %v3178, %v3050
        %v5099 = vpack.c.b16 %v3179, %v3051
        %v5100 = vpack.c.b16 %v3180, %v3052
        %v5101 = vpack.c.b16 %v3181, %v3053
        %v5102 = vpack.c.b16 %v3182, %v3054
        %v5103 = vpack.c.b16 %v3183, %v3055
        %v5104 = vpack.c.b16 %v3184, %v3056
        %v5105 = vpack.c.b16 %v3185, %v3057
        %v5106 = vpack.c.b16 %v3186, %v3058
        %v5107 = vpack.c.b16 %v3187, %v3059
        %v5108 = vpack.c.b16 %v3188, %v3060
        %v5109 = vpack.c.b16 %v3189, %v3061
        %v5110 = vpack.c.b16 %v3190, %v3062
        %v5111 = vpack.c.b16 %v3191, %v3063
        %v5112 = vpack.c.b16 %v3192, %v3064
        %v5113 = vpack.c.b16 %v3193, %v3065
        %v5114 = vpack.c.b16 %v3194, %v3066
        %v5115 = vpack.c.b16 %v3195, %v3067
        %v5116 = vpack.c.b16 %v3196, %v3068
        %v5117 = vpack.c.b16 %v3197, %v3069
        %v5118 = vpack.c.b16 %v3198, %v3070
        %v5119 = vpack.c.b16 %v3199, %v3071
        %v5120 = vpack.c.b16 %v3200, %v3072
        %v5121 = vpack.c.b16 %v3201, %v3073
        %v5122 = vpack.c.b16 %v3202, %v3074
        %v5123 = vpack.c.b16 %v3203, %v3075
        %v5124 = vpack.c.b16 %v3204, %v3076
        %v5125 = vpack.c.b16 %v3205, %v3077
        %v5126 = vpack.c.b16 %v3206, %v3078
        %v5127 = vpack.c.b16 %v3207, %v3079
        %v5128 = vpack.c.b16 %v3208, %v3080
        %v5129 = vpack.c.b16 %v3209, %v3081
        %v5130 = vpack.c.b16 %v3210, %v3082
        %v5131 = vpack.c.b16 %v3211, %v3083
        %v5132 = vpack.c.b16 %v3212, %v3084
        %v5133 = vpack.c.b16 %v3213, %v3085
        %v5134 = vpack.c.b16 %v3214, %v3086
        %v5135 = vpack.c.b16 %v3215, %v3087
        %v5136 = vpack.c.b16 %v3216, %v3088
        %v5137 = vpack.c.b16 %v3217, %v3089
        %v5138 = vpack.c.b16 %v3218, %v3090
        %v5139 = vpack.c.b16 %v3219, %v3091
        %v5140 = vpack.c.b16 %v3220, %v3092
        %v5141 = vpack.c.b16 %v3221, %v3093
        %v5142 = vpack.c.b16 %v3222, %v3094
        %v5143 = vpack.c.b16 %v3223, %v3095
        %v5144 = vpack.c.b16 %v3224, %v3096
        %v5145 = vpack.c.b16 %v3225, %v3097
        %v5146 = vpack.c.b16 %v3226, %v3098
        %v5147 = vpack.c.b16 %v3227, %v3099
        %v5148 = vpack.c.b16 %v3228, %v3100
        %v5149 = vpack.c.b16 %v3229, %v3101
        %v5150 = vpack.c.b16 %v3230, %v3102
        %v5151 = vpack.c.b16 %v3231, %v3103
        %v5152 = vpack.c.b16 %v3232, %v3104
        %v5153 = vpack.c.b16 %v3233, %v3105
        %v5154 = vpack.c.b16 %v3234, %v3106
        %v5155 = vpack.c.b16 %v3235, %v3107
        %v5156 = vpack.c.b16 %v3236, %v3108
        %v5157 = vpack.c.b16 %v3237, %v3109
        %v5158 = vpack.c.b16 %v3238, %v3110
        %v5159 = vpack.c.b16 %v3239, %v3111
        %v5160 = vpack.c.b16 %v3240, %v3112
        %v5161 = vpack.c.b16 %v3241, %v3113
        %v5162 = vpack.c.b16 %v3242, %v3114
        %v5163 = vpack.c.b16 %v3243, %v3115
        %v5164 = vpack.c.b16 %v3244, %v3116
        %v5165 = vpack.c.b16 %v3245, %v3117
        %v5166 = vpack.c.b16 %v3246, %v3118
        %v5167 = vpack.c.b16 %v3247, %v3119
        %v5168 = vpack.c.b16 %v3248, %v3120
        %v5169 = vpack.c.b16 %v3249, %v3121
        %v5170 = vpack.c.b16 %v3250, %v3122
        %v5171 = vpack.c.b16 %v3251, %v3123
        %v5172 = vpack.c.b16 %v3252, %v3124
        %v5173 = vpack.c.b16 %v3253, %v3125
        %v5174 = vpack.c.b16 %v3254, %v3126
        %v5175 = vpack.c.b16 %v3255, %v3127
        %v5176 = vpack.c.b16 %v3256, %v3128
        %v5177 = vpack.c.b16 %v3257, %v3129
        %v5178 = vpack.c.b16 %v3258, %v3130
        %v5179 = vpack.c.b16 %v3259, %v3131
        %v5180 = vpack.c.b16 %v3260, %v3132
        %v5181 = vpack.c.b16 %v3261, %v3133
        %v5182 = vpack.c.b16 %v3262, %v3134
        %v5183 = vpack.c.b16 %v3263, %v3135
        %v5184 = vpack.c.b16 %v3264, %v3136
        %v5185 = vpack.c.b16 %v3265, %v3137
        %v5186 = vpack.c.b16 %v3266, %v3138
        %v5187 = vpack.c.b16 %v3267, %v3139
        %v5188 = vpack.c.b16 %v3268, %v3140
        %v5189 = vpack.c.b16 %v3269, %v3141
        %v5190 = vpack.c.b16 %v3270, %v3142
        %v5191 = vpack.c.b16 %v3271, %v3143
        %v5192 = vpack.c.b16 %v3272, %v3144
        %v5193 = vpack.c.b16 %v3273, %v3145
        %v5194 = vpack.c.b16 %v3274, %v3146
        %v5195 = vpack.c.b16 %v3275, %v3147
        %v5196 = vpack.c.b16 %v3276, %v3148
        %v5197 = vpack.c.b16 %v3277, %v3149
        %v5198 = vpack.c.b16 %v3278, %v3150
        %v5199 = vpack.c.b16 %v3279, %v3151
        %v5200 = vpack.c.b16 %v3280, %v3152
        %v5201 = vpack.c.b16 %v3281, %v3153
        %v5202 = vpack.c.b16 %v3282, %v3154
        %v5203 = vpack.c.b16 %v3411, %v3283
        %v5204 = vpack.c.b16 %v3412, %v3284
        %v5205 = vpack.c.b16 %v3413, %v3285
        %v5206 = vpack.c.b16 %v3414, %v3286
        %v5207 = vpack.c.b16 %v3415, %v3287
        %v5208 = vpack.c.b16 %v3416, %v3288
        %v5209 = vpack.c.b16 %v3417, %v3289
        %v5210 = vpack.c.b16 %v3418, %v3290
        %v5211 = vpack.c.b16 %v3419, %v3291
        %v5212 = vpack.c.b16 %v3420, %v3292
        %v5213 = vpack.c.b16 %v3421, %v3293
        %v5214 = vpack.c.b16 %v3422, %v3294
        %v5215 = vpack.c.b16 %v3423, %v3295
        %v5216 = vpack.c.b16 %v3424, %v3296
        %v5217 = vpack.c.b16 %v3425, %v3297
        %v5218 = vpack.c.b16 %v3426, %v3298
        %v5219 = vpack.c.b16 %v3427, %v3299
        %v5220 = vpack.c.b16 %v3428, %v3300
        %v5221 = vpack.c.b16 %v3429, %v3301
        %v5222 = vpack.c.b16 %v3430, %v3302
        %v5223 = vpack.c.b16 %v3431, %v3303
        %v5224 = vpack.c.b16 %v3432, %v3304
        %v5225 = vpack.c.b16 %v3433, %v3305
        %v5226 = vpack.c.b16 %v3434, %v3306
        %v5227 = vpack.c.b16 %v3435, %v3307
        %v5228 = vpack.c.b16 %v3436, %v3308
        %v5229 = vpack.c.b16 %v3437, %v3309
        %v5230 = vpack.c.b16 %v3438, %v3310
        %v5231 = vpack.c.b16 %v3439, %v3311
        %v5232 = vpack.c.b16 %v3440, %v3312
        %v5233 = vpack.c.b16 %v3441, %v3313
        %v5234 = vpack.c.b16 %v3442, %v3314
        %v5235 = vpack.c.b16 %v3443, %v3315
        %v5236 = vpack.c.b16 %v3444, %v3316
        %v5237 = vpack.c.b16 %v3445, %v3317
        %v5238 = vpack.c.b16 %v3446, %v3318
        %v5239 = vpack.c.b16 %v3447, %v3319
        %v5240 = vpack.c.b16 %v3448, %v3320
        %v5241 = vpack.c.b16 %v3449, %v3321
        %v5242 = vpack.c.b16 %v3450, %v3322
        %v5243 = vpack.c.b16 %v3451, %v3323
        %v5244 = vpack.c.b16 %v3452, %v3324
        %v5245 = vpack.c.b16 %v3453, %v3325
        %v5246 = vpack.c.b16 %v3454, %v3326
        %v5247 = vpack.c.b16 %v3455, %v3327
        %v5248 = vpack.c.b16 %v3456, %v3328
        %v5249 = vpack.c.b16 %v3457, %v3329
        %v5250 = vpack.c.b16 %v3458, %v3330
        %v5251 = vpack.c.b16 %v3459, %v3331
        %v5252 = vpack.c.b16 %v3460, %v3332
        %v5253 = vpack.c.b16 %v3461, %v3333
        %v5254 = vpack.c.b16 %v3462, %v3334
        %v5255 = vpack.c.b16 %v3463, %v3335
        %v5256 = vpack.c.b16 %v3464, %v3336
        %v5257 = vpack.c.b16 %v3465, %v3337
        %v5258 = vpack.c.b16 %v3466, %v3338
        %v5259 = vpack.c.b16 %v3467, %v3339
        %v5260 = vpack.c.b16 %v3468, %v3340
        %v5261 = vpack.c.b16 %v3469, %v3341
        %v5262 = vpack.c.b16 %v3470, %v3342
        %v5263 = vpack.c.b16 %v3471, %v3343
        %v5264 = vpack.c.b16 %v3472, %v3344
        %v5265 = vpack.c.b16 %v3473, %v3345
        %v5266 = vpack.c.b16 %v3474, %v3346
        %v5267 = vpack.c.b16 %v3475, %v3347
        %v5268 = vpack.c.b16 %v3476, %v3348
        %v5269 = vpack.c.b16 %v3477, %v3349
        %v5270 = vpack.c.b16 %v3478, %v3350
        %v5271 = vpack.c.b16 %v3479, %v3351
        %v5272 = vpack.c.b16 %v3480, %v3352
        %v5273 = vpack.c.b16 %v3481, %v3353
        %v5274 = vpack.c.b16 %v3482, %v3354
        %v5275 = vpack.c.b16 %v3483, %v3355
        %v5276 = vpack.c.b16 %v3484, %v3356
        %v5277 = vpack.c.b16 %v3485, %v3357
        %v5278 = vpack.c.b16 %v3486, %v3358
        %v5279 = vpack.c.b16 %v3487, %v3359
        %v5280 = vpack.c.b16 %v3488, %v3360
        %v5281 = vpack.c.b16 %v3489, %v3361
        %v5282 = vpack.c.b16 %v3490, %v3362
        %v5283 = vpack.c.b16 %v3491, %v3363
        %v5284 = vpack.c.b16 %v3492, %v3364
        %v5285 = vpack.c.b16 %v3493, %v3365
        %v5286 = vpack.c.b16 %v3494, %v3366
        %v5287 = vpack.c.b16 %v3495, %v3367
        %v5288 = vpack.c.b16 %v3496, %v3368
        %v5289 = vpack.c.b16 %v3497, %v3369
        %v5290 = vpack.c.b16 %v3498, %v3370
        %v5291 = vpack.c.b16 %v3499, %v3371
        %v5292 = vpack.c.b16 %v3500, %v3372
        %v5293 = vpack.c.b16 %v3501, %v3373
        %v5294 = vpack.c.b16 %v3502, %v3374
        %v5295 = vpack.c.b16 %v3503, %v3375
        %v5296 = vpack.c.b16 %v3504, %v3376
        %v5297 = vpack.c.b16 %v3505, %v3377
        %v5298 = vpack.c.b16 %v3506, %v3378
        %v5299 = vpack.c.b16 %v3507, %v3379
        %v5300 = vpack.c.b16 %v3508, %v3380
        %v5301 = vpack.c.b16 %v3509, %v3381
        %v5302 = vpack.c.b16 %v3510, %v3382
        %v5303 = vpack.c.b16 %v3511, %v3383
        %v5304 = vpack.c.b16 %v3512, %v3384
        %v5305 = vpack.c.b16 %v3513, %v3385
        %v5306 = vpack.c.b16 %v3514, %v3386
        %v5307 = vpack.c.b16 %v3515, %v3387
        %v5308 = vpack.c.b16 %v3516, %v3388
        %v5309 = vpack.c.b16 %v3517, %v3389
        %v5310 = vpack.c.b16 %v3518, %v3390
        %v5311 = vpack.c.b16 %v3519, %v3391
        %v5312 = vpack.c.b16 %v3520, %v3392
        %v5313 = vpack.c.b16 %v3521, %v3393
        %v5314 = vpack.c.b16 %v3522, %v3394
        %v5315 = vpack.c.b16 %v3523, %v3395
        %v5316 = vpack.c.b16 %v3524, %v3396
        %v5317 = vpack.c.b16 %v3525, %v3397
        %v5318 = vpack.c.b16 %v3526, %v3398
        %v5319 = vpack.c.b16 %v3527, %v3399
        %v5320 = vpack.c.b16 %v3528, %v3400
        %v5321 = vpack.c.b16 %v3529, %v3401
        %v5322 = vpack.c.b16 %v3530, %v3402
        %v5323 = vpack.c.b16 %v3531, %v3403
        %v5324 = vpack.c.b16 %v3532, %v3404
        %v5325 = vpack.c.b16 %v3533, %v3405
        %v5326 = vpack.c.b16 %v3534, %v3406
        %v5327 = vpack.c.b16 %v3535, %v3407
        %v5328 = vpack.c.b16 %v3536, %v3408
        %v5329 = vpack.c.b16 %v3537, %v3409
        %v5330 = vpack.c.b16 %v3538, %v3410
        %v5331 = vpack.c.b16 %v3667, %v3539
        %v5332 = vpack.c.b16 %v3668, %v3540
        %v5333 = vpack.c.b16 %v3669, %v3541
        %v5334 = vpack.c.b16 %v3670, %v3542
        %v5335 = vpack.c.b16 %v3671, %v3543
        %v5336 = vpack.c.b16 %v3672, %v3544
        %v5337 = vpack.c.b16 %v3673, %v3545
        %v5338 = vpack.c.b16 %v3674, %v3546
        %v5339 = vpack.c.b16 %v3675, %v3547
        %v5340 = vpack.c.b16 %v3676, %v3548
        %v5341 = vpack.c.b16 %v3677, %v3549
        %v5342 = vpack.c.b16 %v3678, %v3550
        %v5343 = vpack.c.b16 %v3679, %v3551
        %v5344 = vpack.c.b16 %v3680, %v3552
        %v5345 = vpack.c.b16 %v3681, %v3553
        %v5346 = vpack.c.b16 %v3682, %v3554
        %v5347 = vpack.c.b16 %v3683, %v3555
        %v5348 = vpack.c.b16 %v3684, %v3556
        %v5349 = vpack.c.b16 %v3685, %v3557
        %v5350 = vpack.c.b16 %v3686, %v3558
        %v5351 = vpack.c.b16 %v3687, %v3559
        %v5352 = vpack.c.b16 %v3688, %v3560
        %v5353 = vpack.c.b16 %v3689, %v3561
        %v5354 = vpack.c.b16 %v3690, %v3562
        %v5355 = vpack.c.b16 %v3691, %v3563
        %v5356 = vpack.c.b16 %v3692, %v3564
        %v5357 = vpack.c.b16 %v3693, %v3565
        %v5358 = vpack.c.b16 %v3694, %v3566
        %v5359 = vpack.c.b16 %v3695, %v3567
        %v5360 = vpack.c.b16 %v3696, %v3568
        %v5361 = vpack.c.b16 %v3697, %v3569
        %v5362 = vpack.c.b16 %v3698, %v3570
        %v5363 = vpack.c.b16 %v3699, %v3571
        %v5364 = vpack.c.b16 %v3700, %v3572
        %v5365 = vpack.c.b16 %v3701, %v3573
        %v5366 = vpack.c.b16 %v3702, %v3574
        %v5367 = vpack.c.b16 %v3703, %v3575
        %v5368 = vpack.c.b16 %v3704, %v3576
        %v5369 = vpack.c.b16 %v3705, %v3577
        %v5370 = vpack.c.b16 %v3706, %v3578
        %v5371 = vpack.c.b16 %v3707, %v3579
        %v5372 = vpack.c.b16 %v3708, %v3580
        %v5373 = vpack.c.b16 %v3709, %v3581
        %v5374 = vpack.c.b16 %v3710, %v3582
        %v5375 = vpack.c.b16 %v3711, %v3583
        %v5376 = vpack.c.b16 %v3712, %v3584
        %v5377 = vpack.c.b16 %v3713, %v3585
        %v5378 = vpack.c.b16 %v3714, %v3586
        %v5379 = vpack.c.b16 %v3715, %v3587
        %v5380 = vpack.c.b16 %v3716, %v3588
        %v5381 = vpack.c.b16 %v3717, %v3589
        %v5382 = vpack.c.b16 %v3718, %v3590
        %v5383 = vpack.c.b16 %v3719, %v3591
        %v5384 = vpack.c.b16 %v3720, %v3592
        %v5385 = vpack.c.b16 %v3721, %v3593
        %v5386 = vpack.c.b16 %v3722, %v3594
        %v5387 = vpack.c.b16 %v3723, %v3595
        %v5388 = vpack.c.b16 %v3724, %v3596
        %v5389 = vpack.c.b16 %v3725, %v3597
        %v5390 = vpack.c.b16 %v3726, %v3598
        %v5391 = vpack.c.b16 %v3727, %v3599
        %v5392 = vpack.c.b16 %v3728, %v3600
        %v5393 = vpack.c.b16 %v3729, %v3601
        %v5394 = vpack.c.b16 %v3730, %v3602
        %v5395 = vpack.c.b16 %v3731, %v3603
        %v5396 = vpack.c.b16 %v3732, %v3604
        %v5397 = vpack.c.b16 %v3733, %v3605
        %v5398 = vpack.c.b16 %v3734, %v3606
        %v5399 = vpack.c.b16 %v3735, %v3607
        %v5400 = vpack.c.b16 %v3736, %v3608
        %v5401 = vpack.c.b16 %v3737, %v3609
        %v5402 = vpack.c.b16 %v3738, %v3610
        %v5403 = vpack.c.b16 %v3739, %v3611
        %v5404 = vpack.c.b16 %v3740, %v3612
        %v5405 = vpack.c.b16 %v3741, %v3613
        %v5406 = vpack.c.b16 %v3742, %v3614
        %v5407 = vpack.c.b16 %v3743, %v3615
        %v5408 = vpack.c.b16 %v3744, %v3616
        %v5409 = vpack.c.b16 %v3745, %v3617
        %v5410 = vpack.c.b16 %v3746, %v3618
        %v5411 = vpack.c.b16 %v3747, %v3619
        %v5412 = vpack.c.b16 %v3748, %v3620
        %v5413 = vpack.c.b16 %v3749, %v3621
        %v5414 = vpack.c.b16 %v3750, %v3622
        %v5415 = vpack.c.b16 %v3751, %v3623
        %v5416 = vpack.c.b16 %v3752, %v3624
        %v5417 = vpack.c.b16 %v3753, %v3625
        %v5418 = vpack.c.b16 %v3754, %v3626
        %v5419 = vpack.c.b16 %v3755, %v3627
        %v5420 = vpack.c.b16 %v3756, %v3628
        %v5421 = vpack.c.b16 %v3757, %v3629
        %v5422 = vpack.c.b16 %v3758, %v3630
        %v5423 = vpack.c.b16 %v3759, %v3631
        %v5424 = vpack.c.b16 %v3760, %v3632
        %v5425 = vpack.c.b16 %v3761, %v3633
        %v5426 = vpack.c.b16 %v3762, %v3634
        %v5427 = vpack.c.b16 %v3763, %v3635
        %v5428 = vpack.c.b16 %v3764, %v3636
        %v5429 = vpack.c.b16 %v3765, %v3637
        %v5430 = vpack.c.b16 %v3766, %v3638
        %v5431 = vpack.c.b16 %v3767, %v3639
        %v5432 = vpack.c.b16 %v3768, %v3640
        %v5433 = vpack.c.b16 %v3769, %v3641
        %v5434 = vpack.c.b16 %v3770, %v3642
        %v5435 = vpack.c.b16 %v3771, %v3643
        %v5436 = vpack.c.b16 %v3772, %v3644
        %v5437 = vpack.c.b16 %v3773, %v3645
        %v5438 = vpack.c.b16 %v3774, %v3646
        %v5439 = vpack.c.b16 %v3775, %v3647
        %v5440 = vpack.c.b16 %v3776, %v3648
        %v5441 = vpack.c.b16 %v3777, %v3649
        %v5442 = vpack.c.b16 %v3778, %v3650
        %v5443 = vpack.c.b16 %v3779, %v3651
        %v5444 = vpack.c.b16 %v3780, %v3652
        %v5445 = vpack.c.b16 %v3781, %v3653
        %v5446 = vpack.c.b16 %v3782, %v3654
        %v5447 = vpack.c.b16 %v3783, %v3655
        %v5448 = vpack.c.b16 %v3784, %v3656
        %v5449 = vpack.c.b16 %v3785, %v3657
        %v5450 = vpack.c.b16 %v3786, %v3658
        %v5451 = vpack.c.b16 %v3787, %v3659
        %v5452 = vpack.c.b16 %v3788, %v3660
        %v5453 = vpack.c.b16 %v3789, %v3661
        %v5454 = vpack.c.b16 %v3790, %v3662
        %v5455 = vpack.c.b16 %v3791, %v3663
        %v5456 = vpack.c.b16 %v3792, %v3664
        %v5457 = vpack.c.b16 %v3793, %v3665
        %v5458 = vpack.c.b16 %v3794, %v3666
        %v5459 = vpack.c.b16 %v3923, %v3795
        %v5460 = vpack.c.b16 %v3924, %v3796
        %v5461 = vpack.c.b16 %v3925, %v3797
        %v5462 = vpack.c.b16 %v3926, %v3798
        %v5463 = vpack.c.b16 %v3927, %v3799
        %v5464 = vpack.c.b16 %v3928, %v3800
        %v5465 = vpack.c.b16 %v3929, %v3801
        %v5466 = vpack.c.b16 %v3930, %v3802
        %v5467 = vpack.c.b16 %v3931, %v3803
        %v5468 = vpack.c.b16 %v3932, %v3804
        %v5469 = vpack.c.b16 %v3933, %v3805
        %v5470 = vpack.c.b16 %v3934, %v3806
        %v5471 = vpack.c.b16 %v3935, %v3807
        %v5472 = vpack.c.b16 %v3936, %v3808
        %v5473 = vpack.c.b16 %v3937, %v3809
        %v5474 = vpack.c.b16 %v3938, %v3810
        %v5475 = vpack.c.b16 %v3939, %v3811
        %v5476 = vpack.c.b16 %v3940, %v3812
        %v5477 = vpack.c.b16 %v3941, %v3813
        %v5478 = vpack.c.b16 %v3942, %v3814
        %v5479 = vpack.c.b16 %v3943, %v3815
        %v5480 = vpack.c.b16 %v3944, %v3816
        %v5481 = vpack.c.b16 %v3945, %v3817
        %v5482 = vpack.c.b16 %v3946, %v3818
        %v5483 = vpack.c.b16 %v3947, %v3819
        %v5484 = vpack.c.b16 %v3948, %v3820
        %v5485 = vpack.c.b16 %v3949, %v3821
        %v5486 = vpack.c.b16 %v3950, %v3822
        %v5487 = vpack.c.b16 %v3951, %v3823
        %v5488 = vpack.c.b16 %v3952, %v3824
        %v5489 = vpack.c.b16 %v3953, %v3825
        %v5490 = vpack.c.b16 %v3954, %v3826
        %v5491 = vpack.c.b16 %v3955, %v3827
        %v5492 = vpack.c.b16 %v3956, %v3828
        %v5493 = vpack.c.b16 %v3957, %v3829
        %v5494 = vpack.c.b16 %v3958, %v3830
        %v5495 = vpack.c.b16 %v3959, %v3831
        %v5496 = vpack.c.b16 %v3960, %v3832
        %v5497 = vpack.c.b16 %v3961, %v3833
        %v5498 = vpack.c.b16 %v3962, %v3834
        %v5499 = vpack.c.b16 %v3963, %v3835
        %v5500 = vpack.c.b16 %v3964, %v3836
        %v5501 = vpack.c.b16 %v3965, %v3837
        %v5502 = vpack.c.b16 %v3966, %v3838
        %v5503 = vpack.c.b16 %v3967, %v3839
        %v5504 = vpack.c.b16 %v3968, %v3840
        %v5505 = vpack.c.b16 %v3969, %v3841
        %v5506 = vpack.c.b16 %v3970, %v3842
        %v5507 = vpack.c.b16 %v3971, %v3843
        %v5508 = vpack.c.b16 %v3972, %v3844
        %v5509 = vpack.c.b16 %v3973, %v3845
        %v5510 = vpack.c.b16 %v3974, %v3846
        %v5511 = vpack.c.b16 %v3975, %v3847
        %v5512 = vpack.c.b16 %v3976, %v3848
        %v5513 = vpack.c.b16 %v3977, %v3849
        %v5514 = vpack.c.b16 %v3978, %v3850
        %v5515 = vpack.c.b16 %v3979, %v3851
        %v5516 = vpack.c.b16 %v3980, %v3852
        %v5517 = vpack.c.b16 %v3981, %v3853
        %v5518 = vpack.c.b16 %v3982, %v3854
        %v5519 = vpack.c.b16 %v3983, %v3855
        %v5520 = vpack.c.b16 %v3984, %v3856
        %v5521 = vpack.c.b16 %v3985, %v3857
        %v5522 = vpack.c.b16 %v3986, %v3858
        %v5523 = vpack.c.b16 %v3987, %v3859
        %v5524 = vpack.c.b16 %v3988, %v3860
        %v5525 = vpack.c.b16 %v3989, %v3861
        %v5526 = vpack.c.b16 %v3990, %v3862
        %v5527 = vpack.c.b16 %v3991, %v3863
        %v5528 = vpack.c.b16 %v3992, %v3864
        %v5529 = vpack.c.b16 %v3993, %v3865
        %v5530 = vpack.c.b16 %v3994, %v3866
        %v5531 = vpack.c.b16 %v3995, %v3867
        %v5532 = vpack.c.b16 %v3996, %v3868
        %v5533 = vpack.c.b16 %v3997, %v3869
        %v5534 = vpack.c.b16 %v3998, %v3870
        %v5535 = vpack.c.b16 %v3999, %v3871
        %v5536 = vpack.c.b16 %v4000, %v3872
        %v5537 = vpack.c.b16 %v4001, %v3873
        %v5538 = vpack.c.b16 %v4002, %v3874
        %v5539 = vpack.c.b16 %v4003, %v3875
        %v5540 = vpack.c.b16 %v4004, %v3876
        %v5541 = vpack.c.b16 %v4005, %v3877
        %v5542 = vpack.c.b16 %v4006, %v3878
        %v5543 = vpack.c.b16 %v4007, %v3879
        %v5544 = vpack.c.b16 %v4008, %v3880
        %v5545 = vpack.c.b16 %v4009, %v3881
        %v5546 = vpack.c.b16 %v4010, %v3882
        %v5547 = vpack.c.b16 %v4011, %v3883
        %v5548 = vpack.c.b16 %v4012, %v3884
        %v5549 = vpack.c.b16 %v4013, %v3885
        %v5550 = vpack.c.b16 %v4014, %v3886
        %v5551 = vpack.c.b16 %v4015, %v3887
        %v5552 = vpack.c.b16 %v4016, %v3888
        %v5553 = vpack.c.b16 %v4017, %v3889
        %v5554 = vpack.c.b16 %v4018, %v3890
        %v5555 = vpack.c.b16 %v4019, %v3891
        %v5556 = vpack.c.b16 %v4020, %v3892
        %v5557 = vpack.c.b16 %v4021, %v3893
        %v5558 = vpack.c.b16 %v4022, %v3894
        %v5559 = vpack.c.b16 %v4023, %v3895
        %v5560 = vpack.c.b16 %v4024, %v3896
        %v5561 = vpack.c.b16 %v4025, %v3897
        %v5562 = vpack.c.b16 %v4026, %v3898
        %v5563 = vpack.c.b16 %v4027, %v3899
        %v5564 = vpack.c.b16 %v4028, %v3900
        %v5565 = vpack.c.b16 %v4029, %v3901
        %v5566 = vpack.c.b16 %v4030, %v3902
        %v5567 = vpack.c.b16 %v4031, %v3903
        %v5568 = vpack.c.b16 %v4032, %v3904
        %v5569 = vpack.c.b16 %v4033, %v3905
        %v5570 = vpack.c.b16 %v4034, %v3906
        %v5571 = vpack.c.b16 %v4035, %v3907
        %v5572 = vpack.c.b16 %v4036, %v3908
        %v5573 = vpack.c.b16 %v4037, %v3909
        %v5574 = vpack.c.b16 %v4038, %v3910
        %v5575 = vpack.c.b16 %v4039, %v3911
        %v5576 = vpack.c.b16 %v4040, %v3912
        %v5577 = vpack.c.b16 %v4041, %v3913
        %v5578 = vpack.c.b16 %v4042, %v3914
        %v5579 = vpack.c.b16 %v4043, %v3915
        %v5580 = vpack.c.b16 %v4044, %v3916
        %v5581 = vpack.c.b16 %v4045, %v3917
        %v5582 = vpack.c.b16 %v4046, %v3918
        %v5583 = vpack.c.b16 %v4047, %v3919
        %v5584 = vpack.c.b16 %v4048, %v3920
        %v5585 = vpack.c.b16 %v4049, %v3921
        %v5586 = vpack.c.b16 %v4050, %v3922
        %v5587 = vpack.c.b16 %v4179, %v4051
        %v5588 = vpack.c.b16 %v4180, %v4052
        %v5589 = vpack.c.b16 %v4181, %v4053
        %v5590 = vpack.c.b16 %v4182, %v4054
        %v5591 = vpack.c.b16 %v4183, %v4055
        %v5592 = vpack.c.b16 %v4184, %v4056
        %v5593 = vpack.c.b16 %v4185, %v4057
        %v5594 = vpack.c.b16 %v4186, %v4058
        %v5595 = vpack.c.b16 %v4187, %v4059
        %v5596 = vpack.c.b16 %v4188, %v4060
        %v5597 = vpack.c.b16 %v4189, %v4061
        %v5598 = vpack.c.b16 %v4190, %v4062
        %v5599 = vpack.c.b16 %v4191, %v4063
        %v5600 = vpack.c.b16 %v4192, %v4064
        %v5601 = vpack.c.b16 %v4193, %v4065
        %v5602 = vpack.c.b16 %v4194, %v4066
        %v5603 = vpack.c.b16 %v4195, %v4067
        %v5604 = vpack.c.b16 %v4196, %v4068
        %v5605 = vpack.c.b16 %v4197, %v4069
        %v5606 = vpack.c.b16 %v4198, %v4070
        %v5607 = vpack.c.b16 %v4199, %v4071
        %v5608 = vpack.c.b16 %v4200, %v4072
        %v5609 = vpack.c.b16 %v4201, %v4073
        %v5610 = vpack.c.b16 %v4202, %v4074
        %v5611 = vpack.c.b16 %v4203, %v4075
        %v5612 = vpack.c.b16 %v4204, %v4076
        %v5613 = vpack.c.b16 %v4205, %v4077
        %v5614 = vpack.c.b16 %v4206, %v4078
        %v5615 = vpack.c.b16 %v4207, %v4079
        %v5616 = vpack.c.b16 %v4208, %v4080
        %v5617 = vpack.c.b16 %v4209, %v4081
        %v5618 = vpack.c.b16 %v4210, %v4082
        %v5619 = vpack.c.b16 %v4211, %v4083
        %v5620 = vpack.c.b16 %v4212, %v4084
        %v5621 = vpack.c.b16 %v4213, %v4085
        %v5622 = vpack.c.b16 %v4214, %v4086
        %v5623 = vpack.c.b16 %v4215, %v4087
        %v5624 = vpack.c.b16 %v4216, %v4088
        %v5625 = vpack.c.b16 %v4217, %v4089
        %v5626 = vpack.c.b16 %v4218, %v4090
        %v5627 = vpack.c.b16 %v4219, %v4091
        %v5628 = vpack.c.b16 %v4220, %v4092
        %v5629 = vpack.c.b16 %v4221, %v4093
        %v5630 = vpack.c.b16 %v4222, %v4094
        %v5631 = vpack.c.b16 %v4223, %v4095
        %v5632 = vpack.c.b16 %v4224, %v4096
        %v5633 = vpack.c.b16 %v4225, %v4097
        %v5634 = vpack.c.b16 %v4226, %v4098
        %v5635 = vpack.c.b16 %v4227, %v4099
        %v5636 = vpack.c.b16 %v4228, %v4100
        %v5637 = vpack.c.b16 %v4229, %v4101
        %v5638 = vpack.c.b16 %v4230, %v4102
        %v5639 = vpack.c.b16 %v4231, %v4103
        %v5640 = vpack.c.b16 %v4232, %v4104
        %v5641 = vpack.c.b16 %v4233, %v4105
        %v5642 = vpack.c.b16 %v4234, %v4106
        %v5643 = vpack.c.b16 %v4235, %v4107
        %v5644 = vpack.c.b16 %v4236, %v4108
        %v5645 = vpack.c.b16 %v4237, %v4109
        %v5646 = vpack.c.b16 %v4238, %v4110
        %v5647 = vpack.c.b16 %v4239, %v4111
        %v5648 = vpack.c.b16 %v4240, %v4112
        %v5649 = vpack.c.b16 %v4241, %v4113
        %v5650 = vpack.c.b16 %v4242, %v4114
        %v5651 = vpack.c.b16 %v4243, %v4115
        %v5652 = vpack.c.b16 %v4244, %v4116
        %v5653 = vpack.c.b16 %v4245, %v4117
        %v5654 = vpack.c.b16 %v4246, %v4118
        %v5655 = vpack.c.b16 %v4247, %v4119
        %v5656 = vpack.c.b16 %v4248, %v4120
        %v5657 = vpack.c.b16 %v4249, %v4121
        %v5658 = vpack.c.b16 %v4250, %v4122
        %v5659 = vpack.c.b16 %v4251, %v4123
        %v5660 = vpack.c.b16 %v4252, %v4124
        %v5661 = vpack.c.b16 %v4253, %v4125
        %v5662 = vpack.c.b16 %v4254, %v4126
        %v5663 = vpack.c.b16 %v4255, %v4127
        %v5664 = vpack.c.b16 %v4256, %v4128
        %v5665 = vpack.c.b16 %v4257, %v4129
        %v5666 = vpack.c.b16 %v4258, %v4130
        %v5667 = vpack.c.b16 %v4259, %v4131
        %v5668 = vpack.c.b16 %v4260, %v4132
        %v5669 = vpack.c.b16 %v4261, %v4133
        %v5670 = vpack.c.b16 %v4262, %v4134
        %v5671 = vpack.c.b16 %v4263, %v4135
        %v5672 = vpack.c.b16 %v4264, %v4136
        %v5673 = vpack.c.b16 %v4265, %v4137
        %v5674 = vpack.c.b16 %v4266, %v4138
        %v5675 = vpack.c.b16 %v4267, %v4139
        %v5676 = vpack.c.b16 %v4268, %v4140
        %v5677 = vpack.c.b16 %v4269, %v4141
        %v5678 = vpack.c.b16 %v4270, %v4142
        %v5679 = vpack.c.b16 %v4271, %v4143
        %v5680 = vpack.c.b16 %v4272, %v4144
        %v5681 = vpack.c.b16 %v4273, %v4145
        %v5682 = vpack.c.b16 %v4274, %v4146
        %v5683 = vpack.c.b16 %v4275, %v4147
        %v5684 = vpack.c.b16 %v4276, %v4148
        %v5685 = vpack.c.b16 %v4277, %v4149
        %v5686 = vpack.c.b16 %v4278, %v4150
        %v5687 = vpack.c.b16 %v4279, %v4151
        %v5688 = vpack.c.b16 %v4280, %v4152
        %v5689 = vpack.c.b16 %v4281, %v4153
        %v5690 = vpack.c.b16 %v4282, %v4154
        %v5691 = vpack.c.b16 %v4283, %v4155
        %v5692 = vpack.c.b16 %v4284, %v4156
        %v5693 = vpack.c.b16 %v4285, %v4157
        %v5694 = vpack.c.b16 %v4286, %v4158
        %v5695 = vpack.c.b16 %v4287, %v4159
        %v5696 = vpack.c.b16 %v4288, %v4160
        %v5697 = vpack.c.b16 %v4289, %v4161
        %v5698 = vpack.c.b16 %v4290, %v4162
        %v5699 = vpack.c.b16 %v4291, %v4163
        %v5700 = vpack.c.b16 %v4292, %v4164
        %v5701 = vpack.c.b16 %v4293, %v4165
        %v5702 = vpack.c.b16 %v4294, %v4166
        %v5703 = vpack.c.b16 %v4295, %v4167
        %v5704 = vpack.c.b16 %v4296, %v4168
        %v5705 = vpack.c.b16 %v4297, %v4169
        %v5706 = vpack.c.b16 %v4298, %v4170
        %v5707 = vpack.c.b16 %v4299, %v4171
        %v5708 = vpack.c.b16 %v4300, %v4172
        %v5709 = vpack.c.b16 %v4301, %v4173
        %v5710 = vpack.c.b16 %v4302, %v4174
        %v5711 = vpack.c.b16 %v4303, %v4175
        %v5712 = vpack.c.b16 %v4304, %v4176
        %v5713 = vpack.c.b16 %v4305, %v4177
        %v5714 = vpack.c.b16 %v4306, %v4178
        %v5715 = vpack.c.b16 %v4435, %v4307
        %v5716 = vpack.c.b16 %v4436, %v4308
        %v5717 = vpack.c.b16 %v4437, %v4309
        %v5718 = vpack.c.b16 %v4438, %v4310
        %v5719 = vpack.c.b16 %v4439, %v4311
        %v5720 = vpack.c.b16 %v4440, %v4312
        %v5721 = vpack.c.b16 %v4441, %v4313
        %v5722 = vpack.c.b16 %v4442, %v4314
        %v5723 = vpack.c.b16 %v4443, %v4315
        %v5724 = vpack.c.b16 %v4444, %v4316
        %v5725 = vpack.c.b16 %v4445, %v4317
        %v5726 = vpack.c.b16 %v4446, %v4318
        %v5727 = vpack.c.b16 %v4447, %v4319
        %v5728 = vpack.c.b16 %v4448, %v4320
        %v5729 = vpack.c.b16 %v4449, %v4321
        %v5730 = vpack.c.b16 %v4450, %v4322
        %v5731 = vpack.c.b16 %v4451, %v4323
        %v5732 = vpack.c.b16 %v4452, %v4324
        %v5733 = vpack.c.b16 %v4453, %v4325
        %v5734 = vpack.c.b16 %v4454, %v4326
        %v5735 = vpack.c.b16 %v4455, %v4327
        %v5736 = vpack.c.b16 %v4456, %v4328
        %v5737 = vpack.c.b16 %v4457, %v4329
        %v5738 = vpack.c.b16 %v4458, %v4330
        %v5739 = vpack.c.b16 %v4459, %v4331
        %v5740 = vpack.c.b16 %v4460, %v4332
        %v5741 = vpack.c.b16 %v4461, %v4333
        %v5742 = vpack.c.b16 %v4462, %v4334
        %v5743 = vpack.c.b16 %v4463, %v4335
        %v5744 = vpack.c.b16 %v4464, %v4336
        %v5745 = vpack.c.b16 %v4465, %v4337
        %v5746 = vpack.c.b16 %v4466, %v4338
        %v5747 = vpack.c.b16 %v4467, %v4339
        %v5748 = vpack.c.b16 %v4468, %v4340
        %v5749 = vpack.c.b16 %v4469, %v4341
        %v5750 = vpack.c.b16 %v4470, %v4342
        %v5751 = vpack.c.b16 %v4471, %v4343
        %v5752 = vpack.c.b16 %v4472, %v4344
        %v5753 = vpack.c.b16 %v4473, %v4345
        %v5754 = vpack.c.b16 %v4474, %v4346
        %v5755 = vpack.c.b16 %v4475, %v4347
        %v5756 = vpack.c.b16 %v4476, %v4348
        %v5757 = vpack.c.b16 %v4477, %v4349
        %v5758 = vpack.c.b16 %v4478, %v4350
        %v5759 = vpack.c.b16 %v4479, %v4351
        %v5760 = vpack.c.b16 %v4480, %v4352
        %v5761 = vpack.c.b16 %v4481, %v4353
        %v5762 = vpack.c.b16 %v4482, %v4354
        %v5763 = vpack.c.b16 %v4483, %v4355
        %v5764 = vpack.c.b16 %v4484, %v4356
        %v5765 = vpack.c.b16 %v4485, %v4357
        %v5766 = vpack.c.b16 %v4486, %v4358
        %v5767 = vpack.c.b16 %v4487, %v4359
        %v5768 = vpack.c.b16 %v4488, %v4360
        %v5769 = vpack.c.b16 %v4489, %v4361
        %v5770 = vpack.c.b16 %v4490, %v4362
        %v5771 = vpack.c.b16 %v4491, %v4363
        %v5772 = vpack.c.b16 %v4492, %v4364
        %v5773 = vpack.c.b16 %v4493, %v4365
        %v5774 = vpack.c.b16 %v4494, %v4366
        %v5775 = vpack.c.b16 %v4495, %v4367
        %v5776 = vpack.c.b16 %v4496, %v4368
        %v5777 = vpack.c.b16 %v4497, %v4369
        %v5778 = vpack.c.b16 %v4498, %v4370
        %v5779 = vpack.c.b16 %v4499, %v4371
        %v5780 = vpack.c.b16 %v4500, %v4372
        %v5781 = vpack.c.b16 %v4501, %v4373
        %v5782 = vpack.c.b16 %v4502, %v4374
        %v5783 = vpack.c.b16 %v4503, %v4375
        %v5784 = vpack.c.b16 %v4504, %v4376
        %v5785 = vpack.c.b16 %v4505, %v4377
        %v5786 = vpack.c.b16 %v4506, %v4378
        %v5787 = vpack.c.b16 %v4507, %v4379
        %v5788 = vpack.c.b16 %v4508, %v4380
        %v5789 = vpack.c.b16 %v4509, %v4381
        %v5790 = vpack.c.b16 %v4510, %v4382
        %v5791 = vpack.c.b16 %v4511, %v4383
        %v5792 = vpack.c.b16 %v4512, %v4384
        %v5793 = vpack.c.b16 %v4513, %v4385
        %v5794 = vpack.c.b16 %v4514, %v4386
        %v5795 = vpack.c.b16 %v4515, %v4387
        %v5796 = vpack.c.b16 %v4516, %v4388
        %v5797 = vpack.c.b16 %v4517, %v4389
        %v5798 = vpack.c.b16 %v4518, %v4390
        %v5799 = vpack.c.b16 %v4519, %v4391
        %v5800 = vpack.c.b16 %v4520, %v4392
        %v5801 = vpack.c.b16 %v4521, %v4393
        %v5802 = vpack.c.b16 %v4522, %v4394
        %v5803 = vpack.c.b16 %v4523, %v4395
        %v5804 = vpack.c.b16 %v4524, %v4396
        %v5805 = vpack.c.b16 %v4525, %v4397
        %v5806 = vpack.c.b16 %v4526, %v4398
        %v5807 = vpack.c.b16 %v4527, %v4399
        %v5808 = vpack.c.b16 %v4528, %v4400
        %v5809 = vpack.c.b16 %v4529, %v4401
        %v5810 = vpack.c.b16 %v4530, %v4402
        %v5811 = vpack.c.b16 %v4531, %v4403
        %v5812 = vpack.c.b16 %v4532, %v4404
        %v5813 = vpack.c.b16 %v4533, %v4405
        %v5814 = vpack.c.b16 %v4534, %v4406
        %v5815 = vpack.c.b16 %v4535, %v4407
        %v5816 = vpack.c.b16 %v4536, %v4408
        %v5817 = vpack.c.b16 %v4537, %v4409
        %v5818 = vpack.c.b16 %v4538, %v4410
        %v5819 = vpack.c.b16 %v4539, %v4411
        %v5820 = vpack.c.b16 %v4540, %v4412
        %v5821 = vpack.c.b16 %v4541, %v4413
        %v5822 = vpack.c.b16 %v4542, %v4414
        %v5823 = vpack.c.b16 %v4543, %v4415
        %v5824 = vpack.c.b16 %v4544, %v4416
        %v5825 = vpack.c.b16 %v4545, %v4417
        %v5826 = vpack.c.b16 %v4546, %v4418
        %v5827 = vpack.c.b16 %v4547, %v4419
        %v5828 = vpack.c.b16 %v4548, %v4420
        %v5829 = vpack.c.b16 %v4549, %v4421
        %v5830 = vpack.c.b16 %v4550, %v4422
        %v5831 = vpack.c.b16 %v4551, %v4423
        %v5832 = vpack.c.b16 %v4552, %v4424
        %v5833 = vpack.c.b16 %v4553, %v4425
        %v5834 = vpack.c.b16 %v4554, %v4426
        %v5835 = vpack.c.b16 %v4555, %v4427
        %v5836 = vpack.c.b16 %v4556, %v4428
        %v5837 = vpack.c.b16 %v4557, %v4429
        %v5838 = vpack.c.b16 %v4558, %v4430
        %v5839 = vpack.c.b16 %v4559, %v4431
        %v5840 = vpack.c.b16 %v4560, %v4432
        %v5841 = vpack.c.b16 %v4561, %v4433
        %v5842 = vpack.c.b16 %v4562, %v4434
        %v5843 = vpack.c.b16 %v4691, %v4563
        %v5844 = vpack.c.b16 %v4692, %v4564
        %v5845 = vpack.c.b16 %v4693, %v4565
        %v5846 = vpack.c.b16 %v4694, %v4566
        %v5847 = vpack.c.b16 %v4695, %v4567
        %v5848 = vpack.c.b16 %v4696, %v4568
        %v5849 = vpack.c.b16 %v4697, %v4569
        %v5850 = vpack.c.b16 %v4698, %v4570
        %v5851 = vpack.c.b16 %v4699, %v4571
        %v5852 = vpack.c.b16 %v4700, %v4572
        %v5853 = vpack.c.b16 %v4701, %v4573
        %v5854 = vpack.c.b16 %v4702, %v4574
        %v5855 = vpack.c.b16 %v4703, %v4575
        %v5856 = vpack.c.b16 %v4704, %v4576
        %v5857 = vpack.c.b16 %v4705, %v4577
        %v5858 = vpack.c.b16 %v4706, %v4578
        %v5859 = vpack.c.b16 %v4707, %v4579
        %v5860 = vpack.c.b16 %v4708, %v4580
        %v5861 = vpack.c.b16 %v4709, %v4581
        %v5862 = vpack.c.b16 %v4710, %v4582
        %v5863 = vpack.c.b16 %v4711, %v4583
        %v5864 = vpack.c.b16 %v4712, %v4584
        %v5865 = vpack.c.b16 %v4713, %v4585
        %v5866 = vpack.c.b16 %v4714, %v4586
        %v5867 = vpack.c.b16 %v4715, %v4587
        %v5868 = vpack.c.b16 %v4716, %v4588
        %v5869 = vpack.c.b16 %v4717, %v4589
        %v5870 = vpack.c.b16 %v4718, %v4590
        %v5871 = vpack.c.b16 %v4719, %v4591
        %v5872 = vpack.c.b16 %v4720, %v4592
        %v5873 = vpack.c.b16 %v4721, %v4593
        %v5874 = vpack.c.b16 %v4722, %v4594
        %v5875 = vpack.c.b16 %v4723, %v4595
        %v5876 = vpack.c.b16 %v4724, %v4596
        %v5877 = vpack.c.b16 %v4725, %v4597
        %v5878 = vpack.c.b16 %v4726, %v4598
        %v5879 = vpack.c.b16 %v4727, %v4599
        %v5880 = vpack.c.b16 %v4728, %v4600
        %v5881 = vpack.c.b16 %v4729, %v4601
        %v5882 = vpack.c.b16 %v4730, %v4602
        %v5883 = vpack.c.b16 %v4731, %v4603
        %v5884 = vpack.c.b16 %v4732, %v4604
        %v5885 = vpack.c.b16 %v4733, %v4605
        %v5886 = vpack.c.b16 %v4734, %v4606
        %v5887 = vpack.c.b16 %v4735, %v4607
        %v5888 = vpack.c.b16 %v4736, %v4608
        %v5889 = vpack.c.b16 %v4737, %v4609
        %v5890 = vpack.c.b16 %v4738, %v4610
        %v5891 = vpack.c.b16 %v4739, %v4611
        %v5892 = vpack.c.b16 %v4740, %v4612
        %v5893 = vpack.c.b16 %v4741, %v4613
        %v5894 = vpack.c.b16 %v4742, %v4614
        %v5895 = vpack.c.b16 %v4743, %v4615
        %v5896 = vpack.c.b16 %v4744, %v4616
        %v5897 = vpack.c.b16 %v4745, %v4617
        %v5898 = vpack.c.b16 %v4746, %v4618
        %v5899 = vpack.c.b16 %v4747, %v4619
        %v5900 = vpack.c.b16 %v4748, %v4620
        %v5901 = vpack.c.b16 %v4749, %v4621
        %v5902 = vpack.c.b16 %v4750, %v4622
        %v5903 = vpack.c.b16 %v4751, %v4623
        %v5904 = vpack.c.b16 %v4752, %v4624
        %v5905 = vpack.c.b16 %v4753, %v4625
        %v5906 = vpack.c.b16 %v4754, %v4626
        %v5907 = vpack.c.b16 %v4755, %v4627
        %v5908 = vpack.c.b16 %v4756, %v4628
        %v5909 = vpack.c.b16 %v4757, %v4629
        %v5910 = vpack.c.b16 %v4758, %v4630
        %v5911 = vpack.c.b16 %v4759, %v4631
        %v5912 = vpack.c.b16 %v4760, %v4632
        %v5913 = vpack.c.b16 %v4761, %v4633
        %v5914 = vpack.c.b16 %v4762, %v4634
        %v5915 = vpack.c.b16 %v4763, %v4635
        %v5916 = vpack.c.b16 %v4764, %v4636
        %v5917 = vpack.c.b16 %v4765, %v4637
        %v5918 = vpack.c.b16 %v4766, %v4638
        %v5919 = vpack.c.b16 %v4767, %v4639
        %v5920 = vpack.c.b16 %v4768, %v4640
        %v5921 = vpack.c.b16 %v4769, %v4641
        %v5922 = vpack.c.b16 %v4770, %v4642
        %v5923 = vpack.c.b16 %v4771, %v4643
        %v5924 = vpack.c.b16 %v4772, %v4644
        %v5925 = vpack.c.b16 %v4773, %v4645
        %v5926 = vpack.c.b16 %v4774, %v4646
        %v5927 = vpack.c.b16 %v4775, %v4647
        %v5928 = vpack.c.b16 %v4776, %v4648
        %v5929 = vpack.c.b16 %v4777, %v4649
        %v5930 = vpack.c.b16 %v4778, %v4650
        %v5931 = vpack.c.b16 %v4779, %v4651
        %v5932 = vpack.c.b16 %v4780, %v4652
        %v5933 = vpack.c.b16 %v4781, %v4653
        %v5934 = vpack.c.b16 %v4782, %v4654
        %v5935 = vpack.c.b16 %v4783, %v4655
        %v5936 = vpack.c.b16 %v4784, %v4656
        %v5937 = vpack.c.b16 %v4785, %v4657
        %v5938 = vpack.c.b16 %v4786, %v4658
        %v5939 = vpack.c.b16 %v4787, %v4659
        %v5940 = vpack.c.b16 %v4788, %v4660
        %v5941 = vpack.c.b16 %v4789, %v4661
        %v5942 = vpack.c.b16 %v4790, %v4662
        %v5943 = vpack.c.b16 %v4791, %v4663
        %v5944 = vpack.c.b16 %v4792, %v4664
        %v5945 = vpack.c.b16 %v4793, %v4665
        %v5946 = vpack.c.b16 %v4794, %v4666
        %v5947 = vpack.c.b16 %v4795, %v4667
        %v5948 = vpack.c.b16 %v4796, %v4668
        %v5949 = vpack.c.b16 %v4797, %v4669
        %v5950 = vpack.c.b16 %v4798, %v4670
        %v5951 = vpack.c.b16 %v4799, %v4671
        %v5952 = vpack.c.b16 %v4800, %v4672
        %v5953 = vpack.c.b16 %v4801, %v4673
        %v5954 = vpack.c.b16 %v4802, %v4674
        %v5955 = vpack.c.b16 %v4803, %v4675
        %v5956 = vpack.c.b16 %v4804, %v4676
        %v5957 = vpack.c.b16 %v4805, %v4677
        %v5958 = vpack.c.b16 %v4806, %v4678
        %v5959 = vpack.c.b16 %v4807, %v4679
        %v5960 = vpack.c.b16 %v4808, %v4680
        %v5961 = vpack.c.b16 %v4809, %v4681
        %v5962 = vpack.c.b16 %v4810, %v4682
        %v5963 = vpack.c.b16 %v4811, %v4683
        %v5964 = vpack.c.b16 %v4812, %v4684
        %v5965 = vpack.c.b16 %v4813, %v4685
        %v5966 = vpack.c.b16 %v4814, %v4686
        %v5967 = vpack.c.b16 %v4815, %v4687
        %v5968 = vpack.c.b16 %v4816, %v4688
        %v5969 = vpack.c.b16 %v4817, %v4689
        %v5970 = vpack.c.b16 %v4818, %v4690
        %v5971 = vpack.c.b16 %v4947, %v4819
        %v5972 = vpack.c.b16 %v4948, %v4820
        %v5973 = vpack.c.b16 %v4949, %v4821
        %v5974 = vpack.c.b16 %v4950, %v4822
        %v5975 = vpack.c.b16 %v4951, %v4823
        %v5976 = vpack.c.b16 %v4952, %v4824
        %v5977 = vpack.c.b16 %v4953, %v4825
        %v5978 = vpack.c.b16 %v4954, %v4826
        %v5979 = vpack.c.b16 %v4955, %v4827
        %v5980 = vpack.c.b16 %v4956, %v4828
        %v5981 = vpack.c.b16 %v4957, %v4829
        %v5982 = vpack.c.b16 %v4958, %v4830
        %v5983 = vpack.c.b16 %v4959, %v4831
        %v5984 = vpack.c.b16 %v4960, %v4832
        %v5985 = vpack.c.b16 %v4961, %v4833
        %v5986 = vpack.c.b16 %v4962, %v4834
        %v5987 = vpack.c.b16 %v4963, %v4835
        %v5988 = vpack.c.b16 %v4964, %v4836
        %v5989 = vpack.c.b16 %v4965, %v4837
        %v5990 = vpack.c.b16 %v4966, %v4838
        %v5991 = vpack.c.b16 %v4967, %v4839
        %v5992 = vpack.c.b16 %v4968, %v4840
        %v5993 = vpack.c.b16 %v4969, %v4841
        %v5994 = vpack.c.b16 %v4970, %v4842
        %v5995 = vpack.c.b16 %v4971, %v4843
        %v5996 = vpack.c.b16 %v4972, %v4844
        %v5997 = vpack.c.b16 %v4973, %v4845
        %v5998 = vpack.c.b16 %v4974, %v4846
        %v5999 = vpack.c.b16 %v4975, %v4847
        %v6000 = vpack.c.b16 %v4976, %v4848
        %v6001 = vpack.c.b16 %v4977, %v4849
        %v6002 = vpack.c.b16 %v4978, %v4850
        %v6003 = vpack.c.b16 %v4979, %v4851
        %v6004 = vpack.c.b16 %v4980, %v4852
        %v6005 = vpack.c.b16 %v4981, %v4853
        %v6006 = vpack.c.b16 %v4982, %v4854
        %v6007 = vpack.c.b16 %v4983, %v4855
        %v6008 = vpack.c.b16 %v4984, %v4856
        %v6009 = vpack.c.b16 %v4985, %v4857
        %v6010 = vpack.c.b16 %v4986, %v4858
        %v6011 = vpack.c.b16 %v4987, %v4859
        %v6012 = vpack.c.b16 %v4988, %v4860
        %v6013 = vpack.c.b16 %v4989, %v4861
        %v6014 = vpack.c.b16 %v4990, %v4862
        %v6015 = vpack.c.b16 %v4991, %v4863
        %v6016 = vpack.c.b16 %v4992, %v4864
        %v6017 = vpack.c.b16 %v4993, %v4865
        %v6018 = vpack.c.b16 %v4994, %v4866
        %v6019 = vpack.c.b16 %v4995, %v4867
        %v6020 = vpack.c.b16 %v4996, %v4868
        %v6021 = vpack.c.b16 %v4997, %v4869
        %v6022 = vpack.c.b16 %v4998, %v4870
        %v6023 = vpack.c.b16 %v4999, %v4871
        %v6024 = vpack.c.b16 %v5000, %v4872
        %v6025 = vpack.c.b16 %v5001, %v4873
        %v6026 = vpack.c.b16 %v5002, %v4874
        %v6027 = vpack.c.b16 %v5003, %v4875
        %v6028 = vpack.c.b16 %v5004, %v4876
        %v6029 = vpack.c.b16 %v5005, %v4877
        %v6030 = vpack.c.b16 %v5006, %v4878
        %v6031 = vpack.c.b16 %v5007, %v4879
        %v6032 = vpack.c.b16 %v5008, %v4880
        %v6033 = vpack.c.b16 %v5009, %v4881
        %v6034 = vpack.c.b16 %v5010, %v4882
        %v6035 = vpack.c.b16 %v5011, %v4883
        %v6036 = vpack.c.b16 %v5012, %v4884
        %v6037 = vpack.c.b16 %v5013, %v4885
        %v6038 = vpack.c.b16 %v5014, %v4886
        %v6039 = vpack.c.b16 %v5015, %v4887
        %v6040 = vpack.c.b16 %v5016, %v4888
        %v6041 = vpack.c.b16 %v5017, %v4889
        %v6042 = vpack.c.b16 %v5018, %v4890
        %v6043 = vpack.c.b16 %v5019, %v4891
        %v6044 = vpack.c.b16 %v5020, %v4892
        %v6045 = vpack.c.b16 %v5021, %v4893
        %v6046 = vpack.c.b16 %v5022, %v4894
        %v6047 = vpack.c.b16 %v5023, %v4895
        %v6048 = vpack.c.b16 %v5024, %v4896
        %v6049 = vpack.c.b16 %v5025, %v4897
        %v6050 = vpack.c.b16 %v5026, %v4898
        %v6051 = vpack.c.b16 %v5027, %v4899
        %v6052 = vpack.c.b16 %v5028, %v4900
        %v6053 = vpack.c.b16 %v5029, %v4901
        %v6054 = vpack.c.b16 %v5030, %v4902
        %v6055 = vpack.c.b16 %v5031, %v4903
        %v6056 = vpack.c.b16 %v5032, %v4904
        %v6057 = vpack.c.b16 %v5033, %v4905
        %v6058 = vpack.c.b16 %v5034, %v4906
        %v6059 = vpack.c.b16 %v5035, %v4907
        %v6060 = vpack.c.b16 %v5036, %v4908
        %v6061 = vpack.c.b16 %v5037, %v4909
        %v6062 = vpack.c.b16 %v5038, %v4910
        %v6063 = vpack.c.b16 %v5039, %v4911
        %v6064 = vpack.c.b16 %v5040, %v4912
        %v6065 = vpack.c.b16 %v5041, %v4913
        %v6066 = vpack.c.b16 %v5042, %v4914
        %v6067 = vpack.c.b16 %v5043, %v4915
        %v6068 = vpack.c.b16 %v5044, %v4916
        %v6069 = vpack.c.b16 %v5045, %v4917
        %v6070 = vpack.c.b16 %v5046, %v4918
        %v6071 = vpack.c.b16 %v5047, %v4919
        %v6072 = vpack.c.b16 %v5048, %v4920
        %v6073 = vpack.c.b16 %v5049, %v4921
        %v6074 = vpack.c.b16 %v5050, %v4922
        %v6075 = vpack.c.b16 %v5051, %v4923
        %v6076 = vpack.c.b16 %v5052, %v4924
        %v6077 = vpack.c.b16 %v5053, %v4925
        %v6078 = vpack.c.b16 %v5054, %v4926
        %v6079 = vpack.c.b16 %v5055, %v4927
        %v6080 = vpack.c.b16 %v5056, %v4928
        %v6081 = vpack.c.b16 %v5057, %v4929
        %v6082 = vpack.c.b16 %v5058, %v4930
        %v6083 = vpack.c.b16 %v5059, %v4931
        %v6084 = vpack.c.b16 %v5060, %v4932
        %v6085 = vpack.c.b16 %v5061, %v4933
        %v6086 = vpack.c.b16 %v5062, %v4934
        %v6087 = vpack.c.b16 %v5063, %v4935
        %v6088 = vpack.c.b16 %v5064, %v4936
        %v6089 = vpack.c.b16 %v5065, %v4937
        %v6090 = vpack.c.b16 %v5066, %v4938
        %v6091 = vpack.c.b16 %v5067, %v4939
        %v6092 = vpack.c.b16 %v5068, %v4940
        %v6093 = vpack.c.b16 %v5069, %v4941
        %v6094 = vpack.c.b16 %v5070, %v4942
        %v6095 = vpack.c.b16 %v5071, %v4943
        %v6096 = vpack.c.b16 %v5072, %v4944
        %v6097 = vpack.c.b16 %v5073, %v4945
        %v6098 = vpack.c.b16 %v5074, %v4946
        %7123 = vmatprep.subr.bf16.mxu0 %v5972
        %7124 = vmatpush1.bf16.msra.mxu0 %v5971
        %7125 = vmatprep.subr.bf16.mxu0 %v5844
        %7126 = vmatpush1.bf16.msra.mxu0 %v5843
        %7127 = vmatprep.subr.bf16.mxu0 %v5716
        %7128 = vmatpush1.bf16.msra.mxu0 %v5715
        %7129 = vmatprep.subr.bf16.mxu0 %v5588
        %7130 = vmatpush1.bf16.msra.mxu0 %v5587
        %7131 = vmatprep.subr.bf16.mxu0 %v5460
        %7132 = vmatpush1.bf16.msra.mxu0 %v5459
        %7133 = vmatprep.subr.bf16.mxu0 %v5332
        %7134 = vmatpush1.bf16.msra.mxu0 %v5331
        %7135 = vmatprep.subr.bf16.mxu0 %v5204
        %7136 = vmatpush1.bf16.msra.mxu0 %v5203
        %7137 = vmatprep.subr.bf16.mxu0 %v5076
        %7138 = vmatpush1.bf16.msra.mxu0 %v5075
        %7139 = vmatprep.subr.bf16.mxu0 0
        %7140 = vmatpush2.bf16.msra.mxu0 0
        %7141 = vmatprep.subr.bf16.mxu0 0
        %7142 = vmatpush2.bf16.msra.mxu0 0
        %7143 = vmatprep.subr.bf16.mxu0 0
        %7144 = vmatpush2.bf16.msra.mxu0 0
        %7145 = vmatprep.subr.bf16.mxu0 0
        %7146 = vmatpush2.bf16.msra.mxu0 0
        %7147 = vmatprep.subr.bf16.mxu0 0
        %7148 = vmatpush2.bf16.msra.mxu0 0
        %7149 = vmatprep.subr.bf16.mxu0 0
        %7150 = vmatpush2.bf16.msra.mxu0 0
        %7151 = vmatprep.subr.bf16.mxu0 0
        %7152 = vmatpush2.bf16.msra.mxu0 0
        %7153 = vmatprep.subr.bf16.mxu0 0
        %7154 = vmatpush2.bf16.msra.mxu0 0
        %7155 = vmatprep.mubr.bf16.mxu0 0
        %7156 = vmatmul.mubr.bf16.gmra.mxu0 %v2001
        %v7157 = vpop.f32.mrf.mxu0
        %v7158 = vadd.f32 %v1360, %v7157
        %v7159 = vpop.f32.mrf.mxu0
        %v7160 = vadd.f32 %v1364, %v7159
        %v7161 = vpop.f32.mrf.mxu0
        %v7162 = vadd.f32 %v1360, %v7161
        %v7163 = vpop.f32.mrf.mxu0
        %v7164 = vadd.f32 %v1364, %v7163
        %7165 = vdwg.mxu0
        %7166 = vmatprep.subr.bf16.mxu0 %v5974
        %7167 = vmatpush1.bf16.msra.mxu0 %v5973
        %7168 = vmatprep.subr.bf16.mxu0 %v5846
        %7169 = vmatpush1.bf16.msra.mxu0 %v5845
        %7170 = vmatprep.subr.bf16.mxu0 %v5718
        %7171 = vmatpush1.bf16.msra.mxu0 %v5717
        %7172 = vmatprep.subr.bf16.mxu0 %v5590
        %7173 = vmatpush1.bf16.msra.mxu0 %v5589
        %7174 = vmatprep.subr.bf16.mxu0 %v5462
        %7175 = vmatpush1.bf16.msra.mxu0 %v5461
        %7176 = vmatprep.subr.bf16.mxu0 %v5334
        %7177 = vmatpush1.bf16.msra.mxu0 %v5333
        %7178 = vmatprep.subr.bf16.mxu0 %v5206
        %7179 = vmatpush1.bf16.msra.mxu0 %v5205
        %7180 = vmatprep.subr.bf16.mxu0 %v5078
        %7181 = vmatpush1.bf16.msra.mxu0 %v5077
        %7182 = vmatprep.subr.bf16.mxu0 0
        %7183 = vmatpush2.bf16.msra.mxu0 0
        %7184 = vmatprep.subr.bf16.mxu0 0
        %7185 = vmatpush2.bf16.msra.mxu0 0
        %7186 = vmatprep.subr.bf16.mxu0 0
        %7187 = vmatpush2.bf16.msra.mxu0 0
        %7188 = vmatprep.subr.bf16.mxu0 0
        %7189 = vmatpush2.bf16.msra.mxu0 0
        %7190 = vmatprep.subr.bf16.mxu0 0
        %7191 = vmatpush2.bf16.msra.mxu0 0
        %7192 = vmatprep.subr.bf16.mxu0 0
        %7193 = vmatpush2.bf16.msra.mxu0 0
        %7194 = vmatprep.subr.bf16.mxu0 0
        %7195 = vmatpush2.bf16.msra.mxu0 0
        %7196 = vmatprep.subr.bf16.mxu0 0
        %7197 = vmatpush2.bf16.msra.mxu0 0
        %7198 = vmatprep.mubr.bf16.mxu0 0
        %7199 = vmatmul.mubr.bf16.gmra.mxu0 %v2001
        %v7200 = vpop.f32.mrf.mxu0
        %v7201 = vadd.f32 %v1368, %v7200
        %v7202 = vpop.f32.mrf.mxu0
        %v7203 = vadd.f32 %v1372, %v7202
        %v7204 = vpop.f32.mrf.mxu0
        %v7205 = vadd.f32 %v1368, %v7204
        %v7206 = vpop.f32.mrf.mxu0
        %v7207 = vadd.f32 %v1372, %v7206
        %7208 = vdwg.mxu0
        %7209 = vmatprep.subr.bf16.mxu0 %v5976
        %7210 = vmatpush1.bf16.msra.mxu0 %v5975
        %7211 = vmatprep.subr.bf16.mxu0 %v5848
        %7212 = vmatpush1.bf16.msra.mxu0 %v5847
        %7213 = vmatprep.subr.bf16.mxu0 %v5720
        %7214 = vmatpush1.bf16.msra.mxu0 %v5719
        %7215 = vmatprep.subr.bf16.mxu0 %v5592
        %7216 = vmatpush1.bf16.msra.mxu0 %v5591
        %7217 = vmatprep.subr.bf16.mxu0 %v5464
        %7218 = vmatpush1.bf16.msra.mxu0 %v5463
        %7219 = vmatprep.subr.bf16.mxu0 %v5336
        %7220 = vmatpush1.bf16.msra.mxu0 %v5335
        %7221 = vmatprep.subr.bf16.mxu0 %v5208
        %7222 = vmatpush1.bf16.msra.mxu0 %v5207
        %7223 = vmatprep.subr.bf16.mxu0 %v5080
        %7224 = vmatpush1.bf16.msra.mxu0 %v5079
        %7225 = vmatprep.subr.bf16.mxu0 0
        %7226 = vmatpush2.bf16.msra.mxu0 0
        %7227 = vmatprep.subr.bf16.mxu0 0
        %7228 = vmatpush2.bf16.msra.mxu0 0
        %7229 = vmatprep.subr.bf16.mxu0 0
        %7230 = vmatpush2.bf16.msra.mxu0 0
        %7231 = vmatprep.subr.bf16.mxu0 0
        %7232 = vmatpush2.bf16.msra.mxu0 0
        %7233 = vmatprep.subr.bf16.mxu0 0
        %7234 = vmatpush2.bf16.msra.mxu0 0
        %7235 = vmatprep.subr.bf16.mxu0 0
        %7236 = vmatpush2.bf16.msra.mxu0 0
        %7237 = vmatprep.subr.bf16.mxu0 0
        %7238 = vmatpush2.bf16.msra.mxu0 0
        %7239 = vmatprep.subr.bf16.mxu0 0
        %7240 = vmatpush2.bf16.msra.mxu0 0
        %7241 = vmatprep.mubr.bf16.mxu0 0
        %7242 = vmatmul.mubr.bf16.gmra.mxu0 %v2001
        %v7243 = vpop.f32.mrf.mxu0
        %v7244 = vadd.f32 %v1376, %v7243
        %v7245 = vpop.f32.mrf.mxu0
        %v7246 = vadd.f32 %v1380, %v7245
        %v7247 = vpop.f32.mrf.mxu0
        %v7248 = vadd.f32 %v1376, %v7247
        %v7249 = vpop.f32.mrf.mxu0
        %v7250 = vadd.f32 %v1380, %v7249
        %7251 = vdwg.mxu0
        %7252 = vmatprep.subr.bf16.mxu0 %v5978
        %7253 = vmatpush1.bf16.msra.mxu0 %v5977
        %7254 = vmatprep.subr.bf16.mxu0 %v5850
        %7255 = vmatpush1.bf16.msra.mxu0 %v5849
        %7256 = vmatprep.subr.bf16.mxu0 %v5722
        %7257 = vmatpush1.bf16.msra.mxu0 %v5721
        %7258 = vmatprep.subr.bf16.mxu0 %v5594
        %7259 = vmatpush1.bf16.msra.mxu0 %v5593
        %7260 = vmatprep.subr.bf16.mxu0 %v5466
        %7261 = vmatpush1.bf16.msra.mxu0 %v5465
        %7262 = vmatprep.subr.bf16.mxu0 %v5338
        %7263 = vmatpush1.bf16.msra.mxu0 %v5337
        %7264 = vmatprep.subr.bf16.mxu0 %v5210
        %7265 = vmatpush1.bf16.msra.mxu0 %v5209
        %7266 = vmatprep.subr.bf16.mxu0 %v5082
        %7267 = vmatpush1.bf16.msra.mxu0 %v5081
        %7268 = vmatprep.subr.bf16.mxu0 0
        %7269 = vmatpush2.bf16.msra.mxu0 0
        %7270 = vmatprep.subr.bf16.mxu0 0
        %7271 = vmatpush2.bf16.msra.mxu0 0
        %7272 = vmatprep.subr.bf16.mxu0 0
        %7273 = vmatpush2.bf16.msra.mxu0 0
        %7274 = vmatprep.subr.bf16.mxu0 0
        %7275 = vmatpush2.bf16.msra.mxu0 0
        %7276 = vmatprep.subr.bf16.mxu0 0
        %7277 = vmatpush2.bf16.msra.mxu0 0
        %7278 = vmatprep.subr.bf16.mxu0 0
        %7279 = vmatpush2.bf16.msra.mxu0 0
        %7280 = vmatprep.subr.bf16.mxu0 0
        %7281 = vmatpush2.bf16.msra.mxu0 0
        %7282 = vmatprep.subr.bf16.mxu0 0
        %7283 = vmatpush2.bf16.msra.mxu0 0
        %7284 = vmatprep.mubr.bf16.mxu0 0
        %7285 = vmatmul.mubr.bf16.gmra.mxu0 %v2001
        %v7286 = vpop.f32.mrf.mxu0
        %v7287 = vadd.f32 %v1384, %v7286
        %v7288 = vpop.f32.mrf.mxu0
        %v7289 = vadd.f32 %v1388, %v7288
        %v7290 = vpop.f32.mrf.mxu0
        %v7291 = vadd.f32 %v1384, %v7290
        %v7292 = vpop.f32.mrf.mxu0
        %v7293 = vadd.f32 %v1388, %v7292
        %7294 = vdwg.mxu0
        %7295 = vmatprep.subr.bf16.mxu0 %v5980
        %7296 = vmatpush1.bf16.msra.mxu0 %v5979
        %7297 = vmatprep.subr.bf16.mxu0 %v5852
        %7298 = vmatpush1.bf16.msra.mxu0 %v5851
        %7299 = vmatprep.subr.bf16.mxu0 %v5724
        %7300 = vmatpush1.bf16.msra.mxu0 %v5723
        %7301 = vmatprep.subr.bf16.mxu0 %v5596
        %7302 = vmatpush1.bf16.msra.mxu0 %v5595
        %7303 = vmatprep.subr.bf16.mxu0 %v5468
        %7304 = vmatpush1.bf16.msra.mxu0 %v5467
        %7305 = vmatprep.subr.bf16.mxu0 %v5340
        %7306 = vmatpush1.bf16.msra.mxu0 %v5339
        %7307 = vmatprep.subr.bf16.mxu0 %v5212
        %7308 = vmatpush1.bf16.msra.mxu0 %v5211
        %7309 = vmatprep.subr.bf16.mxu0 %v5084
        %7310 = vmatpush1.bf16.msra.mxu0 %v5083
        %7311 = vmatprep.subr.bf16.mxu0 0
        %7312 = vmatpush2.bf16.msra.mxu0 0
        %7313 = vmatprep.subr.bf16.mxu0 0
        %7314 = vmatpush2.bf16.msra.mxu0 0
        %7315 = vmatprep.subr.bf16.mxu0 0
        %7316 = vmatpush2.bf16.msra.mxu0 0
        %7317 = vmatprep.subr.bf16.mxu0 0
        %7318 = vmatpush2.bf16.msra.mxu0 0
        %7319 = vmatprep.subr.bf16.mxu0 0
        %7320 = vmatpush2.bf16.msra.mxu0 0
        %7321 = vmatprep.subr.bf16.mxu0 0
        %7322 = vmatpush2.bf16.msra.mxu0 0
        %7323 = vmatprep.subr.bf16.mxu0 0
        %7324 = vmatpush2.bf16.msra.mxu0 0
        %7325 = vmatprep.subr.bf16.mxu0 0
        %7326 = vmatpush2.bf16.msra.mxu0 0
        %7327 = vmatprep.mubr.bf16.mxu0 0
        %7328 = vmatmul.mubr.bf16.gmra.mxu0 %v2001
        %v7329 = vpop.f32.mrf.mxu0
        %v7330 = vadd.f32 %v1392, %v7329
        %v7331 = vpop.f32.mrf.mxu0
        %v7332 = vadd.f32 %v1396, %v7331
        %v7333 = vpop.f32.mrf.mxu0
        %v7334 = vadd.f32 %v1392, %v7333
        %v7335 = vpop.f32.mrf.mxu0
        %v7336 = vadd.f32 %v1396, %v7335
        %7337 = vdwg.mxu0
        %7338 = vmatprep.subr.bf16.mxu0 %v5982
        %7339 = vmatpush1.bf16.msra.mxu0 %v5981
        %7340 = vmatprep.subr.bf16.mxu0 %v5854
        %7341 = vmatpush1.bf16.msra.mxu0 %v5853
        %7342 = vmatprep.subr.bf16.mxu0 %v5726
        %7343 = vmatpush1.bf16.msra.mxu0 %v5725
        %7344 = vmatprep.subr.bf16.mxu0 %v5598
        %7345 = vmatpush1.bf16.msra.mxu0 %v5597
        %7346 = vmatprep.subr.bf16.mxu0 %v5470
        %7347 = vmatpush1.bf16.msra.mxu0 %v5469
        %7348 = vmatprep.subr.bf16.mxu0 %v5342
        %7349 = vmatpush1.bf16.msra.mxu0 %v5341
        %7350 = vmatprep.subr.bf16.mxu0 %v5214
        %7351 = vmatpush1.bf16.msra.mxu0 %v5213
        %7352 = vmatprep.subr.bf16.mxu0 %v5086
        %7353 = vmatpush1.bf16.msra.mxu0 %v5085
        %7354 = vmatprep.subr.bf16.mxu0 0
        %7355 = vmatpush2.bf16.msra.mxu0 0
        %7356 = vmatprep.subr.bf16.mxu0 0
        %7357 = vmatpush2.bf16.msra.mxu0 0
        %7358 = vmatprep.subr.bf16.mxu0 0
        %7359 = vmatpush2.bf16.msra.mxu0 0
        %7360 = vmatprep.subr.bf16.mxu0 0
        %7361 = vmatpush2.bf16.msra.mxu0 0
        %7362 = vmatprep.subr.bf16.mxu0 0
        %7363 = vmatpush2.bf16.msra.mxu0 0
        %7364 = vmatprep.subr.bf16.mxu0 0
        %7365 = vmatpush2.bf16.msra.mxu0 0
        %7366 = vmatprep.subr.bf16.mxu0 0
        %7367 = vmatpush2.bf16.msra.mxu0 0
        %7368 = vmatprep.subr.bf16.mxu0 0
        %7369 = vmatpush2.bf16.msra.mxu0 0
        %7370 = vmatprep.mubr.bf16.mxu0 0
        %7371 = vmatmul.mubr.bf16.gmra.mxu0 %v2001
        %v7372 = vpop.f32.mrf.mxu0
        %v7373 = vadd.f32 %v1400, %v7372
        %v7374 = vpop.f32.mrf.mxu0
        %v7375 = vadd.f32 %v1404, %v7374
        %v7376 = vpop.f32.mrf.mxu0
        %v7377 = vadd.f32 %v1400, %v7376
        %v7378 = vpop.f32.mrf.mxu0
        %v7379 = vadd.f32 %v1404, %v7378
        %7380 = vdwg.mxu0
        %7381 = vmatprep.subr.bf16.mxu0 %v5984
        %7382 = vmatpush1.bf16.msra.mxu0 %v5983
        %7383 = vmatprep.subr.bf16.mxu0 %v5856
        %7384 = vmatpush1.bf16.msra.mxu0 %v5855
        %7385 = vmatprep.subr.bf16.mxu0 %v5728
        %7386 = vmatpush1.bf16.msra.mxu0 %v5727
        %7387 = vmatprep.subr.bf16.mxu0 %v5600
        %7388 = vmatpush1.bf16.msra.mxu0 %v5599
        %7389 = vmatprep.subr.bf16.mxu0 %v5472
        %7390 = vmatpush1.bf16.msra.mxu0 %v5471
        %7391 = vmatprep.subr.bf16.mxu0 %v5344
        %7392 = vmatpush1.bf16.msra.mxu0 %v5343
        %7393 = vmatprep.subr.bf16.mxu0 %v5216
        %7394 = vmatpush1.bf16.msra.mxu0 %v5215
        %7395 = vmatprep.subr.bf16.mxu0 %v5088
        %7396 = vmatpush1.bf16.msra.mxu0 %v5087
        %7397 = vmatprep.subr.bf16.mxu0 0
        %7398 = vmatpush2.bf16.msra.mxu0 0
        %7399 = vmatprep.subr.bf16.mxu0 0
        %7400 = vmatpush2.bf16.msra.mxu0 0
        %7401 = vmatprep.subr.bf16.mxu0 0
        %7402 = vmatpush2.bf16.msra.mxu0 0
        %7403 = vmatprep.subr.bf16.mxu0 0
        %7404 = vmatpush2.bf16.msra.mxu0 0
        %7405 = vmatprep.subr.bf16.mxu0 0
        %7406 = vmatpush2.bf16.msra.mxu0 0
        %7407 = vmatprep.subr.bf16.mxu0 0
        %7408 = vmatpush2.bf16.msra.mxu0 0
        %7409 = vmatprep.subr.bf16.mxu0 0
        %7410 = vmatpush2.bf16.msra.mxu0 0
        %7411 = vmatprep.subr.bf16.mxu0 0
        %7412 = vmatpush2.bf16.msra.mxu0 0
        %7413 = vmatprep.mubr.bf16.mxu0 0
        %7414 = vmatmul.mubr.bf16.gmra.mxu0 %v2001
        %v7415 = vpop.f32.mrf.mxu0
        %v7416 = vadd.f32 %v1408, %v7415
        %v7417 = vpop.f32.mrf.mxu0
        %v7418 = vadd.f32 %v1412, %v7417
        %v7419 = vpop.f32.mrf.mxu0
        %v7420 = vadd.f32 %v1408, %v7419
        %v7421 = vpop.f32.mrf.mxu0
        %v7422 = vadd.f32 %v1412, %v7421
        %7423 = vdwg.mxu0
        %7424 = vmatprep.subr.bf16.mxu0 %v5986
        %7425 = vmatpush1.bf16.msra.mxu0 %v5985
        %7426 = vmatprep.subr.bf16.mxu0 %v5858
        %7427 = vmatpush1.bf16.msra.mxu0 %v5857
        %7428 = vmatprep.subr.bf16.mxu0 %v5730
        %7429 = vmatpush1.bf16.msra.mxu0 %v5729
        %7430 = vmatprep.subr.bf16.mxu0 %v5602
        %7431 = vmatpush1.bf16.msra.mxu0 %v5601
        %7432 = vmatprep.subr.bf16.mxu0 %v5474
        %7433 = vmatpush1.bf16.msra.mxu0 %v5473
        %7434 = vmatprep.subr.bf16.mxu0 %v5346
        %7435 = vmatpush1.bf16.msra.mxu0 %v5345
        %7436 = vmatprep.subr.bf16.mxu0 %v5218
        %7437 = vmatpush1.bf16.msra.mxu0 %v5217
        %7438 = vmatprep.subr.bf16.mxu0 %v5090
        %7439 = vmatpush1.bf16.msra.mxu0 %v5089
        %7440 = vmatprep.subr.bf16.mxu0 0
        %7441 = vmatpush2.bf16.msra.mxu0 0
        %7442 = vmatprep.subr.bf16.mxu0 0
        %7443 = vmatpush2.bf16.msra.mxu0 0
        %7444 = vmatprep.subr.bf16.mxu0 0
        %7445 = vmatpush2.bf16.msra.mxu0 0
        %7446 = vmatprep.subr.bf16.mxu0 0
        %7447 = vmatpush2.bf16.msra.mxu0 0
        %7448 = vmatprep.subr.bf16.mxu0 0
        %7449 = vmatpush2.bf16.msra.mxu0 0
        %7450 = vmatprep.subr.bf16.mxu0 0
        %7451 = vmatpush2.bf16.msra.mxu0 0
        %7452 = vmatprep.subr.bf16.mxu0 0
        %7453 = vmatpush2.bf16.msra.mxu0 0
        %7454 = vmatprep.subr.bf16.mxu0 0
        %7455 = vmatpush2.bf16.msra.mxu0 0
        %7456 = vmatprep.mubr.bf16.mxu0 0
        %7457 = vmatmul.mubr.bf16.gmra.mxu0 %v2001
        %v7458 = vpop.f32.mrf.mxu0
        %v7459 = vadd.f32 %v1416, %v7458
        %v7460 = vpop.f32.mrf.mxu0
        %v7461 = vadd.f32 %v1420, %v7460
        %v7462 = vpop.f32.mrf.mxu0
        %v7463 = vadd.f32 %v1416, %v7462
        %v7464 = vpop.f32.mrf.mxu0
        %v7465 = vadd.f32 %v1420, %v7464
        %7466 = vdwg.mxu0
        %7467 = vmatprep.subr.bf16.mxu0 %v5988
        %7468 = vmatpush1.bf16.msra.mxu0 %v5987
        %7469 = vmatprep.subr.bf16.mxu0 %v5860
        %7470 = vmatpush1.bf16.msra.mxu0 %v5859
        %7471 = vmatprep.subr.bf16.mxu0 %v5732
        %7472 = vmatpush1.bf16.msra.mxu0 %v5731
        %7473 = vmatprep.subr.bf16.mxu0 %v5604
        %7474 = vmatpush1.bf16.msra.mxu0 %v5603
        %7475 = vmatprep.subr.bf16.mxu0 %v5476
        %7476 = vmatpush1.bf16.msra.mxu0 %v5475
        %7477 = vmatprep.subr.bf16.mxu0 %v5348
        %7478 = vmatpush1.bf16.msra.mxu0 %v5347
        %7479 = vmatprep.subr.bf16.mxu0 %v5220
        %7480 = vmatpush1.bf16.msra.mxu0 %v5219
        %7481 = vmatprep.subr.bf16.mxu0 %v5092
        %7482 = vmatpush1.bf16.msra.mxu0 %v5091
        %7483 = vmatprep.subr.bf16.mxu0 0
        %7484 = vmatpush2.bf16.msra.mxu0 0
        %7485 = vmatprep.subr.bf16.mxu0 0
        %7486 = vmatpush2.bf16.msra.mxu0 0
        %7487 = vmatprep.subr.bf16.mxu0 0
        %7488 = vmatpush2.bf16.msra.mxu0 0
        %7489 = vmatprep.subr.bf16.mxu0 0
        %7490 = vmatpush2.bf16.msra.mxu0 0
        %7491 = vmatprep.subr.bf16.mxu0 0
        %7492 = vmatpush2.bf16.msra.mxu0 0
        %7493 = vmatprep.subr.bf16.mxu0 0
        %7494 = vmatpush2.bf16.msra.mxu0 0
        %7495 = vmatprep.subr.bf16.mxu0 0
        %7496 = vmatpush2.bf16.msra.mxu0 0
        %7497 = vmatprep.subr.bf16.mxu0 0
        %7498 = vmatpush2.bf16.msra.mxu0 0
        %7499 = vmatprep.mubr.bf16.mxu0 0
        %7500 = vmatmul.mubr.bf16.gmra.mxu0 %v2001
        %v7501 = vpop.f32.mrf.mxu0
        %v7502 = vadd.f32 %v1424, %v7501
        %v7503 = vpop.f32.mrf.mxu0
        %v7504 = vadd.f32 %v1428, %v7503
        %v7505 = vpop.f32.mrf.mxu0
        %v7506 = vadd.f32 %v1424, %v7505
        %v7507 = vpop.f32.mrf.mxu0
        %v7508 = vadd.f32 %v1428, %v7507
        %7509 = vdwg.mxu0
        %7510 = vmatprep.subr.bf16.mxu0 %v5990
        %7511 = vmatpush1.bf16.msra.mxu0 %v5989
        %7512 = vmatprep.subr.bf16.mxu0 %v5862
        %7513 = vmatpush1.bf16.msra.mxu0 %v5861
        %7514 = vmatprep.subr.bf16.mxu0 %v5734
        %7515 = vmatpush1.bf16.msra.mxu0 %v5733
        %7516 = vmatprep.subr.bf16.mxu0 %v5606
        %7517 = vmatpush1.bf16.msra.mxu0 %v5605
        %7518 = vmatprep.subr.bf16.mxu0 %v5478
        %7519 = vmatpush1.bf16.msra.mxu0 %v5477
        %7520 = vmatprep.subr.bf16.mxu0 %v5350
        %7521 = vmatpush1.bf16.msra.mxu0 %v5349
        %7522 = vmatprep.subr.bf16.mxu0 %v5222
        %7523 = vmatpush1.bf16.msra.mxu0 %v5221
        %7524 = vmatprep.subr.bf16.mxu0 %v5094
        %7525 = vmatpush1.bf16.msra.mxu0 %v5093
        %7526 = vmatprep.subr.bf16.mxu0 0
        %7527 = vmatpush2.bf16.msra.mxu0 0
        %7528 = vmatprep.subr.bf16.mxu0 0
        %7529 = vmatpush2.bf16.msra.mxu0 0
        %7530 = vmatprep.subr.bf16.mxu0 0
        %7531 = vmatpush2.bf16.msra.mxu0 0
        %7532 = vmatprep.subr.bf16.mxu0 0
        %7533 = vmatpush2.bf16.msra.mxu0 0
        %7534 = vmatprep.subr.bf16.mxu0 0
        %7535 = vmatpush2.bf16.msra.mxu0 0
        %7536 = vmatprep.subr.bf16.mxu0 0
        %7537 = vmatpush2.bf16.msra.mxu0 0
        %7538 = vmatprep.subr.bf16.mxu0 0
        %7539 = vmatpush2.bf16.msra.mxu0 0
        %7540 = vmatprep.subr.bf16.mxu0 0
        %7541 = vmatpush2.bf16.msra.mxu0 0
        %7542 = vmatprep.mubr.bf16.mxu0 0
        %7543 = vmatmul.mubr.bf16.gmra.mxu0 %v2001
        %v7544 = vpop.f32.mrf.mxu0
        %v7545 = vadd.f32 %v1432, %v7544
        %v7546 = vpop.f32.mrf.mxu0
        %v7547 = vadd.f32 %v1436, %v7546
        %v7548 = vpop.f32.mrf.mxu0
        %v7549 = vadd.f32 %v1432, %v7548
        %v7550 = vpop.f32.mrf.mxu0
        %v7551 = vadd.f32 %v1436, %v7550
        %7552 = vdwg.mxu0
        %7553 = vmatprep.subr.bf16.mxu0 %v5992
        %7554 = vmatpush1.bf16.msra.mxu0 %v5991
        %7555 = vmatprep.subr.bf16.mxu0 %v5864
        %7556 = vmatpush1.bf16.msra.mxu0 %v5863
        %7557 = vmatprep.subr.bf16.mxu0 %v5736
        %7558 = vmatpush1.bf16.msra.mxu0 %v5735
        %7559 = vmatprep.subr.bf16.mxu0 %v5608
        %7560 = vmatpush1.bf16.msra.mxu0 %v5607
        %7561 = vmatprep.subr.bf16.mxu0 %v5480
        %7562 = vmatpush1.bf16.msra.mxu0 %v5479
        %7563 = vmatprep.subr.bf16.mxu0 %v5352
        %7564 = vmatpush1.bf16.msra.mxu0 %v5351
        %7565 = vmatprep.subr.bf16.mxu0 %v5224
        %7566 = vmatpush1.bf16.msra.mxu0 %v5223
        %7567 = vmatprep.subr.bf16.mxu0 %v5096
        %7568 = vmatpush1.bf16.msra.mxu0 %v5095
        %7569 = vmatprep.subr.bf16.mxu0 0
        %7570 = vmatpush2.bf16.msra.mxu0 0
        %7571 = vmatprep.subr.bf16.mxu0 0
        %7572 = vmatpush2.bf16.msra.mxu0 0
        %7573 = vmatprep.subr.bf16.mxu0 0
        %7574 = vmatpush2.bf16.msra.mxu0 0
        %7575 = vmatprep.subr.bf16.mxu0 0
        %7576 = vmatpush2.bf16.msra.mxu0 0
        %7577 = vmatprep.subr.bf16.mxu0 0
        %7578 = vmatpush2.bf16.msra.mxu0 0
        %7579 = vmatprep.subr.bf16.mxu0 0
        %7580 = vmatpush2.bf16.msra.mxu0 0
        %7581 = vmatprep.subr.bf16.mxu0 0
        %7582 = vmatpush2.bf16.msra.mxu0 0
        %7583 = vmatprep.subr.bf16.mxu0 0
        %7584 = vmatpush2.bf16.msra.mxu0 0
        %7585 = vmatprep.mubr.bf16.mxu0 0
        %7586 = vmatmul.mubr.bf16.gmra.mxu0 %v2001
        %v7587 = vpop.f32.mrf.mxu0
        %v7588 = vadd.f32 %v1440, %v7587
        %v7589 = vpop.f32.mrf.mxu0
        %v7590 = vadd.f32 %v1444, %v7589
        %v7591 = vpop.f32.mrf.mxu0
        %v7592 = vadd.f32 %v1440, %v7591
        %v7593 = vpop.f32.mrf.mxu0
        %v7594 = vadd.f32 %v1444, %v7593
        %7595 = vdwg.mxu0
        %7596 = vmatprep.subr.bf16.mxu0 %v5994
        %7597 = vmatpush1.bf16.msra.mxu0 %v5993
        %7598 = vmatprep.subr.bf16.mxu0 %v5866
        %7599 = vmatpush1.bf16.msra.mxu0 %v5865
        %7600 = vmatprep.subr.bf16.mxu0 %v5738
        %7601 = vmatpush1.bf16.msra.mxu0 %v5737
        %7602 = vmatprep.subr.bf16.mxu0 %v5610
        %7603 = vmatpush1.bf16.msra.mxu0 %v5609
        %7604 = vmatprep.subr.bf16.mxu0 %v5482
        %7605 = vmatpush1.bf16.msra.mxu0 %v5481
        %7606 = vmatprep.subr.bf16.mxu0 %v5354
        %7607 = vmatpush1.bf16.msra.mxu0 %v5353
        %7608 = vmatprep.subr.bf16.mxu0 %v5226
        %7609 = vmatpush1.bf16.msra.mxu0 %v5225
        %7610 = vmatprep.subr.bf16.mxu0 %v5098
        %7611 = vmatpush1.bf16.msra.mxu0 %v5097
        %7612 = vmatprep.subr.bf16.mxu0 0
        %7613 = vmatpush2.bf16.msra.mxu0 0
        %7614 = vmatprep.subr.bf16.mxu0 0
        %7615 = vmatpush2.bf16.msra.mxu0 0
        %7616 = vmatprep.subr.bf16.mxu0 0
        %7617 = vmatpush2.bf16.msra.mxu0 0
        %7618 = vmatprep.subr.bf16.mxu0 0
        %7619 = vmatpush2.bf16.msra.mxu0 0
        %7620 = vmatprep.subr.bf16.mxu0 0
        %7621 = vmatpush2.bf16.msra.mxu0 0
        %7622 = vmatprep.subr.bf16.mxu0 0
        %7623 = vmatpush2.bf16.msra.mxu0 0
        %7624 = vmatprep.subr.bf16.mxu0 0
        %7625 = vmatpush2.bf16.msra.mxu0 0
        %7626 = vmatprep.subr.bf16.mxu0 0
        %7627 = vmatpush2.bf16.msra.mxu0 0
        %7628 = vmatprep.mubr.bf16.mxu0 0
        %7629 = vmatmul.mubr.bf16.gmra.mxu0 %v2001
        %v7630 = vpop.f32.mrf.mxu0
        %v7631 = vadd.f32 %v1448, %v7630
        %v7632 = vpop.f32.mrf.mxu0
        %v7633 = vadd.f32 %v1452, %v7632
        %v7634 = vpop.f32.mrf.mxu0
        %v7635 = vadd.f32 %v1448, %v7634
        %v7636 = vpop.f32.mrf.mxu0
        %v7637 = vadd.f32 %v1452, %v7636
        %7638 = vdwg.mxu0
        %7639 = vmatprep.subr.bf16.mxu0 %v5996
        %7640 = vmatpush1.bf16.msra.mxu0 %v5995
        %7641 = vmatprep.subr.bf16.mxu0 %v5868
        %7642 = vmatpush1.bf16.msra.mxu0 %v5867
        %7643 = vmatprep.subr.bf16.mxu0 %v5740
        %7644 = vmatpush1.bf16.msra.mxu0 %v5739
        %7645 = vmatprep.subr.bf16.mxu0 %v5612
        %7646 = vmatpush1.bf16.msra.mxu0 %v5611
        %7647 = vmatprep.subr.bf16.mxu0 %v5484
        %7648 = vmatpush1.bf16.msra.mxu0 %v5483
        %7649 = vmatprep.subr.bf16.mxu0 %v5356
        %7650 = vmatpush1.bf16.msra.mxu0 %v5355
        %7651 = vmatprep.subr.bf16.mxu0 %v5228
        %7652 = vmatpush1.bf16.msra.mxu0 %v5227
        %7653 = vmatprep.subr.bf16.mxu0 %v5100
        %7654 = vmatpush1.bf16.msra.mxu0 %v5099
        %7655 = vmatprep.subr.bf16.mxu0 0
        %7656 = vmatpush2.bf16.msra.mxu0 0
        %7657 = vmatprep.subr.bf16.mxu0 0
        %7658 = vmatpush2.bf16.msra.mxu0 0
        %7659 = vmatprep.subr.bf16.mxu0 0
        %7660 = vmatpush2.bf16.msra.mxu0 0
        %7661 = vmatprep.subr.bf16.mxu0 0
        %7662 = vmatpush2.bf16.msra.mxu0 0
        %7663 = vmatprep.subr.bf16.mxu0 0
        %7664 = vmatpush2.bf16.msra.mxu0 0
        %7665 = vmatprep.subr.bf16.mxu0 0
        %7666 = vmatpush2.bf16.msra.mxu0 0
        %7667 = vmatprep.subr.bf16.mxu0 0
        %7668 = vmatpush2.bf16.msra.mxu0 0
        %7669 = vmatprep.subr.bf16.mxu0 0
        %7670 = vmatpush2.bf16.msra.mxu0 0
        %7671 = vmatprep.mubr.bf16.mxu0 0
        %7672 = vmatmul.mubr.bf16.gmra.mxu0 %v2001
        %v7673 = vpop.f32.mrf.mxu0
        %v7674 = vadd.f32 %v1456, %v7673
        %v7675 = vpop.f32.mrf.mxu0
        %v7676 = vadd.f32 %v1460, %v7675
        %v7677 = vpop.f32.mrf.mxu0
        %v7678 = vadd.f32 %v1456, %v7677
        %v7679 = vpop.f32.mrf.mxu0
        %v7680 = vadd.f32 %v1460, %v7679
        %7681 = vdwg.mxu0
        %7682 = vmatprep.subr.bf16.mxu0 %v5998
        %7683 = vmatpush1.bf16.msra.mxu0 %v5997
        %7684 = vmatprep.subr.bf16.mxu0 %v5870
        %7685 = vmatpush1.bf16.msra.mxu0 %v5869
        %7686 = vmatprep.subr.bf16.mxu0 %v5742
        %7687 = vmatpush1.bf16.msra.mxu0 %v5741
        %7688 = vmatprep.subr.bf16.mxu0 %v5614
        %7689 = vmatpush1.bf16.msra.mxu0 %v5613
        %7690 = vmatprep.subr.bf16.mxu0 %v5486
        %7691 = vmatpush1.bf16.msra.mxu0 %v5485
        %7692 = vmatprep.subr.bf16.mxu0 %v5358
        %7693 = vmatpush1.bf16.msra.mxu0 %v5357
        %7694 = vmatprep.subr.bf16.mxu0 %v5230
        %7695 = vmatpush1.bf16.msra.mxu0 %v5229
        %7696 = vmatprep.subr.bf16.mxu0 %v5102
        %7697 = vmatpush1.bf16.msra.mxu0 %v5101
        %7698 = vmatprep.subr.bf16.mxu0 0
        %7699 = vmatpush2.bf16.msra.mxu0 0
        %7700 = vmatprep.subr.bf16.mxu0 0
        %7701 = vmatpush2.bf16.msra.mxu0 0
        %7702 = vmatprep.subr.bf16.mxu0 0
        %7703 = vmatpush2.bf16.msra.mxu0 0
        %7704 = vmatprep.subr.bf16.mxu0 0
        %7705 = vmatpush2.bf16.msra.mxu0 0
        %7706 = vmatprep.subr.bf16.mxu0 0
        %7707 = vmatpush2.bf16.msra.mxu0 0
        %7708 = vmatprep.subr.bf16.mxu0 0
        %7709 = vmatpush2.bf16.msra.mxu0 0
        %7710 = vmatprep.subr.bf16.mxu0 0
        %7711 = vmatpush2.bf16.msra.mxu0 0
        %7712 = vmatprep.subr.bf16.mxu0 0
        %7713 = vmatpush2.bf16.msra.mxu0 0
        %7714 = vmatprep.mubr.bf16.mxu0 0
        %7715 = vmatmul.mubr.bf16.gmra.mxu0 %v2001
        %v7716 = vpop.f32.mrf.mxu0
        %v7717 = vadd.f32 %v1464, %v7716
        %v7718 = vpop.f32.mrf.mxu0
        %v7719 = vadd.f32 %v1468, %v7718
        %v7720 = vpop.f32.mrf.mxu0
        %v7721 = vadd.f32 %v1464, %v7720
        %v7722 = vpop.f32.mrf.mxu0
        %v7723 = vadd.f32 %v1468, %v7722
        %7724 = vdwg.mxu0
        %7725 = vmatprep.subr.bf16.mxu0 %v6000
        %7726 = vmatpush1.bf16.msra.mxu0 %v5999
        %7727 = vmatprep.subr.bf16.mxu0 %v5872
        %7728 = vmatpush1.bf16.msra.mxu0 %v5871
        %7729 = vmatprep.subr.bf16.mxu0 %v5744
        %7730 = vmatpush1.bf16.msra.mxu0 %v5743
        %7731 = vmatprep.subr.bf16.mxu0 %v5616
        %7732 = vmatpush1.bf16.msra.mxu0 %v5615
        %7733 = vmatprep.subr.bf16.mxu0 %v5488
        %7734 = vmatpush1.bf16.msra.mxu0 %v5487
        %7735 = vmatprep.subr.bf16.mxu0 %v5360
        %7736 = vmatpush1.bf16.msra.mxu0 %v5359
        %7737 = vmatprep.subr.bf16.mxu0 %v5232
        %7738 = vmatpush1.bf16.msra.mxu0 %v5231
        %7739 = vmatprep.subr.bf16.mxu0 %v5104
        %7740 = vmatpush1.bf16.msra.mxu0 %v5103
        %7741 = vmatprep.subr.bf16.mxu0 0
        %7742 = vmatpush2.bf16.msra.mxu0 0
        %7743 = vmatprep.subr.bf16.mxu0 0
        %7744 = vmatpush2.bf16.msra.mxu0 0
        %7745 = vmatprep.subr.bf16.mxu0 0
        %7746 = vmatpush2.bf16.msra.mxu0 0
        %7747 = vmatprep.subr.bf16.mxu0 0
        %7748 = vmatpush2.bf16.msra.mxu0 0
        %7749 = vmatprep.subr.bf16.mxu0 0
        %7750 = vmatpush2.bf16.msra.mxu0 0
        %7751 = vmatprep.subr.bf16.mxu0 0
        %7752 = vmatpush2.bf16.msra.mxu0 0
        %7753 = vmatprep.subr.bf16.mxu0 0
        %7754 = vmatpush2.bf16.msra.mxu0 0
        %7755 = vmatprep.subr.bf16.mxu0 0
        %7756 = vmatpush2.bf16.msra.mxu0 0
        %7757 = vmatprep.mubr.bf16.mxu0 0
        %7758 = vmatmul.mubr.bf16.gmra.mxu0 %v2001
        %v7759 = vpop.f32.mrf.mxu0
        %v7760 = vadd.f32 %v1472, %v7759
        %v7761 = vpop.f32.mrf.mxu0
        %v7762 = vadd.f32 %v1476, %v7761
        %v7763 = vpop.f32.mrf.mxu0
        %v7764 = vadd.f32 %v1472, %v7763
        %v7765 = vpop.f32.mrf.mxu0
        %v7766 = vadd.f32 %v1476, %v7765
        %7767 = vdwg.mxu0
        %7768 = vmatprep.subr.bf16.mxu0 %v6002
        %7769 = vmatpush1.bf16.msra.mxu0 %v6001
        %7770 = vmatprep.subr.bf16.mxu0 %v5874
        %7771 = vmatpush1.bf16.msra.mxu0 %v5873
        %7772 = vmatprep.subr.bf16.mxu0 %v5746
        %7773 = vmatpush1.bf16.msra.mxu0 %v5745
        %7774 = vmatprep.subr.bf16.mxu0 %v5618
        %7775 = vmatpush1.bf16.msra.mxu0 %v5617
        %7776 = vmatprep.subr.bf16.mxu0 %v5490
        %7777 = vmatpush1.bf16.msra.mxu0 %v5489
        %7778 = vmatprep.subr.bf16.mxu0 %v5362
        %7779 = vmatpush1.bf16.msra.mxu0 %v5361
        %7780 = vmatprep.subr.bf16.mxu0 %v5234
        %7781 = vmatpush1.bf16.msra.mxu0 %v5233
        %7782 = vmatprep.subr.bf16.mxu0 %v5106
        %7783 = vmatpush1.bf16.msra.mxu0 %v5105
        %7784 = vmatprep.subr.bf16.mxu0 0
        %7785 = vmatpush2.bf16.msra.mxu0 0
        %7786 = vmatprep.subr.bf16.mxu0 0
        %7787 = vmatpush2.bf16.msra.mxu0 0
        %7788 = vmatprep.subr.bf16.mxu0 0
        %7789 = vmatpush2.bf16.msra.mxu0 0
        %7790 = vmatprep.subr.bf16.mxu0 0
        %7791 = vmatpush2.bf16.msra.mxu0 0
        %7792 = vmatprep.subr.bf16.mxu0 0
        %7793 = vmatpush2.bf16.msra.mxu0 0
        %7794 = vmatprep.subr.bf16.mxu0 0
        %7795 = vmatpush2.bf16.msra.mxu0 0
        %7796 = vmatprep.subr.bf16.mxu0 0
        %7797 = vmatpush2.bf16.msra.mxu0 0
        %7798 = vmatprep.subr.bf16.mxu0 0
        %7799 = vmatpush2.bf16.msra.mxu0 0
        %7800 = vmatprep.mubr.bf16.mxu0 0
        %7801 = vmatmul.mubr.bf16.gmra.mxu0 %v2001
        %v7802 = vpop.f32.mrf.mxu0
        %v7803 = vadd.f32 %v1480, %v7802
        %v7804 = vpop.f32.mrf.mxu0
        %v7805 = vadd.f32 %v1484, %v7804
        %v7806 = vpop.f32.mrf.mxu0
        %v7807 = vadd.f32 %v1480, %v7806
        %v7808 = vpop.f32.mrf.mxu0
        %v7809 = vadd.f32 %v1484, %v7808
        %7810 = vdwg.mxu0
        %7811 = vmatprep.subr.bf16.mxu0 %v6004
        %7812 = vmatpush1.bf16.msra.mxu0 %v6003
        %7813 = vmatprep.subr.bf16.mxu0 %v5876
        %7814 = vmatpush1.bf16.msra.mxu0 %v5875
        %7815 = vmatprep.subr.bf16.mxu0 %v5748
        %7816 = vmatpush1.bf16.msra.mxu0 %v5747
        %7817 = vmatprep.subr.bf16.mxu0 %v5620
        %7818 = vmatpush1.bf16.msra.mxu0 %v5619
        %7819 = vmatprep.subr.bf16.mxu0 %v5492
        %7820 = vmatpush1.bf16.msra.mxu0 %v5491
        %7821 = vmatprep.subr.bf16.mxu0 %v5364
        %7822 = vmatpush1.bf16.msra.mxu0 %v5363
        %7823 = vmatprep.subr.bf16.mxu0 %v5236
        %7824 = vmatpush1.bf16.msra.mxu0 %v5235
        %7825 = vmatprep.subr.bf16.mxu0 %v5108
        %7826 = vmatpush1.bf16.msra.mxu0 %v5107
        %7827 = vmatprep.subr.bf16.mxu0 0
        %7828 = vmatpush2.bf16.msra.mxu0 0
        %7829 = vmatprep.subr.bf16.mxu0 0
        %7830 = vmatpush2.bf16.msra.mxu0 0
        %7831 = vmatprep.subr.bf16.mxu0 0
        %7832 = vmatpush2.bf16.msra.mxu0 0
        %7833 = vmatprep.subr.bf16.mxu0 0
        %7834 = vmatpush2.bf16.msra.mxu0 0
        %7835 = vmatprep.subr.bf16.mxu0 0
        %7836 = vmatpush2.bf16.msra.mxu0 0
        %7837 = vmatprep.subr.bf16.mxu0 0
        %7838 = vmatpush2.bf16.msra.mxu0 0
        %7839 = vmatprep.subr.bf16.mxu0 0
        %7840 = vmatpush2.bf16.msra.mxu0 0
        %7841 = vmatprep.subr.bf16.mxu0 0
        %7842 = vmatpush2.bf16.msra.mxu0 0
        %7843 = vmatprep.mubr.bf16.mxu0 0
        %7844 = vmatmul.mubr.bf16.gmra.mxu0 %v2001
        %v7845 = vpop.f32.mrf.mxu0
        %v7846 = vadd.f32 %v1488, %v7845
        %v7847 = vpop.f32.mrf.mxu0
        %v7848 = vadd.f32 %v1492, %v7847
        %v7849 = vpop.f32.mrf.mxu0
        %v7850 = vadd.f32 %v1488, %v7849
        %v7851 = vpop.f32.mrf.mxu0
        %v7852 = vadd.f32 %v1492, %v7851
        %7853 = vdwg.mxu0
        %7854 = vmatprep.subr.bf16.mxu0 %v6006
        %7855 = vmatpush1.bf16.msra.mxu0 %v6005
        %7856 = vmatprep.subr.bf16.mxu0 %v5878
        %7857 = vmatpush1.bf16.msra.mxu0 %v5877
        %7858 = vmatprep.subr.bf16.mxu0 %v5750
        %7859 = vmatpush1.bf16.msra.mxu0 %v5749
        %7860 = vmatprep.subr.bf16.mxu0 %v5622
        %7861 = vmatpush1.bf16.msra.mxu0 %v5621
        %7862 = vmatprep.subr.bf16.mxu0 %v5494
        %7863 = vmatpush1.bf16.msra.mxu0 %v5493
        %7864 = vmatprep.subr.bf16.mxu0 %v5366
        %7865 = vmatpush1.bf16.msra.mxu0 %v5365
        %7866 = vmatprep.subr.bf16.mxu0 %v5238
        %7867 = vmatpush1.bf16.msra.mxu0 %v5237
        %7868 = vmatprep.subr.bf16.mxu0 %v5110
        %7869 = vmatpush1.bf16.msra.mxu0 %v5109
        %7870 = vmatprep.subr.bf16.mxu0 0
        %7871 = vmatpush2.bf16.msra.mxu0 0
        %7872 = vmatprep.subr.bf16.mxu0 0
        %7873 = vmatpush2.bf16.msra.mxu0 0
        %7874 = vmatprep.subr.bf16.mxu0 0
        %7875 = vmatpush2.bf16.msra.mxu0 0
        %7876 = vmatprep.subr.bf16.mxu0 0
        %7877 = vmatpush2.bf16.msra.mxu0 0
        %7878 = vmatprep.subr.bf16.mxu0 0
        %7879 = vmatpush2.bf16.msra.mxu0 0
        %7880 = vmatprep.subr.bf16.mxu0 0
        %7881 = vmatpush2.bf16.msra.mxu0 0
        %7882 = vmatprep.subr.bf16.mxu0 0
        %7883 = vmatpush2.bf16.msra.mxu0 0
        %7884 = vmatprep.subr.bf16.mxu0 0
        %7885 = vmatpush2.bf16.msra.mxu0 0
        %7886 = vmatprep.mubr.bf16.mxu0 0
        %7887 = vmatmul.mubr.bf16.gmra.mxu0 %v2001
        %v7888 = vpop.f32.mrf.mxu0
        %v7889 = vadd.f32 %v1496, %v7888
        %v7890 = vpop.f32.mrf.mxu0
        %v7891 = vadd.f32 %v1500, %v7890
        %v7892 = vpop.f32.mrf.mxu0
        %v7893 = vadd.f32 %v1496, %v7892
        %v7894 = vpop.f32.mrf.mxu0
        %v7895 = vadd.f32 %v1500, %v7894
        %7896 = vdwg.mxu0
        %7897 = vmatprep.subr.bf16.mxu0 %v6008
        %7898 = vmatpush1.bf16.msra.mxu0 %v6007
        %7899 = vmatprep.subr.bf16.mxu0 %v5880
        %7900 = vmatpush1.bf16.msra.mxu0 %v5879
        %7901 = vmatprep.subr.bf16.mxu0 %v5752
        %7902 = vmatpush1.bf16.msra.mxu0 %v5751
        %7903 = vmatprep.subr.bf16.mxu0 %v5624
        %7904 = vmatpush1.bf16.msra.mxu0 %v5623
        %7905 = vmatprep.subr.bf16.mxu0 %v5496
        %7906 = vmatpush1.bf16.msra.mxu0 %v5495
        %7907 = vmatprep.subr.bf16.mxu0 %v5368
        %7908 = vmatpush1.bf16.msra.mxu0 %v5367
        %7909 = vmatprep.subr.bf16.mxu0 %v5240
        %7910 = vmatpush1.bf16.msra.mxu0 %v5239
        %7911 = vmatprep.subr.bf16.mxu0 %v5112
        %7912 = vmatpush1.bf16.msra.mxu0 %v5111
        %7913 = vmatprep.subr.bf16.mxu0 0
        %7914 = vmatpush2.bf16.msra.mxu0 0
        %7915 = vmatprep.subr.bf16.mxu0 0
        %7916 = vmatpush2.bf16.msra.mxu0 0
        %7917 = vmatprep.subr.bf16.mxu0 0
        %7918 = vmatpush2.bf16.msra.mxu0 0
        %7919 = vmatprep.subr.bf16.mxu0 0
        %7920 = vmatpush2.bf16.msra.mxu0 0
        %7921 = vmatprep.subr.bf16.mxu0 0
        %7922 = vmatpush2.bf16.msra.mxu0 0
        %7923 = vmatprep.subr.bf16.mxu0 0
        %7924 = vmatpush2.bf16.msra.mxu0 0
        %7925 = vmatprep.subr.bf16.mxu0 0
        %7926 = vmatpush2.bf16.msra.mxu0 0
        %7927 = vmatprep.subr.bf16.mxu0 0
        %7928 = vmatpush2.bf16.msra.mxu0 0
        %7929 = vmatprep.mubr.bf16.mxu0 0
        %7930 = vmatmul.mubr.bf16.gmra.mxu0 %v2001
        %v7931 = vpop.f32.mrf.mxu0
        %v7932 = vadd.f32 %v1504, %v7931
        %v7933 = vpop.f32.mrf.mxu0
        %v7934 = vadd.f32 %v1508, %v7933
        %v7935 = vpop.f32.mrf.mxu0
        %v7936 = vadd.f32 %v1504, %v7935
        %v7937 = vpop.f32.mrf.mxu0
        %v7938 = vadd.f32 %v1508, %v7937
        %7939 = vdwg.mxu0
        %7940 = vmatprep.subr.bf16.mxu0 %v6010
        %7941 = vmatpush1.bf16.msra.mxu0 %v6009
        %7942 = vmatprep.subr.bf16.mxu0 %v5882
        %7943 = vmatpush1.bf16.msra.mxu0 %v5881
        %7944 = vmatprep.subr.bf16.mxu0 %v5754
        %7945 = vmatpush1.bf16.msra.mxu0 %v5753
        %7946 = vmatprep.subr.bf16.mxu0 %v5626
        %7947 = vmatpush1.bf16.msra.mxu0 %v5625
        %7948 = vmatprep.subr.bf16.mxu0 %v5498
        %7949 = vmatpush1.bf16.msra.mxu0 %v5497
        %7950 = vmatprep.subr.bf16.mxu0 %v5370
        %7951 = vmatpush1.bf16.msra.mxu0 %v5369
        %7952 = vmatprep.subr.bf16.mxu0 %v5242
        %7953 = vmatpush1.bf16.msra.mxu0 %v5241
        %7954 = vmatprep.subr.bf16.mxu0 %v5114
        %7955 = vmatpush1.bf16.msra.mxu0 %v5113
        %7956 = vmatprep.subr.bf16.mxu0 0
        %7957 = vmatpush2.bf16.msra.mxu0 0
        %7958 = vmatprep.subr.bf16.mxu0 0
        %7959 = vmatpush2.bf16.msra.mxu0 0
        %7960 = vmatprep.subr.bf16.mxu0 0
        %7961 = vmatpush2.bf16.msra.mxu0 0
        %7962 = vmatprep.subr.bf16.mxu0 0
        %7963 = vmatpush2.bf16.msra.mxu0 0
        %7964 = vmatprep.subr.bf16.mxu0 0
        %7965 = vmatpush2.bf16.msra.mxu0 0
        %7966 = vmatprep.subr.bf16.mxu0 0
        %7967 = vmatpush2.bf16.msra.mxu0 0
        %7968 = vmatprep.subr.bf16.mxu0 0
        %7969 = vmatpush2.bf16.msra.mxu0 0
        %7970 = vmatprep.subr.bf16.mxu0 0
        %7971 = vmatpush2.bf16.msra.mxu0 0
        %7972 = vmatprep.mubr.bf16.mxu0 0
        %7973 = vmatmul.mubr.bf16.gmra.mxu0 %v2001
        %v7974 = vpop.f32.mrf.mxu0
        %v7975 = vadd.f32 %v1512, %v7974
        %v7976 = vpop.f32.mrf.mxu0
        %v7977 = vadd.f32 %v1516, %v7976
        %v7978 = vpop.f32.mrf.mxu0
        %v7979 = vadd.f32 %v1512, %v7978
        %v7980 = vpop.f32.mrf.mxu0
        %v7981 = vadd.f32 %v1516, %v7980
        %7982 = vdwg.mxu0
        %7983 = vmatprep.subr.bf16.mxu0 %v6012
        %7984 = vmatpush1.bf16.msra.mxu0 %v6011
        %7985 = vmatprep.subr.bf16.mxu0 %v5884
        %7986 = vmatpush1.bf16.msra.mxu0 %v5883
        %7987 = vmatprep.subr.bf16.mxu0 %v5756
        %7988 = vmatpush1.bf16.msra.mxu0 %v5755
        %7989 = vmatprep.subr.bf16.mxu0 %v5628
        %7990 = vmatpush1.bf16.msra.mxu0 %v5627
        %7991 = vmatprep.subr.bf16.mxu0 %v5500
        %7992 = vmatpush1.bf16.msra.mxu0 %v5499
        %7993 = vmatprep.subr.bf16.mxu0 %v5372
        %7994 = vmatpush1.bf16.msra.mxu0 %v5371
        %7995 = vmatprep.subr.bf16.mxu0 %v5244
        %7996 = vmatpush1.bf16.msra.mxu0 %v5243
        %7997 = vmatprep.subr.bf16.mxu0 %v5116
        %7998 = vmatpush1.bf16.msra.mxu0 %v5115
        %7999 = vmatprep.subr.bf16.mxu0 0
        %8000 = vmatpush2.bf16.msra.mxu0 0
        %8001 = vmatprep.subr.bf16.mxu0 0
        %8002 = vmatpush2.bf16.msra.mxu0 0
        %8003 = vmatprep.subr.bf16.mxu0 0
        %8004 = vmatpush2.bf16.msra.mxu0 0
        %8005 = vmatprep.subr.bf16.mxu0 0
        %8006 = vmatpush2.bf16.msra.mxu0 0
        %8007 = vmatprep.subr.bf16.mxu0 0
        %8008 = vmatpush2.bf16.msra.mxu0 0
        %8009 = vmatprep.subr.bf16.mxu0 0
        %8010 = vmatpush2.bf16.msra.mxu0 0
        %8011 = vmatprep.subr.bf16.mxu0 0
        %8012 = vmatpush2.bf16.msra.mxu0 0
        %8013 = vmatprep.subr.bf16.mxu0 0
        %8014 = vmatpush2.bf16.msra.mxu0 0
        %8015 = vmatprep.mubr.bf16.mxu0 0
        %8016 = vmatmul.mubr.bf16.gmra.mxu0 %v2001
        %v8017 = vpop.f32.mrf.mxu0
        %v8018 = vadd.f32 %v1520, %v8017
        %v8019 = vpop.f32.mrf.mxu0
        %v8020 = vadd.f32 %v1524, %v8019
        %v8021 = vpop.f32.mrf.mxu0
        %v8022 = vadd.f32 %v1520, %v8021
        %v8023 = vpop.f32.mrf.mxu0
        %v8024 = vadd.f32 %v1524, %v8023
        %8025 = vdwg.mxu0
        %8026 = vmatprep.subr.bf16.mxu0 %v6014
        %8027 = vmatpush1.bf16.msra.mxu0 %v6013
        %8028 = vmatprep.subr.bf16.mxu0 %v5886
        %8029 = vmatpush1.bf16.msra.mxu0 %v5885
        %8030 = vmatprep.subr.bf16.mxu0 %v5758
        %8031 = vmatpush1.bf16.msra.mxu0 %v5757
        %8032 = vmatprep.subr.bf16.mxu0 %v5630
        %8033 = vmatpush1.bf16.msra.mxu0 %v5629
        %8034 = vmatprep.subr.bf16.mxu0 %v5502
        %8035 = vmatpush1.bf16.msra.mxu0 %v5501
        %8036 = vmatprep.subr.bf16.mxu0 %v5374
        %8037 = vmatpush1.bf16.msra.mxu0 %v5373
        %8038 = vmatprep.subr.bf16.mxu0 %v5246
        %8039 = vmatpush1.bf16.msra.mxu0 %v5245
        %8040 = vmatprep.subr.bf16.mxu0 %v5118
        %8041 = vmatpush1.bf16.msra.mxu0 %v5117
        %8042 = vmatprep.subr.bf16.mxu0 0
        %8043 = vmatpush2.bf16.msra.mxu0 0
        %8044 = vmatprep.subr.bf16.mxu0 0
        %8045 = vmatpush2.bf16.msra.mxu0 0
        %8046 = vmatprep.subr.bf16.mxu0 0
        %8047 = vmatpush2.bf16.msra.mxu0 0
        %8048 = vmatprep.subr.bf16.mxu0 0
        %8049 = vmatpush2.bf16.msra.mxu0 0
        %8050 = vmatprep.subr.bf16.mxu0 0
        %8051 = vmatpush2.bf16.msra.mxu0 0
        %8052 = vmatprep.subr.bf16.mxu0 0
        %8053 = vmatpush2.bf16.msra.mxu0 0
        %8054 = vmatprep.subr.bf16.mxu0 0
        %8055 = vmatpush2.bf16.msra.mxu0 0
        %8056 = vmatprep.subr.bf16.mxu0 0
        %8057 = vmatpush2.bf16.msra.mxu0 0
        %8058 = vmatprep.mubr.bf16.mxu0 0
        %8059 = vmatmul.mubr.bf16.gmra.mxu0 %v2001
        %v8060 = vpop.f32.mrf.mxu0
        %v8061 = vadd.f32 %v1528, %v8060
        %v8062 = vpop.f32.mrf.mxu0
        %v8063 = vadd.f32 %v1532, %v8062
        %v8064 = vpop.f32.mrf.mxu0
        %v8065 = vadd.f32 %v1528, %v8064
        %v8066 = vpop.f32.mrf.mxu0
        %v8067 = vadd.f32 %v1532, %v8066
        %8068 = vdwg.mxu0
        %8069 = vmatprep.subr.bf16.mxu0 %v6016
        %8070 = vmatpush1.bf16.msra.mxu0 %v6015
        %8071 = vmatprep.subr.bf16.mxu0 %v5888
        %8072 = vmatpush1.bf16.msra.mxu0 %v5887
        %8073 = vmatprep.subr.bf16.mxu0 %v5760
        %8074 = vmatpush1.bf16.msra.mxu0 %v5759
        %8075 = vmatprep.subr.bf16.mxu0 %v5632
        %8076 = vmatpush1.bf16.msra.mxu0 %v5631
        %8077 = vmatprep.subr.bf16.mxu0 %v5504
        %8078 = vmatpush1.bf16.msra.mxu0 %v5503
        %8079 = vmatprep.subr.bf16.mxu0 %v5376
        %8080 = vmatpush1.bf16.msra.mxu0 %v5375
        %8081 = vmatprep.subr.bf16.mxu0 %v5248
        %8082 = vmatpush1.bf16.msra.mxu0 %v5247
        %8083 = vmatprep.subr.bf16.mxu0 %v5120
        %8084 = vmatpush1.bf16.msra.mxu0 %v5119
        %8085 = vmatprep.subr.bf16.mxu0 0
        %8086 = vmatpush2.bf16.msra.mxu0 0
        %8087 = vmatprep.subr.bf16.mxu0 0
        %8088 = vmatpush2.bf16.msra.mxu0 0
        %8089 = vmatprep.subr.bf16.mxu0 0
        %8090 = vmatpush2.bf16.msra.mxu0 0
        %8091 = vmatprep.subr.bf16.mxu0 0
        %8092 = vmatpush2.bf16.msra.mxu0 0
        %8093 = vmatprep.subr.bf16.mxu0 0
        %8094 = vmatpush2.bf16.msra.mxu0 0
        %8095 = vmatprep.subr.bf16.mxu0 0
        %8096 = vmatpush2.bf16.msra.mxu0 0
        %8097 = vmatprep.subr.bf16.mxu0 0
        %8098 = vmatpush2.bf16.msra.mxu0 0
        %8099 = vmatprep.subr.bf16.mxu0 0
        %8100 = vmatpush2.bf16.msra.mxu0 0
        %8101 = vmatprep.mubr.bf16.mxu0 0
        %8102 = vmatmul.mubr.bf16.gmra.mxu0 %v2001
        %v8103 = vpop.f32.mrf.mxu0
        %v8104 = vadd.f32 %v1536, %v8103
        %v8105 = vpop.f32.mrf.mxu0
        %v8106 = vadd.f32 %v1540, %v8105
        %v8107 = vpop.f32.mrf.mxu0
        %v8108 = vadd.f32 %v1536, %v8107
        %v8109 = vpop.f32.mrf.mxu0
        %v8110 = vadd.f32 %v1540, %v8109
        %8111 = vdwg.mxu0
        %8112 = vmatprep.subr.bf16.mxu0 %v6018
        %8113 = vmatpush1.bf16.msra.mxu0 %v6017
        %8114 = vmatprep.subr.bf16.mxu0 %v5890
        %8115 = vmatpush1.bf16.msra.mxu0 %v5889
        %8116 = vmatprep.subr.bf16.mxu0 %v5762
        %8117 = vmatpush1.bf16.msra.mxu0 %v5761
        %8118 = vmatprep.subr.bf16.mxu0 %v5634
        %8119 = vmatpush1.bf16.msra.mxu0 %v5633
        %8120 = vmatprep.subr.bf16.mxu0 %v5506
        %8121 = vmatpush1.bf16.msra.mxu0 %v5505
        %8122 = vmatprep.subr.bf16.mxu0 %v5378
        %8123 = vmatpush1.bf16.msra.mxu0 %v5377
        %8124 = vmatprep.subr.bf16.mxu0 %v5250
        %8125 = vmatpush1.bf16.msra.mxu0 %v5249
        %8126 = vmatprep.subr.bf16.mxu0 %v5122
        %8127 = vmatpush1.bf16.msra.mxu0 %v5121
        %8128 = vmatprep.subr.bf16.mxu0 0
        %8129 = vmatpush2.bf16.msra.mxu0 0
        %8130 = vmatprep.subr.bf16.mxu0 0
        %8131 = vmatpush2.bf16.msra.mxu0 0
        %8132 = vmatprep.subr.bf16.mxu0 0
        %8133 = vmatpush2.bf16.msra.mxu0 0
        %8134 = vmatprep.subr.bf16.mxu0 0
        %8135 = vmatpush2.bf16.msra.mxu0 0
        %8136 = vmatprep.subr.bf16.mxu0 0
        %8137 = vmatpush2.bf16.msra.mxu0 0
        %8138 = vmatprep.subr.bf16.mxu0 0
        %8139 = vmatpush2.bf16.msra.mxu0 0
        %8140 = vmatprep.subr.bf16.mxu0 0
        %8141 = vmatpush2.bf16.msra.mxu0 0
        %8142 = vmatprep.subr.bf16.mxu0 0
        %8143 = vmatpush2.bf16.msra.mxu0 0
        %8144 = vmatprep.mubr.bf16.mxu0 0
        %8145 = vmatmul.mubr.bf16.gmra.mxu0 %v2001
        %v8146 = vpop.f32.mrf.mxu0
        %v8147 = vadd.f32 %v1544, %v8146
        %v8148 = vpop.f32.mrf.mxu0
        %v8149 = vadd.f32 %v1548, %v8148
        %v8150 = vpop.f32.mrf.mxu0
        %v8151 = vadd.f32 %v1544, %v8150
        %v8152 = vpop.f32.mrf.mxu0
        %v8153 = vadd.f32 %v1548, %v8152
        %8154 = vdwg.mxu0
        %8155 = vmatprep.subr.bf16.mxu0 %v6020
        %8156 = vmatpush1.bf16.msra.mxu0 %v6019
        %8157 = vmatprep.subr.bf16.mxu0 %v5892
        %8158 = vmatpush1.bf16.msra.mxu0 %v5891
        %8159 = vmatprep.subr.bf16.mxu0 %v5764
        %8160 = vmatpush1.bf16.msra.mxu0 %v5763
        %8161 = vmatprep.subr.bf16.mxu0 %v5636
        %8162 = vmatpush1.bf16.msra.mxu0 %v5635
        %8163 = vmatprep.subr.bf16.mxu0 %v5508
        %8164 = vmatpush1.bf16.msra.mxu0 %v5507
        %8165 = vmatprep.subr.bf16.mxu0 %v5380
        %8166 = vmatpush1.bf16.msra.mxu0 %v5379
        %8167 = vmatprep.subr.bf16.mxu0 %v5252
        %8168 = vmatpush1.bf16.msra.mxu0 %v5251
        %8169 = vmatprep.subr.bf16.mxu0 %v5124
        %8170 = vmatpush1.bf16.msra.mxu0 %v5123
        %8171 = vmatprep.subr.bf16.mxu0 0
        %8172 = vmatpush2.bf16.msra.mxu0 0
        %8173 = vmatprep.subr.bf16.mxu0 0
        %8174 = vmatpush2.bf16.msra.mxu0 0
        %8175 = vmatprep.subr.bf16.mxu0 0
        %8176 = vmatpush2.bf16.msra.mxu0 0
        %8177 = vmatprep.subr.bf16.mxu0 0
        %8178 = vmatpush2.bf16.msra.mxu0 0
        %8179 = vmatprep.subr.bf16.mxu0 0
        %8180 = vmatpush2.bf16.msra.mxu0 0
        %8181 = vmatprep.subr.bf16.mxu0 0
        %8182 = vmatpush2.bf16.msra.mxu0 0
        %8183 = vmatprep.subr.bf16.mxu0 0
        %8184 = vmatpush2.bf16.msra.mxu0 0
        %8185 = vmatprep.subr.bf16.mxu0 0
        %8186 = vmatpush2.bf16.msra.mxu0 0
        %8187 = vmatprep.mubr.bf16.mxu0 0
        %8188 = vmatmul.mubr.bf16.gmra.mxu0 %v2001
        %v8189 = vpop.f32.mrf.mxu0
        %v8190 = vadd.f32 %v1552, %v8189
        %v8191 = vpop.f32.mrf.mxu0
        %v8192 = vadd.f32 %v1556, %v8191
        %v8193 = vpop.f32.mrf.mxu0
        %v8194 = vadd.f32 %v1552, %v8193
        %v8195 = vpop.f32.mrf.mxu0
        %v8196 = vadd.f32 %v1556, %v8195
        %8197 = vdwg.mxu0
        %8198 = vmatprep.subr.bf16.mxu0 %v6022
        %8199 = vmatpush1.bf16.msra.mxu0 %v6021
        %8200 = vmatprep.subr.bf16.mxu0 %v5894
        %8201 = vmatpush1.bf16.msra.mxu0 %v5893
        %8202 = vmatprep.subr.bf16.mxu0 %v5766
        %8203 = vmatpush1.bf16.msra.mxu0 %v5765
        %8204 = vmatprep.subr.bf16.mxu0 %v5638
        %8205 = vmatpush1.bf16.msra.mxu0 %v5637
        %8206 = vmatprep.subr.bf16.mxu0 %v5510
        %8207 = vmatpush1.bf16.msra.mxu0 %v5509
        %8208 = vmatprep.subr.bf16.mxu0 %v5382
        %8209 = vmatpush1.bf16.msra.mxu0 %v5381
        %8210 = vmatprep.subr.bf16.mxu0 %v5254
        %8211 = vmatpush1.bf16.msra.mxu0 %v5253
        %8212 = vmatprep.subr.bf16.mxu0 %v5126
        %8213 = vmatpush1.bf16.msra.mxu0 %v5125
        %8214 = vmatprep.subr.bf16.mxu0 0
        %8215 = vmatpush2.bf16.msra.mxu0 0
        %8216 = vmatprep.subr.bf16.mxu0 0
        %8217 = vmatpush2.bf16.msra.mxu0 0
        %8218 = vmatprep.subr.bf16.mxu0 0
        %8219 = vmatpush2.bf16.msra.mxu0 0
        %8220 = vmatprep.subr.bf16.mxu0 0
        %8221 = vmatpush2.bf16.msra.mxu0 0
        %8222 = vmatprep.subr.bf16.mxu0 0
        %8223 = vmatpush2.bf16.msra.mxu0 0
        %8224 = vmatprep.subr.bf16.mxu0 0
        %8225 = vmatpush2.bf16.msra.mxu0 0
        %8226 = vmatprep.subr.bf16.mxu0 0
        %8227 = vmatpush2.bf16.msra.mxu0 0
        %8228 = vmatprep.subr.bf16.mxu0 0
        %8229 = vmatpush2.bf16.msra.mxu0 0
        %8230 = vmatprep.mubr.bf16.mxu0 0
        %8231 = vmatmul.mubr.bf16.gmra.mxu0 %v2001
        %v8232 = vpop.f32.mrf.mxu0
        %v8233 = vadd.f32 %v1560, %v8232
        %v8234 = vpop.f32.mrf.mxu0
        %v8235 = vadd.f32 %v1564, %v8234
        %v8236 = vpop.f32.mrf.mxu0
        %v8237 = vadd.f32 %v1560, %v8236
        %v8238 = vpop.f32.mrf.mxu0
        %v8239 = vadd.f32 %v1564, %v8238
        %8240 = vdwg.mxu0
        %8241 = vmatprep.subr.bf16.mxu0 %v6024
        %8242 = vmatpush1.bf16.msra.mxu0 %v6023
        %8243 = vmatprep.subr.bf16.mxu0 %v5896
        %8244 = vmatpush1.bf16.msra.mxu0 %v5895
        %8245 = vmatprep.subr.bf16.mxu0 %v5768
        %8246 = vmatpush1.bf16.msra.mxu0 %v5767
        %8247 = vmatprep.subr.bf16.mxu0 %v5640
        %8248 = vmatpush1.bf16.msra.mxu0 %v5639
        %8249 = vmatprep.subr.bf16.mxu0 %v5512
        %8250 = vmatpush1.bf16.msra.mxu0 %v5511
        %8251 = vmatprep.subr.bf16.mxu0 %v5384
        %8252 = vmatpush1.bf16.msra.mxu0 %v5383
        %8253 = vmatprep.subr.bf16.mxu0 %v5256
        %8254 = vmatpush1.bf16.msra.mxu0 %v5255
        %8255 = vmatprep.subr.bf16.mxu0 %v5128
        %8256 = vmatpush1.bf16.msra.mxu0 %v5127
        %8257 = vmatprep.subr.bf16.mxu0 0
        %8258 = vmatpush2.bf16.msra.mxu0 0
        %8259 = vmatprep.subr.bf16.mxu0 0
        %8260 = vmatpush2.bf16.msra.mxu0 0
        %8261 = vmatprep.subr.bf16.mxu0 0
        %8262 = vmatpush2.bf16.msra.mxu0 0
        %8263 = vmatprep.subr.bf16.mxu0 0
        %8264 = vmatpush2.bf16.msra.mxu0 0
        %8265 = vmatprep.subr.bf16.mxu0 0
        %8266 = vmatpush2.bf16.msra.mxu0 0
        %8267 = vmatprep.subr.bf16.mxu0 0
        %8268 = vmatpush2.bf16.msra.mxu0 0
        %8269 = vmatprep.subr.bf16.mxu0 0
        %8270 = vmatpush2.bf16.msra.mxu0 0
        %8271 = vmatprep.subr.bf16.mxu0 0
        %8272 = vmatpush2.bf16.msra.mxu0 0
        %8273 = vmatprep.mubr.bf16.mxu0 0
        %8274 = vmatmul.mubr.bf16.gmra.mxu0 %v2001
        %v8275 = vpop.f32.mrf.mxu0
        %v8276 = vadd.f32 %v1568, %v8275
        %v8277 = vpop.f32.mrf.mxu0
        %v8278 = vadd.f32 %v1572, %v8277
        %v8279 = vpop.f32.mrf.mxu0
        %v8280 = vadd.f32 %v1568, %v8279
        %v8281 = vpop.f32.mrf.mxu0
        %v8282 = vadd.f32 %v1572, %v8281
        %8283 = vdwg.mxu0
        %8284 = vmatprep.subr.bf16.mxu0 %v6026
        %8285 = vmatpush1.bf16.msra.mxu0 %v6025
        %8286 = vmatprep.subr.bf16.mxu0 %v5898
        %8287 = vmatpush1.bf16.msra.mxu0 %v5897
        %8288 = vmatprep.subr.bf16.mxu0 %v5770
        %8289 = vmatpush1.bf16.msra.mxu0 %v5769
        %8290 = vmatprep.subr.bf16.mxu0 %v5642
        %8291 = vmatpush1.bf16.msra.mxu0 %v5641
        %8292 = vmatprep.subr.bf16.mxu0 %v5514
        %8293 = vmatpush1.bf16.msra.mxu0 %v5513
        %8294 = vmatprep.subr.bf16.mxu0 %v5386
        %8295 = vmatpush1.bf16.msra.mxu0 %v5385
        %8296 = vmatprep.subr.bf16.mxu0 %v5258
        %8297 = vmatpush1.bf16.msra.mxu0 %v5257
        %8298 = vmatprep.subr.bf16.mxu0 %v5130
        %8299 = vmatpush1.bf16.msra.mxu0 %v5129
        %8300 = vmatprep.subr.bf16.mxu0 0
        %8301 = vmatpush2.bf16.msra.mxu0 0
        %8302 = vmatprep.subr.bf16.mxu0 0
        %8303 = vmatpush2.bf16.msra.mxu0 0
        %8304 = vmatprep.subr.bf16.mxu0 0
        %8305 = vmatpush2.bf16.msra.mxu0 0
        %8306 = vmatprep.subr.bf16.mxu0 0
        %8307 = vmatpush2.bf16.msra.mxu0 0
        %8308 = vmatprep.subr.bf16.mxu0 0
        %8309 = vmatpush2.bf16.msra.mxu0 0
        %8310 = vmatprep.subr.bf16.mxu0 0
        %8311 = vmatpush2.bf16.msra.mxu0 0
        %8312 = vmatprep.subr.bf16.mxu0 0
        %8313 = vmatpush2.bf16.msra.mxu0 0
        %8314 = vmatprep.subr.bf16.mxu0 0
        %8315 = vmatpush2.bf16.msra.mxu0 0
        %8316 = vmatprep.mubr.bf16.mxu0 0
        %8317 = vmatmul.mubr.bf16.gmra.mxu0 %v2001
        %v8318 = vpop.f32.mrf.mxu0
        %v8319 = vadd.f32 %v1576, %v8318
        %v8320 = vpop.f32.mrf.mxu0
        %v8321 = vadd.f32 %v1580, %v8320
        %v8322 = vpop.f32.mrf.mxu0
        %v8323 = vadd.f32 %v1576, %v8322
        %v8324 = vpop.f32.mrf.mxu0
        %v8325 = vadd.f32 %v1580, %v8324
        %8326 = vdwg.mxu0
        %8327 = vmatprep.subr.bf16.mxu0 %v6028
        %8328 = vmatpush1.bf16.msra.mxu0 %v6027
        %8329 = vmatprep.subr.bf16.mxu0 %v5900
        %8330 = vmatpush1.bf16.msra.mxu0 %v5899
        %8331 = vmatprep.subr.bf16.mxu0 %v5772
        %8332 = vmatpush1.bf16.msra.mxu0 %v5771
        %8333 = vmatprep.subr.bf16.mxu0 %v5644
        %8334 = vmatpush1.bf16.msra.mxu0 %v5643
        %8335 = vmatprep.subr.bf16.mxu0 %v5516
        %8336 = vmatpush1.bf16.msra.mxu0 %v5515
        %8337 = vmatprep.subr.bf16.mxu0 %v5388
        %8338 = vmatpush1.bf16.msra.mxu0 %v5387
        %8339 = vmatprep.subr.bf16.mxu0 %v5260
        %8340 = vmatpush1.bf16.msra.mxu0 %v5259
        %8341 = vmatprep.subr.bf16.mxu0 %v5132
        %8342 = vmatpush1.bf16.msra.mxu0 %v5131
        %8343 = vmatprep.subr.bf16.mxu0 0
        %8344 = vmatpush2.bf16.msra.mxu0 0
        %8345 = vmatprep.subr.bf16.mxu0 0
        %8346 = vmatpush2.bf16.msra.mxu0 0
        %8347 = vmatprep.subr.bf16.mxu0 0
        %8348 = vmatpush2.bf16.msra.mxu0 0
        %8349 = vmatprep.subr.bf16.mxu0 0
        %8350 = vmatpush2.bf16.msra.mxu0 0
        %8351 = vmatprep.subr.bf16.mxu0 0
        %8352 = vmatpush2.bf16.msra.mxu0 0
        %8353 = vmatprep.subr.bf16.mxu0 0
        %8354 = vmatpush2.bf16.msra.mxu0 0
        %8355 = vmatprep.subr.bf16.mxu0 0
        %8356 = vmatpush2.bf16.msra.mxu0 0
        %8357 = vmatprep.subr.bf16.mxu0 0
        %8358 = vmatpush2.bf16.msra.mxu0 0
        %8359 = vmatprep.mubr.bf16.mxu0 0
        %8360 = vmatmul.mubr.bf16.gmra.mxu0 %v2001
        %v8361 = vpop.f32.mrf.mxu0
        %v8362 = vadd.f32 %v1584, %v8361
        %v8363 = vpop.f32.mrf.mxu0
        %v8364 = vadd.f32 %v1588, %v8363
        %v8365 = vpop.f32.mrf.mxu0
        %v8366 = vadd.f32 %v1584, %v8365
        %v8367 = vpop.f32.mrf.mxu0
        %v8368 = vadd.f32 %v1588, %v8367
        %8369 = vdwg.mxu0
        %8370 = vmatprep.subr.bf16.mxu0 %v6030
        %8371 = vmatpush1.bf16.msra.mxu0 %v6029
        %8372 = vmatprep.subr.bf16.mxu0 %v5902
        %8373 = vmatpush1.bf16.msra.mxu0 %v5901
        %8374 = vmatprep.subr.bf16.mxu0 %v5774
        %8375 = vmatpush1.bf16.msra.mxu0 %v5773
        %8376 = vmatprep.subr.bf16.mxu0 %v5646
        %8377 = vmatpush1.bf16.msra.mxu0 %v5645
        %8378 = vmatprep.subr.bf16.mxu0 %v5518
        %8379 = vmatpush1.bf16.msra.mxu0 %v5517
        %8380 = vmatprep.subr.bf16.mxu0 %v5390
        %8381 = vmatpush1.bf16.msra.mxu0 %v5389
        %8382 = vmatprep.subr.bf16.mxu0 %v5262
        %8383 = vmatpush1.bf16.msra.mxu0 %v5261
        %8384 = vmatprep.subr.bf16.mxu0 %v5134
        %8385 = vmatpush1.bf16.msra.mxu0 %v5133
        %8386 = vmatprep.subr.bf16.mxu0 0
        %8387 = vmatpush2.bf16.msra.mxu0 0
        %8388 = vmatprep.subr.bf16.mxu0 0
        %8389 = vmatpush2.bf16.msra.mxu0 0
        %8390 = vmatprep.subr.bf16.mxu0 0
        %8391 = vmatpush2.bf16.msra.mxu0 0
        %8392 = vmatprep.subr.bf16.mxu0 0
        %8393 = vmatpush2.bf16.msra.mxu0 0
        %8394 = vmatprep.subr.bf16.mxu0 0
        %8395 = vmatpush2.bf16.msra.mxu0 0
        %8396 = vmatprep.subr.bf16.mxu0 0
        %8397 = vmatpush2.bf16.msra.mxu0 0
        %8398 = vmatprep.subr.bf16.mxu0 0
        %8399 = vmatpush2.bf16.msra.mxu0 0
        %8400 = vmatprep.subr.bf16.mxu0 0
        %8401 = vmatpush2.bf16.msra.mxu0 0
        %8402 = vmatprep.mubr.bf16.mxu0 0
        %8403 = vmatmul.mubr.bf16.gmra.mxu0 %v2001
        %v8404 = vpop.f32.mrf.mxu0
        %v8405 = vadd.f32 %v1592, %v8404
        %v8406 = vpop.f32.mrf.mxu0
        %v8407 = vadd.f32 %v1596, %v8406
        %v8408 = vpop.f32.mrf.mxu0
        %v8409 = vadd.f32 %v1592, %v8408
        %v8410 = vpop.f32.mrf.mxu0
        %v8411 = vadd.f32 %v1596, %v8410
        %8412 = vdwg.mxu0
        %8413 = vmatprep.subr.bf16.mxu0 %v6032
        %8414 = vmatpush1.bf16.msra.mxu0 %v6031
        %8415 = vmatprep.subr.bf16.mxu0 %v5904
        %8416 = vmatpush1.bf16.msra.mxu0 %v5903
        %8417 = vmatprep.subr.bf16.mxu0 %v5776
        %8418 = vmatpush1.bf16.msra.mxu0 %v5775
        %8419 = vmatprep.subr.bf16.mxu0 %v5648
        %8420 = vmatpush1.bf16.msra.mxu0 %v5647
        %8421 = vmatprep.subr.bf16.mxu0 %v5520
        %8422 = vmatpush1.bf16.msra.mxu0 %v5519
        %8423 = vmatprep.subr.bf16.mxu0 %v5392
        %8424 = vmatpush1.bf16.msra.mxu0 %v5391
        %8425 = vmatprep.subr.bf16.mxu0 %v5264
        %8426 = vmatpush1.bf16.msra.mxu0 %v5263
        %8427 = vmatprep.subr.bf16.mxu0 %v5136
        %8428 = vmatpush1.bf16.msra.mxu0 %v5135
        %8429 = vmatprep.subr.bf16.mxu0 0
        %8430 = vmatpush2.bf16.msra.mxu0 0
        %8431 = vmatprep.subr.bf16.mxu0 0
        %8432 = vmatpush2.bf16.msra.mxu0 0
        %8433 = vmatprep.subr.bf16.mxu0 0
        %8434 = vmatpush2.bf16.msra.mxu0 0
        %8435 = vmatprep.subr.bf16.mxu0 0
        %8436 = vmatpush2.bf16.msra.mxu0 0
        %8437 = vmatprep.subr.bf16.mxu0 0
        %8438 = vmatpush2.bf16.msra.mxu0 0
        %8439 = vmatprep.subr.bf16.mxu0 0
        %8440 = vmatpush2.bf16.msra.mxu0 0
        %8441 = vmatprep.subr.bf16.mxu0 0
        %8442 = vmatpush2.bf16.msra.mxu0 0
        %8443 = vmatprep.subr.bf16.mxu0 0
        %8444 = vmatpush2.bf16.msra.mxu0 0
        %8445 = vmatprep.mubr.bf16.mxu0 0
        %8446 = vmatmul.mubr.bf16.gmra.mxu0 %v2001
        %v8447 = vpop.f32.mrf.mxu0
        %v8448 = vadd.f32 %v1600, %v8447
        %v8449 = vpop.f32.mrf.mxu0
        %v8450 = vadd.f32 %v1604, %v8449
        %v8451 = vpop.f32.mrf.mxu0
        %v8452 = vadd.f32 %v1600, %v8451
        %v8453 = vpop.f32.mrf.mxu0
        %v8454 = vadd.f32 %v1604, %v8453
        %8455 = vdwg.mxu0
        %8456 = vmatprep.subr.bf16.mxu0 %v6034
        %8457 = vmatpush1.bf16.msra.mxu0 %v6033
        %8458 = vmatprep.subr.bf16.mxu0 %v5906
        %8459 = vmatpush1.bf16.msra.mxu0 %v5905
        %8460 = vmatprep.subr.bf16.mxu0 %v5778
        %8461 = vmatpush1.bf16.msra.mxu0 %v5777
        %8462 = vmatprep.subr.bf16.mxu0 %v5650
        %8463 = vmatpush1.bf16.msra.mxu0 %v5649
        %8464 = vmatprep.subr.bf16.mxu0 %v5522
        %8465 = vmatpush1.bf16.msra.mxu0 %v5521
        %8466 = vmatprep.subr.bf16.mxu0 %v5394
        %8467 = vmatpush1.bf16.msra.mxu0 %v5393
        %8468 = vmatprep.subr.bf16.mxu0 %v5266
        %8469 = vmatpush1.bf16.msra.mxu0 %v5265
        %8470 = vmatprep.subr.bf16.mxu0 %v5138
        %8471 = vmatpush1.bf16.msra.mxu0 %v5137
        %8472 = vmatprep.subr.bf16.mxu0 0
        %8473 = vmatpush2.bf16.msra.mxu0 0
        %8474 = vmatprep.subr.bf16.mxu0 0
        %8475 = vmatpush2.bf16.msra.mxu0 0
        %8476 = vmatprep.subr.bf16.mxu0 0
        %8477 = vmatpush2.bf16.msra.mxu0 0
        %8478 = vmatprep.subr.bf16.mxu0 0
        %8479 = vmatpush2.bf16.msra.mxu0 0
        %8480 = vmatprep.subr.bf16.mxu0 0
        %8481 = vmatpush2.bf16.msra.mxu0 0
        %8482 = vmatprep.subr.bf16.mxu0 0
        %8483 = vmatpush2.bf16.msra.mxu0 0
        %8484 = vmatprep.subr.bf16.mxu0 0
        %8485 = vmatpush2.bf16.msra.mxu0 0
        %8486 = vmatprep.subr.bf16.mxu0 0
        %8487 = vmatpush2.bf16.msra.mxu0 0
        %8488 = vmatprep.mubr.bf16.mxu0 0
        %8489 = vmatmul.mubr.bf16.gmra.mxu0 %v2001
        %v8490 = vpop.f32.mrf.mxu0
        %v8491 = vadd.f32 %v1608, %v8490
        %v8492 = vpop.f32.mrf.mxu0
        %v8493 = vadd.f32 %v1612, %v8492
        %v8494 = vpop.f32.mrf.mxu0
        %v8495 = vadd.f32 %v1608, %v8494
        %v8496 = vpop.f32.mrf.mxu0
        %v8497 = vadd.f32 %v1612, %v8496
        %8498 = vdwg.mxu0
        %8499 = vmatprep.subr.bf16.mxu0 %v6036
        %8500 = vmatpush1.bf16.msra.mxu0 %v6035
        %8501 = vmatprep.subr.bf16.mxu0 %v5908
        %8502 = vmatpush1.bf16.msra.mxu0 %v5907
        %8503 = vmatprep.subr.bf16.mxu0 %v5780
        %8504 = vmatpush1.bf16.msra.mxu0 %v5779
        %8505 = vmatprep.subr.bf16.mxu0 %v5652
        %8506 = vmatpush1.bf16.msra.mxu0 %v5651
        %8507 = vmatprep.subr.bf16.mxu0 %v5524
        %8508 = vmatpush1.bf16.msra.mxu0 %v5523
        %8509 = vmatprep.subr.bf16.mxu0 %v5396
        %8510 = vmatpush1.bf16.msra.mxu0 %v5395
        %8511 = vmatprep.subr.bf16.mxu0 %v5268
        %8512 = vmatpush1.bf16.msra.mxu0 %v5267
        %8513 = vmatprep.subr.bf16.mxu0 %v5140
        %8514 = vmatpush1.bf16.msra.mxu0 %v5139
        %8515 = vmatprep.subr.bf16.mxu0 0
        %8516 = vmatpush2.bf16.msra.mxu0 0
        %8517 = vmatprep.subr.bf16.mxu0 0
        %8518 = vmatpush2.bf16.msra.mxu0 0
        %8519 = vmatprep.subr.bf16.mxu0 0
        %8520 = vmatpush2.bf16.msra.mxu0 0
        %8521 = vmatprep.subr.bf16.mxu0 0
        %8522 = vmatpush2.bf16.msra.mxu0 0
        %8523 = vmatprep.subr.bf16.mxu0 0
        %8524 = vmatpush2.bf16.msra.mxu0 0
        %8525 = vmatprep.subr.bf16.mxu0 0
        %8526 = vmatpush2.bf16.msra.mxu0 0
        %8527 = vmatprep.subr.bf16.mxu0 0
        %8528 = vmatpush2.bf16.msra.mxu0 0
        %8529 = vmatprep.subr.bf16.mxu0 0
        %8530 = vmatpush2.bf16.msra.mxu0 0
        %8531 = vmatprep.mubr.bf16.mxu0 0
        %8532 = vmatmul.mubr.bf16.gmra.mxu0 %v2001
        %v8533 = vpop.f32.mrf.mxu0
        %v8534 = vadd.f32 %v1616, %v8533
        %v8535 = vpop.f32.mrf.mxu0
        %v8536 = vadd.f32 %v1620, %v8535
        %v8537 = vpop.f32.mrf.mxu0
        %v8538 = vadd.f32 %v1616, %v8537
        %v8539 = vpop.f32.mrf.mxu0
        %v8540 = vadd.f32 %v1620, %v8539
        %8541 = vdwg.mxu0
        %8542 = vmatprep.subr.bf16.mxu0 %v6038
        %8543 = vmatpush1.bf16.msra.mxu0 %v6037
        %8544 = vmatprep.subr.bf16.mxu0 %v5910
        %8545 = vmatpush1.bf16.msra.mxu0 %v5909
        %8546 = vmatprep.subr.bf16.mxu0 %v5782
        %8547 = vmatpush1.bf16.msra.mxu0 %v5781
        %8548 = vmatprep.subr.bf16.mxu0 %v5654
        %8549 = vmatpush1.bf16.msra.mxu0 %v5653
        %8550 = vmatprep.subr.bf16.mxu0 %v5526
        %8551 = vmatpush1.bf16.msra.mxu0 %v5525
        %8552 = vmatprep.subr.bf16.mxu0 %v5398
        %8553 = vmatpush1.bf16.msra.mxu0 %v5397
        %8554 = vmatprep.subr.bf16.mxu0 %v5270
        %8555 = vmatpush1.bf16.msra.mxu0 %v5269
        %8556 = vmatprep.subr.bf16.mxu0 %v5142
        %8557 = vmatpush1.bf16.msra.mxu0 %v5141
        %8558 = vmatprep.subr.bf16.mxu0 0
        %8559 = vmatpush2.bf16.msra.mxu0 0
        %8560 = vmatprep.subr.bf16.mxu0 0
        %8561 = vmatpush2.bf16.msra.mxu0 0
        %8562 = vmatprep.subr.bf16.mxu0 0
        %8563 = vmatpush2.bf16.msra.mxu0 0
        %8564 = vmatprep.subr.bf16.mxu0 0
        %8565 = vmatpush2.bf16.msra.mxu0 0
        %8566 = vmatprep.subr.bf16.mxu0 0
        %8567 = vmatpush2.bf16.msra.mxu0 0
        %8568 = vmatprep.subr.bf16.mxu0 0
        %8569 = vmatpush2.bf16.msra.mxu0 0
        %8570 = vmatprep.subr.bf16.mxu0 0
        %8571 = vmatpush2.bf16.msra.mxu0 0
        %8572 = vmatprep.subr.bf16.mxu0 0
        %8573 = vmatpush2.bf16.msra.mxu0 0
        %8574 = vmatprep.mubr.bf16.mxu0 0
        %8575 = vmatmul.mubr.bf16.gmra.mxu0 %v2001
        %v8576 = vpop.f32.mrf.mxu0
        %v8577 = vadd.f32 %v1624, %v8576
        %v8578 = vpop.f32.mrf.mxu0
        %v8579 = vadd.f32 %v1628, %v8578
        %v8580 = vpop.f32.mrf.mxu0
        %v8581 = vadd.f32 %v1624, %v8580
        %v8582 = vpop.f32.mrf.mxu0
        %v8583 = vadd.f32 %v1628, %v8582
        %8584 = vdwg.mxu0
        %8585 = vmatprep.subr.bf16.mxu0 %v6040
        %8586 = vmatpush1.bf16.msra.mxu0 %v6039
        %8587 = vmatprep.subr.bf16.mxu0 %v5912
        %8588 = vmatpush1.bf16.msra.mxu0 %v5911
        %8589 = vmatprep.subr.bf16.mxu0 %v5784
        %8590 = vmatpush1.bf16.msra.mxu0 %v5783
        %8591 = vmatprep.subr.bf16.mxu0 %v5656
        %8592 = vmatpush1.bf16.msra.mxu0 %v5655
        %8593 = vmatprep.subr.bf16.mxu0 %v5528
        %8594 = vmatpush1.bf16.msra.mxu0 %v5527
        %8595 = vmatprep.subr.bf16.mxu0 %v5400
        %8596 = vmatpush1.bf16.msra.mxu0 %v5399
        %8597 = vmatprep.subr.bf16.mxu0 %v5272
        %8598 = vmatpush1.bf16.msra.mxu0 %v5271
        %8599 = vmatprep.subr.bf16.mxu0 %v5144
        %8600 = vmatpush1.bf16.msra.mxu0 %v5143
        %8601 = vmatprep.subr.bf16.mxu0 0
        %8602 = vmatpush2.bf16.msra.mxu0 0
        %8603 = vmatprep.subr.bf16.mxu0 0
        %8604 = vmatpush2.bf16.msra.mxu0 0
        %8605 = vmatprep.subr.bf16.mxu0 0
        %8606 = vmatpush2.bf16.msra.mxu0 0
        %8607 = vmatprep.subr.bf16.mxu0 0
        %8608 = vmatpush2.bf16.msra.mxu0 0
        %8609 = vmatprep.subr.bf16.mxu0 0
        %8610 = vmatpush2.bf16.msra.mxu0 0
        %8611 = vmatprep.subr.bf16.mxu0 0
        %8612 = vmatpush2.bf16.msra.mxu0 0
        %8613 = vmatprep.subr.bf16.mxu0 0
        %8614 = vmatpush2.bf16.msra.mxu0 0
        %8615 = vmatprep.subr.bf16.mxu0 0
        %8616 = vmatpush2.bf16.msra.mxu0 0
        %8617 = vmatprep.mubr.bf16.mxu0 0
        %8618 = vmatmul.mubr.bf16.gmra.mxu0 %v2001
        %v8619 = vpop.f32.mrf.mxu0
        %v8620 = vadd.f32 %v1632, %v8619
        %v8621 = vpop.f32.mrf.mxu0
        %v8622 = vadd.f32 %v1636, %v8621
        %v8623 = vpop.f32.mrf.mxu0
        %v8624 = vadd.f32 %v1632, %v8623
        %v8625 = vpop.f32.mrf.mxu0
        %v8626 = vadd.f32 %v1636, %v8625
        %8627 = vdwg.mxu0
        %8628 = vmatprep.subr.bf16.mxu0 %v6042
        %8629 = vmatpush1.bf16.msra.mxu0 %v6041
        %8630 = vmatprep.subr.bf16.mxu0 %v5914
        %8631 = vmatpush1.bf16.msra.mxu0 %v5913
        %8632 = vmatprep.subr.bf16.mxu0 %v5786
        %8633 = vmatpush1.bf16.msra.mxu0 %v5785
        %8634 = vmatprep.subr.bf16.mxu0 %v5658
        %8635 = vmatpush1.bf16.msra.mxu0 %v5657
        %8636 = vmatprep.subr.bf16.mxu0 %v5530
        %8637 = vmatpush1.bf16.msra.mxu0 %v5529
        %8638 = vmatprep.subr.bf16.mxu0 %v5402
        %8639 = vmatpush1.bf16.msra.mxu0 %v5401
        %8640 = vmatprep.subr.bf16.mxu0 %v5274
        %8641 = vmatpush1.bf16.msra.mxu0 %v5273
        %8642 = vmatprep.subr.bf16.mxu0 %v5146
        %8643 = vmatpush1.bf16.msra.mxu0 %v5145
        %8644 = vmatprep.subr.bf16.mxu0 0
        %8645 = vmatpush2.bf16.msra.mxu0 0
        %8646 = vmatprep.subr.bf16.mxu0 0
        %8647 = vmatpush2.bf16.msra.mxu0 0
        %8648 = vmatprep.subr.bf16.mxu0 0
        %8649 = vmatpush2.bf16.msra.mxu0 0
        %8650 = vmatprep.subr.bf16.mxu0 0
        %8651 = vmatpush2.bf16.msra.mxu0 0
        %8652 = vmatprep.subr.bf16.mxu0 0
        %8653 = vmatpush2.bf16.msra.mxu0 0
        %8654 = vmatprep.subr.bf16.mxu0 0
        %8655 = vmatpush2.bf16.msra.mxu0 0
        %8656 = vmatprep.subr.bf16.mxu0 0
        %8657 = vmatpush2.bf16.msra.mxu0 0
        %8658 = vmatprep.subr.bf16.mxu0 0
        %8659 = vmatpush2.bf16.msra.mxu0 0
        %8660 = vmatprep.mubr.bf16.mxu0 0
        %8661 = vmatmul.mubr.bf16.gmra.mxu0 %v2001
        %v8662 = vpop.f32.mrf.mxu0
        %v8663 = vadd.f32 %v1640, %v8662
        %v8664 = vpop.f32.mrf.mxu0
        %v8665 = vadd.f32 %v1644, %v8664
        %v8666 = vpop.f32.mrf.mxu0
        %v8667 = vadd.f32 %v1640, %v8666
        %v8668 = vpop.f32.mrf.mxu0
        %v8669 = vadd.f32 %v1644, %v8668
        %8670 = vdwg.mxu0
        %8671 = vmatprep.subr.bf16.mxu0 %v6044
        %8672 = vmatpush1.bf16.msra.mxu0 %v6043
        %8673 = vmatprep.subr.bf16.mxu0 %v5916
        %8674 = vmatpush1.bf16.msra.mxu0 %v5915
        %8675 = vmatprep.subr.bf16.mxu0 %v5788
        %8676 = vmatpush1.bf16.msra.mxu0 %v5787
        %8677 = vmatprep.subr.bf16.mxu0 %v5660
        %8678 = vmatpush1.bf16.msra.mxu0 %v5659
        %8679 = vmatprep.subr.bf16.mxu0 %v5532
        %8680 = vmatpush1.bf16.msra.mxu0 %v5531
        %8681 = vmatprep.subr.bf16.mxu0 %v5404
        %8682 = vmatpush1.bf16.msra.mxu0 %v5403
        %8683 = vmatprep.subr.bf16.mxu0 %v5276
        %8684 = vmatpush1.bf16.msra.mxu0 %v5275
        %8685 = vmatprep.subr.bf16.mxu0 %v5148
        %8686 = vmatpush1.bf16.msra.mxu0 %v5147
        %8687 = vmatprep.subr.bf16.mxu0 0
        %8688 = vmatpush2.bf16.msra.mxu0 0
        %8689 = vmatprep.subr.bf16.mxu0 0
        %8690 = vmatpush2.bf16.msra.mxu0 0
        %8691 = vmatprep.subr.bf16.mxu0 0
        %8692 = vmatpush2.bf16.msra.mxu0 0
        %8693 = vmatprep.subr.bf16.mxu0 0
        %8694 = vmatpush2.bf16.msra.mxu0 0
        %8695 = vmatprep.subr.bf16.mxu0 0
        %8696 = vmatpush2.bf16.msra.mxu0 0
        %8697 = vmatprep.subr.bf16.mxu0 0
        %8698 = vmatpush2.bf16.msra.mxu0 0
        %8699 = vmatprep.subr.bf16.mxu0 0
        %8700 = vmatpush2.bf16.msra.mxu0 0
        %8701 = vmatprep.subr.bf16.mxu0 0
        %8702 = vmatpush2.bf16.msra.mxu0 0
        %8703 = vmatprep.mubr.bf16.mxu0 0
        %8704 = vmatmul.mubr.bf16.gmra.mxu0 %v2001
        %v8705 = vpop.f32.mrf.mxu0
        %v8706 = vadd.f32 %v1648, %v8705
        %v8707 = vpop.f32.mrf.mxu0
        %v8708 = vadd.f32 %v1652, %v8707
        %v8709 = vpop.f32.mrf.mxu0
        %v8710 = vadd.f32 %v1648, %v8709
        %v8711 = vpop.f32.mrf.mxu0
        %v8712 = vadd.f32 %v1652, %v8711
        %8713 = vdwg.mxu0
        %8714 = vmatprep.subr.bf16.mxu0 %v6046
        %8715 = vmatpush1.bf16.msra.mxu0 %v6045
        %8716 = vmatprep.subr.bf16.mxu0 %v5918
        %8717 = vmatpush1.bf16.msra.mxu0 %v5917
        %8718 = vmatprep.subr.bf16.mxu0 %v5790
        %8719 = vmatpush1.bf16.msra.mxu0 %v5789
        %8720 = vmatprep.subr.bf16.mxu0 %v5662
        %8721 = vmatpush1.bf16.msra.mxu0 %v5661
        %8722 = vmatprep.subr.bf16.mxu0 %v5534
        %8723 = vmatpush1.bf16.msra.mxu0 %v5533
        %8724 = vmatprep.subr.bf16.mxu0 %v5406
        %8725 = vmatpush1.bf16.msra.mxu0 %v5405
        %8726 = vmatprep.subr.bf16.mxu0 %v5278
        %8727 = vmatpush1.bf16.msra.mxu0 %v5277
        %8728 = vmatprep.subr.bf16.mxu0 %v5150
        %8729 = vmatpush1.bf16.msra.mxu0 %v5149
        %8730 = vmatprep.subr.bf16.mxu0 0
        %8731 = vmatpush2.bf16.msra.mxu0 0
        %8732 = vmatprep.subr.bf16.mxu0 0
        %8733 = vmatpush2.bf16.msra.mxu0 0
        %8734 = vmatprep.subr.bf16.mxu0 0
        %8735 = vmatpush2.bf16.msra.mxu0 0
        %8736 = vmatprep.subr.bf16.mxu0 0
        %8737 = vmatpush2.bf16.msra.mxu0 0
        %8738 = vmatprep.subr.bf16.mxu0 0
        %8739 = vmatpush2.bf16.msra.mxu0 0
        %8740 = vmatprep.subr.bf16.mxu0 0
        %8741 = vmatpush2.bf16.msra.mxu0 0
        %8742 = vmatprep.subr.bf16.mxu0 0
        %8743 = vmatpush2.bf16.msra.mxu0 0
        %8744 = vmatprep.subr.bf16.mxu0 0
        %8745 = vmatpush2.bf16.msra.mxu0 0
        %8746 = vmatprep.mubr.bf16.mxu0 0
        %8747 = vmatmul.mubr.bf16.gmra.mxu0 %v2001
        %v8748 = vpop.f32.mrf.mxu0
        %v8749 = vadd.f32 %v1656, %v8748
        %v8750 = vpop.f32.mrf.mxu0
        %v8751 = vadd.f32 %v1660, %v8750
        %v8752 = vpop.f32.mrf.mxu0
        %v8753 = vadd.f32 %v1656, %v8752
        %v8754 = vpop.f32.mrf.mxu0
        %v8755 = vadd.f32 %v1660, %v8754
        %8756 = vdwg.mxu0
        %8757 = vmatprep.subr.bf16.mxu0 %v6048
        %8758 = vmatpush1.bf16.msra.mxu0 %v6047
        %8759 = vmatprep.subr.bf16.mxu0 %v5920
        %8760 = vmatpush1.bf16.msra.mxu0 %v5919
        %8761 = vmatprep.subr.bf16.mxu0 %v5792
        %8762 = vmatpush1.bf16.msra.mxu0 %v5791
        %8763 = vmatprep.subr.bf16.mxu0 %v5664
        %8764 = vmatpush1.bf16.msra.mxu0 %v5663
        %8765 = vmatprep.subr.bf16.mxu0 %v5536
        %8766 = vmatpush1.bf16.msra.mxu0 %v5535
        %8767 = vmatprep.subr.bf16.mxu0 %v5408
        %8768 = vmatpush1.bf16.msra.mxu0 %v5407
        %8769 = vmatprep.subr.bf16.mxu0 %v5280
        %8770 = vmatpush1.bf16.msra.mxu0 %v5279
        %8771 = vmatprep.subr.bf16.mxu0 %v5152
        %8772 = vmatpush1.bf16.msra.mxu0 %v5151
        %8773 = vmatprep.subr.bf16.mxu0 0
        %8774 = vmatpush2.bf16.msra.mxu0 0
        %8775 = vmatprep.subr.bf16.mxu0 0
        %8776 = vmatpush2.bf16.msra.mxu0 0
        %8777 = vmatprep.subr.bf16.mxu0 0
        %8778 = vmatpush2.bf16.msra.mxu0 0
        %8779 = vmatprep.subr.bf16.mxu0 0
        %8780 = vmatpush2.bf16.msra.mxu0 0
        %8781 = vmatprep.subr.bf16.mxu0 0
        %8782 = vmatpush2.bf16.msra.mxu0 0
        %8783 = vmatprep.subr.bf16.mxu0 0
        %8784 = vmatpush2.bf16.msra.mxu0 0
        %8785 = vmatprep.subr.bf16.mxu0 0
        %8786 = vmatpush2.bf16.msra.mxu0 0
        %8787 = vmatprep.subr.bf16.mxu0 0
        %8788 = vmatpush2.bf16.msra.mxu0 0
        %8789 = vmatprep.mubr.bf16.mxu0 0
        %8790 = vmatmul.mubr.bf16.gmra.mxu0 %v2001
        %v8791 = vpop.f32.mrf.mxu0
        %v8792 = vadd.f32 %v1664, %v8791
        %v8793 = vpop.f32.mrf.mxu0
        %v8794 = vadd.f32 %v1668, %v8793
        %v8795 = vpop.f32.mrf.mxu0
        %v8796 = vadd.f32 %v1664, %v8795
        %v8797 = vpop.f32.mrf.mxu0
        %v8798 = vadd.f32 %v1668, %v8797
        %8799 = vdwg.mxu0
        %8800 = vmatprep.subr.bf16.mxu0 %v6050
        %8801 = vmatpush1.bf16.msra.mxu0 %v6049
        %8802 = vmatprep.subr.bf16.mxu0 %v5922
        %8803 = vmatpush1.bf16.msra.mxu0 %v5921
        %8804 = vmatprep.subr.bf16.mxu0 %v5794
        %8805 = vmatpush1.bf16.msra.mxu0 %v5793
        %8806 = vmatprep.subr.bf16.mxu0 %v5666
        %8807 = vmatpush1.bf16.msra.mxu0 %v5665
        %8808 = vmatprep.subr.bf16.mxu0 %v5538
        %8809 = vmatpush1.bf16.msra.mxu0 %v5537
        %8810 = vmatprep.subr.bf16.mxu0 %v5410
        %8811 = vmatpush1.bf16.msra.mxu0 %v5409
        %8812 = vmatprep.subr.bf16.mxu0 %v5282
        %8813 = vmatpush1.bf16.msra.mxu0 %v5281
        %8814 = vmatprep.subr.bf16.mxu0 %v5154
        %8815 = vmatpush1.bf16.msra.mxu0 %v5153
        %8816 = vmatprep.subr.bf16.mxu0 0
        %8817 = vmatpush2.bf16.msra.mxu0 0
        %8818 = vmatprep.subr.bf16.mxu0 0
        %8819 = vmatpush2.bf16.msra.mxu0 0
        %8820 = vmatprep.subr.bf16.mxu0 0
        %8821 = vmatpush2.bf16.msra.mxu0 0
        %8822 = vmatprep.subr.bf16.mxu0 0
        %8823 = vmatpush2.bf16.msra.mxu0 0
        %8824 = vmatprep.subr.bf16.mxu0 0
        %8825 = vmatpush2.bf16.msra.mxu0 0
        %8826 = vmatprep.subr.bf16.mxu0 0
        %8827 = vmatpush2.bf16.msra.mxu0 0
        %8828 = vmatprep.subr.bf16.mxu0 0
        %8829 = vmatpush2.bf16.msra.mxu0 0
        %8830 = vmatprep.subr.bf16.mxu0 0
        %8831 = vmatpush2.bf16.msra.mxu0 0
        %8832 = vmatprep.mubr.bf16.mxu0 0
        %8833 = vmatmul.mubr.bf16.gmra.mxu0 %v2001
        %v8834 = vpop.f32.mrf.mxu0
        %v8835 = vadd.f32 %v1672, %v8834
        %v8836 = vpop.f32.mrf.mxu0
        %v8837 = vadd.f32 %v1676, %v8836
        %v8838 = vpop.f32.mrf.mxu0
        %v8839 = vadd.f32 %v1672, %v8838
        %v8840 = vpop.f32.mrf.mxu0
        %v8841 = vadd.f32 %v1676, %v8840
        %8842 = vdwg.mxu0
        %8843 = vmatprep.subr.bf16.mxu0 %v6052
        %8844 = vmatpush1.bf16.msra.mxu0 %v6051
        %8845 = vmatprep.subr.bf16.mxu0 %v5924
        %8846 = vmatpush1.bf16.msra.mxu0 %v5923
        %8847 = vmatprep.subr.bf16.mxu0 %v5796
        %8848 = vmatpush1.bf16.msra.mxu0 %v5795
        %8849 = vmatprep.subr.bf16.mxu0 %v5668
        %8850 = vmatpush1.bf16.msra.mxu0 %v5667
        %8851 = vmatprep.subr.bf16.mxu0 %v5540
        %8852 = vmatpush1.bf16.msra.mxu0 %v5539
        %8853 = vmatprep.subr.bf16.mxu0 %v5412
        %8854 = vmatpush1.bf16.msra.mxu0 %v5411
        %8855 = vmatprep.subr.bf16.mxu0 %v5284
        %8856 = vmatpush1.bf16.msra.mxu0 %v5283
        %8857 = vmatprep.subr.bf16.mxu0 %v5156
        %8858 = vmatpush1.bf16.msra.mxu0 %v5155
        %8859 = vmatprep.subr.bf16.mxu0 0
        %8860 = vmatpush2.bf16.msra.mxu0 0
        %8861 = vmatprep.subr.bf16.mxu0 0
        %8862 = vmatpush2.bf16.msra.mxu0 0
        %8863 = vmatprep.subr.bf16.mxu0 0
        %8864 = vmatpush2.bf16.msra.mxu0 0
        %8865 = vmatprep.subr.bf16.mxu0 0
        %8866 = vmatpush2.bf16.msra.mxu0 0
        %8867 = vmatprep.subr.bf16.mxu0 0
        %8868 = vmatpush2.bf16.msra.mxu0 0
        %8869 = vmatprep.subr.bf16.mxu0 0
        %8870 = vmatpush2.bf16.msra.mxu0 0
        %8871 = vmatprep.subr.bf16.mxu0 0
        %8872 = vmatpush2.bf16.msra.mxu0 0
        %8873 = vmatprep.subr.bf16.mxu0 0
        %8874 = vmatpush2.bf16.msra.mxu0 0
        %8875 = vmatprep.mubr.bf16.mxu0 0
        %8876 = vmatmul.mubr.bf16.gmra.mxu0 %v2001
        %v8877 = vpop.f32.mrf.mxu0
        %v8878 = vadd.f32 %v1680, %v8877
        %v8879 = vpop.f32.mrf.mxu0
        %v8880 = vadd.f32 %v1684, %v8879
        %v8881 = vpop.f32.mrf.mxu0
        %v8882 = vadd.f32 %v1680, %v8881
        %v8883 = vpop.f32.mrf.mxu0
        %v8884 = vadd.f32 %v1684, %v8883
        %8885 = vdwg.mxu0
        %8886 = vmatprep.subr.bf16.mxu0 %v6054
        %8887 = vmatpush1.bf16.msra.mxu0 %v6053
        %8888 = vmatprep.subr.bf16.mxu0 %v5926
        %8889 = vmatpush1.bf16.msra.mxu0 %v5925
        %8890 = vmatprep.subr.bf16.mxu0 %v5798
        %8891 = vmatpush1.bf16.msra.mxu0 %v5797
        %8892 = vmatprep.subr.bf16.mxu0 %v5670
        %8893 = vmatpush1.bf16.msra.mxu0 %v5669
        %8894 = vmatprep.subr.bf16.mxu0 %v5542
        %8895 = vmatpush1.bf16.msra.mxu0 %v5541
        %8896 = vmatprep.subr.bf16.mxu0 %v5414
        %8897 = vmatpush1.bf16.msra.mxu0 %v5413
        %8898 = vmatprep.subr.bf16.mxu0 %v5286
        %8899 = vmatpush1.bf16.msra.mxu0 %v5285
        %8900 = vmatprep.subr.bf16.mxu0 %v5158
        %8901 = vmatpush1.bf16.msra.mxu0 %v5157
        %8902 = vmatprep.subr.bf16.mxu0 0
        %8903 = vmatpush2.bf16.msra.mxu0 0
        %8904 = vmatprep.subr.bf16.mxu0 0
        %8905 = vmatpush2.bf16.msra.mxu0 0
        %8906 = vmatprep.subr.bf16.mxu0 0
        %8907 = vmatpush2.bf16.msra.mxu0 0
        %8908 = vmatprep.subr.bf16.mxu0 0
        %8909 = vmatpush2.bf16.msra.mxu0 0
        %8910 = vmatprep.subr.bf16.mxu0 0
        %8911 = vmatpush2.bf16.msra.mxu0 0
        %8912 = vmatprep.subr.bf16.mxu0 0
        %8913 = vmatpush2.bf16.msra.mxu0 0
        %8914 = vmatprep.subr.bf16.mxu0 0
        %8915 = vmatpush2.bf16.msra.mxu0 0
        %8916 = vmatprep.subr.bf16.mxu0 0
        %8917 = vmatpush2.bf16.msra.mxu0 0
        %8918 = vmatprep.mubr.bf16.mxu0 0
        %8919 = vmatmul.mubr.bf16.gmra.mxu0 %v2001
        %v8920 = vpop.f32.mrf.mxu0
        %v8921 = vadd.f32 %v1688, %v8920
        %v8922 = vpop.f32.mrf.mxu0
        %v8923 = vadd.f32 %v1692, %v8922
        %v8924 = vpop.f32.mrf.mxu0
        %v8925 = vadd.f32 %v1688, %v8924
        %v8926 = vpop.f32.mrf.mxu0
        %v8927 = vadd.f32 %v1692, %v8926
        %8928 = vdwg.mxu0
        %8929 = vmatprep.subr.bf16.mxu0 %v6056
        %8930 = vmatpush1.bf16.msra.mxu0 %v6055
        %8931 = vmatprep.subr.bf16.mxu0 %v5928
        %8932 = vmatpush1.bf16.msra.mxu0 %v5927
        %8933 = vmatprep.subr.bf16.mxu0 %v5800
        %8934 = vmatpush1.bf16.msra.mxu0 %v5799
        %8935 = vmatprep.subr.bf16.mxu0 %v5672
        %8936 = vmatpush1.bf16.msra.mxu0 %v5671
        %8937 = vmatprep.subr.bf16.mxu0 %v5544
        %8938 = vmatpush1.bf16.msra.mxu0 %v5543
        %8939 = vmatprep.subr.bf16.mxu0 %v5416
        %8940 = vmatpush1.bf16.msra.mxu0 %v5415
        %8941 = vmatprep.subr.bf16.mxu0 %v5288
        %8942 = vmatpush1.bf16.msra.mxu0 %v5287
        %8943 = vmatprep.subr.bf16.mxu0 %v5160
        %8944 = vmatpush1.bf16.msra.mxu0 %v5159
        %8945 = vmatprep.subr.bf16.mxu0 0
        %8946 = vmatpush2.bf16.msra.mxu0 0
        %8947 = vmatprep.subr.bf16.mxu0 0
        %8948 = vmatpush2.bf16.msra.mxu0 0
        %8949 = vmatprep.subr.bf16.mxu0 0
        %8950 = vmatpush2.bf16.msra.mxu0 0
        %8951 = vmatprep.subr.bf16.mxu0 0
        %8952 = vmatpush2.bf16.msra.mxu0 0
        %8953 = vmatprep.subr.bf16.mxu0 0
        %8954 = vmatpush2.bf16.msra.mxu0 0
        %8955 = vmatprep.subr.bf16.mxu0 0
        %8956 = vmatpush2.bf16.msra.mxu0 0
        %8957 = vmatprep.subr.bf16.mxu0 0
        %8958 = vmatpush2.bf16.msra.mxu0 0
        %8959 = vmatprep.subr.bf16.mxu0 0
        %8960 = vmatpush2.bf16.msra.mxu0 0
        %8961 = vmatprep.mubr.bf16.mxu0 0
        %8962 = vmatmul.mubr.bf16.gmra.mxu0 %v2001
        %v8963 = vpop.f32.mrf.mxu0
        %v8964 = vadd.f32 %v1696, %v8963
        %v8965 = vpop.f32.mrf.mxu0
        %v8966 = vadd.f32 %v1700, %v8965
        %v8967 = vpop.f32.mrf.mxu0
        %v8968 = vadd.f32 %v1696, %v8967
        %v8969 = vpop.f32.mrf.mxu0
        %v8970 = vadd.f32 %v1700, %v8969
        %8971 = vdwg.mxu0
        %8972 = vmatprep.subr.bf16.mxu0 %v6058
        %8973 = vmatpush1.bf16.msra.mxu0 %v6057
        %8974 = vmatprep.subr.bf16.mxu0 %v5930
        %8975 = vmatpush1.bf16.msra.mxu0 %v5929
        %8976 = vmatprep.subr.bf16.mxu0 %v5802
        %8977 = vmatpush1.bf16.msra.mxu0 %v5801
        %8978 = vmatprep.subr.bf16.mxu0 %v5674
        %8979 = vmatpush1.bf16.msra.mxu0 %v5673
        %8980 = vmatprep.subr.bf16.mxu0 %v5546
        %8981 = vmatpush1.bf16.msra.mxu0 %v5545
        %8982 = vmatprep.subr.bf16.mxu0 %v5418
        %8983 = vmatpush1.bf16.msra.mxu0 %v5417
        %8984 = vmatprep.subr.bf16.mxu0 %v5290
        %8985 = vmatpush1.bf16.msra.mxu0 %v5289
        %8986 = vmatprep.subr.bf16.mxu0 %v5162
        %8987 = vmatpush1.bf16.msra.mxu0 %v5161
        %8988 = vmatprep.subr.bf16.mxu0 0
        %8989 = vmatpush2.bf16.msra.mxu0 0
        %8990 = vmatprep.subr.bf16.mxu0 0
        %8991 = vmatpush2.bf16.msra.mxu0 0
        %8992 = vmatprep.subr.bf16.mxu0 0
        %8993 = vmatpush2.bf16.msra.mxu0 0
        %8994 = vmatprep.subr.bf16.mxu0 0
        %8995 = vmatpush2.bf16.msra.mxu0 0
        %8996 = vmatprep.subr.bf16.mxu0 0
        %8997 = vmatpush2.bf16.msra.mxu0 0
        %8998 = vmatprep.subr.bf16.mxu0 0
        %8999 = vmatpush2.bf16.msra.mxu0 0
        %9000 = vmatprep.subr.bf16.mxu0 0
        %9001 = vmatpush2.bf16.msra.mxu0 0
        %9002 = vmatprep.subr.bf16.mxu0 0
        %9003 = vmatpush2.bf16.msra.mxu0 0
        %9004 = vmatprep.mubr.bf16.mxu0 0
        %9005 = vmatmul.mubr.bf16.gmra.mxu0 %v2001
        %v9006 = vpop.f32.mrf.mxu0
        %v9007 = vadd.f32 %v1704, %v9006
        %v9008 = vpop.f32.mrf.mxu0
        %v9009 = vadd.f32 %v1708, %v9008
        %v9010 = vpop.f32.mrf.mxu0
        %v9011 = vadd.f32 %v1704, %v9010
        %v9012 = vpop.f32.mrf.mxu0
        %v9013 = vadd.f32 %v1708, %v9012
        %9014 = vdwg.mxu0
        %9015 = vmatprep.subr.bf16.mxu0 %v6060
        %9016 = vmatpush1.bf16.msra.mxu0 %v6059
        %9017 = vmatprep.subr.bf16.mxu0 %v5932
        %9018 = vmatpush1.bf16.msra.mxu0 %v5931
        %9019 = vmatprep.subr.bf16.mxu0 %v5804
        %9020 = vmatpush1.bf16.msra.mxu0 %v5803
        %9021 = vmatprep.subr.bf16.mxu0 %v5676
        %9022 = vmatpush1.bf16.msra.mxu0 %v5675
        %9023 = vmatprep.subr.bf16.mxu0 %v5548
        %9024 = vmatpush1.bf16.msra.mxu0 %v5547
        %9025 = vmatprep.subr.bf16.mxu0 %v5420
        %9026 = vmatpush1.bf16.msra.mxu0 %v5419
        %9027 = vmatprep.subr.bf16.mxu0 %v5292
        %9028 = vmatpush1.bf16.msra.mxu0 %v5291
        %9029 = vmatprep.subr.bf16.mxu0 %v5164
        %9030 = vmatpush1.bf16.msra.mxu0 %v5163
        %9031 = vmatprep.subr.bf16.mxu0 0
        %9032 = vmatpush2.bf16.msra.mxu0 0
        %9033 = vmatprep.subr.bf16.mxu0 0
        %9034 = vmatpush2.bf16.msra.mxu0 0
        %9035 = vmatprep.subr.bf16.mxu0 0
        %9036 = vmatpush2.bf16.msra.mxu0 0
        %9037 = vmatprep.subr.bf16.mxu0 0
        %9038 = vmatpush2.bf16.msra.mxu0 0
        %9039 = vmatprep.subr.bf16.mxu0 0
        %9040 = vmatpush2.bf16.msra.mxu0 0
        %9041 = vmatprep.subr.bf16.mxu0 0
        %9042 = vmatpush2.bf16.msra.mxu0 0
        %9043 = vmatprep.subr.bf16.mxu0 0
        %9044 = vmatpush2.bf16.msra.mxu0 0
        %9045 = vmatprep.subr.bf16.mxu0 0
        %9046 = vmatpush2.bf16.msra.mxu0 0
        %9047 = vmatprep.mubr.bf16.mxu0 0
        %9048 = vmatmul.mubr.bf16.gmra.mxu0 %v2001
        %v9049 = vpop.f32.mrf.mxu0
        %v9050 = vadd.f32 %v1712, %v9049
        %v9051 = vpop.f32.mrf.mxu0
        %v9052 = vadd.f32 %v1716, %v9051
        %v9053 = vpop.f32.mrf.mxu0
        %v9054 = vadd.f32 %v1712, %v9053
        %v9055 = vpop.f32.mrf.mxu0
        %v9056 = vadd.f32 %v1716, %v9055
        %9057 = vdwg.mxu0
        %9058 = vmatprep.subr.bf16.mxu0 %v6062
        %9059 = vmatpush1.bf16.msra.mxu0 %v6061
        %9060 = vmatprep.subr.bf16.mxu0 %v5934
        %9061 = vmatpush1.bf16.msra.mxu0 %v5933
        %9062 = vmatprep.subr.bf16.mxu0 %v5806
        %9063 = vmatpush1.bf16.msra.mxu0 %v5805
        %9064 = vmatprep.subr.bf16.mxu0 %v5678
        %9065 = vmatpush1.bf16.msra.mxu0 %v5677
        %9066 = vmatprep.subr.bf16.mxu0 %v5550
        %9067 = vmatpush1.bf16.msra.mxu0 %v5549
        %9068 = vmatprep.subr.bf16.mxu0 %v5422
        %9069 = vmatpush1.bf16.msra.mxu0 %v5421
        %9070 = vmatprep.subr.bf16.mxu0 %v5294
        %9071 = vmatpush1.bf16.msra.mxu0 %v5293
        %9072 = vmatprep.subr.bf16.mxu0 %v5166
        %9073 = vmatpush1.bf16.msra.mxu0 %v5165
        %9074 = vmatprep.subr.bf16.mxu0 0
        %9075 = vmatpush2.bf16.msra.mxu0 0
        %9076 = vmatprep.subr.bf16.mxu0 0
        %9077 = vmatpush2.bf16.msra.mxu0 0
        %9078 = vmatprep.subr.bf16.mxu0 0
        %9079 = vmatpush2.bf16.msra.mxu0 0
        %9080 = vmatprep.subr.bf16.mxu0 0
        %9081 = vmatpush2.bf16.msra.mxu0 0
        %9082 = vmatprep.subr.bf16.mxu0 0
        %9083 = vmatpush2.bf16.msra.mxu0 0
        %9084 = vmatprep.subr.bf16.mxu0 0
        %9085 = vmatpush2.bf16.msra.mxu0 0
        %9086 = vmatprep.subr.bf16.mxu0 0
        %9087 = vmatpush2.bf16.msra.mxu0 0
        %9088 = vmatprep.subr.bf16.mxu0 0
        %9089 = vmatpush2.bf16.msra.mxu0 0
        %9090 = vmatprep.mubr.bf16.mxu0 0
        %9091 = vmatmul.mubr.bf16.gmra.mxu0 %v2001
        %v9092 = vpop.f32.mrf.mxu0
        %v9093 = vadd.f32 %v1720, %v9092
        %v9094 = vpop.f32.mrf.mxu0
        %v9095 = vadd.f32 %v1724, %v9094
        %v9096 = vpop.f32.mrf.mxu0
        %v9097 = vadd.f32 %v1720, %v9096
        %v9098 = vpop.f32.mrf.mxu0
        %v9099 = vadd.f32 %v1724, %v9098
        %9100 = vdwg.mxu0
        %9101 = vmatprep.subr.bf16.mxu0 %v6064
        %9102 = vmatpush1.bf16.msra.mxu0 %v6063
        %9103 = vmatprep.subr.bf16.mxu0 %v5936
        %9104 = vmatpush1.bf16.msra.mxu0 %v5935
        %9105 = vmatprep.subr.bf16.mxu0 %v5808
        %9106 = vmatpush1.bf16.msra.mxu0 %v5807
        %9107 = vmatprep.subr.bf16.mxu0 %v5680
        %9108 = vmatpush1.bf16.msra.mxu0 %v5679
        %9109 = vmatprep.subr.bf16.mxu0 %v5552
        %9110 = vmatpush1.bf16.msra.mxu0 %v5551
        %9111 = vmatprep.subr.bf16.mxu0 %v5424
        %9112 = vmatpush1.bf16.msra.mxu0 %v5423
        %9113 = vmatprep.subr.bf16.mxu0 %v5296
        %9114 = vmatpush1.bf16.msra.mxu0 %v5295
        %9115 = vmatprep.subr.bf16.mxu0 %v5168
        %9116 = vmatpush1.bf16.msra.mxu0 %v5167
        %9117 = vmatprep.subr.bf16.mxu0 0
        %9118 = vmatpush2.bf16.msra.mxu0 0
        %9119 = vmatprep.subr.bf16.mxu0 0
        %9120 = vmatpush2.bf16.msra.mxu0 0
        %9121 = vmatprep.subr.bf16.mxu0 0
        %9122 = vmatpush2.bf16.msra.mxu0 0
        %9123 = vmatprep.subr.bf16.mxu0 0
        %9124 = vmatpush2.bf16.msra.mxu0 0
        %9125 = vmatprep.subr.bf16.mxu0 0
        %9126 = vmatpush2.bf16.msra.mxu0 0
        %9127 = vmatprep.subr.bf16.mxu0 0
        %9128 = vmatpush2.bf16.msra.mxu0 0
        %9129 = vmatprep.subr.bf16.mxu0 0
        %9130 = vmatpush2.bf16.msra.mxu0 0
        %9131 = vmatprep.subr.bf16.mxu0 0
        %9132 = vmatpush2.bf16.msra.mxu0 0
        %9133 = vmatprep.mubr.bf16.mxu0 0
        %9134 = vmatmul.mubr.bf16.gmra.mxu0 %v2001
        %v9135 = vpop.f32.mrf.mxu0
        %v9136 = vadd.f32 %v1728, %v9135
        %v9137 = vpop.f32.mrf.mxu0
        %v9138 = vadd.f32 %v1732, %v9137
        %v9139 = vpop.f32.mrf.mxu0
        %v9140 = vadd.f32 %v1728, %v9139
        %v9141 = vpop.f32.mrf.mxu0
        %v9142 = vadd.f32 %v1732, %v9141
        %9143 = vdwg.mxu0
        %9144 = vmatprep.subr.bf16.mxu0 %v6066
        %9145 = vmatpush1.bf16.msra.mxu0 %v6065
        %9146 = vmatprep.subr.bf16.mxu0 %v5938
        %9147 = vmatpush1.bf16.msra.mxu0 %v5937
        %9148 = vmatprep.subr.bf16.mxu0 %v5810
        %9149 = vmatpush1.bf16.msra.mxu0 %v5809
        %9150 = vmatprep.subr.bf16.mxu0 %v5682
        %9151 = vmatpush1.bf16.msra.mxu0 %v5681
        %9152 = vmatprep.subr.bf16.mxu0 %v5554
        %9153 = vmatpush1.bf16.msra.mxu0 %v5553
        %9154 = vmatprep.subr.bf16.mxu0 %v5426
        %9155 = vmatpush1.bf16.msra.mxu0 %v5425
        %9156 = vmatprep.subr.bf16.mxu0 %v5298
        %9157 = vmatpush1.bf16.msra.mxu0 %v5297
        %9158 = vmatprep.subr.bf16.mxu0 %v5170
        %9159 = vmatpush1.bf16.msra.mxu0 %v5169
        %9160 = vmatprep.subr.bf16.mxu0 0
        %9161 = vmatpush2.bf16.msra.mxu0 0
        %9162 = vmatprep.subr.bf16.mxu0 0
        %9163 = vmatpush2.bf16.msra.mxu0 0
        %9164 = vmatprep.subr.bf16.mxu0 0
        %9165 = vmatpush2.bf16.msra.mxu0 0
        %9166 = vmatprep.subr.bf16.mxu0 0
        %9167 = vmatpush2.bf16.msra.mxu0 0
        %9168 = vmatprep.subr.bf16.mxu0 0
        %9169 = vmatpush2.bf16.msra.mxu0 0
        %9170 = vmatprep.subr.bf16.mxu0 0
        %9171 = vmatpush2.bf16.msra.mxu0 0
        %9172 = vmatprep.subr.bf16.mxu0 0
        %9173 = vmatpush2.bf16.msra.mxu0 0
        %9174 = vmatprep.subr.bf16.mxu0 0
        %9175 = vmatpush2.bf16.msra.mxu0 0
        %9176 = vmatprep.mubr.bf16.mxu0 0
        %9177 = vmatmul.mubr.bf16.gmra.mxu0 %v2001
        %v9178 = vpop.f32.mrf.mxu0
        %v9179 = vadd.f32 %v1736, %v9178
        %v9180 = vpop.f32.mrf.mxu0
        %v9181 = vadd.f32 %v1740, %v9180
        %v9182 = vpop.f32.mrf.mxu0
        %v9183 = vadd.f32 %v1736, %v9182
        %v9184 = vpop.f32.mrf.mxu0
        %v9185 = vadd.f32 %v1740, %v9184
        %9186 = vdwg.mxu0
        %9187 = vmatprep.subr.bf16.mxu0 %v6068
        %9188 = vmatpush1.bf16.msra.mxu0 %v6067
        %9189 = vmatprep.subr.bf16.mxu0 %v5940
        %9190 = vmatpush1.bf16.msra.mxu0 %v5939
        %9191 = vmatprep.subr.bf16.mxu0 %v5812
        %9192 = vmatpush1.bf16.msra.mxu0 %v5811
        %9193 = vmatprep.subr.bf16.mxu0 %v5684
        %9194 = vmatpush1.bf16.msra.mxu0 %v5683
        %9195 = vmatprep.subr.bf16.mxu0 %v5556
        %9196 = vmatpush1.bf16.msra.mxu0 %v5555
        %9197 = vmatprep.subr.bf16.mxu0 %v5428
        %9198 = vmatpush1.bf16.msra.mxu0 %v5427
        %9199 = vmatprep.subr.bf16.mxu0 %v5300
        %9200 = vmatpush1.bf16.msra.mxu0 %v5299
        %9201 = vmatprep.subr.bf16.mxu0 %v5172
        %9202 = vmatpush1.bf16.msra.mxu0 %v5171
        %9203 = vmatprep.subr.bf16.mxu0 0
        %9204 = vmatpush2.bf16.msra.mxu0 0
        %9205 = vmatprep.subr.bf16.mxu0 0
        %9206 = vmatpush2.bf16.msra.mxu0 0
        %9207 = vmatprep.subr.bf16.mxu0 0
        %9208 = vmatpush2.bf16.msra.mxu0 0
        %9209 = vmatprep.subr.bf16.mxu0 0
        %9210 = vmatpush2.bf16.msra.mxu0 0
        %9211 = vmatprep.subr.bf16.mxu0 0
        %9212 = vmatpush2.bf16.msra.mxu0 0
        %9213 = vmatprep.subr.bf16.mxu0 0
        %9214 = vmatpush2.bf16.msra.mxu0 0
        %9215 = vmatprep.subr.bf16.mxu0 0
        %9216 = vmatpush2.bf16.msra.mxu0 0
        %9217 = vmatprep.subr.bf16.mxu0 0
        %9218 = vmatpush2.bf16.msra.mxu0 0
        %9219 = vmatprep.mubr.bf16.mxu0 0
        %9220 = vmatmul.mubr.bf16.gmra.mxu0 %v2001
        %v9221 = vpop.f32.mrf.mxu0
        %v9222 = vadd.f32 %v1744, %v9221
        %v9223 = vpop.f32.mrf.mxu0
        %v9224 = vadd.f32 %v1748, %v9223
        %v9225 = vpop.f32.mrf.mxu0
        %v9226 = vadd.f32 %v1744, %v9225
        %v9227 = vpop.f32.mrf.mxu0
        %v9228 = vadd.f32 %v1748, %v9227
        %9229 = vdwg.mxu0
        %9230 = vmatprep.subr.bf16.mxu0 %v6070
        %9231 = vmatpush1.bf16.msra.mxu0 %v6069
        %9232 = vmatprep.subr.bf16.mxu0 %v5942
        %9233 = vmatpush1.bf16.msra.mxu0 %v5941
        %9234 = vmatprep.subr.bf16.mxu0 %v5814
        %9235 = vmatpush1.bf16.msra.mxu0 %v5813
        %9236 = vmatprep.subr.bf16.mxu0 %v5686
        %9237 = vmatpush1.bf16.msra.mxu0 %v5685
        %9238 = vmatprep.subr.bf16.mxu0 %v5558
        %9239 = vmatpush1.bf16.msra.mxu0 %v5557
        %9240 = vmatprep.subr.bf16.mxu0 %v5430
        %9241 = vmatpush1.bf16.msra.mxu0 %v5429
        %9242 = vmatprep.subr.bf16.mxu0 %v5302
        %9243 = vmatpush1.bf16.msra.mxu0 %v5301
        %9244 = vmatprep.subr.bf16.mxu0 %v5174
        %9245 = vmatpush1.bf16.msra.mxu0 %v5173
        %9246 = vmatprep.subr.bf16.mxu0 0
        %9247 = vmatpush2.bf16.msra.mxu0 0
        %9248 = vmatprep.subr.bf16.mxu0 0
        %9249 = vmatpush2.bf16.msra.mxu0 0
        %9250 = vmatprep.subr.bf16.mxu0 0
        %9251 = vmatpush2.bf16.msra.mxu0 0
        %9252 = vmatprep.subr.bf16.mxu0 0
        %9253 = vmatpush2.bf16.msra.mxu0 0
        %9254 = vmatprep.subr.bf16.mxu0 0
        %9255 = vmatpush2.bf16.msra.mxu0 0
        %9256 = vmatprep.subr.bf16.mxu0 0
        %9257 = vmatpush2.bf16.msra.mxu0 0
        %9258 = vmatprep.subr.bf16.mxu0 0
        %9259 = vmatpush2.bf16.msra.mxu0 0
        %9260 = vmatprep.subr.bf16.mxu0 0
        %9261 = vmatpush2.bf16.msra.mxu0 0
        %9262 = vmatprep.mubr.bf16.mxu0 0
        %9263 = vmatmul.mubr.bf16.gmra.mxu0 %v2001
        %v9264 = vpop.f32.mrf.mxu0
        %v9265 = vadd.f32 %v1752, %v9264
        %v9266 = vpop.f32.mrf.mxu0
        %v9267 = vadd.f32 %v1756, %v9266
        %v9268 = vpop.f32.mrf.mxu0
        %v9269 = vadd.f32 %v1752, %v9268
        %v9270 = vpop.f32.mrf.mxu0
        %v9271 = vadd.f32 %v1756, %v9270
        %9272 = vdwg.mxu0
        %9273 = vmatprep.subr.bf16.mxu0 %v6072
        %9274 = vmatpush1.bf16.msra.mxu0 %v6071
        %9275 = vmatprep.subr.bf16.mxu0 %v5944
        %9276 = vmatpush1.bf16.msra.mxu0 %v5943
        %9277 = vmatprep.subr.bf16.mxu0 %v5816
        %9278 = vmatpush1.bf16.msra.mxu0 %v5815
        %9279 = vmatprep.subr.bf16.mxu0 %v5688
        %9280 = vmatpush1.bf16.msra.mxu0 %v5687
        %9281 = vmatprep.subr.bf16.mxu0 %v5560
        %9282 = vmatpush1.bf16.msra.mxu0 %v5559
        %9283 = vmatprep.subr.bf16.mxu0 %v5432
        %9284 = vmatpush1.bf16.msra.mxu0 %v5431
        %9285 = vmatprep.subr.bf16.mxu0 %v5304
        %9286 = vmatpush1.bf16.msra.mxu0 %v5303
        %9287 = vmatprep.subr.bf16.mxu0 %v5176
        %9288 = vmatpush1.bf16.msra.mxu0 %v5175
        %9289 = vmatprep.subr.bf16.mxu0 0
        %9290 = vmatpush2.bf16.msra.mxu0 0
        %9291 = vmatprep.subr.bf16.mxu0 0
        %9292 = vmatpush2.bf16.msra.mxu0 0
        %9293 = vmatprep.subr.bf16.mxu0 0
        %9294 = vmatpush2.bf16.msra.mxu0 0
        %9295 = vmatprep.subr.bf16.mxu0 0
        %9296 = vmatpush2.bf16.msra.mxu0 0
        %9297 = vmatprep.subr.bf16.mxu0 0
        %9298 = vmatpush2.bf16.msra.mxu0 0
        %9299 = vmatprep.subr.bf16.mxu0 0
        %9300 = vmatpush2.bf16.msra.mxu0 0
        %9301 = vmatprep.subr.bf16.mxu0 0
        %9302 = vmatpush2.bf16.msra.mxu0 0
        %9303 = vmatprep.subr.bf16.mxu0 0
        %9304 = vmatpush2.bf16.msra.mxu0 0
        %9305 = vmatprep.mubr.bf16.mxu0 0
        %9306 = vmatmul.mubr.bf16.gmra.mxu0 %v2001
        %v9307 = vpop.f32.mrf.mxu0
        %v9308 = vadd.f32 %v1760, %v9307
        %v9309 = vpop.f32.mrf.mxu0
        %v9310 = vadd.f32 %v1764, %v9309
        %v9311 = vpop.f32.mrf.mxu0
        %v9312 = vadd.f32 %v1760, %v9311
        %v9313 = vpop.f32.mrf.mxu0
        %v9314 = vadd.f32 %v1764, %v9313
        %9315 = vdwg.mxu0
        %9316 = vmatprep.subr.bf16.mxu0 %v6074
        %9317 = vmatpush1.bf16.msra.mxu0 %v6073
        %9318 = vmatprep.subr.bf16.mxu0 %v5946
        %9319 = vmatpush1.bf16.msra.mxu0 %v5945
        %9320 = vmatprep.subr.bf16.mxu0 %v5818
        %9321 = vmatpush1.bf16.msra.mxu0 %v5817
        %9322 = vmatprep.subr.bf16.mxu0 %v5690
        %9323 = vmatpush1.bf16.msra.mxu0 %v5689
        %9324 = vmatprep.subr.bf16.mxu0 %v5562
        %9325 = vmatpush1.bf16.msra.mxu0 %v5561
        %9326 = vmatprep.subr.bf16.mxu0 %v5434
        %9327 = vmatpush1.bf16.msra.mxu0 %v5433
        %9328 = vmatprep.subr.bf16.mxu0 %v5306
        %9329 = vmatpush1.bf16.msra.mxu0 %v5305
        %9330 = vmatprep.subr.bf16.mxu0 %v5178
        %9331 = vmatpush1.bf16.msra.mxu0 %v5177
        %9332 = vmatprep.subr.bf16.mxu0 0
        %9333 = vmatpush2.bf16.msra.mxu0 0
        %9334 = vmatprep.subr.bf16.mxu0 0
        %9335 = vmatpush2.bf16.msra.mxu0 0
        %9336 = vmatprep.subr.bf16.mxu0 0
        %9337 = vmatpush2.bf16.msra.mxu0 0
        %9338 = vmatprep.subr.bf16.mxu0 0
        %9339 = vmatpush2.bf16.msra.mxu0 0
        %9340 = vmatprep.subr.bf16.mxu0 0
        %9341 = vmatpush2.bf16.msra.mxu0 0
        %9342 = vmatprep.subr.bf16.mxu0 0
        %9343 = vmatpush2.bf16.msra.mxu0 0
        %9344 = vmatprep.subr.bf16.mxu0 0
        %9345 = vmatpush2.bf16.msra.mxu0 0
        %9346 = vmatprep.subr.bf16.mxu0 0
        %9347 = vmatpush2.bf16.msra.mxu0 0
        %9348 = vmatprep.mubr.bf16.mxu0 0
        %9349 = vmatmul.mubr.bf16.gmra.mxu0 %v2001
        %v9350 = vpop.f32.mrf.mxu0
        %v9351 = vadd.f32 %v1768, %v9350
        %v9352 = vpop.f32.mrf.mxu0
        %v9353 = vadd.f32 %v1772, %v9352
        %v9354 = vpop.f32.mrf.mxu0
        %v9355 = vadd.f32 %v1768, %v9354
        %v9356 = vpop.f32.mrf.mxu0
        %v9357 = vadd.f32 %v1772, %v9356
        %9358 = vdwg.mxu0
        %9359 = vmatprep.subr.bf16.mxu0 %v6076
        %9360 = vmatpush1.bf16.msra.mxu0 %v6075
        %9361 = vmatprep.subr.bf16.mxu0 %v5948
        %9362 = vmatpush1.bf16.msra.mxu0 %v5947
        %9363 = vmatprep.subr.bf16.mxu0 %v5820
        %9364 = vmatpush1.bf16.msra.mxu0 %v5819
        %9365 = vmatprep.subr.bf16.mxu0 %v5692
        %9366 = vmatpush1.bf16.msra.mxu0 %v5691
        %9367 = vmatprep.subr.bf16.mxu0 %v5564
        %9368 = vmatpush1.bf16.msra.mxu0 %v5563
        %9369 = vmatprep.subr.bf16.mxu0 %v5436
        %9370 = vmatpush1.bf16.msra.mxu0 %v5435
        %9371 = vmatprep.subr.bf16.mxu0 %v5308
        %9372 = vmatpush1.bf16.msra.mxu0 %v5307
        %9373 = vmatprep.subr.bf16.mxu0 %v5180
        %9374 = vmatpush1.bf16.msra.mxu0 %v5179
        %9375 = vmatprep.subr.bf16.mxu0 0
        %9376 = vmatpush2.bf16.msra.mxu0 0
        %9377 = vmatprep.subr.bf16.mxu0 0
        %9378 = vmatpush2.bf16.msra.mxu0 0
        %9379 = vmatprep.subr.bf16.mxu0 0
        %9380 = vmatpush2.bf16.msra.mxu0 0
        %9381 = vmatprep.subr.bf16.mxu0 0
        %9382 = vmatpush2.bf16.msra.mxu0 0
        %9383 = vmatprep.subr.bf16.mxu0 0
        %9384 = vmatpush2.bf16.msra.mxu0 0
        %9385 = vmatprep.subr.bf16.mxu0 0
        %9386 = vmatpush2.bf16.msra.mxu0 0
        %9387 = vmatprep.subr.bf16.mxu0 0
        %9388 = vmatpush2.bf16.msra.mxu0 0
        %9389 = vmatprep.subr.bf16.mxu0 0
        %9390 = vmatpush2.bf16.msra.mxu0 0
        %9391 = vmatprep.mubr.bf16.mxu0 0
        %9392 = vmatmul.mubr.bf16.gmra.mxu0 %v2001
        %v9393 = vpop.f32.mrf.mxu0
        %v9394 = vadd.f32 %v1776, %v9393
        %v9395 = vpop.f32.mrf.mxu0
        %v9396 = vadd.f32 %v1780, %v9395
        %v9397 = vpop.f32.mrf.mxu0
        %v9398 = vadd.f32 %v1776, %v9397
        %v9399 = vpop.f32.mrf.mxu0
        %v9400 = vadd.f32 %v1780, %v9399
        %9401 = vdwg.mxu0
        %9402 = vmatprep.subr.bf16.mxu0 %v6078
        %9403 = vmatpush1.bf16.msra.mxu0 %v6077
        %9404 = vmatprep.subr.bf16.mxu0 %v5950
        %9405 = vmatpush1.bf16.msra.mxu0 %v5949
        %9406 = vmatprep.subr.bf16.mxu0 %v5822
        %9407 = vmatpush1.bf16.msra.mxu0 %v5821
        %9408 = vmatprep.subr.bf16.mxu0 %v5694
        %9409 = vmatpush1.bf16.msra.mxu0 %v5693
        %9410 = vmatprep.subr.bf16.mxu0 %v5566
        %9411 = vmatpush1.bf16.msra.mxu0 %v5565
        %9412 = vmatprep.subr.bf16.mxu0 %v5438
        %9413 = vmatpush1.bf16.msra.mxu0 %v5437
        %9414 = vmatprep.subr.bf16.mxu0 %v5310
        %9415 = vmatpush1.bf16.msra.mxu0 %v5309
        %9416 = vmatprep.subr.bf16.mxu0 %v5182
        %9417 = vmatpush1.bf16.msra.mxu0 %v5181
        %9418 = vmatprep.subr.bf16.mxu0 0
        %9419 = vmatpush2.bf16.msra.mxu0 0
        %9420 = vmatprep.subr.bf16.mxu0 0
        %9421 = vmatpush2.bf16.msra.mxu0 0
        %9422 = vmatprep.subr.bf16.mxu0 0
        %9423 = vmatpush2.bf16.msra.mxu0 0
        %9424 = vmatprep.subr.bf16.mxu0 0
        %9425 = vmatpush2.bf16.msra.mxu0 0
        %9426 = vmatprep.subr.bf16.mxu0 0
        %9427 = vmatpush2.bf16.msra.mxu0 0
        %9428 = vmatprep.subr.bf16.mxu0 0
        %9429 = vmatpush2.bf16.msra.mxu0 0
        %9430 = vmatprep.subr.bf16.mxu0 0
        %9431 = vmatpush2.bf16.msra.mxu0 0
        %9432 = vmatprep.subr.bf16.mxu0 0
        %9433 = vmatpush2.bf16.msra.mxu0 0
        %9434 = vmatprep.mubr.bf16.mxu0 0
        %9435 = vmatmul.mubr.bf16.gmra.mxu0 %v2001
        %v9436 = vpop.f32.mrf.mxu0
        %v9437 = vadd.f32 %v1784, %v9436
        %v9438 = vpop.f32.mrf.mxu0
        %v9439 = vadd.f32 %v1788, %v9438
        %v9440 = vpop.f32.mrf.mxu0
        %v9441 = vadd.f32 %v1784, %v9440
        %v9442 = vpop.f32.mrf.mxu0
        %v9443 = vadd.f32 %v1788, %v9442
        %9444 = vdwg.mxu0
        %9445 = vmatprep.subr.bf16.mxu0 %v6080
        %9446 = vmatpush1.bf16.msra.mxu0 %v6079
        %9447 = vmatprep.subr.bf16.mxu0 %v5952
        %9448 = vmatpush1.bf16.msra.mxu0 %v5951
        %9449 = vmatprep.subr.bf16.mxu0 %v5824
        %9450 = vmatpush1.bf16.msra.mxu0 %v5823
        %9451 = vmatprep.subr.bf16.mxu0 %v5696
        %9452 = vmatpush1.bf16.msra.mxu0 %v5695
        %9453 = vmatprep.subr.bf16.mxu0 %v5568
        %9454 = vmatpush1.bf16.msra.mxu0 %v5567
        %9455 = vmatprep.subr.bf16.mxu0 %v5440
        %9456 = vmatpush1.bf16.msra.mxu0 %v5439
        %9457 = vmatprep.subr.bf16.mxu0 %v5312
        %9458 = vmatpush1.bf16.msra.mxu0 %v5311
        %9459 = vmatprep.subr.bf16.mxu0 %v5184
        %9460 = vmatpush1.bf16.msra.mxu0 %v5183
        %9461 = vmatprep.subr.bf16.mxu0 0
        %9462 = vmatpush2.bf16.msra.mxu0 0
        %9463 = vmatprep.subr.bf16.mxu0 0
        %9464 = vmatpush2.bf16.msra.mxu0 0
        %9465 = vmatprep.subr.bf16.mxu0 0
        %9466 = vmatpush2.bf16.msra.mxu0 0
        %9467 = vmatprep.subr.bf16.mxu0 0
        %9468 = vmatpush2.bf16.msra.mxu0 0
        %9469 = vmatprep.subr.bf16.mxu0 0
        %9470 = vmatpush2.bf16.msra.mxu0 0
        %9471 = vmatprep.subr.bf16.mxu0 0
        %9472 = vmatpush2.bf16.msra.mxu0 0
        %9473 = vmatprep.subr.bf16.mxu0 0
        %9474 = vmatpush2.bf16.msra.mxu0 0
        %9475 = vmatprep.subr.bf16.mxu0 0
        %9476 = vmatpush2.bf16.msra.mxu0 0
        %9477 = vmatprep.mubr.bf16.mxu0 0
        %9478 = vmatmul.mubr.bf16.gmra.mxu0 %v2001
        %v9479 = vpop.f32.mrf.mxu0
        %v9480 = vadd.f32 %v1792, %v9479
        %v9481 = vpop.f32.mrf.mxu0
        %v9482 = vadd.f32 %v1796, %v9481
        %v9483 = vpop.f32.mrf.mxu0
        %v9484 = vadd.f32 %v1792, %v9483
        %v9485 = vpop.f32.mrf.mxu0
        %v9486 = vadd.f32 %v1796, %v9485
        %9487 = vdwg.mxu0
        %9488 = vmatprep.subr.bf16.mxu0 %v6082
        %9489 = vmatpush1.bf16.msra.mxu0 %v6081
        %9490 = vmatprep.subr.bf16.mxu0 %v5954
        %9491 = vmatpush1.bf16.msra.mxu0 %v5953
        %9492 = vmatprep.subr.bf16.mxu0 %v5826
        %9493 = vmatpush1.bf16.msra.mxu0 %v5825
        %9494 = vmatprep.subr.bf16.mxu0 %v5698
        %9495 = vmatpush1.bf16.msra.mxu0 %v5697
        %9496 = vmatprep.subr.bf16.mxu0 %v5570
        %9497 = vmatpush1.bf16.msra.mxu0 %v5569
        %9498 = vmatprep.subr.bf16.mxu0 %v5442
        %9499 = vmatpush1.bf16.msra.mxu0 %v5441
        %9500 = vmatprep.subr.bf16.mxu0 %v5314
        %9501 = vmatpush1.bf16.msra.mxu0 %v5313
        %9502 = vmatprep.subr.bf16.mxu0 %v5186
        %9503 = vmatpush1.bf16.msra.mxu0 %v5185
        %9504 = vmatprep.subr.bf16.mxu0 0
        %9505 = vmatpush2.bf16.msra.mxu0 0
        %9506 = vmatprep.subr.bf16.mxu0 0
        %9507 = vmatpush2.bf16.msra.mxu0 0
        %9508 = vmatprep.subr.bf16.mxu0 0
        %9509 = vmatpush2.bf16.msra.mxu0 0
        %9510 = vmatprep.subr.bf16.mxu0 0
        %9511 = vmatpush2.bf16.msra.mxu0 0
        %9512 = vmatprep.subr.bf16.mxu0 0
        %9513 = vmatpush2.bf16.msra.mxu0 0
        %9514 = vmatprep.subr.bf16.mxu0 0
        %9515 = vmatpush2.bf16.msra.mxu0 0
        %9516 = vmatprep.subr.bf16.mxu0 0
        %9517 = vmatpush2.bf16.msra.mxu0 0
        %9518 = vmatprep.subr.bf16.mxu0 0
        %9519 = vmatpush2.bf16.msra.mxu0 0
        %9520 = vmatprep.mubr.bf16.mxu0 0
        %9521 = vmatmul.mubr.bf16.gmra.mxu0 %v2001
        %v9522 = vpop.f32.mrf.mxu0
        %v9523 = vadd.f32 %v1800, %v9522
        %v9524 = vpop.f32.mrf.mxu0
        %v9525 = vadd.f32 %v1804, %v9524
        %v9526 = vpop.f32.mrf.mxu0
        %v9527 = vadd.f32 %v1800, %v9526
        %v9528 = vpop.f32.mrf.mxu0
        %v9529 = vadd.f32 %v1804, %v9528
        %9530 = vdwg.mxu0
        %9531 = vmatprep.subr.bf16.mxu0 %v6084
        %9532 = vmatpush1.bf16.msra.mxu0 %v6083
        %9533 = vmatprep.subr.bf16.mxu0 %v5956
        %9534 = vmatpush1.bf16.msra.mxu0 %v5955
        %9535 = vmatprep.subr.bf16.mxu0 %v5828
        %9536 = vmatpush1.bf16.msra.mxu0 %v5827
        %9537 = vmatprep.subr.bf16.mxu0 %v5700
        %9538 = vmatpush1.bf16.msra.mxu0 %v5699
        %9539 = vmatprep.subr.bf16.mxu0 %v5572
        %9540 = vmatpush1.bf16.msra.mxu0 %v5571
        %9541 = vmatprep.subr.bf16.mxu0 %v5444
        %9542 = vmatpush1.bf16.msra.mxu0 %v5443
        %9543 = vmatprep.subr.bf16.mxu0 %v5316
        %9544 = vmatpush1.bf16.msra.mxu0 %v5315
        %9545 = vmatprep.subr.bf16.mxu0 %v5188
        %9546 = vmatpush1.bf16.msra.mxu0 %v5187
        %9547 = vmatprep.subr.bf16.mxu0 0
        %9548 = vmatpush2.bf16.msra.mxu0 0
        %9549 = vmatprep.subr.bf16.mxu0 0
        %9550 = vmatpush2.bf16.msra.mxu0 0
        %9551 = vmatprep.subr.bf16.mxu0 0
        %9552 = vmatpush2.bf16.msra.mxu0 0
        %9553 = vmatprep.subr.bf16.mxu0 0
        %9554 = vmatpush2.bf16.msra.mxu0 0
        %9555 = vmatprep.subr.bf16.mxu0 0
        %9556 = vmatpush2.bf16.msra.mxu0 0
        %9557 = vmatprep.subr.bf16.mxu0 0
        %9558 = vmatpush2.bf16.msra.mxu0 0
        %9559 = vmatprep.subr.bf16.mxu0 0
        %9560 = vmatpush2.bf16.msra.mxu0 0
        %9561 = vmatprep.subr.bf16.mxu0 0
        %9562 = vmatpush2.bf16.msra.mxu0 0
        %9563 = vmatprep.mubr.bf16.mxu0 0
        %9564 = vmatmul.mubr.bf16.gmra.mxu0 %v2001
        %v9565 = vpop.f32.mrf.mxu0
        %v9566 = vadd.f32 %v1808, %v9565
        %v9567 = vpop.f32.mrf.mxu0
        %v9568 = vadd.f32 %v1812, %v9567
        %v9569 = vpop.f32.mrf.mxu0
        %v9570 = vadd.f32 %v1808, %v9569
        %v9571 = vpop.f32.mrf.mxu0
        %v9572 = vadd.f32 %v1812, %v9571
        %9573 = vdwg.mxu0
        %9574 = vmatprep.subr.bf16.mxu0 %v6086
        %9575 = vmatpush1.bf16.msra.mxu0 %v6085
        %9576 = vmatprep.subr.bf16.mxu0 %v5958
        %9577 = vmatpush1.bf16.msra.mxu0 %v5957
        %9578 = vmatprep.subr.bf16.mxu0 %v5830
        %9579 = vmatpush1.bf16.msra.mxu0 %v5829
        %9580 = vmatprep.subr.bf16.mxu0 %v5702
        %9581 = vmatpush1.bf16.msra.mxu0 %v5701
        %9582 = vmatprep.subr.bf16.mxu0 %v5574
        %9583 = vmatpush1.bf16.msra.mxu0 %v5573
        %9584 = vmatprep.subr.bf16.mxu0 %v5446
        %9585 = vmatpush1.bf16.msra.mxu0 %v5445
        %9586 = vmatprep.subr.bf16.mxu0 %v5318
        %9587 = vmatpush1.bf16.msra.mxu0 %v5317
        %9588 = vmatprep.subr.bf16.mxu0 %v5190
        %9589 = vmatpush1.bf16.msra.mxu0 %v5189
        %9590 = vmatprep.subr.bf16.mxu0 0
        %9591 = vmatpush2.bf16.msra.mxu0 0
        %9592 = vmatprep.subr.bf16.mxu0 0
        %9593 = vmatpush2.bf16.msra.mxu0 0
        %9594 = vmatprep.subr.bf16.mxu0 0
        %9595 = vmatpush2.bf16.msra.mxu0 0
        %9596 = vmatprep.subr.bf16.mxu0 0
        %9597 = vmatpush2.bf16.msra.mxu0 0
        %9598 = vmatprep.subr.bf16.mxu0 0
        %9599 = vmatpush2.bf16.msra.mxu0 0
        %9600 = vmatprep.subr.bf16.mxu0 0
        %9601 = vmatpush2.bf16.msra.mxu0 0
        %9602 = vmatprep.subr.bf16.mxu0 0
        %9603 = vmatpush2.bf16.msra.mxu0 0
        %9604 = vmatprep.subr.bf16.mxu0 0
        %9605 = vmatpush2.bf16.msra.mxu0 0
        %9606 = vmatprep.mubr.bf16.mxu0 0
        %9607 = vmatmul.mubr.bf16.gmra.mxu0 %v2001
        %v9608 = vpop.f32.mrf.mxu0
        %v9609 = vadd.f32 %v1816, %v9608
        %v9610 = vpop.f32.mrf.mxu0
        %v9611 = vadd.f32 %v1820, %v9610
        %v9612 = vpop.f32.mrf.mxu0
        %v9613 = vadd.f32 %v1816, %v9612
        %v9614 = vpop.f32.mrf.mxu0
        %v9615 = vadd.f32 %v1820, %v9614
        %9616 = vdwg.mxu0
        %9617 = vmatprep.subr.bf16.mxu0 %v6088
        %9618 = vmatpush1.bf16.msra.mxu0 %v6087
        %9619 = vmatprep.subr.bf16.mxu0 %v5960
        %9620 = vmatpush1.bf16.msra.mxu0 %v5959
        %9621 = vmatprep.subr.bf16.mxu0 %v5832
        %9622 = vmatpush1.bf16.msra.mxu0 %v5831
        %9623 = vmatprep.subr.bf16.mxu0 %v5704
        %9624 = vmatpush1.bf16.msra.mxu0 %v5703
        %9625 = vmatprep.subr.bf16.mxu0 %v5576
        %9626 = vmatpush1.bf16.msra.mxu0 %v5575
        %9627 = vmatprep.subr.bf16.mxu0 %v5448
        %9628 = vmatpush1.bf16.msra.mxu0 %v5447
        %9629 = vmatprep.subr.bf16.mxu0 %v5320
        %9630 = vmatpush1.bf16.msra.mxu0 %v5319
        %9631 = vmatprep.subr.bf16.mxu0 %v5192
        %9632 = vmatpush1.bf16.msra.mxu0 %v5191
        %9633 = vmatprep.subr.bf16.mxu0 0
        %9634 = vmatpush2.bf16.msra.mxu0 0
        %9635 = vmatprep.subr.bf16.mxu0 0
        %9636 = vmatpush2.bf16.msra.mxu0 0
        %9637 = vmatprep.subr.bf16.mxu0 0
        %9638 = vmatpush2.bf16.msra.mxu0 0
        %9639 = vmatprep.subr.bf16.mxu0 0
        %9640 = vmatpush2.bf16.msra.mxu0 0
        %9641 = vmatprep.subr.bf16.mxu0 0
        %9642 = vmatpush2.bf16.msra.mxu0 0
        %9643 = vmatprep.subr.bf16.mxu0 0
        %9644 = vmatpush2.bf16.msra.mxu0 0
        %9645 = vmatprep.subr.bf16.mxu0 0
        %9646 = vmatpush2.bf16.msra.mxu0 0
        %9647 = vmatprep.subr.bf16.mxu0 0
        %9648 = vmatpush2.bf16.msra.mxu0 0
        %9649 = vmatprep.mubr.bf16.mxu0 0
        %9650 = vmatmul.mubr.bf16.gmra.mxu0 %v2001
        %v9651 = vpop.f32.mrf.mxu0
        %v9652 = vadd.f32 %v1824, %v9651
        %v9653 = vpop.f32.mrf.mxu0
        %v9654 = vadd.f32 %v1828, %v9653
        %v9655 = vpop.f32.mrf.mxu0
        %v9656 = vadd.f32 %v1824, %v9655
        %v9657 = vpop.f32.mrf.mxu0
        %v9658 = vadd.f32 %v1828, %v9657
        %9659 = vdwg.mxu0
        %9660 = vmatprep.subr.bf16.mxu0 %v6090
        %9661 = vmatpush1.bf16.msra.mxu0 %v6089
        %9662 = vmatprep.subr.bf16.mxu0 %v5962
        %9663 = vmatpush1.bf16.msra.mxu0 %v5961
        %9664 = vmatprep.subr.bf16.mxu0 %v5834
        %9665 = vmatpush1.bf16.msra.mxu0 %v5833
        %9666 = vmatprep.subr.bf16.mxu0 %v5706
        %9667 = vmatpush1.bf16.msra.mxu0 %v5705
        %9668 = vmatprep.subr.bf16.mxu0 %v5578
        %9669 = vmatpush1.bf16.msra.mxu0 %v5577
        %9670 = vmatprep.subr.bf16.mxu0 %v5450
        %9671 = vmatpush1.bf16.msra.mxu0 %v5449
        %9672 = vmatprep.subr.bf16.mxu0 %v5322
        %9673 = vmatpush1.bf16.msra.mxu0 %v5321
        %9674 = vmatprep.subr.bf16.mxu0 %v5194
        %9675 = vmatpush1.bf16.msra.mxu0 %v5193
        %9676 = vmatprep.subr.bf16.mxu0 0
        %9677 = vmatpush2.bf16.msra.mxu0 0
        %9678 = vmatprep.subr.bf16.mxu0 0
        %9679 = vmatpush2.bf16.msra.mxu0 0
        %9680 = vmatprep.subr.bf16.mxu0 0
        %9681 = vmatpush2.bf16.msra.mxu0 0
        %9682 = vmatprep.subr.bf16.mxu0 0
        %9683 = vmatpush2.bf16.msra.mxu0 0
        %9684 = vmatprep.subr.bf16.mxu0 0
        %9685 = vmatpush2.bf16.msra.mxu0 0
        %9686 = vmatprep.subr.bf16.mxu0 0
        %9687 = vmatpush2.bf16.msra.mxu0 0
        %9688 = vmatprep.subr.bf16.mxu0 0
        %9689 = vmatpush2.bf16.msra.mxu0 0
        %9690 = vmatprep.subr.bf16.mxu0 0
        %9691 = vmatpush2.bf16.msra.mxu0 0
        %9692 = vmatprep.mubr.bf16.mxu0 0
        %9693 = vmatmul.mubr.bf16.gmra.mxu0 %v2001
        %v9694 = vpop.f32.mrf.mxu0
        %v9695 = vadd.f32 %v1832, %v9694
        %v9696 = vpop.f32.mrf.mxu0
        %v9697 = vadd.f32 %v1836, %v9696
        %v9698 = vpop.f32.mrf.mxu0
        %v9699 = vadd.f32 %v1832, %v9698
        %v9700 = vpop.f32.mrf.mxu0
        %v9701 = vadd.f32 %v1836, %v9700
        %9702 = vdwg.mxu0
        %9703 = vmatprep.subr.bf16.mxu0 %v6092
        %9704 = vmatpush1.bf16.msra.mxu0 %v6091
        %9705 = vmatprep.subr.bf16.mxu0 %v5964
        %9706 = vmatpush1.bf16.msra.mxu0 %v5963
        %9707 = vmatprep.subr.bf16.mxu0 %v5836
        %9708 = vmatpush1.bf16.msra.mxu0 %v5835
        %9709 = vmatprep.subr.bf16.mxu0 %v5708
        %9710 = vmatpush1.bf16.msra.mxu0 %v5707
        %9711 = vmatprep.subr.bf16.mxu0 %v5580
        %9712 = vmatpush1.bf16.msra.mxu0 %v5579
        %9713 = vmatprep.subr.bf16.mxu0 %v5452
        %9714 = vmatpush1.bf16.msra.mxu0 %v5451
        %9715 = vmatprep.subr.bf16.mxu0 %v5324
        %9716 = vmatpush1.bf16.msra.mxu0 %v5323
        %9717 = vmatprep.subr.bf16.mxu0 %v5196
        %9718 = vmatpush1.bf16.msra.mxu0 %v5195
        %9719 = vmatprep.subr.bf16.mxu0 0
        %9720 = vmatpush2.bf16.msra.mxu0 0
        %9721 = vmatprep.subr.bf16.mxu0 0
        %9722 = vmatpush2.bf16.msra.mxu0 0
        %9723 = vmatprep.subr.bf16.mxu0 0
        %9724 = vmatpush2.bf16.msra.mxu0 0
        %9725 = vmatprep.subr.bf16.mxu0 0
        %9726 = vmatpush2.bf16.msra.mxu0 0
        %9727 = vmatprep.subr.bf16.mxu0 0
        %9728 = vmatpush2.bf16.msra.mxu0 0
        %9729 = vmatprep.subr.bf16.mxu0 0
        %9730 = vmatpush2.bf16.msra.mxu0 0
        %9731 = vmatprep.subr.bf16.mxu0 0
        %9732 = vmatpush2.bf16.msra.mxu0 0
        %9733 = vmatprep.subr.bf16.mxu0 0
        %9734 = vmatpush2.bf16.msra.mxu0 0
        %9735 = vmatprep.mubr.bf16.mxu0 0
        %9736 = vmatmul.mubr.bf16.gmra.mxu0 %v2001
        %v9737 = vpop.f32.mrf.mxu0
        %v9738 = vadd.f32 %v1840, %v9737
        %v9739 = vpop.f32.mrf.mxu0
        %v9740 = vadd.f32 %v1844, %v9739
        %v9741 = vpop.f32.mrf.mxu0
        %v9742 = vadd.f32 %v1840, %v9741
        %v9743 = vpop.f32.mrf.mxu0
        %v9744 = vadd.f32 %v1844, %v9743
        %9745 = vdwg.mxu0
        %9746 = vmatprep.subr.bf16.mxu0 %v6094
        %9747 = vmatpush1.bf16.msra.mxu0 %v6093
        %9748 = vmatprep.subr.bf16.mxu0 %v5966
        %9749 = vmatpush1.bf16.msra.mxu0 %v5965
        %9750 = vmatprep.subr.bf16.mxu0 %v5838
        %9751 = vmatpush1.bf16.msra.mxu0 %v5837
        %9752 = vmatprep.subr.bf16.mxu0 %v5710
        %9753 = vmatpush1.bf16.msra.mxu0 %v5709
        %9754 = vmatprep.subr.bf16.mxu0 %v5582
        %9755 = vmatpush1.bf16.msra.mxu0 %v5581
        %9756 = vmatprep.subr.bf16.mxu0 %v5454
        %9757 = vmatpush1.bf16.msra.mxu0 %v5453
        %9758 = vmatprep.subr.bf16.mxu0 %v5326
        %9759 = vmatpush1.bf16.msra.mxu0 %v5325
        %9760 = vmatprep.subr.bf16.mxu0 %v5198
        %9761 = vmatpush1.bf16.msra.mxu0 %v5197
        %9762 = vmatprep.subr.bf16.mxu0 0
        %9763 = vmatpush2.bf16.msra.mxu0 0
        %9764 = vmatprep.subr.bf16.mxu0 0
        %9765 = vmatpush2.bf16.msra.mxu0 0
        %9766 = vmatprep.subr.bf16.mxu0 0
        %9767 = vmatpush2.bf16.msra.mxu0 0
        %9768 = vmatprep.subr.bf16.mxu0 0
        %9769 = vmatpush2.bf16.msra.mxu0 0
        %9770 = vmatprep.subr.bf16.mxu0 0
        %9771 = vmatpush2.bf16.msra.mxu0 0
        %9772 = vmatprep.subr.bf16.mxu0 0
        %9773 = vmatpush2.bf16.msra.mxu0 0
        %9774 = vmatprep.subr.bf16.mxu0 0
        %9775 = vmatpush2.bf16.msra.mxu0 0
        %9776 = vmatprep.subr.bf16.mxu0 0
        %9777 = vmatpush2.bf16.msra.mxu0 0
        %9778 = vmatprep.mubr.bf16.mxu0 0
        %9779 = vmatmul.mubr.bf16.gmra.mxu0 %v2001
        %v9780 = vpop.f32.mrf.mxu0
        %v9781 = vadd.f32 %v1848, %v9780
        %v9782 = vpop.f32.mrf.mxu0
        %v9783 = vadd.f32 %v1852, %v9782
        %v9784 = vpop.f32.mrf.mxu0
        %v9785 = vadd.f32 %v1848, %v9784
        %v9786 = vpop.f32.mrf.mxu0
        %v9787 = vadd.f32 %v1852, %v9786
        %9788 = vdwg.mxu0
        %9789 = vmatprep.subr.bf16.mxu0 %v6096
        %9790 = vmatpush1.bf16.msra.mxu0 %v6095
        %9791 = vmatprep.subr.bf16.mxu0 %v5968
        %9792 = vmatpush1.bf16.msra.mxu0 %v5967
        %9793 = vmatprep.subr.bf16.mxu0 %v5840
        %9794 = vmatpush1.bf16.msra.mxu0 %v5839
        %9795 = vmatprep.subr.bf16.mxu0 %v5712
        %9796 = vmatpush1.bf16.msra.mxu0 %v5711
        %9797 = vmatprep.subr.bf16.mxu0 %v5584
        %9798 = vmatpush1.bf16.msra.mxu0 %v5583
        %9799 = vmatprep.subr.bf16.mxu0 %v5456
        %9800 = vmatpush1.bf16.msra.mxu0 %v5455
        %9801 = vmatprep.subr.bf16.mxu0 %v5328
        %9802 = vmatpush1.bf16.msra.mxu0 %v5327
        %9803 = vmatprep.subr.bf16.mxu0 %v5200
        %9804 = vmatpush1.bf16.msra.mxu0 %v5199
        %9805 = vmatprep.subr.bf16.mxu0 0
        %9806 = vmatpush2.bf16.msra.mxu0 0
        %9807 = vmatprep.subr.bf16.mxu0 0
        %9808 = vmatpush2.bf16.msra.mxu0 0
        %9809 = vmatprep.subr.bf16.mxu0 0
        %9810 = vmatpush2.bf16.msra.mxu0 0
        %9811 = vmatprep.subr.bf16.mxu0 0
        %9812 = vmatpush2.bf16.msra.mxu0 0
        %9813 = vmatprep.subr.bf16.mxu0 0
        %9814 = vmatpush2.bf16.msra.mxu0 0
        %9815 = vmatprep.subr.bf16.mxu0 0
        %9816 = vmatpush2.bf16.msra.mxu0 0
        %9817 = vmatprep.subr.bf16.mxu0 0
        %9818 = vmatpush2.bf16.msra.mxu0 0
        %9819 = vmatprep.subr.bf16.mxu0 0
        %9820 = vmatpush2.bf16.msra.mxu0 0
        %9821 = vmatprep.mubr.bf16.mxu0 0
        %9822 = vmatmul.mubr.bf16.gmra.mxu0 %v2001
        %v9823 = vpop.f32.mrf.mxu0
        %v9824 = vadd.f32 %v1856, %v9823
        %v9825 = vpop.f32.mrf.mxu0
        %v9826 = vadd.f32 %v1860, %v9825
        %v9827 = vpop.f32.mrf.mxu0
        %v9828 = vadd.f32 %v1856, %v9827
        %v9829 = vpop.f32.mrf.mxu0
        %v9830 = vadd.f32 %v1860, %v9829
        %9831 = vdwg.mxu0
        %9832 = vmatprep.subr.bf16.mxu0 %v6098
        %9833 = vmatpush1.bf16.msra.mxu0 %v6097
        %9834 = vmatprep.subr.bf16.mxu0 %v5970
        %9835 = vmatpush1.bf16.msra.mxu0 %v5969
        %9836 = vmatprep.subr.bf16.mxu0 %v5842
        %9837 = vmatpush1.bf16.msra.mxu0 %v5841
        %9838 = vmatprep.subr.bf16.mxu0 %v5714
        %9839 = vmatpush1.bf16.msra.mxu0 %v5713
        %9840 = vmatprep.subr.bf16.mxu0 %v5586
        %9841 = vmatpush1.bf16.msra.mxu0 %v5585
        %9842 = vmatprep.subr.bf16.mxu0 %v5458
        %9843 = vmatpush1.bf16.msra.mxu0 %v5457
        %9844 = vmatprep.subr.bf16.mxu0 %v5330
        %9845 = vmatpush1.bf16.msra.mxu0 %v5329
        %9846 = vmatprep.subr.bf16.mxu0 %v5202
        %9847 = vmatpush1.bf16.msra.mxu0 %v5201
        %9848 = vmatprep.subr.bf16.mxu0 0
        %9849 = vmatpush2.bf16.msra.mxu0 0
        %9850 = vmatprep.subr.bf16.mxu0 0
        %9851 = vmatpush2.bf16.msra.mxu0 0
        %9852 = vmatprep.subr.bf16.mxu0 0
        %9853 = vmatpush2.bf16.msra.mxu0 0
        %9854 = vmatprep.subr.bf16.mxu0 0
        %9855 = vmatpush2.bf16.msra.mxu0 0
        %9856 = vmatprep.subr.bf16.mxu0 0
        %9857 = vmatpush2.bf16.msra.mxu0 0
        %9858 = vmatprep.subr.bf16.mxu0 0
        %9859 = vmatpush2.bf16.msra.mxu0 0
        %9860 = vmatprep.subr.bf16.mxu0 0
        %9861 = vmatpush2.bf16.msra.mxu0 0
        %9862 = vmatprep.subr.bf16.mxu0 0
        %9863 = vmatpush2.bf16.msra.mxu0 0
        %9864 = vmatprep.mubr.bf16.mxu0 0
        %9865 = vmatmul.mubr.bf16.gmra.mxu0 %v2001
        %v9866 = vpop.f32.mrf.mxu0
        %v9867 = vadd.f32 %v1864, %v9866
        %v9868 = vpop.f32.mrf.mxu0
        %v9869 = vadd.f32 %v1868, %v9868
        %v9870 = vpop.f32.mrf.mxu0
        %v9871 = vadd.f32 %v1864, %v9870
        %v9872 = vpop.f32.mrf.mxu0
        %v9873 = vadd.f32 %v1868, %v9872
        %9874 = vdwg.mxu0
        %v9875 = vpack.c.bf16 %v7162, %v7158
        %v9876 = vpack.c.bf16 %v7164, %v7160
        %v9877 = vpack.c.bf16 %v7205, %v7201
        %v9878 = vpack.c.bf16 %v7207, %v7203
        %v9879 = vpack.c.bf16 %v7248, %v7244
        %v9880 = vpack.c.bf16 %v7250, %v7246
        %v9881 = vpack.c.bf16 %v7291, %v7287
        %v9882 = vpack.c.bf16 %v7293, %v7289
        %v9883 = vpack.c.bf16 %v7334, %v7330
        %v9884 = vpack.c.bf16 %v7336, %v7332
        %v9885 = vpack.c.bf16 %v7377, %v7373
        %v9886 = vpack.c.bf16 %v7379, %v7375
        %v9887 = vpack.c.bf16 %v7420, %v7416
        %v9888 = vpack.c.bf16 %v7422, %v7418
        %v9889 = vpack.c.bf16 %v7463, %v7459
        %v9890 = vpack.c.bf16 %v7465, %v7461
        %v9891 = vpack.c.bf16 %v7506, %v7502
        %v9892 = vpack.c.bf16 %v7508, %v7504
        %v9893 = vpack.c.bf16 %v7549, %v7545
        %v9894 = vpack.c.bf16 %v7551, %v7547
        %v9895 = vpack.c.bf16 %v7592, %v7588
        %v9896 = vpack.c.bf16 %v7594, %v7590
        %v9897 = vpack.c.bf16 %v7635, %v7631
        %v9898 = vpack.c.bf16 %v7637, %v7633
        %v9899 = vpack.c.bf16 %v7678, %v7674
        %v9900 = vpack.c.bf16 %v7680, %v7676
        %v9901 = vpack.c.bf16 %v7721, %v7717
        %v9902 = vpack.c.bf16 %v7723, %v7719
        %v9903 = vpack.c.bf16 %v7764, %v7760
        %v9904 = vpack.c.bf16 %v7766, %v7762
        %v9905 = vpack.c.bf16 %v7807, %v7803
        %v9906 = vpack.c.bf16 %v7809, %v7805
        %v9907 = vpack.c.bf16 %v7850, %v7846
        %v9908 = vpack.c.bf16 %v7852, %v7848
        %v9909 = vpack.c.bf16 %v7893, %v7889
        %v9910 = vpack.c.bf16 %v7895, %v7891
        %v9911 = vpack.c.bf16 %v7936, %v7932
        %v9912 = vpack.c.bf16 %v7938, %v7934
        %v9913 = vpack.c.bf16 %v7979, %v7975
        %v9914 = vpack.c.bf16 %v7981, %v7977
        %v9915 = vpack.c.bf16 %v8022, %v8018
        %v9916 = vpack.c.bf16 %v8024, %v8020
        %v9917 = vpack.c.bf16 %v8065, %v8061
        %v9918 = vpack.c.bf16 %v8067, %v8063
        %v9919 = vpack.c.bf16 %v8108, %v8104
        %v9920 = vpack.c.bf16 %v8110, %v8106
        %v9921 = vpack.c.bf16 %v8151, %v8147
        %v9922 = vpack.c.bf16 %v8153, %v8149
        %v9923 = vpack.c.bf16 %v8194, %v8190
        %v9924 = vpack.c.bf16 %v8196, %v8192
        %v9925 = vpack.c.bf16 %v8237, %v8233
        %v9926 = vpack.c.bf16 %v8239, %v8235
        %v9927 = vpack.c.bf16 %v8280, %v8276
        %v9928 = vpack.c.bf16 %v8282, %v8278
        %v9929 = vpack.c.bf16 %v8323, %v8319
        %v9930 = vpack.c.bf16 %v8325, %v8321
        %v9931 = vpack.c.bf16 %v8366, %v8362
        %v9932 = vpack.c.bf16 %v8368, %v8364
        %v9933 = vpack.c.bf16 %v8409, %v8405
        %v9934 = vpack.c.bf16 %v8411, %v8407
        %v9935 = vpack.c.bf16 %v8452, %v8448
        %v9936 = vpack.c.bf16 %v8454, %v8450
        %v9937 = vpack.c.bf16 %v8495, %v8491
        %v9938 = vpack.c.bf16 %v8497, %v8493
        %v9939 = vpack.c.bf16 %v8538, %v8534
        %v9940 = vpack.c.bf16 %v8540, %v8536
        %v9941 = vpack.c.bf16 %v8581, %v8577
        %v9942 = vpack.c.bf16 %v8583, %v8579
        %v9943 = vpack.c.bf16 %v8624, %v8620
        %v9944 = vpack.c.bf16 %v8626, %v8622
        %v9945 = vpack.c.bf16 %v8667, %v8663
        %v9946 = vpack.c.bf16 %v8669, %v8665
        %v9947 = vpack.c.bf16 %v8710, %v8706
        %v9948 = vpack.c.bf16 %v8712, %v8708
        %v9949 = vpack.c.bf16 %v8753, %v8749
        %v9950 = vpack.c.bf16 %v8755, %v8751
        %v9951 = vpack.c.bf16 %v8796, %v8792
        %v9952 = vpack.c.bf16 %v8798, %v8794
        %v9953 = vpack.c.bf16 %v8839, %v8835
        %v9954 = vpack.c.bf16 %v8841, %v8837
        %v9955 = vpack.c.bf16 %v8882, %v8878
        %v9956 = vpack.c.bf16 %v8884, %v8880
        %v9957 = vpack.c.bf16 %v8925, %v8921
        %v9958 = vpack.c.bf16 %v8927, %v8923
        %v9959 = vpack.c.bf16 %v8968, %v8964
        %v9960 = vpack.c.bf16 %v8970, %v8966
        %v9961 = vpack.c.bf16 %v9011, %v9007
        %v9962 = vpack.c.bf16 %v9013, %v9009
        %v9963 = vpack.c.bf16 %v9054, %v9050
        %v9964 = vpack.c.bf16 %v9056, %v9052
        %v9965 = vpack.c.bf16 %v9097, %v9093
        %v9966 = vpack.c.bf16 %v9099, %v9095
        %v9967 = vpack.c.bf16 %v9140, %v9136
        %v9968 = vpack.c.bf16 %v9142, %v9138
        %v9969 = vpack.c.bf16 %v9183, %v9179
        %v9970 = vpack.c.bf16 %v9185, %v9181
        %v9971 = vpack.c.bf16 %v9226, %v9222
        %v9972 = vpack.c.bf16 %v9228, %v9224
        %v9973 = vpack.c.bf16 %v9269, %v9265
        %v9974 = vpack.c.bf16 %v9271, %v9267
        %v9975 = vpack.c.bf16 %v9312, %v9308
        %v9976 = vpack.c.bf16 %v9314, %v9310
        %v9977 = vpack.c.bf16 %v9355, %v9351
        %v9978 = vpack.c.bf16 %v9357, %v9353
        %v9979 = vpack.c.bf16 %v9398, %v9394
        %v9980 = vpack.c.bf16 %v9400, %v9396
        %v9981 = vpack.c.bf16 %v9441, %v9437
        %v9982 = vpack.c.bf16 %v9443, %v9439
        %v9983 = vpack.c.bf16 %v9484, %v9480
        %v9984 = vpack.c.bf16 %v9486, %v9482
        %v9985 = vpack.c.bf16 %v9527, %v9523
        %v9986 = vpack.c.bf16 %v9529, %v9525
        %v9987 = vpack.c.bf16 %v9570, %v9566
        %v9988 = vpack.c.bf16 %v9572, %v9568
        %v9989 = vpack.c.bf16 %v9613, %v9609
        %v9990 = vpack.c.bf16 %v9615, %v9611
        %v9991 = vpack.c.bf16 %v9656, %v9652
        %v9992 = vpack.c.bf16 %v9658, %v9654
        %v9993 = vpack.c.bf16 %v9699, %v9695
        %v9994 = vpack.c.bf16 %v9701, %v9697
        %v9995 = vpack.c.bf16 %v9742, %v9738
        %v9996 = vpack.c.bf16 %v9744, %v9740
        %v9997 = vpack.c.bf16 %v9785, %v9781
        %v9998 = vpack.c.bf16 %v9787, %v9783
        %v9999 = vpack.c.bf16 %v9828, %v9824
        %v10000 = vpack.c.bf16 %v9830, %v9826
        %v10001 = vpack.c.bf16 %v9871, %v9867
        %v10002 = vpack.c.bf16 %v9873, %v9869
        %v10131 = vunpack.c.l.b16 %v9875
        %v10132 = vunpack.c.l.b16 %v9876
        %v10133 = vunpack.c.l.b16 %v9877
        %v10134 = vunpack.c.l.b16 %v9878
        %v10135 = vunpack.c.l.b16 %v9879
        %v10136 = vunpack.c.l.b16 %v9880
        %v10137 = vunpack.c.l.b16 %v9881
        %v10138 = vunpack.c.l.b16 %v9882
        %v10139 = vunpack.c.l.b16 %v9883
        %v10140 = vunpack.c.l.b16 %v9884
        %v10141 = vunpack.c.l.b16 %v9885
        %v10142 = vunpack.c.l.b16 %v9886
        %v10143 = vunpack.c.l.b16 %v9887
        %v10144 = vunpack.c.l.b16 %v9888
        %v10145 = vunpack.c.l.b16 %v9889
        %v10146 = vunpack.c.l.b16 %v9890
        %v10147 = vunpack.c.l.b16 %v9891
        %v10148 = vunpack.c.l.b16 %v9892
        %v10149 = vunpack.c.l.b16 %v9893
        %v10150 = vunpack.c.l.b16 %v9894
        %v10151 = vunpack.c.l.b16 %v9895
        %v10152 = vunpack.c.l.b16 %v9896
        %v10153 = vunpack.c.l.b16 %v9897
        %v10154 = vunpack.c.l.b16 %v9898
        %v10155 = vunpack.c.l.b16 %v9899
        %v10156 = vunpack.c.l.b16 %v9900
        %v10157 = vunpack.c.l.b16 %v9901
        %v10158 = vunpack.c.l.b16 %v9902
        %v10159 = vunpack.c.l.b16 %v9903
        %v10160 = vunpack.c.l.b16 %v9904
        %v10161 = vunpack.c.l.b16 %v9905
        %v10162 = vunpack.c.l.b16 %v9906
        %v10163 = vunpack.c.l.b16 %v9907
        %v10164 = vunpack.c.l.b16 %v9908
        %v10165 = vunpack.c.l.b16 %v9909
        %v10166 = vunpack.c.l.b16 %v9910
        %v10167 = vunpack.c.l.b16 %v9911
        %v10168 = vunpack.c.l.b16 %v9912
        %v10169 = vunpack.c.l.b16 %v9913
        %v10170 = vunpack.c.l.b16 %v9914
        %v10171 = vunpack.c.l.b16 %v9915
        %v10172 = vunpack.c.l.b16 %v9916
        %v10173 = vunpack.c.l.b16 %v9917
        %v10174 = vunpack.c.l.b16 %v9918
        %v10175 = vunpack.c.l.b16 %v9919
        %v10176 = vunpack.c.l.b16 %v9920
        %v10177 = vunpack.c.l.b16 %v9921
        %v10178 = vunpack.c.l.b16 %v9922
        %v10179 = vunpack.c.l.b16 %v9923
        %v10180 = vunpack.c.l.b16 %v9924
        %v10181 = vunpack.c.l.b16 %v9925
        %v10182 = vunpack.c.l.b16 %v9926
        %v10183 = vunpack.c.l.b16 %v9927
        %v10184 = vunpack.c.l.b16 %v9928
        %v10185 = vunpack.c.l.b16 %v9929
        %v10186 = vunpack.c.l.b16 %v9930
        %v10187 = vunpack.c.l.b16 %v9931
        %v10188 = vunpack.c.l.b16 %v9932
        %v10189 = vunpack.c.l.b16 %v9933
        %v10190 = vunpack.c.l.b16 %v9934
        %v10191 = vunpack.c.l.b16 %v9935
        %v10192 = vunpack.c.l.b16 %v9936
        %v10193 = vunpack.c.l.b16 %v9937
        %v10194 = vunpack.c.l.b16 %v9938
        %v10195 = vunpack.c.l.b16 %v9939
        %v10196 = vunpack.c.l.b16 %v9940
        %v10197 = vunpack.c.l.b16 %v9941
        %v10198 = vunpack.c.l.b16 %v9942
        %v10199 = vunpack.c.l.b16 %v9943
        %v10200 = vunpack.c.l.b16 %v9944
        %v10201 = vunpack.c.l.b16 %v9945
        %v10202 = vunpack.c.l.b16 %v9946
        %v10203 = vunpack.c.l.b16 %v9947
        %v10204 = vunpack.c.l.b16 %v9948
        %v10205 = vunpack.c.l.b16 %v9949
        %v10206 = vunpack.c.l.b16 %v9950
        %v10207 = vunpack.c.l.b16 %v9951
        %v10208 = vunpack.c.l.b16 %v9952
        %v10209 = vunpack.c.l.b16 %v9953
        %v10210 = vunpack.c.l.b16 %v9954
        %v10211 = vunpack.c.l.b16 %v9955
        %v10212 = vunpack.c.l.b16 %v9956
        %v10213 = vunpack.c.l.b16 %v9957
        %v10214 = vunpack.c.l.b16 %v9958
        %v10215 = vunpack.c.l.b16 %v9959
        %v10216 = vunpack.c.l.b16 %v9960
        %v10217 = vunpack.c.l.b16 %v9961
        %v10218 = vunpack.c.l.b16 %v9962
        %v10219 = vunpack.c.l.b16 %v9963
        %v10220 = vunpack.c.l.b16 %v9964
        %v10221 = vunpack.c.l.b16 %v9965
        %v10222 = vunpack.c.l.b16 %v9966
        %v10223 = vunpack.c.l.b16 %v9967
        %v10224 = vunpack.c.l.b16 %v9968
        %v10225 = vunpack.c.l.b16 %v9969
        %v10226 = vunpack.c.l.b16 %v9970
        %v10227 = vunpack.c.l.b16 %v9971
        %v10228 = vunpack.c.l.b16 %v9972
        %v10229 = vunpack.c.l.b16 %v9973
        %v10230 = vunpack.c.l.b16 %v9974
        %v10231 = vunpack.c.l.b16 %v9975
        %v10232 = vunpack.c.l.b16 %v9976
        %v10233 = vunpack.c.l.b16 %v9977
        %v10234 = vunpack.c.l.b16 %v9978
        %v10235 = vunpack.c.l.b16 %v9979
        %v10236 = vunpack.c.l.b16 %v9980
        %v10237 = vunpack.c.l.b16 %v9981
        %v10238 = vunpack.c.l.b16 %v9982
        %v10239 = vunpack.c.l.b16 %v9983
        %v10240 = vunpack.c.l.b16 %v9984
        %v10241 = vunpack.c.l.b16 %v9985
        %v10242 = vunpack.c.l.b16 %v9986
        %v10243 = vunpack.c.l.b16 %v9987
        %v10244 = vunpack.c.l.b16 %v9988
        %v10245 = vunpack.c.l.b16 %v9989
        %v10246 = vunpack.c.l.b16 %v9990
        %v10247 = vunpack.c.l.b16 %v9991
        %v10248 = vunpack.c.l.b16 %v9992
        %v10249 = vunpack.c.l.b16 %v9993
        %v10250 = vunpack.c.l.b16 %v9994
        %v10251 = vunpack.c.l.b16 %v9995
        %v10252 = vunpack.c.l.b16 %v9996
        %v10253 = vunpack.c.l.b16 %v9997
        %v10254 = vunpack.c.l.b16 %v9998
        %v10255 = vunpack.c.l.b16 %v9999
        %v10256 = vunpack.c.l.b16 %v10000
        %v10257 = vunpack.c.l.b16 %v10001
        %v10258 = vunpack.c.l.b16 %v10002
        %v10259 = vunpack.c.h.b16 %v9875
        %v10260 = vunpack.c.h.b16 %v9876
        %v10261 = vunpack.c.h.b16 %v9877
        %v10262 = vunpack.c.h.b16 %v9878
        %v10263 = vunpack.c.h.b16 %v9879
        %v10264 = vunpack.c.h.b16 %v9880
        %v10265 = vunpack.c.h.b16 %v9881
        %v10266 = vunpack.c.h.b16 %v9882
        %v10267 = vunpack.c.h.b16 %v9883
        %v10268 = vunpack.c.h.b16 %v9884
        %v10269 = vunpack.c.h.b16 %v9885
        %v10270 = vunpack.c.h.b16 %v9886
        %v10271 = vunpack.c.h.b16 %v9887
        %v10272 = vunpack.c.h.b16 %v9888
        %v10273 = vunpack.c.h.b16 %v9889
        %v10274 = vunpack.c.h.b16 %v9890
        %v10275 = vunpack.c.h.b16 %v9891
        %v10276 = vunpack.c.h.b16 %v9892
        %v10277 = vunpack.c.h.b16 %v9893
        %v10278 = vunpack.c.h.b16 %v9894
        %v10279 = vunpack.c.h.b16 %v9895
        %v10280 = vunpack.c.h.b16 %v9896
        %v10281 = vunpack.c.h.b16 %v9897
        %v10282 = vunpack.c.h.b16 %v9898
        %v10283 = vunpack.c.h.b16 %v9899
        %v10284 = vunpack.c.h.b16 %v9900
        %v10285 = vunpack.c.h.b16 %v9901
        %v10286 = vunpack.c.h.b16 %v9902
        %v10287 = vunpack.c.h.b16 %v9903
        %v10288 = vunpack.c.h.b16 %v9904
        %v10289 = vunpack.c.h.b16 %v9905
        %v10290 = vunpack.c.h.b16 %v9906
        %v10291 = vunpack.c.h.b16 %v9907
        %v10292 = vunpack.c.h.b16 %v9908
        %v10293 = vunpack.c.h.b16 %v9909
        %v10294 = vunpack.c.h.b16 %v9910
        %v10295 = vunpack.c.h.b16 %v9911
        %v10296 = vunpack.c.h.b16 %v9912
        %v10297 = vunpack.c.h.b16 %v9913
        %v10298 = vunpack.c.h.b16 %v9914
        %v10299 = vunpack.c.h.b16 %v9915
        %v10300 = vunpack.c.h.b16 %v9916
        %v10301 = vunpack.c.h.b16 %v9917
        %v10302 = vunpack.c.h.b16 %v9918
        %v10303 = vunpack.c.h.b16 %v9919
        %v10304 = vunpack.c.h.b16 %v9920
        %v10305 = vunpack.c.h.b16 %v9921
        %v10306 = vunpack.c.h.b16 %v9922
        %v10307 = vunpack.c.h.b16 %v9923
        %v10308 = vunpack.c.h.b16 %v9924
        %v10309 = vunpack.c.h.b16 %v9925
        %v10310 = vunpack.c.h.b16 %v9926
        %v10311 = vunpack.c.h.b16 %v9927
        %v10312 = vunpack.c.h.b16 %v9928
        %v10313 = vunpack.c.h.b16 %v9929
        %v10314 = vunpack.c.h.b16 %v9930
        %v10315 = vunpack.c.h.b16 %v9931
        %v10316 = vunpack.c.h.b16 %v9932
        %v10317 = vunpack.c.h.b16 %v9933
        %v10318 = vunpack.c.h.b16 %v9934
        %v10319 = vunpack.c.h.b16 %v9935
        %v10320 = vunpack.c.h.b16 %v9936
        %v10321 = vunpack.c.h.b16 %v9937
        %v10322 = vunpack.c.h.b16 %v9938
        %v10323 = vunpack.c.h.b16 %v9939
        %v10324 = vunpack.c.h.b16 %v9940
        %v10325 = vunpack.c.h.b16 %v9941
        %v10326 = vunpack.c.h.b16 %v9942
        %v10327 = vunpack.c.h.b16 %v9943
        %v10328 = vunpack.c.h.b16 %v9944
        %v10329 = vunpack.c.h.b16 %v9945
        %v10330 = vunpack.c.h.b16 %v9946
        %v10331 = vunpack.c.h.b16 %v9947
        %v10332 = vunpack.c.h.b16 %v9948
        %v10333 = vunpack.c.h.b16 %v9949
        %v10334 = vunpack.c.h.b16 %v9950
        %v10335 = vunpack.c.h.b16 %v9951
        %v10336 = vunpack.c.h.b16 %v9952
        %v10337 = vunpack.c.h.b16 %v9953
        %v10338 = vunpack.c.h.b16 %v9954
        %v10339 = vunpack.c.h.b16 %v9955
        %v10340 = vunpack.c.h.b16 %v9956
        %v10341 = vunpack.c.h.b16 %v9957
        %v10342 = vunpack.c.h.b16 %v9958
        %v10343 = vunpack.c.h.b16 %v9959
        %v10344 = vunpack.c.h.b16 %v9960
        %v10345 = vunpack.c.h.b16 %v9961
        %v10346 = vunpack.c.h.b16 %v9962
        %v10347 = vunpack.c.h.b16 %v9963
        %v10348 = vunpack.c.h.b16 %v9964
        %v10349 = vunpack.c.h.b16 %v9965
        %v10350 = vunpack.c.h.b16 %v9966
        %v10351 = vunpack.c.h.b16 %v9967
        %v10352 = vunpack.c.h.b16 %v9968
        %v10353 = vunpack.c.h.b16 %v9969
        %v10354 = vunpack.c.h.b16 %v9970
        %v10355 = vunpack.c.h.b16 %v9971
        %v10356 = vunpack.c.h.b16 %v9972
        %v10357 = vunpack.c.h.b16 %v9973
        %v10358 = vunpack.c.h.b16 %v9974
        %v10359 = vunpack.c.h.b16 %v9975
        %v10360 = vunpack.c.h.b16 %v9976
        %v10361 = vunpack.c.h.b16 %v9977
        %v10362 = vunpack.c.h.b16 %v9978
        %v10363 = vunpack.c.h.b16 %v9979
        %v10364 = vunpack.c.h.b16 %v9980
        %v10365 = vunpack.c.h.b16 %v9981
        %v10366 = vunpack.c.h.b16 %v9982
        %v10367 = vunpack.c.h.b16 %v9983
        %v10368 = vunpack.c.h.b16 %v9984
        %v10369 = vunpack.c.h.b16 %v9985
        %v10370 = vunpack.c.h.b16 %v9986
        %v10371 = vunpack.c.h.b16 %v9987
        %v10372 = vunpack.c.h.b16 %v9988
        %v10373 = vunpack.c.h.b16 %v9989
        %v10374 = vunpack.c.h.b16 %v9990
        %v10375 = vunpack.c.h.b16 %v9991
        %v10376 = vunpack.c.h.b16 %v9992
        %v10377 = vunpack.c.h.b16 %v9993
        %v10378 = vunpack.c.h.b16 %v9994
        %v10379 = vunpack.c.h.b16 %v9995
        %v10380 = vunpack.c.h.b16 %v9996
        %v10381 = vunpack.c.h.b16 %v9997
        %v10382 = vunpack.c.h.b16 %v9998
        %v10383 = vunpack.c.h.b16 %v9999
        %v10384 = vunpack.c.h.b16 %v10000
        %v10385 = vunpack.c.h.b16 %v10001
        %v10386 = vunpack.c.h.b16 %v10002
        %v10387 = vpack.c.b16 %v10132, %v10131
        %v10388 = vpack.c.b16 %v10134, %v10133
        %v10389 = vpack.c.b16 %v10136, %v10135
        %v10390 = vpack.c.b16 %v10138, %v10137
        %v10391 = vpack.c.b16 %v10140, %v10139
        %v10392 = vpack.c.b16 %v10142, %v10141
        %v10393 = vpack.c.b16 %v10144, %v10143
        %v10394 = vpack.c.b16 %v10146, %v10145
        %v10395 = vpack.c.b16 %v10148, %v10147
        %v10396 = vpack.c.b16 %v10150, %v10149
        %v10397 = vpack.c.b16 %v10152, %v10151
        %v10398 = vpack.c.b16 %v10154, %v10153
        %v10399 = vpack.c.b16 %v10156, %v10155
        %v10400 = vpack.c.b16 %v10158, %v10157
        %v10401 = vpack.c.b16 %v10160, %v10159
        %v10402 = vpack.c.b16 %v10162, %v10161
        %v10403 = vpack.c.b16 %v10164, %v10163
        %v10404 = vpack.c.b16 %v10166, %v10165
        %v10405 = vpack.c.b16 %v10168, %v10167
        %v10406 = vpack.c.b16 %v10170, %v10169
        %v10407 = vpack.c.b16 %v10172, %v10171
        %v10408 = vpack.c.b16 %v10174, %v10173
        %v10409 = vpack.c.b16 %v10176, %v10175
        %v10410 = vpack.c.b16 %v10178, %v10177
        %v10411 = vpack.c.b16 %v10180, %v10179
        %v10412 = vpack.c.b16 %v10182, %v10181
        %v10413 = vpack.c.b16 %v10184, %v10183
        %v10414 = vpack.c.b16 %v10186, %v10185
        %v10415 = vpack.c.b16 %v10188, %v10187
        %v10416 = vpack.c.b16 %v10190, %v10189
        %v10417 = vpack.c.b16 %v10192, %v10191
        %v10418 = vpack.c.b16 %v10194, %v10193
        %v10419 = vpack.c.b16 %v10196, %v10195
        %v10420 = vpack.c.b16 %v10198, %v10197
        %v10421 = vpack.c.b16 %v10200, %v10199
        %v10422 = vpack.c.b16 %v10202, %v10201
        %v10423 = vpack.c.b16 %v10204, %v10203
        %v10424 = vpack.c.b16 %v10206, %v10205
        %v10425 = vpack.c.b16 %v10208, %v10207
        %v10426 = vpack.c.b16 %v10210, %v10209
        %v10427 = vpack.c.b16 %v10212, %v10211
        %v10428 = vpack.c.b16 %v10214, %v10213
        %v10429 = vpack.c.b16 %v10216, %v10215
        %v10430 = vpack.c.b16 %v10218, %v10217
        %v10431 = vpack.c.b16 %v10220, %v10219
        %v10432 = vpack.c.b16 %v10222, %v10221
        %v10433 = vpack.c.b16 %v10224, %v10223
        %v10434 = vpack.c.b16 %v10226, %v10225
        %v10435 = vpack.c.b16 %v10228, %v10227
        %v10436 = vpack.c.b16 %v10230, %v10229
        %v10437 = vpack.c.b16 %v10232, %v10231
        %v10438 = vpack.c.b16 %v10234, %v10233
        %v10439 = vpack.c.b16 %v10236, %v10235
        %v10440 = vpack.c.b16 %v10238, %v10237
        %v10441 = vpack.c.b16 %v10240, %v10239
        %v10442 = vpack.c.b16 %v10242, %v10241
        %v10443 = vpack.c.b16 %v10244, %v10243
        %v10444 = vpack.c.b16 %v10246, %v10245
        %v10445 = vpack.c.b16 %v10248, %v10247
        %v10446 = vpack.c.b16 %v10250, %v10249
        %v10447 = vpack.c.b16 %v10252, %v10251
        %v10448 = vpack.c.b16 %v10254, %v10253
        %v10449 = vpack.c.b16 %v10256, %v10255
        %v10450 = vpack.c.b16 %v10258, %v10257
        %v10451 = vpack.c.b16 %v10260, %v10259
        %v10452 = vpack.c.b16 %v10262, %v10261
        %v10453 = vpack.c.b16 %v10264, %v10263
        %v10454 = vpack.c.b16 %v10266, %v10265
        %v10455 = vpack.c.b16 %v10268, %v10267
        %v10456 = vpack.c.b16 %v10270, %v10269
        %v10457 = vpack.c.b16 %v10272, %v10271
        %v10458 = vpack.c.b16 %v10274, %v10273
        %v10459 = vpack.c.b16 %v10276, %v10275
        %v10460 = vpack.c.b16 %v10278, %v10277
        %v10461 = vpack.c.b16 %v10280, %v10279
        %v10462 = vpack.c.b16 %v10282, %v10281
        %v10463 = vpack.c.b16 %v10284, %v10283
        %v10464 = vpack.c.b16 %v10286, %v10285
        %v10465 = vpack.c.b16 %v10288, %v10287
        %v10466 = vpack.c.b16 %v10290, %v10289
        %v10467 = vpack.c.b16 %v10292, %v10291
        %v10468 = vpack.c.b16 %v10294, %v10293
        %v10469 = vpack.c.b16 %v10296, %v10295
        %v10470 = vpack.c.b16 %v10298, %v10297
        %v10471 = vpack.c.b16 %v10300, %v10299
        %v10472 = vpack.c.b16 %v10302, %v10301
        %v10473 = vpack.c.b16 %v10304, %v10303
        %v10474 = vpack.c.b16 %v10306, %v10305
        %v10475 = vpack.c.b16 %v10308, %v10307
        %v10476 = vpack.c.b16 %v10310, %v10309
        %v10477 = vpack.c.b16 %v10312, %v10311
        %v10478 = vpack.c.b16 %v10314, %v10313
        %v10479 = vpack.c.b16 %v10316, %v10315
        %v10480 = vpack.c.b16 %v10318, %v10317
        %v10481 = vpack.c.b16 %v10320, %v10319
        %v10482 = vpack.c.b16 %v10322, %v10321
        %v10483 = vpack.c.b16 %v10324, %v10323
        %v10484 = vpack.c.b16 %v10326, %v10325
        %v10485 = vpack.c.b16 %v10328, %v10327
        %v10486 = vpack.c.b16 %v10330, %v10329
        %v10487 = vpack.c.b16 %v10332, %v10331
        %v10488 = vpack.c.b16 %v10334, %v10333
        %v10489 = vpack.c.b16 %v10336, %v10335
        %v10490 = vpack.c.b16 %v10338, %v10337
        %v10491 = vpack.c.b16 %v10340, %v10339
        %v10492 = vpack.c.b16 %v10342, %v10341
        %v10493 = vpack.c.b16 %v10344, %v10343
        %v10494 = vpack.c.b16 %v10346, %v10345
        %v10495 = vpack.c.b16 %v10348, %v10347
        %v10496 = vpack.c.b16 %v10350, %v10349
        %v10497 = vpack.c.b16 %v10352, %v10351
        %v10498 = vpack.c.b16 %v10354, %v10353
        %v10499 = vpack.c.b16 %v10356, %v10355
        %v10500 = vpack.c.b16 %v10358, %v10357
        %v10501 = vpack.c.b16 %v10360, %v10359
        %v10502 = vpack.c.b16 %v10362, %v10361
        %v10503 = vpack.c.b16 %v10364, %v10363
        %v10504 = vpack.c.b16 %v10366, %v10365
        %v10505 = vpack.c.b16 %v10368, %v10367
        %v10506 = vpack.c.b16 %v10370, %v10369
        %v10507 = vpack.c.b16 %v10372, %v10371
        %v10508 = vpack.c.b16 %v10374, %v10373
        %v10509 = vpack.c.b16 %v10376, %v10375
        %v10510 = vpack.c.b16 %v10378, %v10377
        %v10511 = vpack.c.b16 %v10380, %v10379
        %v10512 = vpack.c.b16 %v10382, %v10381
        %v10513 = vpack.c.b16 %v10384, %v10383
        %v10514 = vpack.c.b16 %v10386, %v10385
        %10643 = vst [vmem:[%s283] sm:$0xff] %v10387
        %10644 = vst [vmem:[%s283 + $0x8] sm:$0xff] %v10388
        %10645 = vst [vmem:[%s283 + $0x10] sm:$0xff] %v10389
        %10646 = vst [vmem:[%s283 + $0x18] sm:$0xff] %v10390
        %10647 = vst [vmem:[%s283 + $0x20] sm:$0xff] %v10391
        %10648 = vst [vmem:[%s283 + $0x28] sm:$0xff] %v10392
        %10649 = vst [vmem:[%s283 + $0x30] sm:$0xff] %v10393
        %10650 = vst [vmem:[%s283 + $0x38] sm:$0xff] %v10394
        %10651 = vst [vmem:[%s283 + $0x40] sm:$0xff] %v10395
        %10652 = vst [vmem:[%s283 + $0x48] sm:$0xff] %v10396
        %10653 = vst [vmem:[%s283 + $0x50] sm:$0xff] %v10397
        %10654 = vst [vmem:[%s283 + $0x58] sm:$0xff] %v10398
        %10655 = vst [vmem:[%s283 + $0x60] sm:$0xff] %v10399
        %10656 = vst [vmem:[%s283 + $0x68] sm:$0xff] %v10400
        %10657 = vst [vmem:[%s283 + $0x70] sm:$0xff] %v10401
        %10658 = vst [vmem:[%s283 + $0x78] sm:$0xff] %v10402
        %10659 = vst [vmem:[%s283 + $0x80] sm:$0xff] %v10403
        %10660 = vst [vmem:[%s283 + $0x88] sm:$0xff] %v10404
        %10661 = vst [vmem:[%s283 + $0x90] sm:$0xff] %v10405
        %10662 = vst [vmem:[%s283 + $0x98] sm:$0xff] %v10406
        %10663 = vst [vmem:[%s283 + $0xa0] sm:$0xff] %v10407
        %10664 = vst [vmem:[%s283 + $0xa8] sm:$0xff] %v10408
        %10665 = vst [vmem:[%s283 + $0xb0] sm:$0xff] %v10409
        %10666 = vst [vmem:[%s283 + $0xb8] sm:$0xff] %v10410
        %10667 = vst [vmem:[%s283 + $0xc0] sm:$0xff] %v10411
        %10668 = vst [vmem:[%s283 + $0xc8] sm:$0xff] %v10412
        %10669 = vst [vmem:[%s283 + $0xd0] sm:$0xff] %v10413
        %10670 = vst [vmem:[%s283 + $0xd8] sm:$0xff] %v10414
        %10671 = vst [vmem:[%s283 + $0xe0] sm:$0xff] %v10415
        %10672 = vst [vmem:[%s283 + $0xe8] sm:$0xff] %v10416
        %10673 = vst [vmem:[%s283 + $0xf0] sm:$0xff] %v10417
        %10674 = vst [vmem:[%s283 + $0xf8] sm:$0xff] %v10418
        %10675 = vst [vmem:[%s283 + $0x100] sm:$0xff] %v10419
        %10676 = vst [vmem:[%s283 + $0x108] sm:$0xff] %v10420
        %10677 = vst [vmem:[%s283 + $0x110] sm:$0xff] %v10421
        %10678 = vst [vmem:[%s283 + $0x118] sm:$0xff] %v10422
        %10679 = vst [vmem:[%s283 + $0x120] sm:$0xff] %v10423
        %10680 = vst [vmem:[%s283 + $0x128] sm:$0xff] %v10424
        %10681 = vst [vmem:[%s283 + $0x130] sm:$0xff] %v10425
        %10682 = vst [vmem:[%s283 + $0x138] sm:$0xff] %v10426
        %10683 = vst [vmem:[%s283 + $0x140] sm:$0xff] %v10427
        %10684 = vst [vmem:[%s283 + $0x148] sm:$0xff] %v10428
        %10685 = vst [vmem:[%s283 + $0x150] sm:$0xff] %v10429
        %10686 = vst [vmem:[%s283 + $0x158] sm:$0xff] %v10430
        %10687 = vst [vmem:[%s283 + $0x160] sm:$0xff] %v10431
        %10688 = vst [vmem:[%s283 + $0x168] sm:$0xff] %v10432
        %10689 = vst [vmem:[%s283 + $0x170] sm:$0xff] %v10433
        %10690 = vst [vmem:[%s283 + $0x178] sm:$0xff] %v10434
        %10691 = vst [vmem:[%s283 + $0x180] sm:$0xff] %v10435
        %10692 = vst [vmem:[%s283 + $0x188] sm:$0xff] %v10436
        %10693 = vst [vmem:[%s283 + $0x190] sm:$0xff] %v10437
        %10694 = vst [vmem:[%s283 + $0x198] sm:$0xff] %v10438
        %10695 = vst [vmem:[%s283 + $0x1a0] sm:$0xff] %v10439
        %10696 = vst [vmem:[%s283 + $0x1a8] sm:$0xff] %v10440
        %10697 = vst [vmem:[%s283 + $0x1b0] sm:$0xff] %v10441
        %10698 = vst [vmem:[%s283 + $0x1b8] sm:$0xff] %v10442
        %10699 = vst [vmem:[%s283 + $0x1c0] sm:$0xff] %v10443
        %10700 = vst [vmem:[%s283 + $0x1c8] sm:$0xff] %v10444
        %10701 = vst [vmem:[%s283 + $0x1d0] sm:$0xff] %v10445
        %10702 = vst [vmem:[%s283 + $0x1d8] sm:$0xff] %v10446
        %10703 = vst [vmem:[%s283 + $0x1e0] sm:$0xff] %v10447
        %10704 = vst [vmem:[%s283 + $0x1e8] sm:$0xff] %v10448
        %10705 = vst [vmem:[%s283 + $0x1f0] sm:$0xff] %v10449
        %10706 = vst [vmem:[%s283 + $0x1f8] sm:$0xff] %v10450
        %10707 = vst [vmem:[%s283 + $0x200] sm:$0xff] %v10451
        %10708 = vst [vmem:[%s283 + $0x208] sm:$0xff] %v10452
        %10709 = vst [vmem:[%s283 + $0x210] sm:$0xff] %v10453
        %10710 = vst [vmem:[%s283 + $0x218] sm:$0xff] %v10454
        %10711 = vst [vmem:[%s283 + $0x220] sm:$0xff] %v10455
        %10712 = vst [vmem:[%s283 + $0x228] sm:$0xff] %v10456
        %10713 = vst [vmem:[%s283 + $0x230] sm:$0xff] %v10457
        %10714 = vst [vmem:[%s283 + $0x238] sm:$0xff] %v10458
        %10715 = vst [vmem:[%s283 + $0x240] sm:$0xff] %v10459
        %10716 = vst [vmem:[%s283 + $0x248] sm:$0xff] %v10460
        %10717 = vst [vmem:[%s283 + $0x250] sm:$0xff] %v10461
        %10718 = vst [vmem:[%s283 + $0x258] sm:$0xff] %v10462
        %10719 = vst [vmem:[%s283 + $0x260] sm:$0xff] %v10463
        %10720 = vst [vmem:[%s283 + $0x268] sm:$0xff] %v10464
        %10721 = vst [vmem:[%s283 + $0x270] sm:$0xff] %v10465
        %10722 = vst [vmem:[%s283 + $0x278] sm:$0xff] %v10466
        %10723 = vst [vmem:[%s283 + $0x280] sm:$0xff] %v10467
        %10724 = vst [vmem:[%s283 + $0x288] sm:$0xff] %v10468
        %10725 = vst [vmem:[%s283 + $0x290] sm:$0xff] %v10469
        %10726 = vst [vmem:[%s283 + $0x298] sm:$0xff] %v10470
        %10727 = vst [vmem:[%s283 + $0x2a0] sm:$0xff] %v10471
        %10728 = vst [vmem:[%s283 + $0x2a8] sm:$0xff] %v10472
        %10729 = vst [vmem:[%s283 + $0x2b0] sm:$0xff] %v10473
        %10730 = vst [vmem:[%s283 + $0x2b8] sm:$0xff] %v10474
        %10731 = vst [vmem:[%s283 + $0x2c0] sm:$0xff] %v10475
        %10732 = vst [vmem:[%s283 + $0x2c8] sm:$0xff] %v10476
        %10733 = vst [vmem:[%s283 + $0x2d0] sm:$0xff] %v10477
        %10734 = vst [vmem:[%s283 + $0x2d8] sm:$0xff] %v10478
        %10735 = vst [vmem:[%s283 + $0x2e0] sm:$0xff] %v10479
        %10736 = vst [vmem:[%s283 + $0x2e8] sm:$0xff] %v10480
        %10737 = vst [vmem:[%s283 + $0x2f0] sm:$0xff] %v10481
        %10738 = vst [vmem:[%s283 + $0x2f8] sm:$0xff] %v10482
        %10739 = vst [vmem:[%s283 + $0x300] sm:$0xff] %v10483
        %10740 = vst [vmem:[%s283 + $0x308] sm:$0xff] %v10484
        %10741 = vst [vmem:[%s283 + $0x310] sm:$0xff] %v10485
        %10742 = vst [vmem:[%s283 + $0x318] sm:$0xff] %v10486
        %10743 = vst [vmem:[%s283 + $0x320] sm:$0xff] %v10487
        %10744 = vst [vmem:[%s283 + $0x328] sm:$0xff] %v10488
        %10745 = vst [vmem:[%s283 + $0x330] sm:$0xff] %v10489
        %10746 = vst [vmem:[%s283 + $0x338] sm:$0xff] %v10490
        %10747 = vst [vmem:[%s283 + $0x340] sm:$0xff] %v10491
        %10748 = vst [vmem:[%s283 + $0x348] sm:$0xff] %v10492
        %10749 = vst [vmem:[%s283 + $0x350] sm:$0xff] %v10493
        %10750 = vst [vmem:[%s283 + $0x358] sm:$0xff] %v10494
        %10751 = vst [vmem:[%s283 + $0x360] sm:$0xff] %v10495
        %10752 = vst [vmem:[%s283 + $0x368] sm:$0xff] %v10496
        %10753 = vst [vmem:[%s283 + $0x370] sm:$0xff] %v10497
        %10754 = vst [vmem:[%s283 + $0x378] sm:$0xff] %v10498
        %10755 = vst [vmem:[%s283 + $0x380] sm:$0xff] %v10499
        %10756 = vst [vmem:[%s283 + $0x388] sm:$0xff] %v10500
        %10757 = vst [vmem:[%s283 + $0x390] sm:$0xff] %v10501
        %10758 = vst [vmem:[%s283 + $0x398] sm:$0xff] %v10502
        %10759 = vst [vmem:[%s283 + $0x3a0] sm:$0xff] %v10503
        %10760 = vst [vmem:[%s283 + $0x3a8] sm:$0xff] %v10504
        %10761 = vst [vmem:[%s283 + $0x3b0] sm:$0xff] %v10505
        %10762 = vst [vmem:[%s283 + $0x3b8] sm:$0xff] %v10506
        %10763 = vst [vmem:[%s283 + $0x3c0] sm:$0xff] %v10507
        %10764 = vst [vmem:[%s283 + $0x3c8] sm:$0xff] %v10508
        %10765 = vst [vmem:[%s283 + $0x3d0] sm:$0xff] %v10509
        %10766 = vst [vmem:[%s283 + $0x3d8] sm:$0xff] %v10510
        %10767 = vst [vmem:[%s283 + $0x3e0] sm:$0xff] %v10511
        %10768 = vst [vmem:[%s283 + $0x3e8] sm:$0xff] %v10512
        %10769 = vst [vmem:[%s283 + $0x3f0] sm:$0xff] %v10513
        %10770 = vst [vmem:[%s283 + $0x3f8] sm:$0xff] %v10514
        %s10771 = sand.u32 %s138, 1
        %s10772 = scalar_lea.sflag [#allocation4], %s10771
        %s10773 = sand.u32 %s138, 1
        %s10774 = smul.addr %s10773, 1024
        %s10775 = scalar_lea.vmem [#allocation7], %s10774
        // Predicated region
        $region41: #{grouped_matmul.1} parent=31 // pred_check
          %p10776 = pneg %p148
        $region42: #{grouped_matmul.1} parent=31 // pred_check_branch
          %10778 = sbr.rel (%p10776) target = $region44
        $region43: #{grouped_matmul.1} parent=31 // pred_region
          %s10779 = smul.u32 2, %s29
          %s10780 = smul.u32 128, %s30
          %s10782 = ssub.s32 16384, 16384
          %10783 = vsyncadd %s10772, %s10782
          %s10784 = smul.addr %s10779, 14592
          %s10785 = sadd.s32 %s10780, %s10784
          %s10786 = smul.addr %s28, 29184
          %s10787 = sadd.s32 %s10785, %s10786
          %s10788 = smul.addr %s10787, 64
          %s10789 = scalar_lea.hbm %s3, %s10788
          %s10790 = sshll.u32 %s10775, 4
          %s10791 = int_to_ptr.vmem [resolvable:$true] %s10790
          %10796 = dma.vmem_to_hbm [thread:$0]  %s10791, 16384, %s10789, %s10772, 8192, 933888, 512
        $region44: #{grouped_matmul.1} parent=31 // pred_fallthru
          _
      $region32: #{grouped_matmul.1} parent=5 // pred_fallthru
        _
      %p10797 = scmp.le.s32.totalorder 2, %s18
      // Predicated region
      $region45: #{grouped_matmul.1} parent=5 // pred_check
        %p10798 = pneg %p10797
      $region46: #{grouped_matmul.1} parent=5 // pred_check_branch
        %10800 = sbr.rel (%p10798) target = $region48
      $region47: #{grouped_matmul.1} parent=5 // pred_region
        %s10801 = ssub.s32 %s18, 2
        // Predicated region
        $region49: #{grouped_matmul.1} parent=47 // pred_check
          %p10802 = pneg %p154
        $region50: #{grouped_matmul.1} parent=47 // pred_check_branch
          %10804 = sbr.rel (%p10802) target = $region52
        $region51: #{grouped_matmul.1} parent=47 // pred_region
          %s10805 = sand.u32 %s139, 1
          %s10806 = scalar_lea.sflag [#allocation4], %s10805
          %s10807 = sand.u32 %s139, 1
          %s10808 = smul.addr %s10807, 1024
          %s10809 = scalar_lea.vmem [#allocation7], %s10808
          %10810 = dma.done %s10806, 16384
        $region52: #{grouped_matmul.1} parent=47 // pred_fallthru
          _
      $region48: #{grouped_matmul.1} parent=5 // pred_fallthru
        _
    $region6: #{grouped_matmul.1} parent=1 // loop_footer
      %s22 = sadd.s32 1, %s18
    $region7: #{grouped_matmul.1} parent=1 // loop_footer_branch
      %17 = sbr.rel target = $region3
    $region8: #{grouped_matmul.1} parent=1 // loop_exit
      _
    %10811 = vsyncpa [#allocation3], 1
    %s10812 = scalar_lea.sflag [#allocation3], 1
    %10813 = vsyncpa %s10812, 1
    %10814 = vsyncpa [#allocation6], 1
    %s10815 = scalar_lea.sflag [#allocation6], 1
    %10816 = vsyncpa %s10815, 1
    %10817 = vsyncpa [#allocation4], 1
    %s10818 = scalar_lea.sflag [#allocation4], 1
    %10819 = vsyncpa %s10818, 1

</llo_original>
